<compile_context>
chip_gen: v7x
topology: tpu7x:2x2x1
jax: 0.10.0
libtpu: 0.0.40
codegen_flags: <defaults>
</compile_context>

<pallas_src>
import functools

import jax
import jax.numpy as jnp
from jax.experimental import pallas as pl
from jax.experimental.pallas import tpu as pltpu

BN_EPS = 1e-5
_VMEM_LIMIT = 48 * 1024 * 1024          # explicit scoped-VMEM budget (fits v7x 64 MiB)
_ROW_TILE_TARGET = 1024                 # target rows per matmul tile

# (in_channels, out_channels, depthwise stride) for the 5 dw-separable blocks.
BLOCK_CFGS = ((32, 64, 1), (64, 128, 2), (128, 256, 2), (256, 512, 2), (512, 1024, 2))


def _compiler_params():
    # The single grid axis carries a cross-tile stats accumulator -> "arbitrary".
    return pltpu.CompilerParams(dimension_semantics=("arbitrary",),
                                vmem_limit_bytes=_VMEM_LIMIT)


def _row_tile(m, target=_ROW_TILE_TARGET):
    """Largest multiple-of-8 divisor of m that is <= target (else m itself)."""
    if m <= target:
        return m
    t = target - target % 8
    while t >= 8:
        if m % t == 0:
            return t
        t -= 8
    return m


def _out_hw(h, w, stride):
    return (h - 1) // stride + 1, (w - 1) // stride + 1     # k=3, pad=1


# ----------------------------------------------------------------------------
# Pallas kernels
# ----------------------------------------------------------------------------
def matmul_stats_kernel(x_ref, w_ref, y_ref, sum_ref, sq_ref):
    """y = x @ w (bf16 MXU, f32 acc); accumulate per-channel sum / sum-of-squares."""
    @pl.when(pl.program_id(0) == 0)
    def _init():
        sum_ref[...] = jnp.zeros_like(sum_ref)
        sq_ref[...] = jnp.zeros_like(sq_ref)

    y = jnp.dot(x_ref[...], w_ref[...], preferred_element_type=jnp.float32)
    y_ref[...] = y
    sum_ref[...] += jnp.sum(y, axis=0, keepdims=True)
    sq_ref[...] += jnp.sum(y * y, axis=0, keepdims=True)


def bnrelu_matmul_stats_kernel(scale_ref, shift_ref, x_ref, w_ref,
                               y_ref, sum_ref, sq_ref):
    """Apply previous layer's BN+ReLU (f32 FMA), then bf16 MXU matmul + stats."""
    @pl.when(pl.program_id(0) == 0)
    def _init():
        sum_ref[...] = jnp.zeros_like(sum_ref)
        sq_ref[...] = jnp.zeros_like(sq_ref)

    xn = jnp.maximum(x_ref[...] * scale_ref[...] + shift_ref[...], 0.0)
    y = jnp.dot(xn.astype(jnp.bfloat16), w_ref[...],
                preferred_element_type=jnp.float32)
    y_ref[...] = y
    sum_ref[...] += jnp.sum(y, axis=0, keepdims=True)
    sq_ref[...] += jnp.sum(y * y, axis=0, keepdims=True)


def bnrelu_dwconv_stats_kernel(scale_ref, shift_ref, x_ref, w_ref,
                               y_ref, sum_ref, sq_ref,
                               *, stride, hi, wi, ho, wo):
    """Depthwise 3x3 (pad=1, stride s) conv of relu(x*scale+shift), one image.

    x_ref: (1, s*s, Hq, Wq, C) raw previous activation as stride-parity planes
           (padded coordinate (p,q) lives in plane (p%s)*s + q%s at (p//s, q//s)).
    Taps are static unstrided slices of the planes; the conv's zero padding of
    the *normalized* activation is emulated by an iota border mask.
    Outputs raw dw conv (1, ho, wo, C) plus per-channel sum / sumsq accumulated
    across the image grid axis.
    """
    @pl.when(pl.program_id(0) == 0)
    def _init():
        sum_ref[...] = jnp.zeros_like(sum_ref)
        sq_ref[...] = jnp.zeros_like(sq_ref)

    s = stride
    _, ss, hq, wq, c = x_ref.shape
    scale = scale_ref[...]                      # (1, C) -> broadcasts over (h, w, C)
    shift = shift_ref[...]

    # Normalize (previous layer's BN+ReLU) each parity plane once; zero out the
    # positions that correspond to the conv's zero padding.
    planes = []
    for p in range(ss):
        alpha, beta = p // s, p % s
        prow = s * jax.lax.broadcasted_iota(jnp.int32, (hq, wq, 1), 0) + alpha
        pcol = s * jax.lax.broadcasted_iota(jnp.int32, (hq, wq, 1), 1) + beta
        valid = ((prow >= 1) & (prow <= hi) & (pcol >= 1) & (pcol <= wi))
        xn = jnp.maximum(x_ref[0, p] * scale + shift, 0.0)
        planes.append(xn * valid.astype(jnp.float32))

    acc = jnp.zeros((ho, wo, c), jnp.float32)
    for di in range(3):
        for dj in range(3):
            p = (di % s) * s + (dj % s)
            a, b = di // s, dj // s
            tap = planes[p][a:a + ho, b:b + wo, :]
            acc = acc + tap * w_ref[di, dj]     # w_ref[di, dj]: (1, C)
    y_ref[0] = acc

    sum_ref[...] += jnp.sum(jnp.sum(acc, axis=0, keepdims=True),
                            axis=1, keepdims=True)[0]
    sq_ref[...] += jnp.sum(jnp.sum(acc * acc, axis=0, keepdims=True),
                           axis=1, keepdims=True)[0]


def bnrelu_pool_linear_kernel(scale_ref, shift_ref, x_ref, w_ref, b_ref, o_ref):
    """Final BN+ReLU + global average pool + Linear classifier."""
    xn = jnp.maximum(x_ref[...] * scale_ref[...] + shift_ref[...], 0.0)  # (N, HW, C)
    pooled = jnp.mean(xn, axis=1)                                        # (N, C)
    o_ref[...] = jnp.dot(pooled.astype(jnp.bfloat16), w_ref[...],
                         preferred_element_type=jnp.float32) + b_ref[...]


# ----------------------------------------------------------------------------
# pallas_call wrappers
# ----------------------------------------------------------------------------
def pallas_matmul_stats(x, w):
    m, k = x.shape
    cout = w.shape[1]
    tm = _row_tile(m)
    return pl.pallas_call(
        matmul_stats_kernel,
        grid=(m // tm,),
        in_specs=[pl.BlockSpec((tm, k), lambda i: (i, 0)),
                  pl.BlockSpec((k, cout), lambda i: (0, 0))],
        out_specs=[pl.BlockSpec((tm, cout), lambda i: (i, 0)),
                   pl.BlockSpec((1, cout), lambda i: (0, 0)),
                   pl.BlockSpec((1, cout), lambda i: (0, 0))],
        out_shape=[jax.ShapeDtypeStruct((m, cout), jnp.float32),
                   jax.ShapeDtypeStruct((1, cout), jnp.float32),
                   jax.ShapeDtypeStruct((1, cout), jnp.float32)],
        compiler_params=_compiler_params(),
    )(x, w)


def pallas_bnrelu_matmul_stats(x_raw, scale, shift, w):
    m, cin = x_raw.shape
    cout = w.shape[1]
    tm = _row_tile(m)
    return pl.pallas_call(
        bnrelu_matmul_stats_kernel,
        grid=(m // tm,),
        in_specs=[pl.BlockSpec((1, cin), lambda i: (0, 0)),
                  pl.BlockSpec((1, cin), lambda i: (0, 0)),
                  pl.BlockSpec((tm, cin), lambda i: (i, 0)),
                  pl.BlockSpec((cin, cout), lambda i: (0, 0))],
        out_specs=[pl.BlockSpec((tm, cout), lambda i: (i, 0)),
                   pl.BlockSpec((1, cout), lambda i: (0, 0)),
                   pl.BlockSpec((1, cout), lambda i: (0, 0))],
        out_shape=[jax.ShapeDtypeStruct((m, cout), jnp.float32),
                   jax.ShapeDtypeStruct((1, cout), jnp.float32),
                   jax.ShapeDtypeStruct((1, cout), jnp.float32)],
        compiler_params=_compiler_params(),
    )(scale, shift, x_raw, w)


def pallas_bnrelu_dwconv_stats(planes, scale, shift, w, *, stride, hi, wi, ho, wo):
    n, ss, hq, wq, c = planes.shape
    kernel = functools.partial(bnrelu_dwconv_stats_kernel,
                               stride=stride, hi=hi, wi=wi, ho=ho, wo=wo)
    return pl.pallas_call(
        kernel,
        grid=(n,),
        in_specs=[pl.BlockSpec((1, c), lambda i: (0, 0)),
                  pl.BlockSpec((1, c), lambda i: (0, 0)),
                  pl.BlockSpec((1, ss, hq, wq, c), lambda i: (i, 0, 0, 0, 0)),
                  pl.BlockSpec((3, 3, 1, c), lambda i: (0, 0, 0, 0))],
        out_specs=[pl.BlockSpec((1, ho, wo, c), lambda i: (i, 0, 0, 0)),
                   pl.BlockSpec((1, c), lambda i: (0, 0)),
                   pl.BlockSpec((1, c), lambda i: (0, 0))],
        out_shape=[jax.ShapeDtypeStruct((n, ho, wo, c), jnp.float32),
                   jax.ShapeDtypeStruct((1, c), jnp.float32),
                   jax.ShapeDtypeStruct((1, c), jnp.float32)],
        compiler_params=_compiler_params(),
    )(scale, shift, planes, w)


def pallas_bnrelu_pool_linear(x_raw, scale, shift, w, b):
    n, hw, c = x_raw.shape
    ncls = w.shape[1]
    return pl.pallas_call(
        bnrelu_pool_linear_kernel,
        grid=(1,),
        in_specs=[pl.BlockSpec((1, c), lambda i: (0, 0)),
                  pl.BlockSpec((1, c), lambda i: (0, 0)),
                  pl.BlockSpec((n, hw, c), lambda i: (0, 0, 0)),
                  pl.BlockSpec((c, ncls), lambda i: (0, 0)),
                  pl.BlockSpec((1, ncls), lambda i: (0, 0))],
        out_specs=pl.BlockSpec((n, ncls), lambda i: (0, 0)),
        out_shape=jax.ShapeDtypeStruct((n, ncls), jnp.float32),
        compiler_params=_compiler_params(),
    )(scale, shift, x_raw, w, b)


# ----------------------------------------------------------------------------
# JAX glue: im2col (stem only), parity-plane layout, BN scale/shift folding
# ----------------------------------------------------------------------------
def im2col_3x3(x, stride, k_pad):
    """(N,H,W,Cin) -> (N*Ho*Wo, k_pad) patch matrix, tap ordering (kh, kw, cin)."""
    n, h, w, c = x.shape
    ho, wo = _out_hw(h, w, stride)
    xp = jnp.pad(x, ((0, 0), (1, 1), (1, 1), (0, 0)))
    cols = []
    for di in range(3):
        for dj in range(3):
            t = jax.lax.slice(
                xp, (0, di, dj, 0),
                (n, di + (ho - 1) * stride + 1, dj + (wo - 1) * stride + 1, c),
                (1, stride, stride, 1))
            cols.append(t.reshape(n * ho * wo, c))
    patches = jnp.concatenate(cols, axis=-1)
    if k_pad > 9 * c:
        patches = jnp.pad(patches, ((0, 0), (0, k_pad - 9 * c)))
    return patches, (n, ho, wo)


def make_parity_planes(x_raw, stride):
    """(N,H,W,C) raw activation -> (N, s*s, Hq, Wq, C) padded stride-parity planes."""
    n, h, w, c = x_raw.shape
    s = stride
    hq = -(-(h + 2) // s)
    wq = -(-(w + 2) // s)
    xp = jnp.pad(x_raw, ((0, 0), (1, hq * s - h - 1), (1, wq * s - w - 1), (0, 0)))
    planes = xp.reshape(n, hq, s, wq, s, c).transpose(0, 2, 4, 1, 3, 5)
    return planes.reshape(n, s * s, hq, wq, c)


def _bn_scale_shift(t_sum, t_sq, count, gamma, beta):
    """Fold training-mode BatchNorm (biased var, eps=1e-5) into y*scale+shift."""
    mean = t_sum / count
    var = jnp.maximum(t_sq / count - mean * mean, 0.0)
    scale = gamma * jax.lax.rsqrt(var + BN_EPS)
    shift = beta - mean * scale
    return scale, shift


# ----------------------------------------------------------------------------
# Parameter init (deterministic, shapes from the PyTorch module)
# ----------------------------------------------------------------------------
def init_params(key, num_classes=10):
    keys = jax.random.split(key, 2 + 2 * len(BLOCK_CFGS))
    stem_w = (jax.random.normal(keys[0], (3, 3, 3, 32), jnp.float32) * 0.1
              ).reshape(27, 32)
    stem_w = jnp.pad(stem_w, ((0, 5), (0, 0)))           # K: 27 -> 32
    params = {
        "stem_w": stem_w.astype(jnp.bfloat16),
        "stem_g": jnp.ones((1, 32), jnp.float32),
        "stem_b": jnp.zeros((1, 32), jnp.float32),
    }
    blocks = []
    for i, (cin, cout, _stride) in enumerate(BLOCK_CFGS):
        kd, kp = keys[1 + 2 * i], keys[2 + 2 * i]
        blocks.append({
            "dw_w": jax.random.normal(kd, (3, 3, 1, cin), jnp.float32) * 0.1,
            "dw_g": jnp.ones((1, cin), jnp.float32),
            "dw_b": jnp.zeros((1, cin), jnp.float32),
            "pw_w": (jax.random.normal(kp, (cin, cout), jnp.float32)
                     * (1.0 / (cin ** 0.5))).astype(jnp.bfloat16),
            "pw_g": jnp.ones((1, cout), jnp.float32),
            "pw_b": jnp.zeros((1, cout), jnp.float32),
        })
    params["blocks"] = blocks
    params["cls_w"] = (jax.random.normal(keys[-1], (1024, num_classes), jnp.float32)
                       * 0.02).astype(jnp.bfloat16)
    params["cls_b"] = jnp.zeros((1, num_classes), jnp.float32)
    return params


# ----------------------------------------------------------------------------
# Forward pass
# ----------------------------------------------------------------------------
@jax.jit
def mnet_forward(x_nchw, params):
    # TODO(synk): torch.autograd.profiler.record_function is a profiling
    # annotation with no compute; intentionally a no-op here.
    x = jnp.transpose(x_nchw, (0, 2, 3, 1)).astype(jnp.float32)     # NCHW -> NHWC
    n = x.shape[0]

    # Stem: 3x3 s=2 conv as im2col (glue, bf16, K padded to 32) + matmul+stats kernel.
    patches, (n, h, w) = im2col_3x3(x.astype(jnp.bfloat16), stride=2, k_pad=32)
    raw, t_sum, t_sq = pallas_matmul_stats(patches, params["stem_w"])
    scale, shift = _bn_scale_shift(t_sum, t_sq, n * h * w,
                                   params["stem_g"], params["stem_b"])
    x_raw = raw.reshape(n, h, w, 32)

    # Depthwise-separable blocks.  Each kernel applies the previous layer's
    # BN+ReLU on the fly and emits its raw output + per-channel stats.
    for (cin, cout, stride), blk in zip(BLOCK_CFGS, params["blocks"]):
        ho, wo = _out_hw(h, w, stride)
        planes = make_parity_planes(x_raw, stride)
        raw_dw, t_sum, t_sq = pallas_bnrelu_dwconv_stats(
            planes, scale, shift, blk["dw_w"],
            stride=stride, hi=h, wi=w, ho=ho, wo=wo)
        scale, shift = _bn_scale_shift(t_sum, t_sq, n * ho * wo,
                                       blk["dw_g"], blk["dw_b"])
        raw_pw, t_sum, t_sq = pallas_bnrelu_matmul_stats(
            raw_dw.reshape(n * ho * wo, cin), scale, shift, blk["pw_w"])
        scale, shift = _bn_scale_shift(t_sum, t_sq, n * ho * wo,
                                       blk["pw_g"], blk["pw_b"])
        x_raw = raw_pw.reshape(n, ho, wo, cout)
        h, w = ho, wo

    # Head: final BN+ReLU + AdaptiveAvgPool2d((1,1)) + Linear, fused in one kernel.
    logits = pallas_bnrelu_pool_linear(x_raw.reshape(n, h * w, 1024),
                                       scale, shift,
                                       params["cls_w"], params["cls_b"])
    return logits


if __name__ == "__main__":
    key = jax.random.PRNGKey(0)
    k_x, k_p = jax.random.split(key)
    # PyTorch-style NCHW input (3 channels, 16x16 survives all the strides).
    x = jax.random.normal(k_x, (2, 3, 16, 16), jnp.float32)
    params = init_params(k_p, num_classes=10)

    logits = mnet_forward(x, params)
    jax.block_until_ready(logits)
    assert logits.shape == (2, 10) and logits.dtype == jnp.float32
    print("KERNEL_OK")
</pallas_src>

<mosaic_0001>
module attributes {stable_mosaic.version = 11 : i64} {
  func.func @matmul_stats_kernel(%arg0: i32, %arg1: memref<128x32xbf16, #tpu.memory_space<vmem>>, %arg2: memref<32x32xbf16, #tpu.memory_space<vmem>>, %arg3: memref<128x32xf32, #tpu.memory_space<vmem>>, %arg4: memref<1x32xf32, #tpu.memory_space<vmem>>, %arg5: memref<1x32xf32, #tpu.memory_space<vmem>>) attributes {dimension_semantics = [#tpu.dimension_semantics<arbitrary>], iteration_bounds = array<i64: 1>, scalar_prefetch = 0 : i64, scratch_operands = 0 : i64, tpu.core_type = #tpu.core_type<tc>, window_params = [{transform_indices = @transform_0, window_bounds = array<i64: 128, 32>}, {pipeline_mode = #tpu.pipeline_mode<synchronous>, transform_indices = @transform_1, window_bounds = array<i64: 32, 32>}, {transform_indices = @transform_2, window_bounds = array<i64: 128, 32>}, {pipeline_mode = #tpu.pipeline_mode<synchronous>, transform_indices = @transform_3, window_bounds = array<i64: 1, 32>}, {pipeline_mode = #tpu.pipeline_mode<synchronous>, transform_indices = @transform_4, window_bounds = array<i64: 1, 32>}]} {
    %c0_i32 = arith.constant 0 : i32
    %0 = arith.cmpi eq, %arg0, %c0_i32 : i32
    %1 = arith.extui %0 : i1 to i32
    %c0_i32_0 = arith.constant 0 : i32
    %2 = arith.cmpi ne, %1, %c0_i32_0 : i32
    scf.if %2 {
      %cst_16 = arith.constant 0.000000e+00 : f32
      %18 = vector.broadcast %cst_16 : f32 to vector<1x32xf32>
      %c0_17 = arith.constant 0 : index
      %c0_18 = arith.constant 0 : index
      %19 = vector.load %arg4[%c0_17, %c0_18] : memref<1x32xf32, #tpu.memory_space<vmem>>, vector<1x32xf32>
      tpu.vector_store %arg4[%c0_17, %c0_18], %18 {strides = array<i32>} : memref<1x32xf32, #tpu.memory_space<vmem>>, vector<1x32xf32>,
      %cst_19 = arith.constant 0.000000e+00 : f32
      %20 = vector.broadcast %cst_19 : f32 to vector<1x32xf32>
      %c0_20 = arith.constant 0 : index
      %c0_21 = arith.constant 0 : index
      %21 = vector.load %arg5[%c0_20, %c0_21] : memref<1x32xf32, #tpu.memory_space<vmem>>, vector<1x32xf32>
      tpu.vector_store %arg5[%c0_20, %c0_21], %20 {strides = array<i32>} : memref<1x32xf32, #tpu.memory_space<vmem>>, vector<1x32xf32>,
    } else {
    }
    %c0 = arith.constant 0 : index
    %c0_1 = arith.constant 0 : index
    %3 = vector.load %arg1[%c0, %c0_1] : memref<128x32xbf16, #tpu.memory_space<vmem>>, vector<128x32xbf16>
    %c0_2 = arith.constant 0 : index
    %c0_3 = arith.constant 0 : index
    %4 = vector.load %arg2[%c0_2, %c0_3] : memref<32x32xbf16, #tpu.memory_space<vmem>>, vector<32x32xbf16>
    %cst = arith.constant dense<0.000000e+00> : vector<128x32xf32>
    %5 = tpu.matmul %3, %4, %cst {dimension_numbers = #tpu.dot_dimension_numbers<[1], [0], [0], [1], [0, 0, 1, 1], [], []>} : vector<128x32xbf16>, vector<32x32xbf16>, vector<128x32xf32> -> vector<128x32xf32>
    %c0_4 = arith.constant 0 : index
    %c0_5 = arith.constant 0 : index
    %6 = vector.load %arg3[%c0_4, %c0_5] : memref<128x32xf32, #tpu.memory_space<vmem>>, vector<128x32xf32>
    tpu.vector_store %arg3[%c0_4, %c0_5], %5 {strides = array<i32>} : memref<128x32xf32, #tpu.memory_space<vmem>>, vector<128x32xf32>,
    %c0_6 = arith.constant 0 : index
    %c0_7 = arith.constant 0 : index
    %7 = vector.load %arg4[%c0_6, %c0_7] : memref<1x32xf32, #tpu.memory_space<vmem>>, vector<1x32xf32>
    %cst_8 = arith.constant dense<0.000000e+00> : vector<32xf32>
    %8 = vector.multi_reduction <add>, %5, %cst_8 [0] : vector<128x32xf32> to vector<32xf32>
    %9 = vector.shape_cast %8 : vector<32xf32> to vector<1x32xf32>
    %10 = arith.addf %7, %9 : vector<1x32xf32>
    %c0_9 = arith.constant 0 : index
    %c0_10 = arith.constant 0 : index
    %11 = vector.load %arg4[%c0_9, %c0_10] : memref<1x32xf32, #tpu.memory_space<vmem>>, vector<1x32xf32>
    tpu.vector_store %arg4[%c0_9, %c0_10], %10 {strides = array<i32>} : memref<1x32xf32, #tpu.memory_space<vmem>>, vector<1x32xf32>,
    %c0_11 = arith.constant 0 : index
    %c0_12 = arith.constant 0 : index
    %12 = vector.load %arg5[%c0_11, %c0_12] : memref<1x32xf32, #tpu.memory_space<vmem>>, vector<1x32xf32>
    %13 = arith.mulf %5, %5 : vector<128x32xf32>
    %cst_13 = arith.constant dense<0.000000e+00> : vector<32xf32>
    %14 = vector.multi_reduction <add>, %13, %cst_13 [0] : vector<128x32xf32> to vector<32xf32>
    %15 = vector.shape_cast %14 : vector<32xf32> to vector<1x32xf32>
    %16 = arith.addf %12, %15 : vector<1x32xf32>
    %c0_14 = arith.constant 0 : index
    %c0_15 = arith.constant 0 : index
    %17 = vector.load %arg5[%c0_14, %c0_15] : memref<1x32xf32, #tpu.memory_space<vmem>>, vector<1x32xf32>
    tpu.vector_store %arg5[%c0_14, %c0_15], %16 {strides = array<i32>} : memref<1x32xf32, #tpu.memory_space<vmem>>, vector<1x32xf32>,
    return
  }
  func.func @transform_0(%arg0: i32) -> (i32, i32) {
    %c0_i32 = arith.constant 0 : i32
    %c0_i32_0 = arith.constant 0 : i32
    return %arg0, %c0_i32 : i32, i32
  }
  func.func @transform_1(%arg0: i32) -> (i32, i32) {
    %c0_i32 = arith.constant 0 : i32
    %c0_i32_0 = arith.constant 0 : i32
    %c0_i32_1 = arith.constant 0 : i32
    return %c0_i32, %c0_i32_0 : i32, i32
  }
  func.func @transform_2(%arg0: i32) -> (i32, i32) {
    %c0_i32 = arith.constant 0 : i32
    %c0_i32_0 = arith.constant 0 : i32
    return %arg0, %c0_i32 : i32, i32
  }
  func.func @transform_3(%arg0: i32) -> (i32, i32) {
    %c0_i32 = arith.constant 0 : i32
    %c0_i32_0 = arith.constant 0 : i32
    %c0_i32_1 = arith.constant 0 : i32
    return %c0_i32, %c0_i32_0 : i32, i32
  }
  func.func @transform_4(%arg0: i32) -> (i32, i32) {
    %c0_i32 = arith.constant 0 : i32
    %c0_i32_0 = arith.constant 0 : i32
    %c0_i32_1 = arith.constant 0 : i32
    return %c0_i32, %c0_i32_0 : i32, i32
  }
}

module attributes {stable_mosaic.version = 11 : i64} {
  func.func @bnrelu_matmul_stats_kernel(%arg0: i32, %arg1: memref<1x32xf32, #tpu.memory_space<vmem>>, %arg2: memref<1x32xf32, #tpu.memory_space<vmem>>, %arg3: memref<128x32xf32, #tpu.memory_space<vmem>>, %arg4: memref<32x64xbf16, #tpu.memory_space<vmem>>, %arg5: memref<128x64xf32, #tpu.memory_space<vmem>>, %arg6: memref<1x64xf32, #tpu.memory_space<vmem>>, %arg7: memref<1x64xf32, #tpu.memory_space<vmem>>) attributes {dimension_semantics = [#tpu.dimension_semantics<arbitrary>], iteration_bounds = array<i64: 1>, scalar_prefetch = 0 : i64, scratch_operands = 0 : i64, tpu.core_type = #tpu.core_type<tc>, window_params = [{pipeline_mode = #tpu.pipeline_mode<synchronous>, transform_indices = @transform_0, window_bounds = array<i64: 1, 32>}, {pipeline_mode = #tpu.pipeline_mode<synchronous>, transform_indices = @transform_1, window_bounds = array<i64: 1, 32>}, {transform_indices = @transform_2, window_bounds = array<i64: 128, 32>}, {pipeline_mode = #tpu.pipeline_mode<synchronous>, transform_indices = @transform_3, window_bounds = array<i64: 32, 64>}, {transform_indices = @transform_4, window_bounds = array<i64: 128, 64>}, {pipeline_mode = #tpu.pipeline_mode<synchronous>, transform_indices = @transform_5, window_bounds = array<i64: 1, 64>}, {pipeline_mode = #tpu.pipeline_mode<synchronous>, transform_indices = @transform_6, window_bounds = array<i64: 1, 64>}]} {
    %c0_i32 = arith.constant 0 : i32
    %0 = arith.cmpi eq, %arg0, %c0_i32 : i32
    %1 = arith.extui %0 : i1 to i32
    %c0_i32_0 = arith.constant 0 : i32
    %2 = arith.cmpi ne, %1, %c0_i32_0 : i32
    scf.if %2 {
      %cst_21 = arith.constant 0.000000e+00 : f32
      %27 = vector.broadcast %cst_21 : f32 to vector<1x64xf32>
      %c0_22 = arith.constant 0 : index
      %c0_23 = arith.constant 0 : index
      %28 = vector.load %arg6[%c0_22, %c0_23] : memref<1x64xf32, #tpu.memory_space<vmem>>, vector<1x64xf32>
      tpu.vector_store %arg6[%c0_22, %c0_23], %27 {strides = array<i32>} : memref<1x64xf32, #tpu.memory_space<vmem>>, vector<1x64xf32>,
      %cst_24 = arith.constant 0.000000e+00 : f32
      %29 = vector.broadcast %cst_24 : f32 to vector<1x64xf32>
      %c0_25 = arith.constant 0 : index
      %c0_26 = arith.constant 0 : index
      %30 = vector.load %arg7[%c0_25, %c0_26] : memref<1x64xf32, #tpu.memory_space<vmem>>, vector<1x64xf32>
      tpu.vector_store %arg7[%c0_25, %c0_26], %29 {strides = array<i32>} : memref<1x64xf32, #tpu.memory_space<vmem>>, vector<1x64xf32>,
    } else {
    }
    %c0 = arith.constant 0 : index
    %c0_1 = arith.constant 0 : index
    %3 = vector.load %arg3[%c0, %c0_1] : memref<128x32xf32, #tpu.memory_space<vmem>>, vector<128x32xf32>
    %c0_2 = arith.constant 0 : index
    %c0_3 = arith.constant 0 : index
    %4 = vector.load %arg1[%c0_2, %c0_3] : memref<1x32xf32, #tpu.memory_space<vmem>>, vector<1x32xf32>
    %5 = vector.broadcast %4 : vector<1x32xf32> to vector<128x32xf32>
    %6 = arith.mulf %3, %5 : vector<128x32xf32>
    %c0_4 = arith.constant 0 : index
    %c0_5 = arith.constant 0 : index
    %7 = vector.load %arg2[%c0_4, %c0_5] : memref<1x32xf32, #tpu.memory_space<vmem>>, vector<1x32xf32>
    %8 = vector.broadcast %7 : vector<1x32xf32> to vector<128x32xf32>
    %9 = arith.addf %6, %8 : vector<128x32xf32>
    %cst = arith.constant 0.000000e+00 : f32
    %10 = vector.broadcast %cst : f32 to vector<128x32xf32>
    %11 = arith.maximumf %9, %10 : vector<128x32xf32>
    %12 = arith.truncf %11 : vector<128x32xf32> to vector<128x32xbf16>
    %c0_6 = arith.constant 0 : index
    %c0_7 = arith.constant 0 : index
    %13 = vector.load %arg4[%c0_6, %c0_7] : memref<32x64xbf16, #tpu.memory_space<vmem>>, vector<32x64xbf16>
    %cst_8 = arith.constant dense<0.000000e+00> : vector<128x64xf32>
    %14 = tpu.matmul %12, %13, %cst_8 {dimension_numbers = #tpu.dot_dimension_numbers<[1], [0], [0], [1], [0, 0, 1, 1], [], []>} : vector<128x32xbf16>, vector<32x64xbf16>, vector<128x64xf32> -> vector<128x64xf32>
    %c0_9 = arith.constant 0 : index
    %c0_10 = arith.constant 0 : index
    %15 = vector.load %arg5[%c0_9, %c0_10] : memref<128x64xf32, #tpu.memory_space<vmem>>, vector<128x64xf32>
    tpu.vector_store %arg5[%c0_9, %c0_10], %14 {strides = array<i32>} : memref<128x64xf32, #tpu.memory_space<vmem>>, vector<128x64xf32>,
    %c0_11 = arith.constant 0 : index
    %c0_12 = arith.constant 0 : index
    %16 = vector.load %arg6[%c0_11, %c0_12] : memref<1x64xf32, #tpu.memory_space<vmem>>, vector<1x64xf32>
    %cst_13 = arith.constant dense<0.000000e+00> : vector<64xf32>
    %17 = vector.multi_reduction <add>, %14, %cst_13 [0] : vector<128x64xf32> to vector<64xf32>
    %18 = vector.shape_cast %17 : vector<64xf32> to vector<1x64xf32>
    %19 = arith.addf %16, %18 : vector<1x64xf32>
    %c0_14 = arith.constant 0 : index
    %c0_15 = arith.constant 0 : index
    %20 = vector.load %arg6[%c0_14, %c0_15] : memref<1x64xf32, #tpu.memory_space<vmem>>, vector<1x64xf32>
    tpu.vector_store %arg6[%c0_14, %c0_15], %19 {strides = array<i32>} : memref<1x64xf32, #tpu.memory_space<vmem>>, vector<1x64xf32>,
    %c0_16 = arith.constant 0 : index
    %c0_17 = arith.constant 0 : index
    %21 = vector.load %arg7[%c0_16, %c0_17] : memref<1x64xf32, #tpu.memory_space<vmem>>, vector<1x64xf32>
    %22 = arith.mulf %14, %14 : vector<128x64xf32>
    %cst_18 = arith.constant dense<0.000000e+00> : vector<64xf32>
    %23 = vector.multi_reduction <add>, %22, %cst_18 [0] : vector<128x64xf32> to vector<64xf32>
    %24 = vector.shape_cast %23 : vector<64xf32> to vector<1x64xf32>
    %25 = arith.addf %21, %24 : vector<1x64xf32>
    %c0_19 = arith.constant 0 : index
    %c0_20 = arith.constant 0 : index
    %26 = vector.load %arg7[%c0_19, %c0_20] : memref<1x64xf32, #tpu.memory_space<vmem>>, vector<1x64xf32>
    tpu.vector_store %arg7[%c0_19, %c0_20], %25 {strides = array<i32>} : memref<1x64xf32, #tpu.memory_space<vmem>>, vector<1x64xf32>,
    return
  }
  func.func @transform_0(%arg0: i32) -> (i32, i32) {
    %c0_i32 = arith.constant 0 : i32
    %c0_i32_0 = arith.constant 0 : i32
    %c0_i32_1 = arith.constant 0 : i32
    return %c0_i32, %c0_i32_0 : i32, i32
  }
  func.func @transform_1(%arg0: i32) -> (i32, i32) {
    %c0_i32 = arith.constant 0 : i32
    %c0_i32_0 = arith.constant 0 : i32
    %c0_i32_1 = arith.constant 0 : i32
    return %c0_i32, %c0_i32_0 : i32, i32
  }
  func.func @transform_2(%arg0: i32) -> (i32, i32) {
    %c0_i32 = arith.constant 0 : i32
    %c0_i32_0 = arith.constant 0 : i32
    return %arg0, %c0_i32 : i32, i32
  }
  func.func @transform_3(%arg0: i32) -> (i32, i32) {
    %c0_i32 = arith.constant 0 : i32
    %c0_i32_0 = arith.constant 0 : i32
    %c0_i32_1 = arith.constant 0 : i32
    return %c0_i32, %c0_i32_0 : i32, i32
  }
  func.func @transform_4(%arg0: i32) -> (i32, i32) {
    %c0_i32 = arith.constant 0 : i32
    %c0_i32_0 = arith.constant 0 : i32
    return %arg0, %c0_i32 : i32, i32
  }
  func.func @transform_5(%arg0: i32) -> (i32, i32) {
    %c0_i32 = arith.constant 0 : i32
    %c0_i32_0 = arith.constant 0 : i32
    %c0_i32_1 = arith.constant 0 : i32
    return %c0_i32, %c0_i32_0 : i32, i32
  }
  func.func @transform_6(%arg0: i32) -> (i32, i32) {
    %c0_i32 = arith.constant 0 : i32
    %c0_i32_0 = arith.constant 0 : i32
    %c0_i32_1 = arith.constant 0 : i32
    return %c0_i32, %c0_i32_0 : i32, i32
  }
}

module attributes {stable_mosaic.version = 11 : i64} {
  func.func @bnrelu_dwconv_stats_kernel(%arg0: i32, %arg1: memref<1x32xf32, #tpu.memory_space<vmem>>, %arg2: memref<1x32xf32, #tpu.memory_space<vmem>>, %arg3: memref<1x1x10x10x32xf32, #tpu.memory_space<vmem>>, %arg4: memref<3x3x1x32xf32, #tpu.memory_space<vmem>>, %arg5: memref<1x8x8x32xf32, #tpu.memory_space<vmem>>, %arg6: memref<1x32xf32, #tpu.memory_space<vmem>>, %arg7: memref<1x32xf32, #tpu.memory_space<vmem>>) attributes {dimension_semantics = [#tpu.dimension_semantics<arbitrary>], iteration_bounds = array<i64: 2>, scalar_prefetch = 0 : i64, scratch_operands = 0 : i64, tpu.core_type = #tpu.core_type<tc>, window_params = [{pipeline_mode = #tpu.pipeline_mode<synchronous>, transform_indices = @transform_0, window_bounds = array<i64: 1, 32>}, {pipeline_mode = #tpu.pipeline_mode<synchronous>, transform_indices = @transform_1, window_bounds = array<i64: 1, 32>}, {transform_indices = @transform_2, window_bounds = array<i64: 1, 1, 10, 10, 32>}, {pipeline_mode = #tpu.pipeline_mode<synchronous>, transform_indices = @transform_3, window_bounds = array<i64: 3, 3, 1, 32>}, {transform_indices = @transform_4, window_bounds = array<i64: 1, 8, 8, 32>}, {pipeline_mode = #tpu.pipeline_mode<synchronous>, transform_indices = @transform_5, window_bounds = array<i64: 1, 32>}, {pipeline_mode = #tpu.pipeline_mode<synchronous>, transform_indices = @transform_6, window_bounds = array<i64: 1, 32>}]} {
    %c0_i32 = arith.constant 0 : i32
    %0 = arith.cmpi eq, %arg0, %c0_i32 : i32
    %1 = arith.extui %0 : i1 to i32
    %c0_i32_0 = arith.constant 0 : i32
    %2 = arith.cmpi ne, %1, %c0_i32_0 : i32
    scf.if %2 {
      %cst_66 = arith.constant 0.000000e+00 : f32
      %124 = vector.broadcast %cst_66 : f32 to vector<1x32xf32>
      %c0_67 = arith.constant 0 : index
      %c0_68 = arith.constant 0 : index
      %125 = vector.load %arg6[%c0_67, %c0_68] : memref<1x32xf32, #tpu.memory_space<vmem>>, vector<1x32xf32>
      tpu.vector_store %arg6[%c0_67, %c0_68], %124 {strides = array<i32>} : memref<1x32xf32, #tpu.memory_space<vmem>>, vector<1x32xf32>,
      %cst_69 = arith.constant 0.000000e+00 : f32
      %126 = vector.broadcast %cst_69 : f32 to vector<1x32xf32>
      %c0_70 = arith.constant 0 : index
      %c0_71 = arith.constant 0 : index
      %127 = vector.load %arg7[%c0_70, %c0_71] : memref<1x32xf32, #tpu.memory_space<vmem>>, vector<1x32xf32>
      tpu.vector_store %arg7[%c0_70, %c0_71], %126 {strides = array<i32>} : memref<1x32xf32, #tpu.memory_space<vmem>>, vector<1x32xf32>,
    } else {
    }
    %c0 = arith.constant 0 : index
    %c0_1 = arith.constant 0 : index
    %3 = vector.load %arg1[%c0, %c0_1] : memref<1x32xf32, #tpu.memory_space<vmem>>, vector<1x32xf32>
    %c0_2 = arith.constant 0 : index
    %c0_3 = arith.constant 0 : index
    %4 = vector.load %arg2[%c0_2, %c0_3] : memref<1x32xf32, #tpu.memory_space<vmem>>, vector<1x32xf32>
    %5 = tpu.iota {dimensions = array<i32: 0>} : vector<10x10x1xi32>
    %c1_i32 = arith.constant 1 : i32
    %6 = vector.broadcast %c1_i32 : i32 to vector<10x10x1xi32>
    %7 = arith.muli %6, %5 : vector<10x10x1xi32>
    %c0_i32_4 = arith.constant 0 : i32
    %8 = vector.broadcast %c0_i32_4 : i32 to vector<10x10x1xi32>
    %9 = arith.addi %7, %8 : vector<10x10x1xi32>
    %10 = tpu.iota {dimensions = array<i32: 1>} : vector<10x10x1xi32>
    %c1_i32_5 = arith.constant 1 : i32
    %11 = vector.broadcast %c1_i32_5 : i32 to vector<10x10x1xi32>
    %12 = arith.muli %11, %10 : vector<10x10x1xi32>
    %c0_i32_6 = arith.constant 0 : i32
    %13 = vector.broadcast %c0_i32_6 : i32 to vector<10x10x1xi32>
    %14 = arith.addi %12, %13 : vector<10x10x1xi32>
    %c1_i32_7 = arith.constant 1 : i32
    %15 = vector.broadcast %c1_i32_7 : i32 to vector<10x10x1xi32>
    %16 = arith.cmpi sge, %9, %15 : vector<10x10x1xi32>
    %c8_i32 = arith.constant 8 : i32
    %17 = vector.broadcast %c8_i32 : i32 to vector<10x10x1xi32>
    %18 = arith.cmpi sle, %9, %17 : vector<10x10x1xi32>
    %19 = arith.andi %16, %18 : vector<10x10x1xi1>
    %c1_i32_8 = arith.constant 1 : i32
    %20 = vector.broadcast %c1_i32_8 : i32 to vector<10x10x1xi32>
    %21 = arith.cmpi sge, %14, %20 : vector<10x10x1xi32>
    %22 = arith.andi %19, %21 : vector<10x10x1xi1>
    %c8_i32_9 = arith.constant 8 : i32
    %23 = vector.broadcast %c8_i32_9 : i32 to vector<10x10x1xi32>
    %24 = arith.cmpi sle, %14, %23 : vector<10x10x1xi32>
    %25 = arith.andi %22, %24 : vector<10x10x1xi1>
    %c0_10 = arith.constant 0 : index
    %c0_11 = arith.constant 0 : index
    %c0_12 = arith.constant 0 : index
    %c0_13 = arith.constant 0 : index
    %c0_14 = arith.constant 0 : index
    %26 = vector.load %arg3[%c0_10, %c0_11, %c0_12, %c0_13, %c0_14] : memref<1x1x10x10x32xf32, #tpu.memory_space<vmem>>, vector<1x1x10x10x32xf32>
    %27 = vector.shape_cast %26 : vector<1x1x10x10x32xf32> to vector<10x10x32xf32>
    %28 = vector.shape_cast %3 : vector<1x32xf32> to vector<1x1x32xf32>
    %29 = vector.broadcast %28 : vector<1x1x32xf32> to vector<10x10x32xf32>
    %30 = arith.mulf %27, %29 : vector<10x10x32xf32>
    %31 = vector.shape_cast %4 : vector<1x32xf32> to vector<1x1x32xf32>
    %32 = vector.broadcast %31 : vector<1x1x32xf32> to vector<10x10x32xf32>
    %33 = arith.addf %30, %32 : vector<10x10x32xf32>
    %cst = arith.constant 0.000000e+00 : f32
    %34 = vector.broadcast %cst : f32 to vector<10x10x32xf32>
    %35 = arith.maximumf %33, %34 : vector<10x10x32xf32>
    %36 = arith.extui %25 : vector<10x10x1xi1> to vector<10x10x1xi32>
    %37 = arith.sitofp %36 : vector<10x10x1xi32> to vector<10x10x1xf32>
    %38 = vector.broadcast %37 : vector<10x10x1xf32> to vector<10x10x32xf32>
    %39 = arith.mulf %35, %38 : vector<10x10x32xf32>
    %cst_15 = arith.constant 0.000000e+00 : f32
    %40 = vector.broadcast %cst_15 : f32 to vector<8x8x32xf32>
    %41 = vector.extract_strided_slice %39 {offsets = [0, 0, 0], sizes = [8, 8, 32], strides = [1, 1, 1]} : vector<10x10x32xf32> to vector<8x8x32xf32>
    %c0_16 = arith.constant 0 : index
    %c0_17 = arith.constant 0 : index
    %c0_18 = arith.constant 0 : index
    %c0_19 = arith.constant 0 : index
    %42 = vector.load %arg4[%c0_16, %c0_17, %c0_18, %c0_19] : memref<3x3x1x32xf32, #tpu.memory_space<vmem>>, vector<1x1x1x32xf32>
    %43 = vector.shape_cast %42 : vector<1x1x1x32xf32> to vector<1x32xf32>
    %44 = vector.shape_cast %43 : vector<1x32xf32> to vector<1x1x32xf32>
    %45 = vector.broadcast %44 : vector<1x1x32xf32> to vector<8x8x32xf32>
    %46 = arith.mulf %41, %45 : vector<8x8x32xf32>
    %47 = arith.addf %40, %46 : vector<8x8x32xf32>
    %48 = vector.extract_strided_slice %39 {offsets = [0, 1, 0], sizes = [8, 8, 32], strides = [1, 1, 1]} : vector<10x10x32xf32> to vector<8x8x32xf32>
    %c0_20 = arith.constant 0 : index
    %c1 = arith.constant 1 : index
    %c0_21 = arith.constant 0 : index
    %c0_22 = arith.constant 0 : index
    %49 = vector.load %arg4[%c0_20, %c1, %c0_21, %c0_22] : memref<3x3x1x32xf32, #tpu.memory_space<vmem>>, vector<1x1x1x32xf32>
    %50 = vector.shape_cast %49 : vector<1x1x1x32xf32> to vector<1x32xf32>
    %51 = vector.shape_cast %50 : vector<1x32xf32> to vector<1x1x32xf32>
    %52 = vector.broadcast %51 : vector<1x1x32xf32> to vector<8x8x32xf32>
    %53 = arith.mulf %48, %52 : vector<8x8x32xf32>
    %54 = arith.addf %47, %53 : vector<8x8x32xf32>
    %55 = vector.extract_strided_slice %39 {offsets = [0, 2, 0], sizes = [8, 8, 32], strides = [1, 1, 1]} : vector<10x10x32xf32> to vector<8x8x32xf32>
    %c0_23 = arith.constant 0 : index
    %c2 = arith.constant 2 : index
    %c0_24 = arith.constant 0 : index
    %c0_25 = arith.constant 0 : index
    %56 = vector.load %arg4[%c0_23, %c2, %c0_24, %c0_25] : memref<3x3x1x32xf32, #tpu.memory_space<vmem>>, vector<1x1x1x32xf32>
    %57 = vector.shape_cast %56 : vector<1x1x1x32xf32> to vector<1x32xf32>
    %58 = vector.shape_cast %57 : vector<1x32xf32> to vector<1x1x32xf32>
    %59 = vector.broadcast %58 : vector<1x1x32xf32> to vector<8x8x32xf32>
    %60 = arith.mulf %55, %59 : vector<8x8x32xf32>
    %61 = arith.addf %54, %60 : vector<8x8x32xf32>
    %62 = vector.extract_strided_slice %39 {offsets = [1, 0, 0], sizes = [8, 8, 32], strides = [1, 1, 1]} : vector<10x10x32xf32> to vector<8x8x32xf32>
    %c1_26 = arith.constant 1 : index
    %c0_27 = arith.constant 0 : index
    %c0_28 = arith.constant 0 : index
    %c0_29 = arith.constant 0 : index
    %63 = vector.load %arg4[%c1_26, %c0_27, %c0_28, %c0_29] : memref<3x3x1x32xf32, #tpu.memory_space<vmem>>, vector<1x1x1x32xf32>
    %64 = vector.shape_cast %63 : vector<1x1x1x32xf32> to vector<1x32xf32>
    %65 = vector.shape_cast %64 : vector<1x32xf32> to vector<1x1x32xf32>
    %66 = vector.broadcast %65 : vector<1x1x32xf32> to vector<8x8x32xf32>
    %67 = arith.mulf %62, %66 : vector<8x8x32xf32>
    %68 = arith.addf %61, %67 : vector<8x8x32xf32>
    %69 = vector.extract_strided_slice %39 {offsets = [1, 1, 0], sizes = [8, 8, 32], strides = [1, 1, 1]} : vector<10x10x32xf32> to vector<8x8x32xf32>
    %c1_30 = arith.constant 1 : index
    %c1_31 = arith.constant 1 : index
    %c0_32 = arith.constant 0 : index
    %c0_33 = arith.constant 0 : index
    %70 = vector.load %arg4[%c1_30, %c1_31, %c0_32, %c0_33] : memref<3x3x1x32xf32, #tpu.memory_space<vmem>>, vector<1x1x1x32xf32>
    %71 = vector.shape_cast %70 : vector<1x1x1x32xf32> to vector<1x32xf32>
    %72 = vector.shape_cast %71 : vector<1x32xf32> to vector<1x1x32xf32>
    %73 = vector.broadcast %72 : vector<1x1x32xf32> to vector<8x8x32xf32>
    %74 = arith.mulf %69, %73 : vector<8x8x32xf32>
    %75 = arith.addf %68, %74 : vector<8x8x32xf32>
    %76 = vector.extract_strided_slice %39 {offsets = [1, 2, 0], sizes = [8, 8, 32], strides = [1, 1, 1]} : vector<10x10x32xf32> to vector<8x8x32xf32>
    %c1_34 = arith.constant 1 : index
    %c2_35 = arith.constant 2 : index
    %c0_36 = arith.constant 0 : index
    %c0_37 = arith.constant 0 : index
    %77 = vector.load %arg4[%c1_34, %c2_35, %c0_36, %c0_37] : memref<3x3x1x32xf32, #tpu.memory_space<vmem>>, vector<1x1x1x32xf32>
    %78 = vector.shape_cast %77 : vector<1x1x1x32xf32> to vector<1x32xf32>
    %79 = vector.shape_cast %78 : vector<1x32xf32> to vector<1x1x32xf32>
    %80 = vector.broadcast %79 : vector<1x1x32xf32> to vector<8x8x32xf32>
    %81 = arith.mulf %76, %80 : vector<8x8x32xf32>
    %82 = arith.addf %75, %81 : vector<8x8x32xf32>
    %83 = vector.extract_strided_slice %39 {offsets = [2, 0, 0], sizes = [8, 8, 32], strides = [1, 1, 1]} : vector<10x10x32xf32> to vector<8x8x32xf32>
    %c2_38 = arith.constant 2 : index
    %c0_39 = arith.constant 0 : index
    %c0_40 = arith.constant 0 : index
    %c0_41 = arith.constant 0 : index
    %84 = vector.load %arg4[%c2_38, %c0_39, %c0_40, %c0_41] : memref<3x3x1x32xf32, #tpu.memory_space<vmem>>, vector<1x1x1x32xf32>
    %85 = vector.shape_cast %84 : vector<1x1x1x32xf32> to vector<1x32xf32>
    %86 = vector.shape_cast %85 : vector<1x32xf32> to vector<1x1x32xf32>
    %87 = vector.broadcast %86 : vector<1x1x32xf32> to vector<8x8x32xf32>
    %88 = arith.mulf %83, %87 : vector<8x8x32xf32>
    %89 = arith.addf %82, %88 : vector<8x8x32xf32>
    %90 = vector.extract_strided_slice %39 {offsets = [2, 1, 0], sizes = [8, 8, 32], strides = [1, 1, 1]} : vector<10x10x32xf32> to vector<8x8x32xf32>
    %c2_42 = arith.constant 2 : index
    %c1_43 = arith.constant 1 : index
    %c0_44 = arith.constant 0 : index
    %c0_45 = arith.constant 0 : index
    %91 = vector.load %arg4[%c2_42, %c1_43, %c0_44, %c0_45] : memref<3x3x1x32xf32, #tpu.memory_space<vmem>>, vector<1x1x1x32xf32>
    %92 = vector.shape_cast %91 : vector<1x1x1x32xf32> to vector<1x32xf32>
    %93 = vector.shape_cast %92 : vector<1x32xf32> to vector<1x1x32xf32>
    %94 = vector.broadcast %93 : vector<1x1x32xf32> to vector<8x8x32xf32>
    %95 = arith.mulf %90, %94 : vector<8x8x32xf32>
    %96 = arith.addf %89, %95 : vector<8x8x32xf32>
    %97 = vector.extract_strided_slice %39 {offsets = [2, 2, 0], sizes = [8, 8, 32], strides = [1, 1, 1]} : vector<10x10x32xf32> to vector<8x8x32xf32>
    %c2_46 = arith.constant 2 : index
    %c2_47 = arith.constant 2 : index
    %c0_48 = arith.constant 0 : index
    %c0_49 = arith.constant 0 : index
    %98 = vector.load %arg4[%c2_46, %c2_47, %c0_48, %c0_49] : memref<3x3x1x32xf32, #tpu.memory_space<vmem>>, vector<1x1x1x32xf32>
    %99 = vector.shape_cast %98 : vector<1x1x1x32xf32> to vector<1x32xf32>
    %100 = vector.shape_cast %99 : vector<1x32xf32> to vector<1x1x32xf32>
    %101 = vector.broadcast %100 : vector<1x1x32xf32> to vector<8x8x32xf32>
    %102 = arith.mulf %97, %101 : vector<8x8x32xf32>
    %103 = arith.addf %96, %102 : vector<8x8x32xf32>
    %c0_50 = arith.constant 0 : index
    %c0_51 = arith.constant 0 : index
    %c0_52 = arith.constant 0 : index
    %c0_53 = arith.constant 0 : index
    %104 = vector.load %arg5[%c0_50, %c0_51, %c0_52, %c0_53] : memref<1x8x8x32xf32, #tpu.memory_space<vmem>>, vector<1x8x8x32xf32>
    %105 = vector.shape_cast %104 : vector<1x8x8x32xf32> to vector<8x8x32xf32>
    %106 = vector.shape_cast %103 : vector<8x8x32xf32> to vector<1x8x8x32xf32>
    tpu.vector_store %arg5[%c0_50, %c0_51, %c0_52, %c0_53], %106 {strides = array<i32>} : memref<1x8x8x32xf32, #tpu.memory_space<vmem>>, vector<1x8x8x32xf32>,
    %c0_54 = arith.constant 0 : index
    %c0_55 = arith.constant 0 : index
    %107 = vector.load %arg6[%c0_54, %c0_55] : memref<1x32xf32, #tpu.memory_space<vmem>>, vector<1x32xf32>
    %cst_56 = arith.constant dense<0.000000e+00> : vector<8x32xf32>
    %108 = vector.multi_reduction <add>, %103, %cst_56 [0] : vector<8x8x32xf32> to vector<8x32xf32>
    %109 = vector.shape_cast %108 : vector<8x32xf32> to vector<1x8x32xf32>
    %cst_57 = arith.constant dense<0.000000e+00> : vector<1x32xf32>
    %110 = vector.multi_reduction <add>, %109, %cst_57 [1] : vector<1x8x32xf32> to vector<1x32xf32>
    %111 = vector.shape_cast %110 : vector<1x32xf32> to vector<1x1x32xf32>
    %112 = vector.shape_cast %111 : vector<1x1x32xf32> to vector<1x32xf32>
    %113 = arith.addf %107, %112 : vector<1x32xf32>
    %c0_58 = arith.constant 0 : index
    %c0_59 = arith.constant 0 : index
    %114 = vector.load %arg6[%c0_58, %c0_59] : memref<1x32xf32, #tpu.memory_space<vmem>>, vector<1x32xf32>
    tpu.vector_store %arg6[%c0_58, %c0_59], %113 {strides = array<i32>} : memref<1x32xf32, #tpu.memory_space<vmem>>, vector<1x32xf32>,
    %c0_60 = arith.constant 0 : index
    %c0_61 = arith.constant 0 : index
    %115 = vector.load %arg7[%c0_60, %c0_61] : memref<1x32xf32, #tpu.memory_space<vmem>>, vector<1x32xf32>
    %116 = arith.mulf %103, %103 : vector<8x8x32xf32>
    %cst_62 = arith.constant dense<0.000000e+00> : vector<8x32xf32>
    %117 = vector.multi_reduction <add>, %116, %cst_62 [0] : vector<8x8x32xf32> to vector<8x32xf32>
    %118 = vector.shape_cast %117 : vector<8x32xf32> to vector<1x8x32xf32>
    %cst_63 = arith.constant dense<0.000000e+00> : vector<1x32xf32>
    %119 = vector.multi_reduction <add>, %118, %cst_63 [1] : vector<1x8x32xf32> to vector<1x32xf32>
    %120 = vector.shape_cast %119 : vector<1x32xf32> to vector<1x1x32xf32>
    %121 = vector.shape_cast %120 : vector<1x1x32xf32> to vector<1x32xf32>
    %122 = arith.addf %115, %121 : vector<1x32xf32>
    %c0_64 = arith.constant 0 : index
    %c0_65 = arith.constant 0 : index
    %123 = vector.load %arg7[%c0_64, %c0_65] : memref<1x32xf32, #tpu.memory_space<vmem>>, vector<1x32xf32>
    tpu.vector_store %arg7[%c0_64, %c0_65], %122 {strides = array<i32>} : memref<1x32xf32, #tpu.memory_space<vmem>>, vector<1x32xf32>,
    return
  }
  func.func @transform_0(%arg0: i32) -> (i32, i32) {
    %c0_i32 = arith.constant 0 : i32
    %c0_i32_0 = arith.constant 0 : i32
    %c0_i32_1 = arith.constant 0 : i32
    return %c0_i32, %c0_i32_0 : i32, i32
  }
  func.func @transform_1(%arg0: i32) -> (i32, i32) {
    %c0_i32 = arith.constant 0 : i32
    %c0_i32_0 = arith.constant 0 : i32
    %c0_i32_1 = arith.constant 0 : i32
    return %c0_i32, %c0_i32_0 : i32, i32
  }
  func.func @transform_2(%arg0: i32) -> (i32, i32, i32, i32, i32) {
    %c0_i32 = arith.constant 0 : i32
    %c0_i32_0 = arith.constant 0 : i32
    %c0_i32_1 = arith.constant 0 : i32
    %c0_i32_2 = arith.constant 0 : i32
    %c0_i32_3 = arith.constant 0 : i32
    return %arg0, %c0_i32, %c0_i32_0, %c0_i32_1, %c0_i32_2 : i32, i32, i32, i32, i32
  }
  func.func @transform_3(%arg0: i32) -> (i32, i32, i32, i32) {
    %c0_i32 = arith.constant 0 : i32
    %c0_i32_0 = arith.constant 0 : i32
    %c0_i32_1 = arith.constant 0 : i32
    %c0_i32_2 = arith.constant 0 : i32
    %c0_i32_3 = arith.constant 0 : i32
    return %c0_i32, %c0_i32_0, %c0_i32_1, %c0_i32_2 : i32, i32, i32, i32
  }
  func.func @transform_4(%arg0: i32) -> (i32, i32, i32, i32) {
    %c0_i32 = arith.constant 0 : i32
    %c0_i32_0 = arith.constant 0 : i32
    %c0_i32_1 = arith.constant 0 : i32
    %c0_i32_2 = arith.constant 0 : i32
    return %arg0, %c0_i32, %c0_i32_0, %c0_i32_1 : i32, i32, i32, i32
  }
  func.func @transform_5(%arg0: i32) -> (i32, i32) {
    %c0_i32 = arith.constant 0 : i32
    %c0_i32_0 = arith.constant 0 : i32
    %c0_i32_1 = arith.constant 0 : i32
    return %c0_i32, %c0_i32_0 : i32, i32
  }
  func.func @transform_6(%arg0: i32) -> (i32, i32) {
    %c0_i32 = arith.constant 0 : i32
    %c0_i32_0 = arith.constant 0 : i32
    %c0_i32_1 = arith.constant 0 : i32
    return %c0_i32, %c0_i32_0 : i32, i32
  }
}

module attributes {stable_mosaic.version = 11 : i64} {
  func.func @bnrelu_dwconv_stats_kernel(%arg0: i32, %arg1: memref<1x64xf32, #tpu.memory_space<vmem>>, %arg2: memref<1x64xf32, #tpu.memory_space<vmem>>, %arg3: memref<1x4x5x5x64xf32, #tpu.memory_space<vmem>>, %arg4: memref<3x3x1x64xf32, #tpu.memory_space<vmem>>, %arg5: memref<1x4x4x64xf32, #tpu.memory_space<vmem>>, %arg6: memref<1x64xf32, #tpu.memory_space<vmem>>, %arg7: memref<1x64xf32, #tpu.memory_space<vmem>>) attributes {dimension_semantics = [#tpu.dimension_semantics<arbitrary>], iteration_bounds = array<i64: 2>, scalar_prefetch = 0 : i64, scratch_operands = 0 : i64, tpu.core_type = #tpu.core_type<tc>, window_params = [{pipeline_mode = #tpu.pipeline_mode<synchronous>, transform_indices = @transform_0, window_bounds = array<i64: 1, 64>}, {pipeline_mode = #tpu.pipeline_mode<synchronous>, transform_indices = @transform_1, window_bounds = array<i64: 1, 64>}, {transform_indices = @transform_2, window_bounds = array<i64: 1, 4, 5, 5, 64>}, {pipeline_mode = #tpu.pipeline_mode<synchronous>, transform_indices = @transform_3, window_bounds = array<i64: 3, 3, 1, 64>}, {transform_indices = @transform_4, window_bounds = array<i64: 1, 4, 4, 64>}, {pipeline_mode = #tpu.pipeline_mode<synchronous>, transform_indices = @transform_5, window_bounds = array<i64: 1, 64>}, {pipeline_mode = #tpu.pipeline_mode<synchronous>, transform_indices = @transform_6, window_bounds = array<i64: 1, 64>}]} {
    %c0_i32 = arith.constant 0 : i32
    %0 = arith.cmpi eq, %arg0, %c0_i32 : i32
    %1 = arith.extui %0 : i1 to i32
    %c0_i32_0 = arith.constant 0 : i32
    %2 = arith.cmpi ne, %1, %c0_i32_0 : i32
    scf.if %2 {
      %cst_106 = arith.constant 0.000000e+00 : f32
      %229 = vector.broadcast %cst_106 : f32 to vector<1x64xf32>
      %c0_107 = arith.constant 0 : index
      %c0_108 = arith.constant 0 : index
      %230 = vector.load %arg6[%c0_107, %c0_108] : memref<1x64xf32, #tpu.memory_space<vmem>>, vector<1x64xf32>
      tpu.vector_store %arg6[%c0_107, %c0_108], %229 {strides = array<i32>} : memref<1x64xf32, #tpu.memory_space<vmem>>, vector<1x64xf32>,
      %cst_109 = arith.constant 0.000000e+00 : f32
      %231 = vector.broadcast %cst_109 : f32 to vector<1x64xf32>
      %c0_110 = arith.constant 0 : index
      %c0_111 = arith.constant 0 : index
      %232 = vector.load %arg7[%c0_110, %c0_111] : memref<1x64xf32, #tpu.memory_space<vmem>>, vector<1x64xf32>
      tpu.vector_store %arg7[%c0_110, %c0_111], %231 {strides = array<i32>} : memref<1x64xf32, #tpu.memory_space<vmem>>, vector<1x64xf32>,
    } else {
    }
    %c0 = arith.constant 0 : index
    %c0_1 = arith.constant 0 : index
    %3 = vector.load %arg1[%c0, %c0_1] : memref<1x64xf32, #tpu.memory_space<vmem>>, vector<1x64xf32>
    %c0_2 = arith.constant 0 : index
    %c0_3 = arith.constant 0 : index
    %4 = vector.load %arg2[%c0_2, %c0_3] : memref<1x64xf32, #tpu.memory_space<vmem>>, vector<1x64xf32>
    %5 = tpu.iota {dimensions = array<i32: 0>} : vector<5x5x1xi32>
    %c2_i32 = arith.constant 2 : i32
    %6 = vector.broadcast %c2_i32 : i32 to vector<5x5x1xi32>
    %7 = arith.muli %6, %5 : vector<5x5x1xi32>
    %c0_i32_4 = arith.constant 0 : i32
    %8 = vector.broadcast %c0_i32_4 : i32 to vector<5x5x1xi32>
    %9 = arith.addi %7, %8 : vector<5x5x1xi32>
    %10 = tpu.iota {dimensions = array<i32: 1>} : vector<5x5x1xi32>
    %c2_i32_5 = arith.constant 2 : i32
    %11 = vector.broadcast %c2_i32_5 : i32 to vector<5x5x1xi32>
    %12 = arith.muli %11, %10 : vector<5x5x1xi32>
    %c0_i32_6 = arith.constant 0 : i32
    %13 = vector.broadcast %c0_i32_6 : i32 to vector<5x5x1xi32>
    %14 = arith.addi %12, %13 : vector<5x5x1xi32>
    %c1_i32 = arith.constant 1 : i32
    %15 = vector.broadcast %c1_i32 : i32 to vector<5x5x1xi32>
    %16 = arith.cmpi sge, %9, %15 : vector<5x5x1xi32>
    %c8_i32 = arith.constant 8 : i32
    %17 = vector.broadcast %c8_i32 : i32 to vector<5x5x1xi32>
    %18 = arith.cmpi sle, %9, %17 : vector<5x5x1xi32>
    %19 = arith.andi %16, %18 : vector<5x5x1xi1>
    %c1_i32_7 = arith.constant 1 : i32
    %20 = vector.broadcast %c1_i32_7 : i32 to vector<5x5x1xi32>
    %21 = arith.cmpi sge, %14, %20 : vector<5x5x1xi32>
    %22 = arith.andi %19, %21 : vector<5x5x1xi1>
    %c8_i32_8 = arith.constant 8 : i32
    %23 = vector.broadcast %c8_i32_8 : i32 to vector<5x5x1xi32>
    %24 = arith.cmpi sle, %14, %23 : vector<5x5x1xi32>
    %25 = arith.andi %22, %24 : vector<5x5x1xi1>
    %c0_9 = arith.constant 0 : index
    %c0_10 = arith.constant 0 : index
    %c0_11 = arith.constant 0 : index
    %c0_12 = arith.constant 0 : index
    %c0_13 = arith.constant 0 : index
    %26 = vector.load %arg3[%c0_9, %c0_10, %c0_11, %c0_12, %c0_13] : memref<1x4x5x5x64xf32, #tpu.memory_space<vmem>>, vector<1x1x5x5x64xf32>
    %27 = vector.shape_cast %26 : vector<1x1x5x5x64xf32> to vector<5x5x64xf32>
    %28 = vector.shape_cast %3 : vector<1x64xf32> to vector<1x1x64xf32>
    %29 = vector.broadcast %28 : vector<1x1x64xf32> to vector<5x5x64xf32>
    %30 = arith.mulf %27, %29 : vector<5x5x64xf32>
    %31 = vector.shape_cast %4 : vector<1x64xf32> to vector<1x1x64xf32>
    %32 = vector.broadcast %31 : vector<1x1x64xf32> to vector<5x5x64xf32>
    %33 = arith.addf %30, %32 : vector<5x5x64xf32>
    %cst = arith.constant 0.000000e+00 : f32
    %34 = vector.broadcast %cst : f32 to vector<5x5x64xf32>
    %35 = arith.maximumf %33, %34 : vector<5x5x64xf32>
    %36 = arith.extui %25 : vector<5x5x1xi1> to vector<5x5x1xi32>
    %37 = arith.sitofp %36 : vector<5x5x1xi32> to vector<5x5x1xf32>
    %38 = vector.broadcast %37 : vector<5x5x1xf32> to vector<5x5x64xf32>
    %39 = arith.mulf %35, %38 : vector<5x5x64xf32>
    %40 = tpu.iota {dimensions = array<i32: 0>} : vector<5x5x1xi32>
    %c2_i32_14 = arith.constant 2 : i32
    %41 = vector.broadcast %c2_i32_14 : i32 to vector<5x5x1xi32>
    %42 = arith.muli %41, %40 : vector<5x5x1xi32>
    %c0_i32_15 = arith.constant 0 : i32
    %43 = vector.broadcast %c0_i32_15 : i32 to vector<5x5x1xi32>
    %44 = arith.addi %42, %43 : vector<5x5x1xi32>
    %45 = tpu.iota {dimensions = array<i32: 1>} : vector<5x5x1xi32>
    %c2_i32_16 = arith.constant 2 : i32
    %46 = vector.broadcast %c2_i32_16 : i32 to vector<5x5x1xi32>
    %47 = arith.muli %46, %45 : vector<5x5x1xi32>
    %c1_i32_17 = arith.constant 1 : i32
    %48 = vector.broadcast %c1_i32_17 : i32 to vector<5x5x1xi32>
    %49 = arith.addi %47, %48 : vector<5x5x1xi32>
    %c1_i32_18 = arith.constant 1 : i32
    %50 = vector.broadcast %c1_i32_18 : i32 to vector<5x5x1xi32>
    %51 = arith.cmpi sge, %44, %50 : vector<5x5x1xi32>
    %c8_i32_19 = arith.constant 8 : i32
    %52 = vector.broadcast %c8_i32_19 : i32 to vector<5x5x1xi32>
    %53 = arith.cmpi sle, %44, %52 : vector<5x5x1xi32>
    %54 = arith.andi %51, %53 : vector<5x5x1xi1>
    %c1_i32_20 = arith.constant 1 : i32
    %55 = vector.broadcast %c1_i32_20 : i32 to vector<5x5x1xi32>
    %56 = arith.cmpi sge, %49, %55 : vector<5x5x1xi32>
    %57 = arith.andi %54, %56 : vector<5x5x1xi1>
    %c8_i32_21 = arith.constant 8 : i32
    %58 = vector.broadcast %c8_i32_21 : i32 to vector<5x5x1xi32>
    %59 = arith.cmpi sle, %49, %58 : vector<5x5x1xi32>
    %60 = arith.andi %57, %59 : vector<5x5x1xi1>
    %c0_22 = arith.constant 0 : index
    %c1 = arith.constant 1 : index
    %c0_23 = arith.constant 0 : index
    %c0_24 = arith.constant 0 : index
    %c0_25 = arith.constant 0 : index
    %61 = vector.load %arg3[%c0_22, %c1, %c0_23, %c0_24, %c0_25] : memref<1x4x5x5x64xf32, #tpu.memory_space<vmem>>, vector<1x1x5x5x64xf32>
    %62 = vector.shape_cast %61 : vector<1x1x5x5x64xf32> to vector<5x5x64xf32>
    %63 = vector.shape_cast %3 : vector<1x64xf32> to vector<1x1x64xf32>
    %64 = vector.broadcast %63 : vector<1x1x64xf32> to vector<5x5x64xf32>
    %65 = arith.mulf %62, %64 : vector<5x5x64xf32>
    %66 = vector.shape_cast %4 : vector<1x64xf32> to vector<1x1x64xf32>
    %67 = vector.broadcast %66 : vector<1x1x64xf32> to vector<5x5x64xf32>
    %68 = arith.addf %65, %67 : vector<5x5x64xf32>
    %cst_26 = arith.constant 0.000000e+00 : f32
    %69 = vector.broadcast %cst_26 : f32 to vector<5x5x64xf32>
    %70 = arith.maximumf %68, %69 : vector<5x5x64xf32>
    %71 = arith.extui %60 : vector<5x5x1xi1> to vector<5x5x1xi32>
    %72 = arith.sitofp %71 : vector<5x5x1xi32> to vector<5x5x1xf32>
    %73 = vector.broadcast %72 : vector<5x5x1xf32> to vector<5x5x64xf32>
    %74 = arith.mulf %70, %73 : vector<5x5x64xf32>
    %75 = tpu.iota {dimensions = array<i32: 0>} : vector<5x5x1xi32>
    %c2_i32_27 = arith.constant 2 : i32
    %76 = vector.broadcast %c2_i32_27 : i32 to vector<5x5x1xi32>
    %77 = arith.muli %76, %75 : vector<5x5x1xi32>
    %c1_i32_28 = arith.constant 1 : i32
    %78 = vector.broadcast %c1_i32_28 : i32 to vector<5x5x1xi32>
    %79 = arith.addi %77, %78 : vector<5x5x1xi32>
    %80 = tpu.iota {dimensions = array<i32: 1>} : vector<5x5x1xi32>
    %c2_i32_29 = arith.constant 2 : i32
    %81 = vector.broadcast %c2_i32_29 : i32 to vector<5x5x1xi32>
    %82 = arith.muli %81, %80 : vector<5x5x1xi32>
    %c0_i32_30 = arith.constant 0 : i32
    %83 = vector.broadcast %c0_i32_30 : i32 to vector<5x5x1xi32>
    %84 = arith.addi %82, %83 : vector<5x5x1xi32>
    %c1_i32_31 = arith.constant 1 : i32
    %85 = vector.broadcast %c1_i32_31 : i32 to vector<5x5x1xi32>
    %86 = arith.cmpi sge, %79, %85 : vector<5x5x1xi32>
    %c8_i32_32 = arith.constant 8 : i32
    %87 = vector.broadcast %c8_i32_32 : i32 to vector<5x5x1xi32>
    %88 = arith.cmpi sle, %79, %87 : vector<5x5x1xi32>
    %89 = arith.andi %86, %88 : vector<5x5x1xi1>
    %c1_i32_33 = arith.constant 1 : i32
    %90 = vector.broadcast %c1_i32_33 : i32 to vector<5x5x1xi32>
    %91 = arith.cmpi sge, %84, %90 : vector<5x5x1xi32>
    %92 = arith.andi %89, %91 : vector<5x5x1xi1>
    %c8_i32_34 = arith.constant 8 : i32
    %93 = vector.broadcast %c8_i32_34 : i32 to vector<5x5x1xi32>
    %94 = arith.cmpi sle, %84, %93 : vector<5x5x1xi32>
    %95 = arith.andi %92, %94 : vector<5x5x1xi1>
    %c0_35 = arith.constant 0 : index
    %c2 = arith.constant 2 : index
    %c0_36 = arith.constant 0 : index
    %c0_37 = arith.constant 0 : index
    %c0_38 = arith.constant 0 : index
    %96 = vector.load %arg3[%c0_35, %c2, %c0_36, %c0_37, %c0_38] : memref<1x4x5x5x64xf32, #tpu.memory_space<vmem>>, vector<1x1x5x5x64xf32>
    %97 = vector.shape_cast %96 : vector<1x1x5x5x64xf32> to vector<5x5x64xf32>
    %98 = vector.shape_cast %3 : vector<1x64xf32> to vector<1x1x64xf32>
    %99 = vector.broadcast %98 : vector<1x1x64xf32> to vector<5x5x64xf32>
    %100 = arith.mulf %97, %99 : vector<5x5x64xf32>
    %101 = vector.shape_cast %4 : vector<1x64xf32> to vector<1x1x64xf32>
    %102 = vector.broadcast %101 : vector<1x1x64xf32> to vector<5x5x64xf32>
    %103 = arith.addf %100, %102 : vector<5x5x64xf32>
    %cst_39 = arith.constant 0.000000e+00 : f32
    %104 = vector.broadcast %cst_39 : f32 to vector<5x5x64xf32>
    %105 = arith.maximumf %103, %104 : vector<5x5x64xf32>
    %106 = arith.extui %95 : vector<5x5x1xi1> to vector<5x5x1xi32>
    %107 = arith.sitofp %106 : vector<5x5x1xi32> to vector<5x5x1xf32>
    %108 = vector.broadcast %107 : vector<5x5x1xf32> to vector<5x5x64xf32>
    %109 = arith.mulf %105, %108 : vector<5x5x64xf32>
    %110 = tpu.iota {dimensions = array<i32: 0>} : vector<5x5x1xi32>
    %c2_i32_40 = arith.constant 2 : i32
    %111 = vector.broadcast %c2_i32_40 : i32 to vector<5x5x1xi32>
    %112 = arith.muli %111, %110 : vector<5x5x1xi32>
    %c1_i32_41 = arith.constant 1 : i32
    %113 = vector.broadcast %c1_i32_41 : i32 to vector<5x5x1xi32>
    %114 = arith.addi %112, %113 : vector<5x5x1xi32>
    %115 = tpu.iota {dimensions = array<i32: 1>} : vector<5x5x1xi32>
    %c2_i32_42 = arith.constant 2 : i32
    %116 = vector.broadcast %c2_i32_42 : i32 to vector<5x5x1xi32>
    %117 = arith.muli %116, %115 : vector<5x5x1xi32>
    %c1_i32_43 = arith.constant 1 : i32
    %118 = vector.broadcast %c1_i32_43 : i32 to vector<5x5x1xi32>
    %119 = arith.addi %117, %118 : vector<5x5x1xi32>
    %c1_i32_44 = arith.constant 1 : i32
    %120 = vector.broadcast %c1_i32_44 : i32 to vector<5x5x1xi32>
    %121 = arith.cmpi sge, %114, %120 : vector<5x5x1xi32>
    %c8_i32_45 = arith.constant 8 : i32
    %122 = vector.broadcast %c8_i32_45 : i32 to vector<5x5x1xi32>
    %123 = arith.cmpi sle, %114, %122 : vector<5x5x1xi32>
    %124 = arith.andi %121, %123 : vector<5x5x1xi1>
    %c1_i32_46 = arith.constant 1 : i32
    %125 = vector.broadcast %c1_i32_46 : i32 to vector<5x5x1xi32>
    %126 = arith.cmpi sge, %119, %125 : vector<5x5x1xi32>
    %127 = arith.andi %124, %126 : vector<5x5x1xi1>
    %c8_i32_47 = arith.constant 8 : i32
    %128 = vector.broadcast %c8_i32_47 : i32 to vector<5x5x1xi32>
    %129 = arith.cmpi sle, %119, %128 : vector<5x5x1xi32>
    %130 = arith.andi %127, %129 : vector<5x5x1xi1>
    %c0_48 = arith.constant 0 : index
    %c3 = arith.constant 3 : index
    %c0_49 = arith.constant 0 : index
    %c0_50 = arith.constant 0 : index
    %c0_51 = arith.constant 0 : index
    %131 = vector.load %arg3[%c0_48, %c3, %c0_49, %c0_50, %c0_51] : memref<1x4x5x5x64xf32, #tpu.memory_space<vmem>>, vector<1x1x5x5x64xf32>
    %132 = vector.shape_cast %131 : vector<1x1x5x5x64xf32> to vector<5x5x64xf32>
    %133 = vector.shape_cast %3 : vector<1x64xf32> to vector<1x1x64xf32>
    %134 = vector.broadcast %133 : vector<1x1x64xf32> to vector<5x5x64xf32>
    %135 = arith.mulf %132, %134 : vector<5x5x64xf32>
    %136 = vector.shape_cast %4 : vector<1x64xf32> to vector<1x1x64xf32>
    %137 = vector.broadcast %136 : vector<1x1x64xf32> to vector<5x5x64xf32>
    %138 = arith.addf %135, %137 : vector<5x5x64xf32>
    %cst_52 = arith.constant 0.000000e+00 : f32
    %139 = vector.broadcast %cst_52 : f32 to vector<5x5x64xf32>
    %140 = arith.maximumf %138, %139 : vector<5x5x64xf32>
    %141 = arith.extui %130 : vector<5x5x1xi1> to vector<5x5x1xi32>
    %142 = arith.sitofp %141 : vector<5x5x1xi32> to vector<5x5x1xf32>
    %143 = vector.broadcast %142 : vector<5x5x1xf32> to vector<5x5x64xf32>
    %144 = arith.mulf %140, %143 : vector<5x5x64xf32>
    %cst_53 = arith.constant 0.000000e+00 : f32
    %145 = vector.broadcast %cst_53 : f32 to vector<4x4x64xf32>
    %146 = vector.extract_strided_slice %39 {offsets = [0, 0, 0], sizes = [4, 4, 64], strides = [1, 1, 1]} : vector<5x5x64xf32> to vector<4x4x64xf32>
    %c0_54 = arith.constant 0 : index
    %c0_55 = arith.constant 0 : index
    %c0_56 = arith.constant 0 : index
    %c0_57 = arith.constant 0 : index
    %147 = vector.load %arg4[%c0_54, %c0_55, %c0_56, %c0_57] : memref<3x3x1x64xf32, #tpu.memory_space<vmem>>, vector<1x1x1x64xf32>
    %148 = vector.shape_cast %147 : vector<1x1x1x64xf32> to vector<1x64xf32>
    %149 = vector.shape_cast %148 : vector<1x64xf32> to vector<1x1x64xf32>
    %150 = vector.broadcast %149 : vector<1x1x64xf32> to vector<4x4x64xf32>
    %151 = arith.mulf %146, %150 : vector<4x4x64xf32>
    %152 = arith.addf %145, %151 : vector<4x4x64xf32>
    %153 = vector.extract_strided_slice %74 {offsets = [0, 0, 0], sizes = [4, 4, 64], strides = [1, 1, 1]} : vector<5x5x64xf32> to vector<4x4x64xf32>
    %c0_58 = arith.constant 0 : index
    %c1_59 = arith.constant 1 : index
    %c0_60 = arith.constant 0 : index
    %c0_61 = arith.constant 0 : index
    %154 = vector.load %arg4[%c0_58, %c1_59, %c0_60, %c0_61] : memref<3x3x1x64xf32, #tpu.memory_space<vmem>>, vector<1x1x1x64xf32>
    %155 = vector.shape_cast %154 : vector<1x1x1x64xf32> to vector<1x64xf32>
    %156 = vector.shape_cast %155 : vector<1x64xf32> to vector<1x1x64xf32>
    %157 = vector.broadcast %156 : vector<1x1x64xf32> to vector<4x4x64xf32>
    %158 = arith.mulf %153, %157 : vector<4x4x64xf32>
    %159 = arith.addf %152, %158 : vector<4x4x64xf32>
    %160 = vector.extract_strided_slice %39 {offsets = [0, 1, 0], sizes = [4, 4, 64], strides = [1, 1, 1]} : vector<5x5x64xf32> to vector<4x4x64xf32>
    %c0_62 = arith.constant 0 : index
    %c2_63 = arith.constant 2 : index
    %c0_64 = arith.constant 0 : index
    %c0_65 = arith.constant 0 : index
    %161 = vector.load %arg4[%c0_62, %c2_63, %c0_64, %c0_65] : memref<3x3x1x64xf32, #tpu.memory_space<vmem>>, vector<1x1x1x64xf32>
    %162 = vector.shape_cast %161 : vector<1x1x1x64xf32> to vector<1x64xf32>
    %163 = vector.shape_cast %162 : vector<1x64xf32> to vector<1x1x64xf32>
    %164 = vector.broadcast %163 : vector<1x1x64xf32> to vector<4x4x64xf32>
    %165 = arith.mulf %160, %164 : vector<4x4x64xf32>
    %166 = arith.addf %159, %165 : vector<4x4x64xf32>
    %167 = vector.extract_strided_slice %109 {offsets = [0, 0, 0], sizes = [4, 4, 64], strides = [1, 1, 1]} : vector<5x5x64xf32> to vector<4x4x64xf32>
    %c1_66 = arith.constant 1 : index
    %c0_67 = arith.constant 0 : index
    %c0_68 = arith.constant 0 : index
    %c0_69 = arith.constant 0 : index
    %168 = vector.load %arg4[%c1_66, %c0_67, %c0_68, %c0_69] : memref<3x3x1x64xf32, #tpu.memory_space<vmem>>, vector<1x1x1x64xf32>
    %169 = vector.shape_cast %168 : vector<1x1x1x64xf32> to vector<1x64xf32>
    %170 = vector.shape_cast %169 : vector<1x64xf32> to vector<1x1x64xf32>
    %171 = vector.broadcast %170 : vector<1x1x64xf32> to vector<4x4x64xf32>
    %172 = arith.mulf %167, %171 : vector<4x4x64xf32>
    %173 = arith.addf %166, %172 : vector<4x4x64xf32>
    %174 = vector.extract_strided_slice %144 {offsets = [0, 0, 0], sizes = [4, 4, 64], strides = [1, 1, 1]} : vector<5x5x64xf32> to vector<4x4x64xf32>
    %c1_70 = arith.constant 1 : index
    %c1_71 = arith.constant 1 : index
    %c0_72 = arith.constant 0 : index
    %c0_73 = arith.constant 0 : index
    %175 = vector.load %arg4[%c1_70, %c1_71, %c0_72, %c0_73] : memref<3x3x1x64xf32, #tpu.memory_space<vmem>>, vector<1x1x1x64xf32>
    %176 = vector.shape_cast %175 : vector<1x1x1x64xf32> to vector<1x64xf32>
    %177 = vector.shape_cast %176 : vector<1x64xf32> to vector<1x1x64xf32>
    %178 = vector.broadcast %177 : vector<1x1x64xf32> to vector<4x4x64xf32>
    %179 = arith.mulf %174, %178 : vector<4x4x64xf32>
    %180 = arith.addf %173, %179 : vector<4x4x64xf32>
    %181 = vector.extract_strided_slice %109 {offsets = [0, 1, 0], sizes = [4, 4, 64], strides = [1, 1, 1]} : vector<5x5x64xf32> to vector<4x4x64xf32>
    %c1_74 = arith.constant 1 : index
    %c2_75 = arith.constant 2 : index
    %c0_76 = arith.constant 0 : index
    %c0_77 = arith.constant 0 : index
    %182 = vector.load %arg4[%c1_74, %c2_75, %c0_76, %c0_77] : memref<3x3x1x64xf32, #tpu.memory_space<vmem>>, vector<1x1x1x64xf32>
    %183 = vector.shape_cast %182 : vector<1x1x1x64xf32> to vector<1x64xf32>
    %184 = vector.shape_cast %183 : vector<1x64xf32> to vector<1x1x64xf32>
    %185 = vector.broadcast %184 : vector<1x1x64xf32> to vector<4x4x64xf32>
    %186 = arith.mulf %181, %185 : vector<4x4x64xf32>
    %187 = arith.addf %180, %186 : vector<4x4x64xf32>
    %188 = vector.extract_strided_slice %39 {offsets = [1, 0, 0], sizes = [4, 4, 64], strides = [1, 1, 1]} : vector<5x5x64xf32> to vector<4x4x64xf32>
    %c2_78 = arith.constant 2 : index
    %c0_79 = arith.constant 0 : index
    %c0_80 = arith.constant 0 : index
    %c0_81 = arith.constant 0 : index
    %189 = vector.load %arg4[%c2_78, %c0_79, %c0_80, %c0_81] : memref<3x3x1x64xf32, #tpu.memory_space<vmem>>, vector<1x1x1x64xf32>
    %190 = vector.shape_cast %189 : vector<1x1x1x64xf32> to vector<1x64xf32>
    %191 = vector.shape_cast %190 : vector<1x64xf32> to vector<1x1x64xf32>
    %192 = vector.broadcast %191 : vector<1x1x64xf32> to vector<4x4x64xf32>
    %193 = arith.mulf %188, %192 : vector<4x4x64xf32>
    %194 = arith.addf %187, %193 : vector<4x4x64xf32>
    %195 = vector.extract_strided_slice %74 {offsets = [1, 0, 0], sizes = [4, 4, 64], strides = [1, 1, 1]} : vector<5x5x64xf32> to vector<4x4x64xf32>
    %c2_82 = arith.constant 2 : index
    %c1_83 = arith.constant 1 : index
    %c0_84 = arith.constant 0 : index
    %c0_85 = arith.constant 0 : index
    %196 = vector.load %arg4[%c2_82, %c1_83, %c0_84, %c0_85] : memref<3x3x1x64xf32, #tpu.memory_space<vmem>>, vector<1x1x1x64xf32>
    %197 = vector.shape_cast %196 : vector<1x1x1x64xf32> to vector<1x64xf32>
    %198 = vector.shape_cast %197 : vector<1x64xf32> to vector<1x1x64xf32>
    %199 = vector.broadcast %198 : vector<1x1x64xf32> to vector<4x4x64xf32>
    %200 = arith.mulf %195, %199 : vector<4x4x64xf32>
    %201 = arith.addf %194, %200 : vector<4x4x64xf32>
    %202 = vector.extract_strided_slice %39 {offsets = [1, 1, 0], sizes = [4, 4, 64], strides = [1, 1, 1]} : vector<5x5x64xf32> to vector<4x4x64xf32>
    %c2_86 = arith.constant 2 : index
    %c2_87 = arith.constant 2 : index
    %c0_88 = arith.constant 0 : index
    %c0_89 = arith.constant 0 : index
    %203 = vector.load %arg4[%c2_86, %c2_87, %c0_88, %c0_89] : memref<3x3x1x64xf32, #tpu.memory_space<vmem>>, vector<1x1x1x64xf32>
    %204 = vector.shape_cast %203 : vector<1x1x1x64xf32> to vector<1x64xf32>
    %205 = vector.shape_cast %204 : vector<1x64xf32> to vector<1x1x64xf32>
    %206 = vector.broadcast %205 : vector<1x1x64xf32> to vector<4x4x64xf32>
    %207 = arith.mulf %202, %206 : vector<4x4x64xf32>
    %208 = arith.addf %201, %207 : vector<4x4x64xf32>
    %c0_90 = arith.constant 0 : index
    %c0_91 = arith.constant 0 : index
    %c0_92 = arith.constant 0 : index
    %c0_93 = arith.constant 0 : index
    %209 = vector.load %arg5[%c0_90, %c0_91, %c0_92, %c0_93] : memref<1x4x4x64xf32, #tpu.memory_space<vmem>>, vector<1x4x4x64xf32>
    %210 = vector.shape_cast %209 : vector<1x4x4x64xf32> to vector<4x4x64xf32>
    %211 = vector.shape_cast %208 : vector<4x4x64xf32> to vector<1x4x4x64xf32>
    tpu.vector_store %arg5[%c0_90, %c0_91, %c0_92, %c0_93], %211 {strides = array<i32>} : memref<1x4x4x64xf32, #tpu.memory_space<vmem>>, vector<1x4x4x64xf32>,
    %c0_94 = arith.constant 0 : index
    %c0_95 = arith.constant 0 : index
    %212 = vector.load %arg6[%c0_94, %c0_95] : memref<1x64xf32, #tpu.memory_space<vmem>>, vector<1x64xf32>
    %cst_96 = arith.constant dense<0.000000e+00> : vector<4x64xf32>
    %213 = vector.multi_reduction <add>, %208, %cst_96 [0] : vector<4x4x64xf32> to vector<4x64xf32>
    %214 = vector.shape_cast %213 : vector<4x64xf32> to vector<1x4x64xf32>
    %cst_97 = arith.constant dense<0.000000e+00> : vector<1x64xf32>
    %215 = vector.multi_reduction <add>, %214, %cst_97 [1] : vector<1x4x64xf32> to vector<1x64xf32>
    %216 = vector.shape_cast %215 : vector<1x64xf32> to vector<1x1x64xf32>
    %217 = vector.shape_cast %216 : vector<1x1x64xf32> to vector<1x64xf32>
    %218 = arith.addf %212, %217 : vector<1x64xf32>
    %c0_98 = arith.constant 0 : index
    %c0_99 = arith.constant 0 : index
    %219 = vector.load %arg6[%c0_98, %c0_99] : memref<1x64xf32, #tpu.memory_space<vmem>>, vector<1x64xf32>
    tpu.vector_store %arg6[%c0_98, %c0_99], %218 {strides = array<i32>} : memref<1x64xf32, #tpu.memory_space<vmem>>, vector<1x64xf32>,
    %c0_100 = arith.constant 0 : index
    %c0_101 = arith.constant 0 : index
    %220 = vector.load %arg7[%c0_100, %c0_101] : memref<1x64xf32, #tpu.memory_space<vmem>>, vector<1x64xf32>
    %221 = arith.mulf %208, %208 : vector<4x4x64xf32>
    %cst_102 = arith.constant dense<0.000000e+00> : vector<4x64xf32>
    %222 = vector.multi_reduction <add>, %221, %cst_102 [0] : vector<4x4x64xf32> to vector<4x64xf32>
    %223 = vector.shape_cast %222 : vector<4x64xf32> to vector<1x4x64xf32>
    %cst_103 = arith.constant dense<0.000000e+00> : vector<1x64xf32>
    %224 = vector.multi_reduction <add>, %223, %cst_103 [1] : vector<1x4x64xf32> to vector<1x64xf32>
    %225 = vector.shape_cast %224 : vector<1x64xf32> to vector<1x1x64xf32>
    %226 = vector.shape_cast %225 : vector<1x1x64xf32> to vector<1x64xf32>
    %227 = arith.addf %220, %226 : vector<1x64xf32>
    %c0_104 = arith.constant 0 : index
    %c0_105 = arith.constant 0 : index
    %228 = vector.load %arg7[%c0_104, %c0_105] : memref<1x64xf32, #tpu.memory_space<vmem>>, vector<1x64xf32>
    tpu.vector_store %arg7[%c0_104, %c0_105], %227 {strides = array<i32>} : memref<1x64xf32, #tpu.memory_space<vmem>>, vector<1x64xf32>,
    return
  }
  func.func @transform_0(%arg0: i32) -> (i32, i32) {
    %c0_i32 = arith.constant 0 : i32
    %c0_i32_0 = arith.constant 0 : i32
    %c0_i32_1 = arith.constant 0 : i32
    return %c0_i32, %c0_i32_0 : i32, i32
  }
  func.func @transform_1(%arg0: i32) -> (i32, i32) {
    %c0_i32 = arith.constant 0 : i32
    %c0_i32_0 = arith.constant 0 : i32
    %c0_i32_1 = arith.constant 0 : i32
    return %c0_i32, %c0_i32_0 : i32, i32
  }
  func.func @transform_2(%arg0: i32) -> (i32, i32, i32, i32, i32) {
    %c0_i32 = arith.constant 0 : i32
    %c0_i32_0 = arith.constant 0 : i32
    %c0_i32_1 = arith.constant 0 : i32
    %c0_i32_2 = arith.constant 0 : i32
    %c0_i32_3 = arith.constant 0 : i32
    return %arg0, %c0_i32, %c0_i32_0, %c0_i32_1, %c0_i32_2 : i32, i32, i32, i32, i32
  }
  func.func @transform_3(%arg0: i32) -> (i32, i32, i32, i32) {
    %c0_i32 = arith.constant 0 : i32
    %c0_i32_0 = arith.constant 0 : i32
    %c0_i32_1 = arith.constant 0 : i32
    %c0_i32_2 = arith.constant 0 : i32
    %c0_i32_3 = arith.constant 0 : i32
    return %c0_i32, %c0_i32_0, %c0_i32_1, %c0_i32_2 : i32, i32, i32, i32
  }
  func.func @transform_4(%arg0: i32) -> (i32, i32, i32, i32) {
    %c0_i32 = arith.constant 0 : i32
    %c0_i32_0 = arith.constant 0 : i32
    %c0_i32_1 = arith.constant 0 : i32
    %c0_i32_2 = arith.constant 0 : i32
    return %arg0, %c0_i32, %c0_i32_0, %c0_i32_1 : i32, i32, i32, i32
  }
  func.func @transform_5(%arg0: i32) -> (i32, i32) {
    %c0_i32 = arith.constant 0 : i32
    %c0_i32_0 = arith.constant 0 : i32
    %c0_i32_1 = arith.constant 0 : i32
    return %c0_i32, %c0_i32_0 : i32, i32
  }
  func.func @transform_6(%arg0: i32) -> (i32, i32) {
    %c0_i32 = arith.constant 0 : i32
    %c0_i32_0 = arith.constant 0 : i32
    %c0_i32_1 = arith.constant 0 : i32
    return %c0_i32, %c0_i32_0 : i32, i32
  }
}

module attributes {stable_mosaic.version = 11 : i64} {
  func.func @bnrelu_matmul_stats_kernel(%arg0: i32, %arg1: memref<1x64xf32, #tpu.memory_space<vmem>>, %arg2: memref<1x64xf32, #tpu.memory_space<vmem>>, %arg3: memref<32x64xf32, #tpu.memory_space<vmem>>, %arg4: memref<64x128xbf16, #tpu.memory_space<vmem>>, %arg5: memref<32x128xf32, #tpu.memory_space<vmem>>, %arg6: memref<1x128xf32, #tpu.memory_space<vmem>>, %arg7: memref<1x128xf32, #tpu.memory_space<vmem>>) attributes {dimension_semantics = [#tpu.dimension_semantics<arbitrary>], iteration_bounds = array<i64: 1>, scalar_prefetch = 0 : i64, scratch_operands = 0 : i64, tpu.core_type = #tpu.core_type<tc>, window_params = [{pipeline_mode = #tpu.pipeline_mode<synchronous>, transform_indices = @transform_0, window_bounds = array<i64: 1, 64>}, {pipeline_mode = #tpu.pipeline_mode<synchronous>, transform_indices = @transform_1, window_bounds = array<i64: 1, 64>}, {transform_indices = @transform_2, window_bounds = array<i64: 32, 64>}, {pipeline_mode = #tpu.pipeline_mode<synchronous>, transform_indices = @transform_3, window_bounds = array<i64: 64, 128>}, {transform_indices = @transform_4, window_bounds = array<i64: 32, 128>}, {pipeline_mode = #tpu.pipeline_mode<synchronous>, transform_indices = @transform_5, window_bounds = array<i64: 1, 128>}, {pipeline_mode = #tpu.pipeline_mode<synchronous>, transform_indices = @transform_6, window_bounds = array<i64: 1, 128>}]} {
    %c0_i32 = arith.constant 0 : i32
    %0 = arith.cmpi eq, %arg0, %c0_i32 : i32
    %1 = arith.extui %0 : i1 to i32
    %c0_i32_0 = arith.constant 0 : i32
    %2 = arith.cmpi ne, %1, %c0_i32_0 : i32
    scf.if %2 {
      %cst_21 = arith.constant 0.000000e+00 : f32
      %27 = vector.broadcast %cst_21 : f32 to vector<1x128xf32>
      %c0_22 = arith.constant 0 : index
      %c0_23 = arith.constant 0 : index
      %28 = vector.load %arg6[%c0_22, %c0_23] : memref<1x128xf32, #tpu.memory_space<vmem>>, vector<1x128xf32>
      tpu.vector_store %arg6[%c0_22, %c0_23], %27 {strides = array<i32>} : memref<1x128xf32, #tpu.memory_space<vmem>>, vector<1x128xf32>,
      %cst_24 = arith.constant 0.000000e+00 : f32
      %29 = vector.broadcast %cst_24 : f32 to vector<1x128xf32>
      %c0_25 = arith.constant 0 : index
      %c0_26 = arith.constant 0 : index
      %30 = vector.load %arg7[%c0_25, %c0_26] : memref<1x128xf32, #tpu.memory_space<vmem>>, vector<1x128xf32>
      tpu.vector_store %arg7[%c0_25, %c0_26], %29 {strides = array<i32>} : memref<1x128xf32, #tpu.memory_space<vmem>>, vector<1x128xf32>,
    } else {
    }
    %c0 = arith.constant 0 : index
    %c0_1 = arith.constant 0 : index
    %3 = vector.load %arg3[%c0, %c0_1] : memref<32x64xf32, #tpu.memory_space<vmem>>, vector<32x64xf32>
    %c0_2 = arith.constant 0 : index
    %c0_3 = arith.constant 0 : index
    %4 = vector.load %arg1[%c0_2, %c0_3] : memref<1x64xf32, #tpu.memory_space<vmem>>, vector<1x64xf32>
    %5 = vector.broadcast %4 : vector<1x64xf32> to vector<32x64xf32>
    %6 = arith.mulf %3, %5 : vector<32x64xf32>
    %c0_4 = arith.constant 0 : index
    %c0_5 = arith.constant 0 : index
    %7 = vector.load %arg2[%c0_4, %c0_5] : memref<1x64xf32, #tpu.memory_space<vmem>>, vector<1x64xf32>
    %8 = vector.broadcast %7 : vector<1x64xf32> to vector<32x64xf32>
    %9 = arith.addf %6, %8 : vector<32x64xf32>
    %cst = arith.constant 0.000000e+00 : f32
    %10 = vector.broadcast %cst : f32 to vector<32x64xf32>
    %11 = arith.maximumf %9, %10 : vector<32x64xf32>
    %12 = arith.truncf %11 : vector<32x64xf32> to vector<32x64xbf16>
    %c0_6 = arith.constant 0 : index
    %c0_7 = arith.constant 0 : index
    %13 = vector.load %arg4[%c0_6, %c0_7] : memref<64x128xbf16, #tpu.memory_space<vmem>>, vector<64x128xbf16>
    %cst_8 = arith.constant dense<0.000000e+00> : vector<32x128xf32>
    %14 = tpu.matmul %12, %13, %cst_8 {dimension_numbers = #tpu.dot_dimension_numbers<[1], [0], [0], [1], [0, 0, 1, 1], [], []>} : vector<32x64xbf16>, vector<64x128xbf16>, vector<32x128xf32> -> vector<32x128xf32>
    %c0_9 = arith.constant 0 : index
    %c0_10 = arith.constant 0 : index
    %15 = vector.load %arg5[%c0_9, %c0_10] : memref<32x128xf32, #tpu.memory_space<vmem>>, vector<32x128xf32>
    tpu.vector_store %arg5[%c0_9, %c0_10], %14 {strides = array<i32>} : memref<32x128xf32, #tpu.memory_space<vmem>>, vector<32x128xf32>,
    %c0_11 = arith.constant 0 : index
    %c0_12 = arith.constant 0 : index
    %16 = vector.load %arg6[%c0_11, %c0_12] : memref<1x128xf32, #tpu.memory_space<vmem>>, vector<1x128xf32>
    %cst_13 = arith.constant dense<0.000000e+00> : vector<128xf32>
    %17 = vector.multi_reduction <add>, %14, %cst_13 [0] : vector<32x128xf32> to vector<128xf32>
    %18 = vector.shape_cast %17 : vector<128xf32> to vector<1x128xf32>
    %19 = arith.addf %16, %18 : vector<1x128xf32>
    %c0_14 = arith.constant 0 : index
    %c0_15 = arith.constant 0 : index
    %20 = vector.load %arg6[%c0_14, %c0_15] : memref<1x128xf32, #tpu.memory_space<vmem>>, vector<1x128xf32>
    tpu.vector_store %arg6[%c0_14, %c0_15], %19 {strides = array<i32>} : memref<1x128xf32, #tpu.memory_space<vmem>>, vector<1x128xf32>,
    %c0_16 = arith.constant 0 : index
    %c0_17 = arith.constant 0 : index
    %21 = vector.load %arg7[%c0_16, %c0_17] : memref<1x128xf32, #tpu.memory_space<vmem>>, vector<1x128xf32>
    %22 = arith.mulf %14, %14 : vector<32x128xf32>
    %cst_18 = arith.constant dense<0.000000e+00> : vector<128xf32>
    %23 = vector.multi_reduction <add>, %22, %cst_18 [0] : vector<32x128xf32> to vector<128xf32>
    %24 = vector.shape_cast %23 : vector<128xf32> to vector<1x128xf32>
    %25 = arith.addf %21, %24 : vector<1x128xf32>
    %c0_19 = arith.constant 0 : index
    %c0_20 = arith.constant 0 : index
    %26 = vector.load %arg7[%c0_19, %c0_20] : memref<1x128xf32, #tpu.memory_space<vmem>>, vector<1x128xf32>
    tpu.vector_store %arg7[%c0_19, %c0_20], %25 {strides = array<i32>} : memref<1x128xf32, #tpu.memory_space<vmem>>, vector<1x128xf32>,
    return
  }
  func.func @transform_0(%arg0: i32) -> (i32, i32) {
    %c0_i32 = arith.constant 0 : i32
    %c0_i32_0 = arith.constant 0 : i32
    %c0_i32_1 = arith.constant 0 : i32
    return %c0_i32, %c0_i32_0 : i32, i32
  }
  func.func @transform_1(%arg0: i32) -> (i32, i32) {
    %c0_i32 = arith.constant 0 : i32
    %c0_i32_0 = arith.constant 0 : i32
    %c0_i32_1 = arith.constant 0 : i32
    return %c0_i32, %c0_i32_0 : i32, i32
  }
  func.func @transform_2(%arg0: i32) -> (i32, i32) {
    %c0_i32 = arith.constant 0 : i32
    %c0_i32_0 = arith.constant 0 : i32
    return %arg0, %c0_i32 : i32, i32
  }
  func.func @transform_3(%arg0: i32) -> (i32, i32) {
    %c0_i32 = arith.constant 0 : i32
    %c0_i32_0 = arith.constant 0 : i32
    %c0_i32_1 = arith.constant 0 : i32
    return %c0_i32, %c0_i32_0 : i32, i32
  }
  func.func @transform_4(%arg0: i32) -> (i32, i32) {
    %c0_i32 = arith.constant 0 : i32
    %c0_i32_0 = arith.constant 0 : i32
    return %arg0, %c0_i32 : i32, i32
  }
  func.func @transform_5(%arg0: i32) -> (i32, i32) {
    %c0_i32 = arith.constant 0 : i32
    %c0_i32_0 = arith.constant 0 : i32
    %c0_i32_1 = arith.constant 0 : i32
    return %c0_i32, %c0_i32_0 : i32, i32
  }
  func.func @transform_6(%arg0: i32) -> (i32, i32) {
    %c0_i32 = arith.constant 0 : i32
    %c0_i32_0 = arith.constant 0 : i32
    %c0_i32_1 = arith.constant 0 : i32
    return %c0_i32, %c0_i32_0 : i32, i32
  }
}

module attributes {stable_mosaic.version = 11 : i64} {
  func.func @bnrelu_dwconv_stats_kernel(%arg0: i32, %arg1: memref<1x128xf32, #tpu.memory_space<vmem>>, %arg2: memref<1x128xf32, #tpu.memory_space<vmem>>, %arg3: memref<1x4x3x3x128xf32, #tpu.memory_space<vmem>>, %arg4: memref<3x3x1x128xf32, #tpu.memory_space<vmem>>, %arg5: memref<1x2x2x128xf32, #tpu.memory_space<vmem>>, %arg6: memref<1x128xf32, #tpu.memory_space<vmem>>, %arg7: memref<1x128xf32, #tpu.memory_space<vmem>>) attributes {dimension_semantics = [#tpu.dimension_semantics<arbitrary>], iteration_bounds = array<i64: 2>, scalar_prefetch = 0 : i64, scratch_operands = 0 : i64, tpu.core_type = #tpu.core_type<tc>, window_params = [{pipeline_mode = #tpu.pipeline_mode<synchronous>, transform_indices = @transform_0, window_bounds = array<i64: 1, 128>}, {pipeline_mode = #tpu.pipeline_mode<synchronous>, transform_indices = @transform_1, window_bounds = array<i64: 1, 128>}, {transform_indices = @transform_2, window_bounds = array<i64: 1, 4, 3, 3, 128>}, {pipeline_mode = #tpu.pipeline_mode<synchronous>, transform_indices = @transform_3, window_bounds = array<i64: 3, 3, 1, 128>}, {transform_indices = @transform_4, window_bounds = array<i64: 1, 2, 2, 128>}, {pipeline_mode = #tpu.pipeline_mode<synchronous>, transform_indices = @transform_5, window_bounds = array<i64: 1, 128>}, {pipeline_mode = #tpu.pipeline_mode<synchronous>, transform_indices = @transform_6, window_bounds = array<i64: 1, 128>}]} {
    %c0_i32 = arith.constant 0 : i32
    %0 = arith.cmpi eq, %arg0, %c0_i32 : i32
    %1 = arith.extui %0 : i1 to i32
    %c0_i32_0 = arith.constant 0 : i32
    %2 = arith.cmpi ne, %1, %c0_i32_0 : i32
    scf.if %2 {
      %cst_106 = arith.constant 0.000000e+00 : f32
      %229 = vector.broadcast %cst_106 : f32 to vector<1x128xf32>
      %c0_107 = arith.constant 0 : index
      %c0_108 = arith.constant 0 : index
      %230 = vector.load %arg6[%c0_107, %c0_108] : memref<1x128xf32, #tpu.memory_space<vmem>>, vector<1x128xf32>
      tpu.vector_store %arg6[%c0_107, %c0_108], %229 {strides = array<i32>} : memref<1x128xf32, #tpu.memory_space<vmem>>, vector<1x128xf32>,
      %cst_109 = arith.constant 0.000000e+00 : f32
      %231 = vector.broadcast %cst_109 : f32 to vector<1x128xf32>
      %c0_110 = arith.constant 0 : index
      %c0_111 = arith.constant 0 : index
      %232 = vector.load %arg7[%c0_110, %c0_111] : memref<1x128xf32, #tpu.memory_space<vmem>>, vector<1x128xf32>
      tpu.vector_store %arg7[%c0_110, %c0_111], %231 {strides = array<i32>} : memref<1x128xf32, #tpu.memory_space<vmem>>, vector<1x128xf32>,
    } else {
    }
    %c0 = arith.constant 0 : index
    %c0_1 = arith.constant 0 : index
    %3 = vector.load %arg1[%c0, %c0_1] : memref<1x128xf32, #tpu.memory_space<vmem>>, vector<1x128xf32>
    %c0_2 = arith.constant 0 : index
    %c0_3 = arith.constant 0 : index
    %4 = vector.load %arg2[%c0_2, %c0_3] : memref<1x128xf32, #tpu.memory_space<vmem>>, vector<1x128xf32>
    %5 = tpu.iota {dimensions = array<i32: 0>} : vector<3x3x1xi32>
    %c2_i32 = arith.constant 2 : i32
    %6 = vector.broadcast %c2_i32 : i32 to vector<3x3x1xi32>
    %7 = arith.muli %6, %5 : vector<3x3x1xi32>
    %c0_i32_4 = arith.constant 0 : i32
    %8 = vector.broadcast %c0_i32_4 : i32 to vector<3x3x1xi32>
    %9 = arith.addi %7, %8 : vector<3x3x1xi32>
    %10 = tpu.iota {dimensions = array<i32: 1>} : vector<3x3x1xi32>
    %c2_i32_5 = arith.constant 2 : i32
    %11 = vector.broadcast %c2_i32_5 : i32 to vector<3x3x1xi32>
    %12 = arith.muli %11, %10 : vector<3x3x1xi32>
    %c0_i32_6 = arith.constant 0 : i32
    %13 = vector.broadcast %c0_i32_6 : i32 to vector<3x3x1xi32>
    %14 = arith.addi %12, %13 : vector<3x3x1xi32>
    %c1_i32 = arith.constant 1 : i32
    %15 = vector.broadcast %c1_i32 : i32 to vector<3x3x1xi32>
    %16 = arith.cmpi sge, %9, %15 : vector<3x3x1xi32>
    %c4_i32 = arith.constant 4 : i32
    %17 = vector.broadcast %c4_i32 : i32 to vector<3x3x1xi32>
    %18 = arith.cmpi sle, %9, %17 : vector<3x3x1xi32>
    %19 = arith.andi %16, %18 : vector<3x3x1xi1>
    %c1_i32_7 = arith.constant 1 : i32
    %20 = vector.broadcast %c1_i32_7 : i32 to vector<3x3x1xi32>
    %21 = arith.cmpi sge, %14, %20 : vector<3x3x1xi32>
    %22 = arith.andi %19, %21 : vector<3x3x1xi1>
    %c4_i32_8 = arith.constant 4 : i32
    %23 = vector.broadcast %c4_i32_8 : i32 to vector<3x3x1xi32>
    %24 = arith.cmpi sle, %14, %23 : vector<3x3x1xi32>
    %25 = arith.andi %22, %24 : vector<3x3x1xi1>
    %c0_9 = arith.constant 0 : index
    %c0_10 = arith.constant 0 : index
    %c0_11 = arith.constant 0 : index
    %c0_12 = arith.constant 0 : index
    %c0_13 = arith.constant 0 : index
    %26 = vector.load %arg3[%c0_9, %c0_10, %c0_11, %c0_12, %c0_13] : memref<1x4x3x3x128xf32, #tpu.memory_space<vmem>>, vector<1x1x3x3x128xf32>
    %27 = vector.shape_cast %26 : vector<1x1x3x3x128xf32> to vector<3x3x128xf32>
    %28 = vector.shape_cast %3 : vector<1x128xf32> to vector<1x1x128xf32>
    %29 = vector.broadcast %28 : vector<1x1x128xf32> to vector<3x3x128xf32>
    %30 = arith.mulf %27, %29 : vector<3x3x128xf32>
    %31 = vector.shape_cast %4 : vector<1x128xf32> to vector<1x1x128xf32>
    %32 = vector.broadcast %31 : vector<1x1x128xf32> to vector<3x3x128xf32>
    %33 = arith.addf %30, %32 : vector<3x3x128xf32>
    %cst = arith.constant 0.000000e+00 : f32
    %34 = vector.broadcast %cst : f32 to vector<3x3x128xf32>
    %35 = arith.maximumf %33, %34 : vector<3x3x128xf32>
    %36 = arith.extui %25 : vector<3x3x1xi1> to vector<3x3x1xi32>
    %37 = arith.sitofp %36 : vector<3x3x1xi32> to vector<3x3x1xf32>
    %38 = vector.broadcast %37 : vector<3x3x1xf32> to vector<3x3x128xf32>
    %39 = arith.mulf %35, %38 : vector<3x3x128xf32>
    %40 = tpu.iota {dimensions = array<i32: 0>} : vector<3x3x1xi32>
    %c2_i32_14 = arith.constant 2 : i32
    %41 = vector.broadcast %c2_i32_14 : i32 to vector<3x3x1xi32>
    %42 = arith.muli %41, %40 : vector<3x3x1xi32>
    %c0_i32_15 = arith.constant 0 : i32
    %43 = vector.broadcast %c0_i32_15 : i32 to vector<3x3x1xi32>
    %44 = arith.addi %42, %43 : vector<3x3x1xi32>
    %45 = tpu.iota {dimensions = array<i32: 1>} : vector<3x3x1xi32>
    %c2_i32_16 = arith.constant 2 : i32
    %46 = vector.broadcast %c2_i32_16 : i32 to vector<3x3x1xi32>
    %47 = arith.muli %46, %45 : vector<3x3x1xi32>
    %c1_i32_17 = arith.constant 1 : i32
    %48 = vector.broadcast %c1_i32_17 : i32 to vector<3x3x1xi32>
    %49 = arith.addi %47, %48 : vector<3x3x1xi32>
    %c1_i32_18 = arith.constant 1 : i32
    %50 = vector.broadcast %c1_i32_18 : i32 to vector<3x3x1xi32>
    %51 = arith.cmpi sge, %44, %50 : vector<3x3x1xi32>
    %c4_i32_19 = arith.constant 4 : i32
    %52 = vector.broadcast %c4_i32_19 : i32 to vector<3x3x1xi32>
    %53 = arith.cmpi sle, %44, %52 : vector<3x3x1xi32>
    %54 = arith.andi %51, %53 : vector<3x3x1xi1>
    %c1_i32_20 = arith.constant 1 : i32
    %55 = vector.broadcast %c1_i32_20 : i32 to vector<3x3x1xi32>
    %56 = arith.cmpi sge, %49, %55 : vector<3x3x1xi32>
    %57 = arith.andi %54, %56 : vector<3x3x1xi1>
    %c4_i32_21 = arith.constant 4 : i32
    %58 = vector.broadcast %c4_i32_21 : i32 to vector<3x3x1xi32>
    %59 = arith.cmpi sle, %49, %58 : vector<3x3x1xi32>
    %60 = arith.andi %57, %59 : vector<3x3x1xi1>
    %c0_22 = arith.constant 0 : index
    %c1 = arith.constant 1 : index
    %c0_23 = arith.constant 0 : index
    %c0_24 = arith.constant 0 : index
    %c0_25 = arith.constant 0 : index
    %61 = vector.load %arg3[%c0_22, %c1, %c0_23, %c0_24, %c0_25] : memref<1x4x3x3x128xf32, #tpu.memory_space<vmem>>, vector<1x1x3x3x128xf32>
    %62 = vector.shape_cast %61 : vector<1x1x3x3x128xf32> to vector<3x3x128xf32>
    %63 = vector.shape_cast %3 : vector<1x128xf32> to vector<1x1x128xf32>
    %64 = vector.broadcast %63 : vector<1x1x128xf32> to vector<3x3x128xf32>
    %65 = arith.mulf %62, %64 : vector<3x3x128xf32>
    %66 = vector.shape_cast %4 : vector<1x128xf32> to vector<1x1x128xf32>
    %67 = vector.broadcast %66 : vector<1x1x128xf32> to vector<3x3x128xf32>
    %68 = arith.addf %65, %67 : vector<3x3x128xf32>
    %cst_26 = arith.constant 0.000000e+00 : f32
    %69 = vector.broadcast %cst_26 : f32 to vector<3x3x128xf32>
    %70 = arith.maximumf %68, %69 : vector<3x3x128xf32>
    %71 = arith.extui %60 : vector<3x3x1xi1> to vector<3x3x1xi32>
    %72 = arith.sitofp %71 : vector<3x3x1xi32> to vector<3x3x1xf32>
    %73 = vector.broadcast %72 : vector<3x3x1xf32> to vector<3x3x128xf32>
    %74 = arith.mulf %70, %73 : vector<3x3x128xf32>
    %75 = tpu.iota {dimensions = array<i32: 0>} : vector<3x3x1xi32>
    %c2_i32_27 = arith.constant 2 : i32
    %76 = vector.broadcast %c2_i32_27 : i32 to vector<3x3x1xi32>
    %77 = arith.muli %76, %75 : vector<3x3x1xi32>
    %c1_i32_28 = arith.constant 1 : i32
    %78 = vector.broadcast %c1_i32_28 : i32 to vector<3x3x1xi32>
    %79 = arith.addi %77, %78 : vector<3x3x1xi32>
    %80 = tpu.iota {dimensions = array<i32: 1>} : vector<3x3x1xi32>
    %c2_i32_29 = arith.constant 2 : i32
    %81 = vector.broadcast %c2_i32_29 : i32 to vector<3x3x1xi32>
    %82 = arith.muli %81, %80 : vector<3x3x1xi32>
    %c0_i32_30 = arith.constant 0 : i32
    %83 = vector.broadcast %c0_i32_30 : i32 to vector<3x3x1xi32>
    %84 = arith.addi %82, %83 : vector<3x3x1xi32>
    %c1_i32_31 = arith.constant 1 : i32
    %85 = vector.broadcast %c1_i32_31 : i32 to vector<3x3x1xi32>
    %86 = arith.cmpi sge, %79, %85 : vector<3x3x1xi32>
    %c4_i32_32 = arith.constant 4 : i32
    %87 = vector.broadcast %c4_i32_32 : i32 to vector<3x3x1xi32>
    %88 = arith.cmpi sle, %79, %87 : vector<3x3x1xi32>
    %89 = arith.andi %86, %88 : vector<3x3x1xi1>
    %c1_i32_33 = arith.constant 1 : i32
    %90 = vector.broadcast %c1_i32_33 : i32 to vector<3x3x1xi32>
    %91 = arith.cmpi sge, %84, %90 : vector<3x3x1xi32>
    %92 = arith.andi %89, %91 : vector<3x3x1xi1>
    %c4_i32_34 = arith.constant 4 : i32
    %93 = vector.broadcast %c4_i32_34 : i32 to vector<3x3x1xi32>
    %94 = arith.cmpi sle, %84, %93 : vector<3x3x1xi32>
    %95 = arith.andi %92, %94 : vector<3x3x1xi1>
    %c0_35 = arith.constant 0 : index
    %c2 = arith.constant 2 : index
    %c0_36 = arith.constant 0 : index
    %c0_37 = arith.constant 0 : index
    %c0_38 = arith.constant 0 : index
    %96 = vector.load %arg3[%c0_35, %c2, %c0_36, %c0_37, %c0_38] : memref<1x4x3x3x128xf32, #tpu.memory_space<vmem>>, vector<1x1x3x3x128xf32>
    %97 = vector.shape_cast %96 : vector<1x1x3x3x128xf32> to vector<3x3x128xf32>
    %98 = vector.shape_cast %3 : vector<1x128xf32> to vector<1x1x128xf32>
    %99 = vector.broadcast %98 : vector<1x1x128xf32> to vector<3x3x128xf32>
    %100 = arith.mulf %97, %99 : vector<3x3x128xf32>
    %101 = vector.shape_cast %4 : vector<1x128xf32> to vector<1x1x128xf32>
    %102 = vector.broadcast %101 : vector<1x1x128xf32> to vector<3x3x128xf32>
    %103 = arith.addf %100, %102 : vector<3x3x128xf32>
    %cst_39 = arith.constant 0.000000e+00 : f32
    %104 = vector.broadcast %cst_39 : f32 to vector<3x3x128xf32>
    %105 = arith.maximumf %103, %104 : vector<3x3x128xf32>
    %106 = arith.extui %95 : vector<3x3x1xi1> to vector<3x3x1xi32>
    %107 = arith.sitofp %106 : vector<3x3x1xi32> to vector<3x3x1xf32>
    %108 = vector.broadcast %107 : vector<3x3x1xf32> to vector<3x3x128xf32>
    %109 = arith.mulf %105, %108 : vector<3x3x128xf32>
    %110 = tpu.iota {dimensions = array<i32: 0>} : vector<3x3x1xi32>
    %c2_i32_40 = arith.constant 2 : i32
    %111 = vector.broadcast %c2_i32_40 : i32 to vector<3x3x1xi32>
    %112 = arith.muli %111, %110 : vector<3x3x1xi32>
    %c1_i32_41 = arith.constant 1 : i32
    %113 = vector.broadcast %c1_i32_41 : i32 to vector<3x3x1xi32>
    %114 = arith.addi %112, %113 : vector<3x3x1xi32>
    %115 = tpu.iota {dimensions = array<i32: 1>} : vector<3x3x1xi32>
    %c2_i32_42 = arith.constant 2 : i32
    %116 = vector.broadcast %c2_i32_42 : i32 to vector<3x3x1xi32>
    %117 = arith.muli %116, %115 : vector<3x3x1xi32>
    %c1_i32_43 = arith.constant 1 : i32
    %118 = vector.broadcast %c1_i32_43 : i32 to vector<3x3x1xi32>
    %119 = arith.addi %117, %118 : vector<3x3x1xi32>
    %c1_i32_44 = arith.constant 1 : i32
    %120 = vector.broadcast %c1_i32_44 : i32 to vector<3x3x1xi32>
    %121 = arith.cmpi sge, %114, %120 : vector<3x3x1xi32>
    %c4_i32_45 = arith.constant 4 : i32
    %122 = vector.broadcast %c4_i32_45 : i32 to vector<3x3x1xi32>
    %123 = arith.cmpi sle, %114, %122 : vector<3x3x1xi32>
    %124 = arith.andi %121, %123 : vector<3x3x1xi1>
    %c1_i32_46 = arith.constant 1 : i32
    %125 = vector.broadcast %c1_i32_46 : i32 to vector<3x3x1xi32>
    %126 = arith.cmpi sge, %119, %125 : vector<3x3x1xi32>
    %127 = arith.andi %124, %126 : vector<3x3x1xi1>
    %c4_i32_47 = arith.constant 4 : i32
    %128 = vector.broadcast %c4_i32_47 : i32 to vector<3x3x1xi32>
    %129 = arith.cmpi sle, %119, %128 : vector<3x3x1xi32>
    %130 = arith.andi %127, %129 : vector<3x3x1xi1>
    %c0_48 = arith.constant 0 : index
    %c3 = arith.constant 3 : index
    %c0_49 = arith.constant 0 : index
    %c0_50 = arith.constant 0 : index
    %c0_51 = arith.constant 0 : index
    %131 = vector.load %arg3[%c0_48, %c3, %c0_49, %c0_50, %c0_51] : memref<1x4x3x3x128xf32, #tpu.memory_space<vmem>>, vector<1x1x3x3x128xf32>
    %132 = vector.shape_cast %131 : vector<1x1x3x3x128xf32> to vector<3x3x128xf32>
    %133 = vector.shape_cast %3 : vector<1x128xf32> to vector<1x1x128xf32>
    %134 = vector.broadcast %133 : vector<1x1x128xf32> to vector<3x3x128xf32>
    %135 = arith.mulf %132, %134 : vector<3x3x128xf32>
    %136 = vector.shape_cast %4 : vector<1x128xf32> to vector<1x1x128xf32>
    %137 = vector.broadcast %136 : vector<1x1x128xf32> to vector<3x3x128xf32>
    %138 = arith.addf %135, %137 : vector<3x3x128xf32>
    %cst_52 = arith.constant 0.000000e+00 : f32
    %139 = vector.broadcast %cst_52 : f32 to vector<3x3x128xf32>
    %140 = arith.maximumf %138, %139 : vector<3x3x128xf32>
    %141 = arith.extui %130 : vector<3x3x1xi1> to vector<3x3x1xi32>
    %142 = arith.sitofp %141 : vector<3x3x1xi32> to vector<3x3x1xf32>
    %143 = vector.broadcast %142 : vector<3x3x1xf32> to vector<3x3x128xf32>
    %144 = arith.mulf %140, %143 : vector<3x3x128xf32>
    %cst_53 = arith.constant 0.000000e+00 : f32
    %145 = vector.broadcast %cst_53 : f32 to vector<2x2x128xf32>
    %146 = vector.extract_strided_slice %39 {offsets = [0, 0, 0], sizes = [2, 2, 128], strides = [1, 1, 1]} : vector<3x3x128xf32> to vector<2x2x128xf32>
    %c0_54 = arith.constant 0 : index
    %c0_55 = arith.constant 0 : index
    %c0_56 = arith.constant 0 : index
    %c0_57 = arith.constant 0 : index
    %147 = vector.load %arg4[%c0_54, %c0_55, %c0_56, %c0_57] : memref<3x3x1x128xf32, #tpu.memory_space<vmem>>, vector<1x1x1x128xf32>
    %148 = vector.shape_cast %147 : vector<1x1x1x128xf32> to vector<1x128xf32>
    %149 = vector.shape_cast %148 : vector<1x128xf32> to vector<1x1x128xf32>
    %150 = vector.broadcast %149 : vector<1x1x128xf32> to vector<2x2x128xf32>
    %151 = arith.mulf %146, %150 : vector<2x2x128xf32>
    %152 = arith.addf %145, %151 : vector<2x2x128xf32>
    %153 = vector.extract_strided_slice %74 {offsets = [0, 0, 0], sizes = [2, 2, 128], strides = [1, 1, 1]} : vector<3x3x128xf32> to vector<2x2x128xf32>
    %c0_58 = arith.constant 0 : index
    %c1_59 = arith.constant 1 : index
    %c0_60 = arith.constant 0 : index
    %c0_61 = arith.constant 0 : index
    %154 = vector.load %arg4[%c0_58, %c1_59, %c0_60, %c0_61] : memref<3x3x1x128xf32, #tpu.memory_space<vmem>>, vector<1x1x1x128xf32>
    %155 = vector.shape_cast %154 : vector<1x1x1x128xf32> to vector<1x128xf32>
    %156 = vector.shape_cast %155 : vector<1x128xf32> to vector<1x1x128xf32>
    %157 = vector.broadcast %156 : vector<1x1x128xf32> to vector<2x2x128xf32>
    %158 = arith.mulf %153, %157 : vector<2x2x128xf32>
    %159 = arith.addf %152, %158 : vector<2x2x128xf32>
    %160 = vector.extract_strided_slice %39 {offsets = [0, 1, 0], sizes = [2, 2, 128], strides = [1, 1, 1]} : vector<3x3x128xf32> to vector<2x2x128xf32>
    %c0_62 = arith.constant 0 : index
    %c2_63 = arith.constant 2 : index
    %c0_64 = arith.constant 0 : index
    %c0_65 = arith.constant 0 : index
    %161 = vector.load %arg4[%c0_62, %c2_63, %c0_64, %c0_65] : memref<3x3x1x128xf32, #tpu.memory_space<vmem>>, vector<1x1x1x128xf32>
    %162 = vector.shape_cast %161 : vector<1x1x1x128xf32> to vector<1x128xf32>
    %163 = vector.shape_cast %162 : vector<1x128xf32> to vector<1x1x128xf32>
    %164 = vector.broadcast %163 : vector<1x1x128xf32> to vector<2x2x128xf32>
    %165 = arith.mulf %160, %164 : vector<2x2x128xf32>
    %166 = arith.addf %159, %165 : vector<2x2x128xf32>
    %167 = vector.extract_strided_slice %109 {offsets = [0, 0, 0], sizes = [2, 2, 128], strides = [1, 1, 1]} : vector<3x3x128xf32> to vector<2x2x128xf32>
    %c1_66 = arith.constant 1 : index
    %c0_67 = arith.constant 0 : index
    %c0_68 = arith.constant 0 : index
    %c0_69 = arith.constant 0 : index
    %168 = vector.load %arg4[%c1_66, %c0_67, %c0_68, %c0_69] : memref<3x3x1x128xf32, #tpu.memory_space<vmem>>, vector<1x1x1x128xf32>
    %169 = vector.shape_cast %168 : vector<1x1x1x128xf32> to vector<1x128xf32>
    %170 = vector.shape_cast %169 : vector<1x128xf32> to vector<1x1x128xf32>
    %171 = vector.broadcast %170 : vector<1x1x128xf32> to vector<2x2x128xf32>
    %172 = arith.mulf %167, %171 : vector<2x2x128xf32>
    %173 = arith.addf %166, %172 : vector<2x2x128xf32>
    %174 = vector.extract_strided_slice %144 {offsets = [0, 0, 0], sizes = [2, 2, 128], strides = [1, 1, 1]} : vector<3x3x128xf32> to vector<2x2x128xf32>
    %c1_70 = arith.constant 1 : index
    %c1_71 = arith.constant 1 : index
    %c0_72 = arith.constant 0 : index
    %c0_73 = arith.constant 0 : index
    %175 = vector.load %arg4[%c1_70, %c1_71, %c0_72, %c0_73] : memref<3x3x1x128xf32, #tpu.memory_space<vmem>>, vector<1x1x1x128xf32>
    %176 = vector.shape_cast %175 : vector<1x1x1x128xf32> to vector<1x128xf32>
    %177 = vector.shape_cast %176 : vector<1x128xf32> to vector<1x1x128xf32>
    %178 = vector.broadcast %177 : vector<1x1x128xf32> to vector<2x2x128xf32>
    %179 = arith.mulf %174, %178 : vector<2x2x128xf32>
    %180 = arith.addf %173, %179 : vector<2x2x128xf32>
    %181 = vector.extract_strided_slice %109 {offsets = [0, 1, 0], sizes = [2, 2, 128], strides = [1, 1, 1]} : vector<3x3x128xf32> to vector<2x2x128xf32>
    %c1_74 = arith.constant 1 : index
    %c2_75 = arith.constant 2 : index
    %c0_76 = arith.constant 0 : index
    %c0_77 = arith.constant 0 : index
    %182 = vector.load %arg4[%c1_74, %c2_75, %c0_76, %c0_77] : memref<3x3x1x128xf32, #tpu.memory_space<vmem>>, vector<1x1x1x128xf32>
    %183 = vector.shape_cast %182 : vector<1x1x1x128xf32> to vector<1x128xf32>
    %184 = vector.shape_cast %183 : vector<1x128xf32> to vector<1x1x128xf32>
    %185 = vector.broadcast %184 : vector<1x1x128xf32> to vector<2x2x128xf32>
    %186 = arith.mulf %181, %185 : vector<2x2x128xf32>
    %187 = arith.addf %180, %186 : vector<2x2x128xf32>
    %188 = vector.extract_strided_slice %39 {offsets = [1, 0, 0], sizes = [2, 2, 128], strides = [1, 1, 1]} : vector<3x3x128xf32> to vector<2x2x128xf32>
    %c2_78 = arith.constant 2 : index
    %c0_79 = arith.constant 0 : index
    %c0_80 = arith.constant 0 : index
    %c0_81 = arith.constant 0 : index
    %189 = vector.load %arg4[%c2_78, %c0_79, %c0_80, %c0_81] : memref<3x3x1x128xf32, #tpu.memory_space<vmem>>, vector<1x1x1x128xf32>
    %190 = vector.shape_cast %189 : vector<1x1x1x128xf32> to vector<1x128xf32>
    %191 = vector.shape_cast %190 : vector<1x128xf32> to vector<1x1x128xf32>
    %192 = vector.broadcast %191 : vector<1x1x128xf32> to vector<2x2x128xf32>
    %193 = arith.mulf %188, %192 : vector<2x2x128xf32>
    %194 = arith.addf %187, %193 : vector<2x2x128xf32>
    %195 = vector.extract_strided_slice %74 {offsets = [1, 0, 0], sizes = [2, 2, 128], strides = [1, 1, 1]} : vector<3x3x128xf32> to vector<2x2x128xf32>
    %c2_82 = arith.constant 2 : index
    %c1_83 = arith.constant 1 : index
    %c0_84 = arith.constant 0 : index
    %c0_85 = arith.constant 0 : index
    %196 = vector.load %arg4[%c2_82, %c1_83, %c0_84, %c0_85] : memref<3x3x1x128xf32, #tpu.memory_space<vmem>>, vector<1x1x1x128xf32>
    %197 = vector.shape_cast %196 : vector<1x1x1x128xf32> to vector<1x128xf32>
    %198 = vector.shape_cast %197 : vector<1x128xf32> to vector<1x1x128xf32>
    %199 = vector.broadcast %198 : vector<1x1x128xf32> to vector<2x2x128xf32>
    %200 = arith.mulf %195, %199 : vector<2x2x128xf32>
    %201 = arith.addf %194, %200 : vector<2x2x128xf32>
    %202 = vector.extract_strided_slice %39 {offsets = [1, 1, 0], sizes = [2, 2, 128], strides = [1, 1, 1]} : vector<3x3x128xf32> to vector<2x2x128xf32>
    %c2_86 = arith.constant 2 : index
    %c2_87 = arith.constant 2 : index
    %c0_88 = arith.constant 0 : index
    %c0_89 = arith.constant 0 : index
    %203 = vector.load %arg4[%c2_86, %c2_87, %c0_88, %c0_89] : memref<3x3x1x128xf32, #tpu.memory_space<vmem>>, vector<1x1x1x128xf32>
    %204 = vector.shape_cast %203 : vector<1x1x1x128xf32> to vector<1x128xf32>
    %205 = vector.shape_cast %204 : vector<1x128xf32> to vector<1x1x128xf32>
    %206 = vector.broadcast %205 : vector<1x1x128xf32> to vector<2x2x128xf32>
    %207 = arith.mulf %202, %206 : vector<2x2x128xf32>
    %208 = arith.addf %201, %207 : vector<2x2x128xf32>
    %c0_90 = arith.constant 0 : index
    %c0_91 = arith.constant 0 : index
    %c0_92 = arith.constant 0 : index
    %c0_93 = arith.constant 0 : index
    %209 = vector.load %arg5[%c0_90, %c0_91, %c0_92, %c0_93] : memref<1x2x2x128xf32, #tpu.memory_space<vmem>>, vector<1x2x2x128xf32>
    %210 = vector.shape_cast %209 : vector<1x2x2x128xf32> to vector<2x2x128xf32>
    %211 = vector.shape_cast %208 : vector<2x2x128xf32> to vector<1x2x2x128xf32>
    tpu.vector_store %arg5[%c0_90, %c0_91, %c0_92, %c0_93], %211 {strides = array<i32>} : memref<1x2x2x128xf32, #tpu.memory_space<vmem>>, vector<1x2x2x128xf32>,
    %c0_94 = arith.constant 0 : index
    %c0_95 = arith.constant 0 : index
    %212 = vector.load %arg6[%c0_94, %c0_95] : memref<1x128xf32, #tpu.memory_space<vmem>>, vector<1x128xf32>
    %cst_96 = arith.constant dense<0.000000e+00> : vector<2x128xf32>
    %213 = vector.multi_reduction <add>, %208, %cst_96 [0] : vector<2x2x128xf32> to vector<2x128xf32>
    %214 = vector.shape_cast %213 : vector<2x128xf32> to vector<1x2x128xf32>
    %cst_97 = arith.constant dense<0.000000e+00> : vector<1x128xf32>
    %215 = vector.multi_reduction <add>, %214, %cst_97 [1] : vector<1x2x128xf32> to vector<1x128xf32>
    %216 = vector.shape_cast %215 : vector<1x128xf32> to vector<1x1x128xf32>
    %217 = vector.shape_cast %216 : vector<1x1x128xf32> to vector<1x128xf32>
    %218 = arith.addf %212, %217 : vector<1x128xf32>
    %c0_98 = arith.constant 0 : index
    %c0_99 = arith.constant 0 : index
    %219 = vector.load %arg6[%c0_98, %c0_99] : memref<1x128xf32, #tpu.memory_space<vmem>>, vector<1x128xf32>
    tpu.vector_store %arg6[%c0_98, %c0_99], %218 {strides = array<i32>} : memref<1x128xf32, #tpu.memory_space<vmem>>, vector<1x128xf32>,
    %c0_100 = arith.constant 0 : index
    %c0_101 = arith.constant 0 : index
    %220 = vector.load %arg7[%c0_100, %c0_101] : memref<1x128xf32, #tpu.memory_space<vmem>>, vector<1x128xf32>
    %221 = arith.mulf %208, %208 : vector<2x2x128xf32>
    %cst_102 = arith.constant dense<0.000000e+00> : vector<2x128xf32>
    %222 = vector.multi_reduction <add>, %221, %cst_102 [0] : vector<2x2x128xf32> to vector<2x128xf32>
    %223 = vector.shape_cast %222 : vector<2x128xf32> to vector<1x2x128xf32>
    %cst_103 = arith.constant dense<0.000000e+00> : vector<1x128xf32>
    %224 = vector.multi_reduction <add>, %223, %cst_103 [1] : vector<1x2x128xf32> to vector<1x128xf32>
    %225 = vector.shape_cast %224 : vector<1x128xf32> to vector<1x1x128xf32>
    %226 = vector.shape_cast %225 : vector<1x1x128xf32> to vector<1x128xf32>
    %227 = arith.addf %220, %226 : vector<1x128xf32>
    %c0_104 = arith.constant 0 : index
    %c0_105 = arith.constant 0 : index
    %228 = vector.load %arg7[%c0_104, %c0_105] : memref<1x128xf32, #tpu.memory_space<vmem>>, vector<1x128xf32>
    tpu.vector_store %arg7[%c0_104, %c0_105], %227 {strides = array<i32>} : memref<1x128xf32, #tpu.memory_space<vmem>>, vector<1x128xf32>,
    return
  }
  func.func @transform_0(%arg0: i32) -> (i32, i32) {
    %c0_i32 = arith.constant 0 : i32
    %c0_i32_0 = arith.constant 0 : i32
    %c0_i32_1 = arith.constant 0 : i32
    return %c0_i32, %c0_i32_0 : i32, i32
  }
  func.func @transform_1(%arg0: i32) -> (i32, i32) {
    %c0_i32 = arith.constant 0 : i32
    %c0_i32_0 = arith.constant 0 : i32
    %c0_i32_1 = arith.constant 0 : i32
    return %c0_i32, %c0_i32_0 : i32, i32
  }
  func.func @transform_2(%arg0: i32) -> (i32, i32, i32, i32, i32) {
    %c0_i32 = arith.constant 0 : i32
    %c0_i32_0 = arith.constant 0 : i32
    %c0_i32_1 = arith.constant 0 : i32
    %c0_i32_2 = arith.constant 0 : i32
    %c0_i32_3 = arith.constant 0 : i32
    return %arg0, %c0_i32, %c0_i32_0, %c0_i32_1, %c0_i32_2 : i32, i32, i32, i32, i32
  }
  func.func @transform_3(%arg0: i32) -> (i32, i32, i32, i32) {
    %c0_i32 = arith.constant 0 : i32
    %c0_i32_0 = arith.constant 0 : i32
    %c0_i32_1 = arith.constant 0 : i32
    %c0_i32_2 = arith.constant 0 : i32
    %c0_i32_3 = arith.constant 0 : i32
    return %c0_i32, %c0_i32_0, %c0_i32_1, %c0_i32_2 : i32, i32, i32, i32
  }
  func.func @transform_4(%arg0: i32) -> (i32, i32, i32, i32) {
    %c0_i32 = arith.constant 0 : i32
    %c0_i32_0 = arith.constant 0 : i32
    %c0_i32_1 = arith.constant 0 : i32
    %c0_i32_2 = arith.constant 0 : i32
    return %arg0, %c0_i32, %c0_i32_0, %c0_i32_1 : i32, i32, i32, i32
  }
  func.func @transform_5(%arg0: i32) -> (i32, i32) {
    %c0_i32 = arith.constant 0 : i32
    %c0_i32_0 = arith.constant 0 : i32
    %c0_i32_1 = arith.constant 0 : i32
    return %c0_i32, %c0_i32_0 : i32, i32
  }
  func.func @transform_6(%arg0: i32) -> (i32, i32) {
    %c0_i32 = arith.constant 0 : i32
    %c0_i32_0 = arith.constant 0 : i32
    %c0_i32_1 = arith.constant 0 : i32
    return %c0_i32, %c0_i32_0 : i32, i32
  }
}

module attributes {stable_mosaic.version = 11 : i64} {
  func.func @bnrelu_matmul_stats_kernel(%arg0: i32, %arg1: memref<1x128xf32, #tpu.memory_space<vmem>>, %arg2: memref<1x128xf32, #tpu.memory_space<vmem>>, %arg3: memref<8x128xf32, #tpu.memory_space<vmem>>, %arg4: memref<128x256xbf16, #tpu.memory_space<vmem>>, %arg5: memref<8x256xf32, #tpu.memory_space<vmem>>, %arg6: memref<1x256xf32, #tpu.memory_space<vmem>>, %arg7: memref<1x256xf32, #tpu.memory_space<vmem>>) attributes {dimension_semantics = [#tpu.dimension_semantics<arbitrary>], iteration_bounds = array<i64: 1>, scalar_prefetch = 0 : i64, scratch_operands = 0 : i64, tpu.core_type = #tpu.core_type<tc>, window_params = [{pipeline_mode = #tpu.pipeline_mode<synchronous>, transform_indices = @transform_0, window_bounds = array<i64: 1, 128>}, {pipeline_mode = #tpu.pipeline_mode<synchronous>, transform_indices = @transform_1, window_bounds = array<i64: 1, 128>}, {transform_indices = @transform_2, window_bounds = array<i64: 8, 128>}, {pipeline_mode = #tpu.pipeline_mode<synchronous>, transform_indices = @transform_3, window_bounds = array<i64: 128, 256>}, {transform_indices = @transform_4, window_bounds = array<i64: 8, 256>}, {pipeline_mode = #tpu.pipeline_mode<synchronous>, transform_indices = @transform_5, window_bounds = array<i64: 1, 256>}, {pipeline_mode = #tpu.pipeline_mode<synchronous>, transform_indices = @transform_6, window_bounds = array<i64: 1, 256>}]} {
    %c0_i32 = arith.constant 0 : i32
    %0 = arith.cmpi eq, %arg0, %c0_i32 : i32
    %1 = arith.extui %0 : i1 to i32
    %c0_i32_0 = arith.constant 0 : i32
    %2 = arith.cmpi ne, %1, %c0_i32_0 : i32
    scf.if %2 {
      %cst_21 = arith.constant 0.000000e+00 : f32
      %27 = vector.broadcast %cst_21 : f32 to vector<1x256xf32>
      %c0_22 = arith.constant 0 : index
      %c0_23 = arith.constant 0 : index
      %28 = vector.load %arg6[%c0_22, %c0_23] : memref<1x256xf32, #tpu.memory_space<vmem>>, vector<1x256xf32>
      tpu.vector_store %arg6[%c0_22, %c0_23], %27 {strides = array<i32>} : memref<1x256xf32, #tpu.memory_space<vmem>>, vector<1x256xf32>,
      %cst_24 = arith.constant 0.000000e+00 : f32
      %29 = vector.broadcast %cst_24 : f32 to vector<1x256xf32>
      %c0_25 = arith.constant 0 : index
      %c0_26 = arith.constant 0 : index
      %30 = vector.load %arg7[%c0_25, %c0_26] : memref<1x256xf32, #tpu.memory_space<vmem>>, vector<1x256xf32>
      tpu.vector_store %arg7[%c0_25, %c0_26], %29 {strides = array<i32>} : memref<1x256xf32, #tpu.memory_space<vmem>>, vector<1x256xf32>,
    } else {
    }
    %c0 = arith.constant 0 : index
    %c0_1 = arith.constant 0 : index
    %3 = vector.load %arg3[%c0, %c0_1] : memref<8x128xf32, #tpu.memory_space<vmem>>, vector<8x128xf32>
    %c0_2 = arith.constant 0 : index
    %c0_3 = arith.constant 0 : index
    %4 = vector.load %arg1[%c0_2, %c0_3] : memref<1x128xf32, #tpu.memory_space<vmem>>, vector<1x128xf32>
    %5 = vector.broadcast %4 : vector<1x128xf32> to vector<8x128xf32>
    %6 = arith.mulf %3, %5 : vector<8x128xf32>
    %c0_4 = arith.constant 0 : index
    %c0_5 = arith.constant 0 : index
    %7 = vector.load %arg2[%c0_4, %c0_5] : memref<1x128xf32, #tpu.memory_space<vmem>>, vector<1x128xf32>
    %8 = vector.broadcast %7 : vector<1x128xf32> to vector<8x128xf32>
    %9 = arith.addf %6, %8 : vector<8x128xf32>
    %cst = arith.constant 0.000000e+00 : f32
    %10 = vector.broadcast %cst : f32 to vector<8x128xf32>
    %11 = arith.maximumf %9, %10 : vector<8x128xf32>
    %12 = arith.truncf %11 : vector<8x128xf32> to vector<8x128xbf16>
    %c0_6 = arith.constant 0 : index
    %c0_7 = arith.constant 0 : index
    %13 = vector.load %arg4[%c0_6, %c0_7] : memref<128x256xbf16, #tpu.memory_space<vmem>>, vector<128x256xbf16>
    %cst_8 = arith.constant dense<0.000000e+00> : vector<8x256xf32>
    %14 = tpu.matmul %12, %13, %cst_8 {dimension_numbers = #tpu.dot_dimension_numbers<[1], [0], [0], [1], [0, 0, 1, 1], [], []>} : vector<8x128xbf16>, vector<128x256xbf16>, vector<8x256xf32> -> vector<8x256xf32>
    %c0_9 = arith.constant 0 : index
    %c0_10 = arith.constant 0 : index
    %15 = vector.load %arg5[%c0_9, %c0_10] : memref<8x256xf32, #tpu.memory_space<vmem>>, vector<8x256xf32>
    tpu.vector_store %arg5[%c0_9, %c0_10], %14 {strides = array<i32>} : memref<8x256xf32, #tpu.memory_space<vmem>>, vector<8x256xf32>,
    %c0_11 = arith.constant 0 : index
    %c0_12 = arith.constant 0 : index
    %16 = vector.load %arg6[%c0_11, %c0_12] : memref<1x256xf32, #tpu.memory_space<vmem>>, vector<1x256xf32>
    %cst_13 = arith.constant dense<0.000000e+00> : vector<256xf32>
    %17 = vector.multi_reduction <add>, %14, %cst_13 [0] : vector<8x256xf32> to vector<256xf32>
    %18 = vector.shape_cast %17 : vector<256xf32> to vector<1x256xf32>
    %19 = arith.addf %16, %18 : vector<1x256xf32>
    %c0_14 = arith.constant 0 : index
    %c0_15 = arith.constant 0 : index
    %20 = vector.load %arg6[%c0_14, %c0_15] : memref<1x256xf32, #tpu.memory_space<vmem>>, vector<1x256xf32>
    tpu.vector_store %arg6[%c0_14, %c0_15], %19 {strides = array<i32>} : memref<1x256xf32, #tpu.memory_space<vmem>>, vector<1x256xf32>,
    %c0_16 = arith.constant 0 : index
    %c0_17 = arith.constant 0 : index
    %21 = vector.load %arg7[%c0_16, %c0_17] : memref<1x256xf32, #tpu.memory_space<vmem>>, vector<1x256xf32>
    %22 = arith.mulf %14, %14 : vector<8x256xf32>
    %cst_18 = arith.constant dense<0.000000e+00> : vector<256xf32>
    %23 = vector.multi_reduction <add>, %22, %cst_18 [0] : vector<8x256xf32> to vector<256xf32>
    %24 = vector.shape_cast %23 : vector<256xf32> to vector<1x256xf32>
    %25 = arith.addf %21, %24 : vector<1x256xf32>
    %c0_19 = arith.constant 0 : index
    %c0_20 = arith.constant 0 : index
    %26 = vector.load %arg7[%c0_19, %c0_20] : memref<1x256xf32, #tpu.memory_space<vmem>>, vector<1x256xf32>
    tpu.vector_store %arg7[%c0_19, %c0_20], %25 {strides = array<i32>} : memref<1x256xf32, #tpu.memory_space<vmem>>, vector<1x256xf32>,
    return
  }
  func.func @transform_0(%arg0: i32) -> (i32, i32) {
    %c0_i32 = arith.constant 0 : i32
    %c0_i32_0 = arith.constant 0 : i32
    %c0_i32_1 = arith.constant 0 : i32
    return %c0_i32, %c0_i32_0 : i32, i32
  }
  func.func @transform_1(%arg0: i32) -> (i32, i32) {
    %c0_i32 = arith.constant 0 : i32
    %c0_i32_0 = arith.constant 0 : i32
    %c0_i32_1 = arith.constant 0 : i32
    return %c0_i32, %c0_i32_0 : i32, i32
  }
  func.func @transform_2(%arg0: i32) -> (i32, i32) {
    %c0_i32 = arith.constant 0 : i32
    %c0_i32_0 = arith.constant 0 : i32
    return %arg0, %c0_i32 : i32, i32
  }
  func.func @transform_3(%arg0: i32) -> (i32, i32) {
    %c0_i32 = arith.constant 0 : i32
    %c0_i32_0 = arith.constant 0 : i32
    %c0_i32_1 = arith.constant 0 : i32
    return %c0_i32, %c0_i32_0 : i32, i32
  }
  func.func @transform_4(%arg0: i32) -> (i32, i32) {
    %c0_i32 = arith.constant 0 : i32
    %c0_i32_0 = arith.constant 0 : i32
    return %arg0, %c0_i32 : i32, i32
  }
  func.func @transform_5(%arg0: i32) -> (i32, i32) {
    %c0_i32 = arith.constant 0 : i32
    %c0_i32_0 = arith.constant 0 : i32
    %c0_i32_1 = arith.constant 0 : i32
    return %c0_i32, %c0_i32_0 : i32, i32
  }
  func.func @transform_6(%arg0: i32) -> (i32, i32) {
    %c0_i32 = arith.constant 0 : i32
    %c0_i32_0 = arith.constant 0 : i32
    %c0_i32_1 = arith.constant 0 : i32
    return %c0_i32, %c0_i32_0 : i32, i32
  }
}

module attributes {stable_mosaic.version = 11 : i64} {
  func.func @bnrelu_dwconv_stats_kernel(%arg0: i32, %arg1: memref<1x256xf32, #tpu.memory_space<vmem>>, %arg2: memref<1x256xf32, #tpu.memory_space<vmem>>, %arg3: memref<1x4x2x2x256xf32, #tpu.memory_space<vmem>>, %arg4: memref<3x3x1x256xf32, #tpu.memory_space<vmem>>, %arg5: memref<1x1x1x256xf32, #tpu.memory_space<vmem>>, %arg6: memref<1x256xf32, #tpu.memory_space<vmem>>, %arg7: memref<1x256xf32, #tpu.memory_space<vmem>>) attributes {dimension_semantics = [#tpu.dimension_semantics<arbitrary>], iteration_bounds = array<i64: 2>, scalar_prefetch = 0 : i64, scratch_operands = 0 : i64, tpu.core_type = #tpu.core_type<tc>, window_params = [{pipeline_mode = #tpu.pipeline_mode<synchronous>, transform_indices = @transform_0, window_bounds = array<i64: 1, 256>}, {pipeline_mode = #tpu.pipeline_mode<synchronous>, transform_indices = @transform_1, window_bounds = array<i64: 1, 256>}, {transform_indices = @transform_2, window_bounds = array<i64: 1, 4, 2, 2, 256>}, {pipeline_mode = #tpu.pipeline_mode<synchronous>, transform_indices = @transform_3, window_bounds = array<i64: 3, 3, 1, 256>}, {transform_indices = @transform_4, window_bounds = array<i64: 1, 1, 1, 256>}, {pipeline_mode = #tpu.pipeline_mode<synchronous>, transform_indices = @transform_5, window_bounds = array<i64: 1, 256>}, {pipeline_mode = #tpu.pipeline_mode<synchronous>, transform_indices = @transform_6, window_bounds = array<i64: 1, 256>}]} {
    %c0_i32 = arith.constant 0 : i32
    %0 = arith.cmpi eq, %arg0, %c0_i32 : i32
    %1 = arith.extui %0 : i1 to i32
    %c0_i32_0 = arith.constant 0 : i32
    %2 = arith.cmpi ne, %1, %c0_i32_0 : i32
    scf.if %2 {
      %cst_107 = arith.constant 0.000000e+00 : f32
      %220 = vector.broadcast %cst_107 : f32 to vector<1x256xf32>
      %c0_108 = arith.constant 0 : index
      %c0_109 = arith.constant 0 : index
      %221 = vector.load %arg6[%c0_108, %c0_109] : memref<1x256xf32, #tpu.memory_space<vmem>>, vector<1x256xf32>
      tpu.vector_store %arg6[%c0_108, %c0_109], %220 {strides = array<i32>} : memref<1x256xf32, #tpu.memory_space<vmem>>, vector<1x256xf32>,
      %cst_110 = arith.constant 0.000000e+00 : f32
      %222 = vector.broadcast %cst_110 : f32 to vector<1x256xf32>
      %c0_111 = arith.constant 0 : index
      %c0_112 = arith.constant 0 : index
      %223 = vector.load %arg7[%c0_111, %c0_112] : memref<1x256xf32, #tpu.memory_space<vmem>>, vector<1x256xf32>
      tpu.vector_store %arg7[%c0_111, %c0_112], %222 {strides = array<i32>} : memref<1x256xf32, #tpu.memory_space<vmem>>, vector<1x256xf32>,
    } else {
    }
    %c0 = arith.constant 0 : index
    %c0_1 = arith.constant 0 : index
    %3 = vector.load %arg1[%c0, %c0_1] : memref<1x256xf32, #tpu.memory_space<vmem>>, vector<1x256xf32>
    %c0_2 = arith.constant 0 : index
    %c0_3 = arith.constant 0 : index
    %4 = vector.load %arg2[%c0_2, %c0_3] : memref<1x256xf32, #tpu.memory_space<vmem>>, vector<1x256xf32>
    %5 = tpu.iota {dimensions = array<i32: 0>} : vector<2x2x1xi32>
    %c2_i32 = arith.constant 2 : i32
    %6 = vector.broadcast %c2_i32 : i32 to vector<2x2x1xi32>
    %7 = arith.muli %6, %5 : vector<2x2x1xi32>
    %c0_i32_4 = arith.constant 0 : i32
    %8 = vector.broadcast %c0_i32_4 : i32 to vector<2x2x1xi32>
    %9 = arith.addi %7, %8 : vector<2x2x1xi32>
    %10 = tpu.iota {dimensions = array<i32: 1>} : vector<2x2x1xi32>
    %c2_i32_5 = arith.constant 2 : i32
    %11 = vector.broadcast %c2_i32_5 : i32 to vector<2x2x1xi32>
    %12 = arith.muli %11, %10 : vector<2x2x1xi32>
    %c0_i32_6 = arith.constant 0 : i32
    %13 = vector.broadcast %c0_i32_6 : i32 to vector<2x2x1xi32>
    %14 = arith.addi %12, %13 : vector<2x2x1xi32>
    %c1_i32 = arith.constant 1 : i32
    %15 = vector.broadcast %c1_i32 : i32 to vector<2x2x1xi32>
    %16 = arith.cmpi sge, %9, %15 : vector<2x2x1xi32>
    %c2_i32_7 = arith.constant 2 : i32
    %17 = vector.broadcast %c2_i32_7 : i32 to vector<2x2x1xi32>
    %18 = arith.cmpi sle, %9, %17 : vector<2x2x1xi32>
    %19 = arith.andi %16, %18 : vector<2x2x1xi1>
    %c1_i32_8 = arith.constant 1 : i32
    %20 = vector.broadcast %c1_i32_8 : i32 to vector<2x2x1xi32>
    %21 = arith.cmpi sge, %14, %20 : vector<2x2x1xi32>
    %22 = arith.andi %19, %21 : vector<2x2x1xi1>
    %c2_i32_9 = arith.constant 2 : i32
    %23 = vector.broadcast %c2_i32_9 : i32 to vector<2x2x1xi32>
    %24 = arith.cmpi sle, %14, %23 : vector<2x2x1xi32>
    %25 = arith.andi %22, %24 : vector<2x2x1xi1>
    %c0_10 = arith.constant 0 : index
    %c0_11 = arith.constant 0 : index
    %c0_12 = arith.constant 0 : index
    %c0_13 = arith.constant 0 : index
    %c0_14 = arith.constant 0 : index
    %26 = vector.load %arg3[%c0_10, %c0_11, %c0_12, %c0_13, %c0_14] : memref<1x4x2x2x256xf32, #tpu.memory_space<vmem>>, vector<1x1x2x2x256xf32>
    %27 = vector.shape_cast %26 : vector<1x1x2x2x256xf32> to vector<2x2x256xf32>
    %28 = vector.shape_cast %3 : vector<1x256xf32> to vector<1x1x256xf32>
    %29 = vector.broadcast %28 : vector<1x1x256xf32> to vector<2x2x256xf32>
    %30 = arith.mulf %27, %29 : vector<2x2x256xf32>
    %31 = vector.shape_cast %4 : vector<1x256xf32> to vector<1x1x256xf32>
    %32 = vector.broadcast %31 : vector<1x1x256xf32> to vector<2x2x256xf32>
    %33 = arith.addf %30, %32 : vector<2x2x256xf32>
    %cst = arith.constant 0.000000e+00 : f32
    %34 = vector.broadcast %cst : f32 to vector<2x2x256xf32>
    %35 = arith.maximumf %33, %34 : vector<2x2x256xf32>
    %36 = arith.extui %25 : vector<2x2x1xi1> to vector<2x2x1xi32>
    %37 = arith.sitofp %36 : vector<2x2x1xi32> to vector<2x2x1xf32>
    %38 = vector.broadcast %37 : vector<2x2x1xf32> to vector<2x2x256xf32>
    %39 = arith.mulf %35, %38 : vector<2x2x256xf32>
    %40 = tpu.iota {dimensions = array<i32: 0>} : vector<2x2x1xi32>
    %c2_i32_15 = arith.constant 2 : i32
    %41 = vector.broadcast %c2_i32_15 : i32 to vector<2x2x1xi32>
    %42 = arith.muli %41, %40 : vector<2x2x1xi32>
    %c0_i32_16 = arith.constant 0 : i32
    %43 = vector.broadcast %c0_i32_16 : i32 to vector<2x2x1xi32>
    %44 = arith.addi %42, %43 : vector<2x2x1xi32>
    %45 = tpu.iota {dimensions = array<i32: 1>} : vector<2x2x1xi32>
    %c2_i32_17 = arith.constant 2 : i32
    %46 = vector.broadcast %c2_i32_17 : i32 to vector<2x2x1xi32>
    %47 = arith.muli %46, %45 : vector<2x2x1xi32>
    %c1_i32_18 = arith.constant 1 : i32
    %48 = vector.broadcast %c1_i32_18 : i32 to vector<2x2x1xi32>
    %49 = arith.addi %47, %48 : vector<2x2x1xi32>
    %c1_i32_19 = arith.constant 1 : i32
    %50 = vector.broadcast %c1_i32_19 : i32 to vector<2x2x1xi32>
    %51 = arith.cmpi sge, %44, %50 : vector<2x2x1xi32>
    %c2_i32_20 = arith.constant 2 : i32
    %52 = vector.broadcast %c2_i32_20 : i32 to vector<2x2x1xi32>
    %53 = arith.cmpi sle, %44, %52 : vector<2x2x1xi32>
    %54 = arith.andi %51, %53 : vector<2x2x1xi1>
    %c1_i32_21 = arith.constant 1 : i32
    %55 = vector.broadcast %c1_i32_21 : i32 to vector<2x2x1xi32>
    %56 = arith.cmpi sge, %49, %55 : vector<2x2x1xi32>
    %57 = arith.andi %54, %56 : vector<2x2x1xi1>
    %c2_i32_22 = arith.constant 2 : i32
    %58 = vector.broadcast %c2_i32_22 : i32 to vector<2x2x1xi32>
    %59 = arith.cmpi sle, %49, %58 : vector<2x2x1xi32>
    %60 = arith.andi %57, %59 : vector<2x2x1xi1>
    %c0_23 = arith.constant 0 : index
    %c1 = arith.constant 1 : index
    %c0_24 = arith.constant 0 : index
    %c0_25 = arith.constant 0 : index
    %c0_26 = arith.constant 0 : index
    %61 = vector.load %arg3[%c0_23, %c1, %c0_24, %c0_25, %c0_26] : memref<1x4x2x2x256xf32, #tpu.memory_space<vmem>>, vector<1x1x2x2x256xf32>
    %62 = vector.shape_cast %61 : vector<1x1x2x2x256xf32> to vector<2x2x256xf32>
    %63 = vector.shape_cast %3 : vector<1x256xf32> to vector<1x1x256xf32>
    %64 = vector.broadcast %63 : vector<1x1x256xf32> to vector<2x2x256xf32>
    %65 = arith.mulf %62, %64 : vector<2x2x256xf32>
    %66 = vector.shape_cast %4 : vector<1x256xf32> to vector<1x1x256xf32>
    %67 = vector.broadcast %66 : vector<1x1x256xf32> to vector<2x2x256xf32>
    %68 = arith.addf %65, %67 : vector<2x2x256xf32>
    %cst_27 = arith.constant 0.000000e+00 : f32
    %69 = vector.broadcast %cst_27 : f32 to vector<2x2x256xf32>
    %70 = arith.maximumf %68, %69 : vector<2x2x256xf32>
    %71 = arith.extui %60 : vector<2x2x1xi1> to vector<2x2x1xi32>
    %72 = arith.sitofp %71 : vector<2x2x1xi32> to vector<2x2x1xf32>
    %73 = vector.broadcast %72 : vector<2x2x1xf32> to vector<2x2x256xf32>
    %74 = arith.mulf %70, %73 : vector<2x2x256xf32>
    %75 = tpu.iota {dimensions = array<i32: 0>} : vector<2x2x1xi32>
    %c2_i32_28 = arith.constant 2 : i32
    %76 = vector.broadcast %c2_i32_28 : i32 to vector<2x2x1xi32>
    %77 = arith.muli %76, %75 : vector<2x2x1xi32>
    %c1_i32_29 = arith.constant 1 : i32
    %78 = vector.broadcast %c1_i32_29 : i32 to vector<2x2x1xi32>
    %79 = arith.addi %77, %78 : vector<2x2x1xi32>
    %80 = tpu.iota {dimensions = array<i32: 1>} : vector<2x2x1xi32>
    %c2_i32_30 = arith.constant 2 : i32
    %81 = vector.broadcast %c2_i32_30 : i32 to vector<2x2x1xi32>
    %82 = arith.muli %81, %80 : vector<2x2x1xi32>
    %c0_i32_31 = arith.constant 0 : i32
    %83 = vector.broadcast %c0_i32_31 : i32 to vector<2x2x1xi32>
    %84 = arith.addi %82, %83 : vector<2x2x1xi32>
    %c1_i32_32 = arith.constant 1 : i32
    %85 = vector.broadcast %c1_i32_32 : i32 to vector<2x2x1xi32>
    %86 = arith.cmpi sge, %79, %85 : vector<2x2x1xi32>
    %c2_i32_33 = arith.constant 2 : i32
    %87 = vector.broadcast %c2_i32_33 : i32 to vector<2x2x1xi32>
    %88 = arith.cmpi sle, %79, %87 : vector<2x2x1xi32>
    %89 = arith.andi %86, %88 : vector<2x2x1xi1>
    %c1_i32_34 = arith.constant 1 : i32
    %90 = vector.broadcast %c1_i32_34 : i32 to vector<2x2x1xi32>
    %91 = arith.cmpi sge, %84, %90 : vector<2x2x1xi32>
    %92 = arith.andi %89, %91 : vector<2x2x1xi1>
    %c2_i32_35 = arith.constant 2 : i32
    %93 = vector.broadcast %c2_i32_35 : i32 to vector<2x2x1xi32>
    %94 = arith.cmpi sle, %84, %93 : vector<2x2x1xi32>
    %95 = arith.andi %92, %94 : vector<2x2x1xi1>
    %c0_36 = arith.constant 0 : index
    %c2 = arith.constant 2 : index
    %c0_37 = arith.constant 0 : index
    %c0_38 = arith.constant 0 : index
    %c0_39 = arith.constant 0 : index
    %96 = vector.load %arg3[%c0_36, %c2, %c0_37, %c0_38, %c0_39] : memref<1x4x2x2x256xf32, #tpu.memory_space<vmem>>, vector<1x1x2x2x256xf32>
    %97 = vector.shape_cast %96 : vector<1x1x2x2x256xf32> to vector<2x2x256xf32>
    %98 = vector.shape_cast %3 : vector<1x256xf32> to vector<1x1x256xf32>
    %99 = vector.broadcast %98 : vector<1x1x256xf32> to vector<2x2x256xf32>
    %100 = arith.mulf %97, %99 : vector<2x2x256xf32>
    %101 = vector.shape_cast %4 : vector<1x256xf32> to vector<1x1x256xf32>
    %102 = vector.broadcast %101 : vector<1x1x256xf32> to vector<2x2x256xf32>
    %103 = arith.addf %100, %102 : vector<2x2x256xf32>
    %cst_40 = arith.constant 0.000000e+00 : f32
    %104 = vector.broadcast %cst_40 : f32 to vector<2x2x256xf32>
    %105 = arith.maximumf %103, %104 : vector<2x2x256xf32>
    %106 = arith.extui %95 : vector<2x2x1xi1> to vector<2x2x1xi32>
    %107 = arith.sitofp %106 : vector<2x2x1xi32> to vector<2x2x1xf32>
    %108 = vector.broadcast %107 : vector<2x2x1xf32> to vector<2x2x256xf32>
    %109 = arith.mulf %105, %108 : vector<2x2x256xf32>
    %110 = tpu.iota {dimensions = array<i32: 0>} : vector<2x2x1xi32>
    %c2_i32_41 = arith.constant 2 : i32
    %111 = vector.broadcast %c2_i32_41 : i32 to vector<2x2x1xi32>
    %112 = arith.muli %111, %110 : vector<2x2x1xi32>
    %c1_i32_42 = arith.constant 1 : i32
    %113 = vector.broadcast %c1_i32_42 : i32 to vector<2x2x1xi32>
    %114 = arith.addi %112, %113 : vector<2x2x1xi32>
    %115 = tpu.iota {dimensions = array<i32: 1>} : vector<2x2x1xi32>
    %c2_i32_43 = arith.constant 2 : i32
    %116 = vector.broadcast %c2_i32_43 : i32 to vector<2x2x1xi32>
    %117 = arith.muli %116, %115 : vector<2x2x1xi32>
    %c1_i32_44 = arith.constant 1 : i32
    %118 = vector.broadcast %c1_i32_44 : i32 to vector<2x2x1xi32>
    %119 = arith.addi %117, %118 : vector<2x2x1xi32>
    %c1_i32_45 = arith.constant 1 : i32
    %120 = vector.broadcast %c1_i32_45 : i32 to vector<2x2x1xi32>
    %121 = arith.cmpi sge, %114, %120 : vector<2x2x1xi32>
    %c2_i32_46 = arith.constant 2 : i32
    %122 = vector.broadcast %c2_i32_46 : i32 to vector<2x2x1xi32>
    %123 = arith.cmpi sle, %114, %122 : vector<2x2x1xi32>
    %124 = arith.andi %121, %123 : vector<2x2x1xi1>
    %c1_i32_47 = arith.constant 1 : i32
    %125 = vector.broadcast %c1_i32_47 : i32 to vector<2x2x1xi32>
    %126 = arith.cmpi sge, %119, %125 : vector<2x2x1xi32>
    %127 = arith.andi %124, %126 : vector<2x2x1xi1>
    %c2_i32_48 = arith.constant 2 : i32
    %128 = vector.broadcast %c2_i32_48 : i32 to vector<2x2x1xi32>
    %129 = arith.cmpi sle, %119, %128 : vector<2x2x1xi32>
    %130 = arith.andi %127, %129 : vector<2x2x1xi1>
    %c0_49 = arith.constant 0 : index
    %c3 = arith.constant 3 : index
    %c0_50 = arith.constant 0 : index
    %c0_51 = arith.constant 0 : index
    %c0_52 = arith.constant 0 : index
    %131 = vector.load %arg3[%c0_49, %c3, %c0_50, %c0_51, %c0_52] : memref<1x4x2x2x256xf32, #tpu.memory_space<vmem>>, vector<1x1x2x2x256xf32>
    %132 = vector.shape_cast %131 : vector<1x1x2x2x256xf32> to vector<2x2x256xf32>
    %133 = vector.shape_cast %3 : vector<1x256xf32> to vector<1x1x256xf32>
    %134 = vector.broadcast %133 : vector<1x1x256xf32> to vector<2x2x256xf32>
    %135 = arith.mulf %132, %134 : vector<2x2x256xf32>
    %136 = vector.shape_cast %4 : vector<1x256xf32> to vector<1x1x256xf32>
    %137 = vector.broadcast %136 : vector<1x1x256xf32> to vector<2x2x256xf32>
    %138 = arith.addf %135, %137 : vector<2x2x256xf32>
    %cst_53 = arith.constant 0.000000e+00 : f32
    %139 = vector.broadcast %cst_53 : f32 to vector<2x2x256xf32>
    %140 = arith.maximumf %138, %139 : vector<2x2x256xf32>
    %141 = arith.extui %130 : vector<2x2x1xi1> to vector<2x2x1xi32>
    %142 = arith.sitofp %141 : vector<2x2x1xi32> to vector<2x2x1xf32>
    %143 = vector.broadcast %142 : vector<2x2x1xf32> to vector<2x2x256xf32>
    %144 = arith.mulf %140, %143 : vector<2x2x256xf32>
    %cst_54 = arith.constant 0.000000e+00 : f32
    %145 = vector.broadcast %cst_54 : f32 to vector<1x1x256xf32>
    %146 = vector.extract_strided_slice %39 {offsets = [0, 0, 0], sizes = [1, 1, 256], strides = [1, 1, 1]} : vector<2x2x256xf32> to vector<1x1x256xf32>
    %c0_55 = arith.constant 0 : index
    %c0_56 = arith.constant 0 : index
    %c0_57 = arith.constant 0 : index
    %c0_58 = arith.constant 0 : index
    %147 = vector.load %arg4[%c0_55, %c0_56, %c0_57, %c0_58] : memref<3x3x1x256xf32, #tpu.memory_space<vmem>>, vector<1x1x1x256xf32>
    %148 = vector.shape_cast %147 : vector<1x1x1x256xf32> to vector<1x256xf32>
    %149 = vector.shape_cast %148 : vector<1x256xf32> to vector<1x1x256xf32>
    %150 = arith.mulf %146, %149 : vector<1x1x256xf32>
    %151 = arith.addf %145, %150 : vector<1x1x256xf32>
    %152 = vector.extract_strided_slice %74 {offsets = [0, 0, 0], sizes = [1, 1, 256], strides = [1, 1, 1]} : vector<2x2x256xf32> to vector<1x1x256xf32>
    %c0_59 = arith.constant 0 : index
    %c1_60 = arith.constant 1 : index
    %c0_61 = arith.constant 0 : index
    %c0_62 = arith.constant 0 : index
    %153 = vector.load %arg4[%c0_59, %c1_60, %c0_61, %c0_62] : memref<3x3x1x256xf32, #tpu.memory_space<vmem>>, vector<1x1x1x256xf32>
    %154 = vector.shape_cast %153 : vector<1x1x1x256xf32> to vector<1x256xf32>
    %155 = vector.shape_cast %154 : vector<1x256xf32> to vector<1x1x256xf32>
    %156 = arith.mulf %152, %155 : vector<1x1x256xf32>
    %157 = arith.addf %151, %156 : vector<1x1x256xf32>
    %158 = vector.extract_strided_slice %39 {offsets = [0, 1, 0], sizes = [1, 1, 256], strides = [1, 1, 1]} : vector<2x2x256xf32> to vector<1x1x256xf32>
    %c0_63 = arith.constant 0 : index
    %c2_64 = arith.constant 2 : index
    %c0_65 = arith.constant 0 : index
    %c0_66 = arith.constant 0 : index
    %159 = vector.load %arg4[%c0_63, %c2_64, %c0_65, %c0_66] : memref<3x3x1x256xf32, #tpu.memory_space<vmem>>, vector<1x1x1x256xf32>
    %160 = vector.shape_cast %159 : vector<1x1x1x256xf32> to vector<1x256xf32>
    %161 = vector.shape_cast %160 : vector<1x256xf32> to vector<1x1x256xf32>
    %162 = arith.mulf %158, %161 : vector<1x1x256xf32>
    %163 = arith.addf %157, %162 : vector<1x1x256xf32>
    %164 = vector.extract_strided_slice %109 {offsets = [0, 0, 0], sizes = [1, 1, 256], strides = [1, 1, 1]} : vector<2x2x256xf32> to vector<1x1x256xf32>
    %c1_67 = arith.constant 1 : index
    %c0_68 = arith.constant 0 : index
    %c0_69 = arith.constant 0 : index
    %c0_70 = arith.constant 0 : index
    %165 = vector.load %arg4[%c1_67, %c0_68, %c0_69, %c0_70] : memref<3x3x1x256xf32, #tpu.memory_space<vmem>>, vector<1x1x1x256xf32>
    %166 = vector.shape_cast %165 : vector<1x1x1x256xf32> to vector<1x256xf32>
    %167 = vector.shape_cast %166 : vector<1x256xf32> to vector<1x1x256xf32>
    %168 = arith.mulf %164, %167 : vector<1x1x256xf32>
    %169 = arith.addf %163, %168 : vector<1x1x256xf32>
    %170 = vector.extract_strided_slice %144 {offsets = [0, 0, 0], sizes = [1, 1, 256], strides = [1, 1, 1]} : vector<2x2x256xf32> to vector<1x1x256xf32>
    %c1_71 = arith.constant 1 : index
    %c1_72 = arith.constant 1 : index
    %c0_73 = arith.constant 0 : index
    %c0_74 = arith.constant 0 : index
    %171 = vector.load %arg4[%c1_71, %c1_72, %c0_73, %c0_74] : memref<3x3x1x256xf32, #tpu.memory_space<vmem>>, vector<1x1x1x256xf32>
    %172 = vector.shape_cast %171 : vector<1x1x1x256xf32> to vector<1x256xf32>
    %173 = vector.shape_cast %172 : vector<1x256xf32> to vector<1x1x256xf32>
    %174 = arith.mulf %170, %173 : vector<1x1x256xf32>
    %175 = arith.addf %169, %174 : vector<1x1x256xf32>
    %176 = vector.extract_strided_slice %109 {offsets = [0, 1, 0], sizes = [1, 1, 256], strides = [1, 1, 1]} : vector<2x2x256xf32> to vector<1x1x256xf32>
    %c1_75 = arith.constant 1 : index
    %c2_76 = arith.constant 2 : index
    %c0_77 = arith.constant 0 : index
    %c0_78 = arith.constant 0 : index
    %177 = vector.load %arg4[%c1_75, %c2_76, %c0_77, %c0_78] : memref<3x3x1x256xf32, #tpu.memory_space<vmem>>, vector<1x1x1x256xf32>
    %178 = vector.shape_cast %177 : vector<1x1x1x256xf32> to vector<1x256xf32>
    %179 = vector.shape_cast %178 : vector<1x256xf32> to vector<1x1x256xf32>
    %180 = arith.mulf %176, %179 : vector<1x1x256xf32>
    %181 = arith.addf %175, %180 : vector<1x1x256xf32>
    %182 = vector.extract_strided_slice %39 {offsets = [1, 0, 0], sizes = [1, 1, 256], strides = [1, 1, 1]} : vector<2x2x256xf32> to vector<1x1x256xf32>
    %c2_79 = arith.constant 2 : index
    %c0_80 = arith.constant 0 : index
    %c0_81 = arith.constant 0 : index
    %c0_82 = arith.constant 0 : index
    %183 = vector.load %arg4[%c2_79, %c0_80, %c0_81, %c0_82] : memref<3x3x1x256xf32, #tpu.memory_space<vmem>>, vector<1x1x1x256xf32>
    %184 = vector.shape_cast %183 : vector<1x1x1x256xf32> to vector<1x256xf32>
    %185 = vector.shape_cast %184 : vector<1x256xf32> to vector<1x1x256xf32>
    %186 = arith.mulf %182, %185 : vector<1x1x256xf32>
    %187 = arith.addf %181, %186 : vector<1x1x256xf32>
    %188 = vector.extract_strided_slice %74 {offsets = [1, 0, 0], sizes = [1, 1, 256], strides = [1, 1, 1]} : vector<2x2x256xf32> to vector<1x1x256xf32>
    %c2_83 = arith.constant 2 : index
    %c1_84 = arith.constant 1 : index
    %c0_85 = arith.constant 0 : index
    %c0_86 = arith.constant 0 : index
    %189 = vector.load %arg4[%c2_83, %c1_84, %c0_85, %c0_86] : memref<3x3x1x256xf32, #tpu.memory_space<vmem>>, vector<1x1x1x256xf32>
    %190 = vector.shape_cast %189 : vector<1x1x1x256xf32> to vector<1x256xf32>
    %191 = vector.shape_cast %190 : vector<1x256xf32> to vector<1x1x256xf32>
    %192 = arith.mulf %188, %191 : vector<1x1x256xf32>
    %193 = arith.addf %187, %192 : vector<1x1x256xf32>
    %194 = vector.extract_strided_slice %39 {offsets = [1, 1, 0], sizes = [1, 1, 256], strides = [1, 1, 1]} : vector<2x2x256xf32> to vector<1x1x256xf32>
    %c2_87 = arith.constant 2 : index
    %c2_88 = arith.constant 2 : index
    %c0_89 = arith.constant 0 : index
    %c0_90 = arith.constant 0 : index
    %195 = vector.load %arg4[%c2_87, %c2_88, %c0_89, %c0_90] : memref<3x3x1x256xf32, #tpu.memory_space<vmem>>, vector<1x1x1x256xf32>
    %196 = vector.shape_cast %195 : vector<1x1x1x256xf32> to vector<1x256xf32>
    %197 = vector.shape_cast %196 : vector<1x256xf32> to vector<1x1x256xf32>
    %198 = arith.mulf %194, %197 : vector<1x1x256xf32>
    %199 = arith.addf %193, %198 : vector<1x1x256xf32>
    %c0_91 = arith.constant 0 : index
    %c0_92 = arith.constant 0 : index
    %c0_93 = arith.constant 0 : index
    %c0_94 = arith.constant 0 : index
    %200 = vector.load %arg5[%c0_91, %c0_92, %c0_93, %c0_94] : memref<1x1x1x256xf32, #tpu.memory_space<vmem>>, vector<1x1x1x256xf32>
    %201 = vector.shape_cast %200 : vector<1x1x1x256xf32> to vector<1x1x256xf32>
    %202 = vector.shape_cast %199 : vector<1x1x256xf32> to vector<1x1x1x256xf32>
    tpu.vector_store %arg5[%c0_91, %c0_92, %c0_93, %c0_94], %202 {strides = array<i32>} : memref<1x1x1x256xf32, #tpu.memory_space<vmem>>, vector<1x1x1x256xf32>,
    %c0_95 = arith.constant 0 : index
    %c0_96 = arith.constant 0 : index
    %203 = vector.load %arg6[%c0_95, %c0_96] : memref<1x256xf32, #tpu.memory_space<vmem>>, vector<1x256xf32>
    %cst_97 = arith.constant dense<0.000000e+00> : vector<1x256xf32>
    %204 = vector.multi_reduction <add>, %199, %cst_97 [0] : vector<1x1x256xf32> to vector<1x256xf32>
    %205 = vector.shape_cast %204 : vector<1x256xf32> to vector<1x1x256xf32>
    %cst_98 = arith.constant dense<0.000000e+00> : vector<1x256xf32>
    %206 = vector.multi_reduction <add>, %205, %cst_98 [1] : vector<1x1x256xf32> to vector<1x256xf32>
    %207 = vector.shape_cast %206 : vector<1x256xf32> to vector<1x1x256xf32>
    %208 = vector.shape_cast %207 : vector<1x1x256xf32> to vector<1x256xf32>
    %209 = arith.addf %203, %208 : vector<1x256xf32>
    %c0_99 = arith.constant 0 : index
    %c0_100 = arith.constant 0 : index
    %210 = vector.load %arg6[%c0_99, %c0_100] : memref<1x256xf32, #tpu.memory_space<vmem>>, vector<1x256xf32>
    tpu.vector_store %arg6[%c0_99, %c0_100], %209 {strides = array<i32>} : memref<1x256xf32, #tpu.memory_space<vmem>>, vector<1x256xf32>,
    %c0_101 = arith.constant 0 : index
    %c0_102 = arith.constant 0 : index
    %211 = vector.load %arg7[%c0_101, %c0_102] : memref<1x256xf32, #tpu.memory_space<vmem>>, vector<1x256xf32>
    %212 = arith.mulf %199, %199 : vector<1x1x256xf32>
    %cst_103 = arith.constant dense<0.000000e+00> : vector<1x256xf32>
    %213 = vector.multi_reduction <add>, %212, %cst_103 [0] : vector<1x1x256xf32> to vector<1x256xf32>
    %214 = vector.shape_cast %213 : vector<1x256xf32> to vector<1x1x256xf32>
    %cst_104 = arith.constant dense<0.000000e+00> : vector<1x256xf32>
    %215 = vector.multi_reduction <add>, %214, %cst_104 [1] : vector<1x1x256xf32> to vector<1x256xf32>
    %216 = vector.shape_cast %215 : vector<1x256xf32> to vector<1x1x256xf32>
    %217 = vector.shape_cast %216 : vector<1x1x256xf32> to vector<1x256xf32>
    %218 = arith.addf %211, %217 : vector<1x256xf32>
    %c0_105 = arith.constant 0 : index
    %c0_106 = arith.constant 0 : index
    %219 = vector.load %arg7[%c0_105, %c0_106] : memref<1x256xf32, #tpu.memory_space<vmem>>, vector<1x256xf32>
    tpu.vector_store %arg7[%c0_105, %c0_106], %218 {strides = array<i32>} : memref<1x256xf32, #tpu.memory_space<vmem>>, vector<1x256xf32>,
    return
  }
  func.func @transform_0(%arg0: i32) -> (i32, i32) {
    %c0_i32 = arith.constant 0 : i32
    %c0_i32_0 = arith.constant 0 : i32
    %c0_i32_1 = arith.constant 0 : i32
    return %c0_i32, %c0_i32_0 : i32, i32
  }
  func.func @transform_1(%arg0: i32) -> (i32, i32) {
    %c0_i32 = arith.constant 0 : i32
    %c0_i32_0 = arith.constant 0 : i32
    %c0_i32_1 = arith.constant 0 : i32
    return %c0_i32, %c0_i32_0 : i32, i32
  }
  func.func @transform_2(%arg0: i32) -> (i32, i32, i32, i32, i32) {
    %c0_i32 = arith.constant 0 : i32
    %c0_i32_0 = arith.constant 0 : i32
    %c0_i32_1 = arith.constant 0 : i32
    %c0_i32_2 = arith.constant 0 : i32
    %c0_i32_3 = arith.constant 0 : i32
    return %arg0, %c0_i32, %c0_i32_0, %c0_i32_1, %c0_i32_2 : i32, i32, i32, i32, i32
  }
  func.func @transform_3(%arg0: i32) -> (i32, i32, i32, i32) {
    %c0_i32 = arith.constant 0 : i32
    %c0_i32_0 = arith.constant 0 : i32
    %c0_i32_1 = arith.constant 0 : i32
    %c0_i32_2 = arith.constant 0 : i32
    %c0_i32_3 = arith.constant 0 : i32
    return %c0_i32, %c0_i32_0, %c0_i32_1, %c0_i32_2 : i32, i32, i32, i32
  }
  func.func @transform_4(%arg0: i32) -> (i32, i32, i32, i32) {
    %c0_i32 = arith.constant 0 : i32
    %c0_i32_0 = arith.constant 0 : i32
    %c0_i32_1 = arith.constant 0 : i32
    %c0_i32_2 = arith.constant 0 : i32
    return %arg0, %c0_i32, %c0_i32_0, %c0_i32_1 : i32, i32, i32, i32
  }
  func.func @transform_5(%arg0: i32) -> (i32, i32) {
    %c0_i32 = arith.constant 0 : i32
    %c0_i32_0 = arith.constant 0 : i32
    %c0_i32_1 = arith.constant 0 : i32
    return %c0_i32, %c0_i32_0 : i32, i32
  }
  func.func @transform_6(%arg0: i32) -> (i32, i32) {
    %c0_i32 = arith.constant 0 : i32
    %c0_i32_0 = arith.constant 0 : i32
    %c0_i32_1 = arith.constant 0 : i32
    return %c0_i32, %c0_i32_0 : i32, i32
  }
}

module attributes {stable_mosaic.version = 11 : i64} {
  func.func @bnrelu_matmul_stats_kernel(%arg0: i32, %arg1: memref<1x256xf32, #tpu.memory_space<vmem>>, %arg2: memref<1x256xf32, #tpu.memory_space<vmem>>, %arg3: memref<2x256xf32, #tpu.memory_space<vmem>>, %arg4: memref<256x512xbf16, #tpu.memory_space<vmem>>, %arg5: memref<2x512xf32, #tpu.memory_space<vmem>>, %arg6: memref<1x512xf32, #tpu.memory_space<vmem>>, %arg7: memref<1x512xf32, #tpu.memory_space<vmem>>) attributes {dimension_semantics = [#tpu.dimension_semantics<arbitrary>], iteration_bounds = array<i64: 1>, scalar_prefetch = 0 : i64, scratch_operands = 0 : i64, tpu.core_type = #tpu.core_type<tc>, window_params = [{pipeline_mode = #tpu.pipeline_mode<synchronous>, transform_indices = @transform_0, window_bounds = array<i64: 1, 256>}, {pipeline_mode = #tpu.pipeline_mode<synchronous>, transform_indices = @transform_1, window_bounds = array<i64: 1, 256>}, {transform_indices = @transform_2, window_bounds = array<i64: 2, 256>}, {pipeline_mode = #tpu.pipeline_mode<synchronous>, transform_indices = @transform_3, window_bounds = array<i64: 256, 512>}, {transform_indices = @transform_4, window_bounds = array<i64: 2, 512>}, {pipeline_mode = #tpu.pipeline_mode<synchronous>, transform_indices = @transform_5, window_bounds = array<i64: 1, 512>}, {pipeline_mode = #tpu.pipeline_mode<synchronous>, transform_indices = @transform_6, window_bounds = array<i64: 1, 512>}]} {
    %c0_i32 = arith.constant 0 : i32
    %0 = arith.cmpi eq, %arg0, %c0_i32 : i32
    %1 = arith.extui %0 : i1 to i32
    %c0_i32_0 = arith.constant 0 : i32
    %2 = arith.cmpi ne, %1, %c0_i32_0 : i32
    scf.if %2 {
      %cst_21 = arith.constant 0.000000e+00 : f32
      %27 = vector.broadcast %cst_21 : f32 to vector<1x512xf32>
      %c0_22 = arith.constant 0 : index
      %c0_23 = arith.constant 0 : index
      %28 = vector.load %arg6[%c0_22, %c0_23] : memref<1x512xf32, #tpu.memory_space<vmem>>, vector<1x512xf32>
      tpu.vector_store %arg6[%c0_22, %c0_23], %27 {strides = array<i32>} : memref<1x512xf32, #tpu.memory_space<vmem>>, vector<1x512xf32>,
      %cst_24 = arith.constant 0.000000e+00 : f32
      %29 = vector.broadcast %cst_24 : f32 to vector<1x512xf32>
      %c0_25 = arith.constant 0 : index
      %c0_26 = arith.constant 0 : index
      %30 = vector.load %arg7[%c0_25, %c0_26] : memref<1x512xf32, #tpu.memory_space<vmem>>, vector<1x512xf32>
      tpu.vector_store %arg7[%c0_25, %c0_26], %29 {strides = array<i32>} : memref<1x512xf32, #tpu.memory_space<vmem>>, vector<1x512xf32>,
    } else {
    }
    %c0 = arith.constant 0 : index
    %c0_1 = arith.constant 0 : index
    %3 = vector.load %arg3[%c0, %c0_1] : memref<2x256xf32, #tpu.memory_space<vmem>>, vector<2x256xf32>
    %c0_2 = arith.constant 0 : index
    %c0_3 = arith.constant 0 : index
    %4 = vector.load %arg1[%c0_2, %c0_3] : memref<1x256xf32, #tpu.memory_space<vmem>>, vector<1x256xf32>
    %5 = vector.broadcast %4 : vector<1x256xf32> to vector<2x256xf32>
    %6 = arith.mulf %3, %5 : vector<2x256xf32>
    %c0_4 = arith.constant 0 : index
    %c0_5 = arith.constant 0 : index
    %7 = vector.load %arg2[%c0_4, %c0_5] : memref<1x256xf32, #tpu.memory_space<vmem>>, vector<1x256xf32>
    %8 = vector.broadcast %7 : vector<1x256xf32> to vector<2x256xf32>
    %9 = arith.addf %6, %8 : vector<2x256xf32>
    %cst = arith.constant 0.000000e+00 : f32
    %10 = vector.broadcast %cst : f32 to vector<2x256xf32>
    %11 = arith.maximumf %9, %10 : vector<2x256xf32>
    %12 = arith.truncf %11 : vector<2x256xf32> to vector<2x256xbf16>
    %c0_6 = arith.constant 0 : index
    %c0_7 = arith.constant 0 : index
    %13 = vector.load %arg4[%c0_6, %c0_7] : memref<256x512xbf16, #tpu.memory_space<vmem>>, vector<256x512xbf16>
    %cst_8 = arith.constant dense<0.000000e+00> : vector<2x512xf32>
    %14 = tpu.matmul %12, %13, %cst_8 {dimension_numbers = #tpu.dot_dimension_numbers<[1], [0], [0], [1], [0, 0, 1, 1], [], []>} : vector<2x256xbf16>, vector<256x512xbf16>, vector<2x512xf32> -> vector<2x512xf32>
    %c0_9 = arith.constant 0 : index
    %c0_10 = arith.constant 0 : index
    %15 = vector.load %arg5[%c0_9, %c0_10] : memref<2x512xf32, #tpu.memory_space<vmem>>, vector<2x512xf32>
    tpu.vector_store %arg5[%c0_9, %c0_10], %14 {strides = array<i32>} : memref<2x512xf32, #tpu.memory_space<vmem>>, vector<2x512xf32>,
    %c0_11 = arith.constant 0 : index
    %c0_12 = arith.constant 0 : index
    %16 = vector.load %arg6[%c0_11, %c0_12] : memref<1x512xf32, #tpu.memory_space<vmem>>, vector<1x512xf32>
    %cst_13 = arith.constant dense<0.000000e+00> : vector<512xf32>
    %17 = vector.multi_reduction <add>, %14, %cst_13 [0] : vector<2x512xf32> to vector<512xf32>
    %18 = vector.shape_cast %17 : vector<512xf32> to vector<1x512xf32>
    %19 = arith.addf %16, %18 : vector<1x512xf32>
    %c0_14 = arith.constant 0 : index
    %c0_15 = arith.constant 0 : index
    %20 = vector.load %arg6[%c0_14, %c0_15] : memref<1x512xf32, #tpu.memory_space<vmem>>, vector<1x512xf32>
    tpu.vector_store %arg6[%c0_14, %c0_15], %19 {strides = array<i32>} : memref<1x512xf32, #tpu.memory_space<vmem>>, vector<1x512xf32>,
    %c0_16 = arith.constant 0 : index
    %c0_17 = arith.constant 0 : index
    %21 = vector.load %arg7[%c0_16, %c0_17] : memref<1x512xf32, #tpu.memory_space<vmem>>, vector<1x512xf32>
    %22 = arith.mulf %14, %14 : vector<2x512xf32>
    %cst_18 = arith.constant dense<0.000000e+00> : vector<512xf32>
    %23 = vector.multi_reduction <add>, %22, %cst_18 [0] : vector<2x512xf32> to vector<512xf32>
    %24 = vector.shape_cast %23 : vector<512xf32> to vector<1x512xf32>
    %25 = arith.addf %21, %24 : vector<1x512xf32>
    %c0_19 = arith.constant 0 : index
    %c0_20 = arith.constant 0 : index
    %26 = vector.load %arg7[%c0_19, %c0_20] : memref<1x512xf32, #tpu.memory_space<vmem>>, vector<1x512xf32>
    tpu.vector_store %arg7[%c0_19, %c0_20], %25 {strides = array<i32>} : memref<1x512xf32, #tpu.memory_space<vmem>>, vector<1x512xf32>,
    return
  }
  func.func @transform_0(%arg0: i32) -> (i32, i32) {
    %c0_i32 = arith.constant 0 : i32
    %c0_i32_0 = arith.constant 0 : i32
    %c0_i32_1 = arith.constant 0 : i32
    return %c0_i32, %c0_i32_0 : i32, i32
  }
  func.func @transform_1(%arg0: i32) -> (i32, i32) {
    %c0_i32 = arith.constant 0 : i32
    %c0_i32_0 = arith.constant 0 : i32
    %c0_i32_1 = arith.constant 0 : i32
    return %c0_i32, %c0_i32_0 : i32, i32
  }
  func.func @transform_2(%arg0: i32) -> (i32, i32) {
    %c0_i32 = arith.constant 0 : i32
    %c0_i32_0 = arith.constant 0 : i32
    return %arg0, %c0_i32 : i32, i32
  }
  func.func @transform_3(%arg0: i32) -> (i32, i32) {
    %c0_i32 = arith.constant 0 : i32
    %c0_i32_0 = arith.constant 0 : i32
    %c0_i32_1 = arith.constant 0 : i32
    return %c0_i32, %c0_i32_0 : i32, i32
  }
  func.func @transform_4(%arg0: i32) -> (i32, i32) {
    %c0_i32 = arith.constant 0 : i32
    %c0_i32_0 = arith.constant 0 : i32
    return %arg0, %c0_i32 : i32, i32
  }
  func.func @transform_5(%arg0: i32) -> (i32, i32) {
    %c0_i32 = arith.constant 0 : i32
    %c0_i32_0 = arith.constant 0 : i32
    %c0_i32_1 = arith.constant 0 : i32
    return %c0_i32, %c0_i32_0 : i32, i32
  }
  func.func @transform_6(%arg0: i32) -> (i32, i32) {
    %c0_i32 = arith.constant 0 : i32
    %c0_i32_0 = arith.constant 0 : i32
    %c0_i32_1 = arith.constant 0 : i32
    return %c0_i32, %c0_i32_0 : i32, i32
  }
}

module attributes {stable_mosaic.version = 11 : i64} {
  func.func @bnrelu_dwconv_stats_kernel(%arg0: i32, %arg1: memref<1x512xf32, #tpu.memory_space<vmem>>, %arg2: memref<1x512xf32, #tpu.memory_space<vmem>>, %arg3: memref<1x4x2x2x512xf32, #tpu.memory_space<vmem>>, %arg4: memref<3x3x1x512xf32, #tpu.memory_space<vmem>>, %arg5: memref<1x1x1x512xf32, #tpu.memory_space<vmem>>, %arg6: memref<1x512xf32, #tpu.memory_space<vmem>>, %arg7: memref<1x512xf32, #tpu.memory_space<vmem>>) attributes {dimension_semantics = [#tpu.dimension_semantics<arbitrary>], iteration_bounds = array<i64: 2>, scalar_prefetch = 0 : i64, scratch_operands = 0 : i64, tpu.core_type = #tpu.core_type<tc>, window_params = [{pipeline_mode = #tpu.pipeline_mode<synchronous>, transform_indices = @transform_0, window_bounds = array<i64: 1, 512>}, {pipeline_mode = #tpu.pipeline_mode<synchronous>, transform_indices = @transform_1, window_bounds = array<i64: 1, 512>}, {transform_indices = @transform_2, window_bounds = array<i64: 1, 4, 2, 2, 512>}, {pipeline_mode = #tpu.pipeline_mode<synchronous>, transform_indices = @transform_3, window_bounds = array<i64: 3, 3, 1, 512>}, {transform_indices = @transform_4, window_bounds = array<i64: 1, 1, 1, 512>}, {pipeline_mode = #tpu.pipeline_mode<synchronous>, transform_indices = @transform_5, window_bounds = array<i64: 1, 512>}, {pipeline_mode = #tpu.pipeline_mode<synchronous>, transform_indices = @transform_6, window_bounds = array<i64: 1, 512>}]} {
    %c0_i32 = arith.constant 0 : i32
    %0 = arith.cmpi eq, %arg0, %c0_i32 : i32
    %1 = arith.extui %0 : i1 to i32
    %c0_i32_0 = arith.constant 0 : i32
    %2 = arith.cmpi ne, %1, %c0_i32_0 : i32
    scf.if %2 {
      %cst_107 = arith.constant 0.000000e+00 : f32
      %220 = vector.broadcast %cst_107 : f32 to vector<1x512xf32>
      %c0_108 = arith.constant 0 : index
      %c0_109 = arith.constant 0 : index
      %221 = vector.load %arg6[%c0_108, %c0_109] : memref<1x512xf32, #tpu.memory_space<vmem>>, vector<1x512xf32>
      tpu.vector_store %arg6[%c0_108, %c0_109], %220 {strides = array<i32>} : memref<1x512xf32, #tpu.memory_space<vmem>>, vector<1x512xf32>,
      %cst_110 = arith.constant 0.000000e+00 : f32
      %222 = vector.broadcast %cst_110 : f32 to vector<1x512xf32>
      %c0_111 = arith.constant 0 : index
      %c0_112 = arith.constant 0 : index
      %223 = vector.load %arg7[%c0_111, %c0_112] : memref<1x512xf32, #tpu.memory_space<vmem>>, vector<1x512xf32>
      tpu.vector_store %arg7[%c0_111, %c0_112], %222 {strides = array<i32>} : memref<1x512xf32, #tpu.memory_space<vmem>>, vector<1x512xf32>,
    } else {
    }
    %c0 = arith.constant 0 : index
    %c0_1 = arith.constant 0 : index
    %3 = vector.load %arg1[%c0, %c0_1] : memref<1x512xf32, #tpu.memory_space<vmem>>, vector<1x512xf32>
    %c0_2 = arith.constant 0 : index
    %c0_3 = arith.constant 0 : index
    %4 = vector.load %arg2[%c0_2, %c0_3] : memref<1x512xf32, #tpu.memory_space<vmem>>, vector<1x512xf32>
    %5 = tpu.iota {dimensions = array<i32: 0>} : vector<2x2x1xi32>
    %c2_i32 = arith.constant 2 : i32
    %6 = vector.broadcast %c2_i32 : i32 to vector<2x2x1xi32>
    %7 = arith.muli %6, %5 : vector<2x2x1xi32>
    %c0_i32_4 = arith.constant 0 : i32
    %8 = vector.broadcast %c0_i32_4 : i32 to vector<2x2x1xi32>
    %9 = arith.addi %7, %8 : vector<2x2x1xi32>
    %10 = tpu.iota {dimensions = array<i32: 1>} : vector<2x2x1xi32>
    %c2_i32_5 = arith.constant 2 : i32
    %11 = vector.broadcast %c2_i32_5 : i32 to vector<2x2x1xi32>
    %12 = arith.muli %11, %10 : vector<2x2x1xi32>
    %c0_i32_6 = arith.constant 0 : i32
    %13 = vector.broadcast %c0_i32_6 : i32 to vector<2x2x1xi32>
    %14 = arith.addi %12, %13 : vector<2x2x1xi32>
    %c1_i32 = arith.constant 1 : i32
    %15 = vector.broadcast %c1_i32 : i32 to vector<2x2x1xi32>
    %16 = arith.cmpi sge, %9, %15 : vector<2x2x1xi32>
    %c1_i32_7 = arith.constant 1 : i32
    %17 = vector.broadcast %c1_i32_7 : i32 to vector<2x2x1xi32>
    %18 = arith.cmpi sle, %9, %17 : vector<2x2x1xi32>
    %19 = arith.andi %16, %18 : vector<2x2x1xi1>
    %c1_i32_8 = arith.constant 1 : i32
    %20 = vector.broadcast %c1_i32_8 : i32 to vector<2x2x1xi32>
    %21 = arith.cmpi sge, %14, %20 : vector<2x2x1xi32>
    %22 = arith.andi %19, %21 : vector<2x2x1xi1>
    %c1_i32_9 = arith.constant 1 : i32
    %23 = vector.broadcast %c1_i32_9 : i32 to vector<2x2x1xi32>
    %24 = arith.cmpi sle, %14, %23 : vector<2x2x1xi32>
    %25 = arith.andi %22, %24 : vector<2x2x1xi1>
    %c0_10 = arith.constant 0 : index
    %c0_11 = arith.constant 0 : index
    %c0_12 = arith.constant 0 : index
    %c0_13 = arith.constant 0 : index
    %c0_14 = arith.constant 0 : index
    %26 = vector.load %arg3[%c0_10, %c0_11, %c0_12, %c0_13, %c0_14] : memref<1x4x2x2x512xf32, #tpu.memory_space<vmem>>, vector<1x1x2x2x512xf32>
    %27 = vector.shape_cast %26 : vector<1x1x2x2x512xf32> to vector<2x2x512xf32>
    %28 = vector.shape_cast %3 : vector<1x512xf32> to vector<1x1x512xf32>
    %29 = vector.broadcast %28 : vector<1x1x512xf32> to vector<2x2x512xf32>
    %30 = arith.mulf %27, %29 : vector<2x2x512xf32>
    %31 = vector.shape_cast %4 : vector<1x512xf32> to vector<1x1x512xf32>
    %32 = vector.broadcast %31 : vector<1x1x512xf32> to vector<2x2x512xf32>
    %33 = arith.addf %30, %32 : vector<2x2x512xf32>
    %cst = arith.constant 0.000000e+00 : f32
    %34 = vector.broadcast %cst : f32 to vector<2x2x512xf32>
    %35 = arith.maximumf %33, %34 : vector<2x2x512xf32>
    %36 = arith.extui %25 : vector<2x2x1xi1> to vector<2x2x1xi32>
    %37 = arith.sitofp %36 : vector<2x2x1xi32> to vector<2x2x1xf32>
    %38 = vector.broadcast %37 : vector<2x2x1xf32> to vector<2x2x512xf32>
    %39 = arith.mulf %35, %38 : vector<2x2x512xf32>
    %40 = tpu.iota {dimensions = array<i32: 0>} : vector<2x2x1xi32>
    %c2_i32_15 = arith.constant 2 : i32
    %41 = vector.broadcast %c2_i32_15 : i32 to vector<2x2x1xi32>
    %42 = arith.muli %41, %40 : vector<2x2x1xi32>
    %c0_i32_16 = arith.constant 0 : i32
    %43 = vector.broadcast %c0_i32_16 : i32 to vector<2x2x1xi32>
    %44 = arith.addi %42, %43 : vector<2x2x1xi32>
    %45 = tpu.iota {dimensions = array<i32: 1>} : vector<2x2x1xi32>
    %c2_i32_17 = arith.constant 2 : i32
    %46 = vector.broadcast %c2_i32_17 : i32 to vector<2x2x1xi32>
    %47 = arith.muli %46, %45 : vector<2x2x1xi32>
    %c1_i32_18 = arith.constant 1 : i32
    %48 = vector.broadcast %c1_i32_18 : i32 to vector<2x2x1xi32>
    %49 = arith.addi %47, %48 : vector<2x2x1xi32>
    %c1_i32_19 = arith.constant 1 : i32
    %50 = vector.broadcast %c1_i32_19 : i32 to vector<2x2x1xi32>
    %51 = arith.cmpi sge, %44, %50 : vector<2x2x1xi32>
    %c1_i32_20 = arith.constant 1 : i32
    %52 = vector.broadcast %c1_i32_20 : i32 to vector<2x2x1xi32>
    %53 = arith.cmpi sle, %44, %52 : vector<2x2x1xi32>
    %54 = arith.andi %51, %53 : vector<2x2x1xi1>
    %c1_i32_21 = arith.constant 1 : i32
    %55 = vector.broadcast %c1_i32_21 : i32 to vector<2x2x1xi32>
    %56 = arith.cmpi sge, %49, %55 : vector<2x2x1xi32>
    %57 = arith.andi %54, %56 : vector<2x2x1xi1>
    %c1_i32_22 = arith.constant 1 : i32
    %58 = vector.broadcast %c1_i32_22 : i32 to vector<2x2x1xi32>
    %59 = arith.cmpi sle, %49, %58 : vector<2x2x1xi32>
    %60 = arith.andi %57, %59 : vector<2x2x1xi1>
    %c0_23 = arith.constant 0 : index
    %c1 = arith.constant 1 : index
    %c0_24 = arith.constant 0 : index
    %c0_25 = arith.constant 0 : index
    %c0_26 = arith.constant 0 : index
    %61 = vector.load %arg3[%c0_23, %c1, %c0_24, %c0_25, %c0_26] : memref<1x4x2x2x512xf32, #tpu.memory_space<vmem>>, vector<1x1x2x2x512xf32>
    %62 = vector.shape_cast %61 : vector<1x1x2x2x512xf32> to vector<2x2x512xf32>
    %63 = vector.shape_cast %3 : vector<1x512xf32> to vector<1x1x512xf32>
    %64 = vector.broadcast %63 : vector<1x1x512xf32> to vector<2x2x512xf32>
    %65 = arith.mulf %62, %64 : vector<2x2x512xf32>
    %66 = vector.shape_cast %4 : vector<1x512xf32> to vector<1x1x512xf32>
    %67 = vector.broadcast %66 : vector<1x1x512xf32> to vector<2x2x512xf32>
    %68 = arith.addf %65, %67 : vector<2x2x512xf32>
    %cst_27 = arith.constant 0.000000e+00 : f32
    %69 = vector.broadcast %cst_27 : f32 to vector<2x2x512xf32>
    %70 = arith.maximumf %68, %69 : vector<2x2x512xf32>
    %71 = arith.extui %60 : vector<2x2x1xi1> to vector<2x2x1xi32>
    %72 = arith.sitofp %71 : vector<2x2x1xi32> to vector<2x2x1xf32>
    %73 = vector.broadcast %72 : vector<2x2x1xf32> to vector<2x2x512xf32>
    %74 = arith.mulf %70, %73 : vector<2x2x512xf32>
    %75 = tpu.iota {dimensions = array<i32: 0>} : vector<2x2x1xi32>
    %c2_i32_28 = arith.constant 2 : i32
    %76 = vector.broadcast %c2_i32_28 : i32 to vector<2x2x1xi32>
    %77 = arith.muli %76, %75 : vector<2x2x1xi32>
    %c1_i32_29 = arith.constant 1 : i32
    %78 = vector.broadcast %c1_i32_29 : i32 to vector<2x2x1xi32>
    %79 = arith.addi %77, %78 : vector<2x2x1xi32>
    %80 = tpu.iota {dimensions = array<i32: 1>} : vector<2x2x1xi32>
    %c2_i32_30 = arith.constant 2 : i32
    %81 = vector.broadcast %c2_i32_30 : i32 to vector<2x2x1xi32>
    %82 = arith.muli %81, %80 : vector<2x2x1xi32>
    %c0_i32_31 = arith.constant 0 : i32
    %83 = vector.broadcast %c0_i32_31 : i32 to vector<2x2x1xi32>
    %84 = arith.addi %82, %83 : vector<2x2x1xi32>
    %c1_i32_32 = arith.constant 1 : i32
    %85 = vector.broadcast %c1_i32_32 : i32 to vector<2x2x1xi32>
    %86 = arith.cmpi sge, %79, %85 : vector<2x2x1xi32>
    %c1_i32_33 = arith.constant 1 : i32
    %87 = vector.broadcast %c1_i32_33 : i32 to vector<2x2x1xi32>
    %88 = arith.cmpi sle, %79, %87 : vector<2x2x1xi32>
    %89 = arith.andi %86, %88 : vector<2x2x1xi1>
    %c1_i32_34 = arith.constant 1 : i32
    %90 = vector.broadcast %c1_i32_34 : i32 to vector<2x2x1xi32>
    %91 = arith.cmpi sge, %84, %90 : vector<2x2x1xi32>
    %92 = arith.andi %89, %91 : vector<2x2x1xi1>
    %c1_i32_35 = arith.constant 1 : i32
    %93 = vector.broadcast %c1_i32_35 : i32 to vector<2x2x1xi32>
    %94 = arith.cmpi sle, %84, %93 : vector<2x2x1xi32>
    %95 = arith.andi %92, %94 : vector<2x2x1xi1>
    %c0_36 = arith.constant 0 : index
    %c2 = arith.constant 2 : index
    %c0_37 = arith.constant 0 : index
    %c0_38 = arith.constant 0 : index
    %c0_39 = arith.constant 0 : index
    %96 = vector.load %arg3[%c0_36, %c2, %c0_37, %c0_38, %c0_39] : memref<1x4x2x2x512xf32, #tpu.memory_space<vmem>>, vector<1x1x2x2x512xf32>
    %97 = vector.shape_cast %96 : vector<1x1x2x2x512xf32> to vector<2x2x512xf32>
    %98 = vector.shape_cast %3 : vector<1x512xf32> to vector<1x1x512xf32>
    %99 = vector.broadcast %98 : vector<1x1x512xf32> to vector<2x2x512xf32>
    %100 = arith.mulf %97, %99 : vector<2x2x512xf32>
    %101 = vector.shape_cast %4 : vector<1x512xf32> to vector<1x1x512xf32>
    %102 = vector.broadcast %101 : vector<1x1x512xf32> to vector<2x2x512xf32>
    %103 = arith.addf %100, %102 : vector<2x2x512xf32>
    %cst_40 = arith.constant 0.000000e+00 : f32
    %104 = vector.broadcast %cst_40 : f32 to vector<2x2x512xf32>
    %105 = arith.maximumf %103, %104 : vector<2x2x512xf32>
    %106 = arith.extui %95 : vector<2x2x1xi1> to vector<2x2x1xi32>
    %107 = arith.sitofp %106 : vector<2x2x1xi32> to vector<2x2x1xf32>
    %108 = vector.broadcast %107 : vector<2x2x1xf32> to vector<2x2x512xf32>
    %109 = arith.mulf %105, %108 : vector<2x2x512xf32>
    %110 = tpu.iota {dimensions = array<i32: 0>} : vector<2x2x1xi32>
    %c2_i32_41 = arith.constant 2 : i32
    %111 = vector.broadcast %c2_i32_41 : i32 to vector<2x2x1xi32>
    %112 = arith.muli %111, %110 : vector<2x2x1xi32>
    %c1_i32_42 = arith.constant 1 : i32
    %113 = vector.broadcast %c1_i32_42 : i32 to vector<2x2x1xi32>
    %114 = arith.addi %112, %113 : vector<2x2x1xi32>
    %115 = tpu.iota {dimensions = array<i32: 1>} : vector<2x2x1xi32>
    %c2_i32_43 = arith.constant 2 : i32
    %116 = vector.broadcast %c2_i32_43 : i32 to vector<2x2x1xi32>
    %117 = arith.muli %116, %115 : vector<2x2x1xi32>
    %c1_i32_44 = arith.constant 1 : i32
    %118 = vector.broadcast %c1_i32_44 : i32 to vector<2x2x1xi32>
    %119 = arith.addi %117, %118 : vector<2x2x1xi32>
    %c1_i32_45 = arith.constant 1 : i32
    %120 = vector.broadcast %c1_i32_45 : i32 to vector<2x2x1xi32>
    %121 = arith.cmpi sge, %114, %120 : vector<2x2x1xi32>
    %c1_i32_46 = arith.constant 1 : i32
    %122 = vector.broadcast %c1_i32_46 : i32 to vector<2x2x1xi32>
    %123 = arith.cmpi sle, %114, %122 : vector<2x2x1xi32>
    %124 = arith.andi %121, %123 : vector<2x2x1xi1>
    %c1_i32_47 = arith.constant 1 : i32
    %125 = vector.broadcast %c1_i32_47 : i32 to vector<2x2x1xi32>
    %126 = arith.cmpi sge, %119, %125 : vector<2x2x1xi32>
    %127 = arith.andi %124, %126 : vector<2x2x1xi1>
    %c1_i32_48 = arith.constant 1 : i32
    %128 = vector.broadcast %c1_i32_48 : i32 to vector<2x2x1xi32>
    %129 = arith.cmpi sle, %119, %128 : vector<2x2x1xi32>
    %130 = arith.andi %127, %129 : vector<2x2x1xi1>
    %c0_49 = arith.constant 0 : index
    %c3 = arith.constant 3 : index
    %c0_50 = arith.constant 0 : index
    %c0_51 = arith.constant 0 : index
    %c0_52 = arith.constant 0 : index
    %131 = vector.load %arg3[%c0_49, %c3, %c0_50, %c0_51, %c0_52] : memref<1x4x2x2x512xf32, #tpu.memory_space<vmem>>, vector<1x1x2x2x512xf32>
    %132 = vector.shape_cast %131 : vector<1x1x2x2x512xf32> to vector<2x2x512xf32>
    %133 = vector.shape_cast %3 : vector<1x512xf32> to vector<1x1x512xf32>
    %134 = vector.broadcast %133 : vector<1x1x512xf32> to vector<2x2x512xf32>
    %135 = arith.mulf %132, %134 : vector<2x2x512xf32>
    %136 = vector.shape_cast %4 : vector<1x512xf32> to vector<1x1x512xf32>
    %137 = vector.broadcast %136 : vector<1x1x512xf32> to vector<2x2x512xf32>
    %138 = arith.addf %135, %137 : vector<2x2x512xf32>
    %cst_53 = arith.constant 0.000000e+00 : f32
    %139 = vector.broadcast %cst_53 : f32 to vector<2x2x512xf32>
    %140 = arith.maximumf %138, %139 : vector<2x2x512xf32>
    %141 = arith.extui %130 : vector<2x2x1xi1> to vector<2x2x1xi32>
    %142 = arith.sitofp %141 : vector<2x2x1xi32> to vector<2x2x1xf32>
    %143 = vector.broadcast %142 : vector<2x2x1xf32> to vector<2x2x512xf32>
    %144 = arith.mulf %140, %143 : vector<2x2x512xf32>
    %cst_54 = arith.constant 0.000000e+00 : f32
    %145 = vector.broadcast %cst_54 : f32 to vector<1x1x512xf32>
    %146 = vector.extract_strided_slice %39 {offsets = [0, 0, 0], sizes = [1, 1, 512], strides = [1, 1, 1]} : vector<2x2x512xf32> to vector<1x1x512xf32>
    %c0_55 = arith.constant 0 : index
    %c0_56 = arith.constant 0 : index
    %c0_57 = arith.constant 0 : index
    %c0_58 = arith.constant 0 : index
    %147 = vector.load %arg4[%c0_55, %c0_56, %c0_57, %c0_58] : memref<3x3x1x512xf32, #tpu.memory_space<vmem>>, vector<1x1x1x512xf32>
    %148 = vector.shape_cast %147 : vector<1x1x1x512xf32> to vector<1x512xf32>
    %149 = vector.shape_cast %148 : vector<1x512xf32> to vector<1x1x512xf32>
    %150 = arith.mulf %146, %149 : vector<1x1x512xf32>
    %151 = arith.addf %145, %150 : vector<1x1x512xf32>
    %152 = vector.extract_strided_slice %74 {offsets = [0, 0, 0], sizes = [1, 1, 512], strides = [1, 1, 1]} : vector<2x2x512xf32> to vector<1x1x512xf32>
    %c0_59 = arith.constant 0 : index
    %c1_60 = arith.constant 1 : index
    %c0_61 = arith.constant 0 : index
    %c0_62 = arith.constant 0 : index
    %153 = vector.load %arg4[%c0_59, %c1_60, %c0_61, %c0_62] : memref<3x3x1x512xf32, #tpu.memory_space<vmem>>, vector<1x1x1x512xf32>
    %154 = vector.shape_cast %153 : vector<1x1x1x512xf32> to vector<1x512xf32>
    %155 = vector.shape_cast %154 : vector<1x512xf32> to vector<1x1x512xf32>
    %156 = arith.mulf %152, %155 : vector<1x1x512xf32>
    %157 = arith.addf %151, %156 : vector<1x1x512xf32>
    %158 = vector.extract_strided_slice %39 {offsets = [0, 1, 0], sizes = [1, 1, 512], strides = [1, 1, 1]} : vector<2x2x512xf32> to vector<1x1x512xf32>
    %c0_63 = arith.constant 0 : index
    %c2_64 = arith.constant 2 : index
    %c0_65 = arith.constant 0 : index
    %c0_66 = arith.constant 0 : index
    %159 = vector.load %arg4[%c0_63, %c2_64, %c0_65, %c0_66] : memref<3x3x1x512xf32, #tpu.memory_space<vmem>>, vector<1x1x1x512xf32>
    %160 = vector.shape_cast %159 : vector<1x1x1x512xf32> to vector<1x512xf32>
    %161 = vector.shape_cast %160 : vector<1x512xf32> to vector<1x1x512xf32>
    %162 = arith.mulf %158, %161 : vector<1x1x512xf32>
    %163 = arith.addf %157, %162 : vector<1x1x512xf32>
    %164 = vector.extract_strided_slice %109 {offsets = [0, 0, 0], sizes = [1, 1, 512], strides = [1, 1, 1]} : vector<2x2x512xf32> to vector<1x1x512xf32>
    %c1_67 = arith.constant 1 : index
    %c0_68 = arith.constant 0 : index
    %c0_69 = arith.constant 0 : index
    %c0_70 = arith.constant 0 : index
    %165 = vector.load %arg4[%c1_67, %c0_68, %c0_69, %c0_70] : memref<3x3x1x512xf32, #tpu.memory_space<vmem>>, vector<1x1x1x512xf32>
    %166 = vector.shape_cast %165 : vector<1x1x1x512xf32> to vector<1x512xf32>
    %167 = vector.shape_cast %166 : vector<1x512xf32> to vector<1x1x512xf32>
    %168 = arith.mulf %164, %167 : vector<1x1x512xf32>
    %169 = arith.addf %163, %168 : vector<1x1x512xf32>
    %170 = vector.extract_strided_slice %144 {offsets = [0, 0, 0], sizes = [1, 1, 512], strides = [1, 1, 1]} : vector<2x2x512xf32> to vector<1x1x512xf32>
    %c1_71 = arith.constant 1 : index
    %c1_72 = arith.constant 1 : index
    %c0_73 = arith.constant 0 : index
    %c0_74 = arith.constant 0 : index
    %171 = vector.load %arg4[%c1_71, %c1_72, %c0_73, %c0_74] : memref<3x3x1x512xf32, #tpu.memory_space<vmem>>, vector<1x1x1x512xf32>
    %172 = vector.shape_cast %171 : vector<1x1x1x512xf32> to vector<1x512xf32>
    %173 = vector.shape_cast %172 : vector<1x512xf32> to vector<1x1x512xf32>
    %174 = arith.mulf %170, %173 : vector<1x1x512xf32>
    %175 = arith.addf %169, %174 : vector<1x1x512xf32>
    %176 = vector.extract_strided_slice %109 {offsets = [0, 1, 0], sizes = [1, 1, 512], strides = [1, 1, 1]} : vector<2x2x512xf32> to vector<1x1x512xf32>
    %c1_75 = arith.constant 1 : index
    %c2_76 = arith.constant 2 : index
    %c0_77 = arith.constant 0 : index
    %c0_78 = arith.constant 0 : index
    %177 = vector.load %arg4[%c1_75, %c2_76, %c0_77, %c0_78] : memref<3x3x1x512xf32, #tpu.memory_space<vmem>>, vector<1x1x1x512xf32>
    %178 = vector.shape_cast %177 : vector<1x1x1x512xf32> to vector<1x512xf32>
    %179 = vector.shape_cast %178 : vector<1x512xf32> to vector<1x1x512xf32>
    %180 = arith.mulf %176, %179 : vector<1x1x512xf32>
    %181 = arith.addf %175, %180 : vector<1x1x512xf32>
    %182 = vector.extract_strided_slice %39 {offsets = [1, 0, 0], sizes = [1, 1, 512], strides = [1, 1, 1]} : vector<2x2x512xf32> to vector<1x1x512xf32>
    %c2_79 = arith.constant 2 : index
    %c0_80 = arith.constant 0 : index
    %c0_81 = arith.constant 0 : index
    %c0_82 = arith.constant 0 : index
    %183 = vector.load %arg4[%c2_79, %c0_80, %c0_81, %c0_82] : memref<3x3x1x512xf32, #tpu.memory_space<vmem>>, vector<1x1x1x512xf32>
    %184 = vector.shape_cast %183 : vector<1x1x1x512xf32> to vector<1x512xf32>
    %185 = vector.shape_cast %184 : vector<1x512xf32> to vector<1x1x512xf32>
    %186 = arith.mulf %182, %185 : vector<1x1x512xf32>
    %187 = arith.addf %181, %186 : vector<1x1x512xf32>
    %188 = vector.extract_strided_slice %74 {offsets = [1, 0, 0], sizes = [1, 1, 512], strides = [1, 1, 1]} : vector<2x2x512xf32> to vector<1x1x512xf32>
    %c2_83 = arith.constant 2 : index
    %c1_84 = arith.constant 1 : index
    %c0_85 = arith.constant 0 : index
    %c0_86 = arith.constant 0 : index
    %189 = vector.load %arg4[%c2_83, %c1_84, %c0_85, %c0_86] : memref<3x3x1x512xf32, #tpu.memory_space<vmem>>, vector<1x1x1x512xf32>
    %190 = vector.shape_cast %189 : vector<1x1x1x512xf32> to vector<1x512xf32>
    %191 = vector.shape_cast %190 : vector<1x512xf32> to vector<1x1x512xf32>
    %192 = arith.mulf %188, %191 : vector<1x1x512xf32>
    %193 = arith.addf %187, %192 : vector<1x1x512xf32>
    %194 = vector.extract_strided_slice %39 {offsets = [1, 1, 0], sizes = [1, 1, 512], strides = [1, 1, 1]} : vector<2x2x512xf32> to vector<1x1x512xf32>
    %c2_87 = arith.constant 2 : index
    %c2_88 = arith.constant 2 : index
    %c0_89 = arith.constant 0 : index
    %c0_90 = arith.constant 0 : index
    %195 = vector.load %arg4[%c2_87, %c2_88, %c0_89, %c0_90] : memref<3x3x1x512xf32, #tpu.memory_space<vmem>>, vector<1x1x1x512xf32>
    %196 = vector.shape_cast %195 : vector<1x1x1x512xf32> to vector<1x512xf32>
    %197 = vector.shape_cast %196 : vector<1x512xf32> to vector<1x1x512xf32>
    %198 = arith.mulf %194, %197 : vector<1x1x512xf32>
    %199 = arith.addf %193, %198 : vector<1x1x512xf32>
    %c0_91 = arith.constant 0 : index
    %c0_92 = arith.constant 0 : index
    %c0_93 = arith.constant 0 : index
    %c0_94 = arith.constant 0 : index
    %200 = vector.load %arg5[%c0_91, %c0_92, %c0_93, %c0_94] : memref<1x1x1x512xf32, #tpu.memory_space<vmem>>, vector<1x1x1x512xf32>
    %201 = vector.shape_cast %200 : vector<1x1x1x512xf32> to vector<1x1x512xf32>
    %202 = vector.shape_cast %199 : vector<1x1x512xf32> to vector<1x1x1x512xf32>
    tpu.vector_store %arg5[%c0_91, %c0_92, %c0_93, %c0_94], %202 {strides = array<i32>} : memref<1x1x1x512xf32, #tpu.memory_space<vmem>>, vector<1x1x1x512xf32>,
    %c0_95 = arith.constant 0 : index
    %c0_96 = arith.constant 0 : index
    %203 = vector.load %arg6[%c0_95, %c0_96] : memref<1x512xf32, #tpu.memory_space<vmem>>, vector<1x512xf32>
    %cst_97 = arith.constant dense<0.000000e+00> : vector<1x512xf32>
    %204 = vector.multi_reduction <add>, %199, %cst_97 [0] : vector<1x1x512xf32> to vector<1x512xf32>
    %205 = vector.shape_cast %204 : vector<1x512xf32> to vector<1x1x512xf32>
    %cst_98 = arith.constant dense<0.000000e+00> : vector<1x512xf32>
    %206 = vector.multi_reduction <add>, %205, %cst_98 [1] : vector<1x1x512xf32> to vector<1x512xf32>
    %207 = vector.shape_cast %206 : vector<1x512xf32> to vector<1x1x512xf32>
    %208 = vector.shape_cast %207 : vector<1x1x512xf32> to vector<1x512xf32>
    %209 = arith.addf %203, %208 : vector<1x512xf32>
    %c0_99 = arith.constant 0 : index
    %c0_100 = arith.constant 0 : index
    %210 = vector.load %arg6[%c0_99, %c0_100] : memref<1x512xf32, #tpu.memory_space<vmem>>, vector<1x512xf32>
    tpu.vector_store %arg6[%c0_99, %c0_100], %209 {strides = array<i32>} : memref<1x512xf32, #tpu.memory_space<vmem>>, vector<1x512xf32>,
    %c0_101 = arith.constant 0 : index
    %c0_102 = arith.constant 0 : index
    %211 = vector.load %arg7[%c0_101, %c0_102] : memref<1x512xf32, #tpu.memory_space<vmem>>, vector<1x512xf32>
    %212 = arith.mulf %199, %199 : vector<1x1x512xf32>
    %cst_103 = arith.constant dense<0.000000e+00> : vector<1x512xf32>
    %213 = vector.multi_reduction <add>, %212, %cst_103 [0] : vector<1x1x512xf32> to vector<1x512xf32>
    %214 = vector.shape_cast %213 : vector<1x512xf32> to vector<1x1x512xf32>
    %cst_104 = arith.constant dense<0.000000e+00> : vector<1x512xf32>
    %215 = vector.multi_reduction <add>, %214, %cst_104 [1] : vector<1x1x512xf32> to vector<1x512xf32>
    %216 = vector.shape_cast %215 : vector<1x512xf32> to vector<1x1x512xf32>
    %217 = vector.shape_cast %216 : vector<1x1x512xf32> to vector<1x512xf32>
    %218 = arith.addf %211, %217 : vector<1x512xf32>
    %c0_105 = arith.constant 0 : index
    %c0_106 = arith.constant 0 : index
    %219 = vector.load %arg7[%c0_105, %c0_106] : memref<1x512xf32, #tpu.memory_space<vmem>>, vector<1x512xf32>
    tpu.vector_store %arg7[%c0_105, %c0_106], %218 {strides = array<i32>} : memref<1x512xf32, #tpu.memory_space<vmem>>, vector<1x512xf32>,
    return
  }
  func.func @transform_0(%arg0: i32) -> (i32, i32) {
    %c0_i32 = arith.constant 0 : i32
    %c0_i32_0 = arith.constant 0 : i32
    %c0_i32_1 = arith.constant 0 : i32
    return %c0_i32, %c0_i32_0 : i32, i32
  }
  func.func @transform_1(%arg0: i32) -> (i32, i32) {
    %c0_i32 = arith.constant 0 : i32
    %c0_i32_0 = arith.constant 0 : i32
    %c0_i32_1 = arith.constant 0 : i32
    return %c0_i32, %c0_i32_0 : i32, i32
  }
  func.func @transform_2(%arg0: i32) -> (i32, i32, i32, i32, i32) {
    %c0_i32 = arith.constant 0 : i32
    %c0_i32_0 = arith.constant 0 : i32
    %c0_i32_1 = arith.constant 0 : i32
    %c0_i32_2 = arith.constant 0 : i32
    %c0_i32_3 = arith.constant 0 : i32
    return %arg0, %c0_i32, %c0_i32_0, %c0_i32_1, %c0_i32_2 : i32, i32, i32, i32, i32
  }
  func.func @transform_3(%arg0: i32) -> (i32, i32, i32, i32) {
    %c0_i32 = arith.constant 0 : i32
    %c0_i32_0 = arith.constant 0 : i32
    %c0_i32_1 = arith.constant 0 : i32
    %c0_i32_2 = arith.constant 0 : i32
    %c0_i32_3 = arith.constant 0 : i32
    return %c0_i32, %c0_i32_0, %c0_i32_1, %c0_i32_2 : i32, i32, i32, i32
  }
  func.func @transform_4(%arg0: i32) -> (i32, i32, i32, i32) {
    %c0_i32 = arith.constant 0 : i32
    %c0_i32_0 = arith.constant 0 : i32
    %c0_i32_1 = arith.constant 0 : i32
    %c0_i32_2 = arith.constant 0 : i32
    return %arg0, %c0_i32, %c0_i32_0, %c0_i32_1 : i32, i32, i32, i32
  }
  func.func @transform_5(%arg0: i32) -> (i32, i32) {
    %c0_i32 = arith.constant 0 : i32
    %c0_i32_0 = arith.constant 0 : i32
    %c0_i32_1 = arith.constant 0 : i32
    return %c0_i32, %c0_i32_0 : i32, i32
  }
  func.func @transform_6(%arg0: i32) -> (i32, i32) {
    %c0_i32 = arith.constant 0 : i32
    %c0_i32_0 = arith.constant 0 : i32
    %c0_i32_1 = arith.constant 0 : i32
    return %c0_i32, %c0_i32_0 : i32, i32
  }
}

module attributes {stable_mosaic.version = 11 : i64} {
  func.func @bnrelu_matmul_stats_kernel(%arg0: i32, %arg1: memref<1x512xf32, #tpu.memory_space<vmem>>, %arg2: memref<1x512xf32, #tpu.memory_space<vmem>>, %arg3: memref<2x512xf32, #tpu.memory_space<vmem>>, %arg4: memref<512x1024xbf16, #tpu.memory_space<vmem>>, %arg5: memref<2x1024xf32, #tpu.memory_space<vmem>>, %arg6: memref<1x1024xf32, #tpu.memory_space<vmem>>, %arg7: memref<1x1024xf32, #tpu.memory_space<vmem>>) attributes {dimension_semantics = [#tpu.dimension_semantics<arbitrary>], iteration_bounds = array<i64: 1>, scalar_prefetch = 0 : i64, scratch_operands = 0 : i64, tpu.core_type = #tpu.core_type<tc>, window_params = [{pipeline_mode = #tpu.pipeline_mode<synchronous>, transform_indices = @transform_0, window_bounds = array<i64: 1, 512>}, {pipeline_mode = #tpu.pipeline_mode<synchronous>, transform_indices = @transform_1, window_bounds = array<i64: 1, 512>}, {transform_indices = @transform_2, window_bounds = array<i64: 2, 512>}, {pipeline_mode = #tpu.pipeline_mode<synchronous>, transform_indices = @transform_3, window_bounds = array<i64: 512, 1024>}, {transform_indices = @transform_4, window_bounds = array<i64: 2, 1024>}, {pipeline_mode = #tpu.pipeline_mode<synchronous>, transform_indices = @transform_5, window_bounds = array<i64: 1, 1024>}, {pipeline_mode = #tpu.pipeline_mode<synchronous>, transform_indices = @transform_6, window_bounds = array<i64: 1, 1024>}]} {
    %c0_i32 = arith.constant 0 : i32
    %0 = arith.cmpi eq, %arg0, %c0_i32 : i32
    %1 = arith.extui %0 : i1 to i32
    %c0_i32_0 = arith.constant 0 : i32
    %2 = arith.cmpi ne, %1, %c0_i32_0 : i32
    scf.if %2 {
      %cst_21 = arith.constant 0.000000e+00 : f32
      %27 = vector.broadcast %cst_21 : f32 to vector<1x1024xf32>
      %c0_22 = arith.constant 0 : index
      %c0_23 = arith.constant 0 : index
      %28 = vector.load %arg6[%c0_22, %c0_23] : memref<1x1024xf32, #tpu.memory_space<vmem>>, vector<1x1024xf32>
      tpu.vector_store %arg6[%c0_22, %c0_23], %27 {strides = array<i32>} : memref<1x1024xf32, #tpu.memory_space<vmem>>, vector<1x1024xf32>,
      %cst_24 = arith.constant 0.000000e+00 : f32
      %29 = vector.broadcast %cst_24 : f32 to vector<1x1024xf32>
      %c0_25 = arith.constant 0 : index
      %c0_26 = arith.constant 0 : index
      %30 = vector.load %arg7[%c0_25, %c0_26] : memref<1x1024xf32, #tpu.memory_space<vmem>>, vector<1x1024xf32>
      tpu.vector_store %arg7[%c0_25, %c0_26], %29 {strides = array<i32>} : memref<1x1024xf32, #tpu.memory_space<vmem>>, vector<1x1024xf32>,
    } else {
    }
    %c0 = arith.constant 0 : index
    %c0_1 = arith.constant 0 : index
    %3 = vector.load %arg3[%c0, %c0_1] : memref<2x512xf32, #tpu.memory_space<vmem>>, vector<2x512xf32>
    %c0_2 = arith.constant 0 : index
    %c0_3 = arith.constant 0 : index
    %4 = vector.load %arg1[%c0_2, %c0_3] : memref<1x512xf32, #tpu.memory_space<vmem>>, vector<1x512xf32>
    %5 = vector.broadcast %4 : vector<1x512xf32> to vector<2x512xf32>
    %6 = arith.mulf %3, %5 : vector<2x512xf32>
    %c0_4 = arith.constant 0 : index
    %c0_5 = arith.constant 0 : index
    %7 = vector.load %arg2[%c0_4, %c0_5] : memref<1x512xf32, #tpu.memory_space<vmem>>, vector<1x512xf32>
    %8 = vector.broadcast %7 : vector<1x512xf32> to vector<2x512xf32>
    %9 = arith.addf %6, %8 : vector<2x512xf32>
    %cst = arith.constant 0.000000e+00 : f32
    %10 = vector.broadcast %cst : f32 to vector<2x512xf32>
    %11 = arith.maximumf %9, %10 : vector<2x512xf32>
    %12 = arith.truncf %11 : vector<2x512xf32> to vector<2x512xbf16>
    %c0_6 = arith.constant 0 : index
    %c0_7 = arith.constant 0 : index
    %13 = vector.load %arg4[%c0_6, %c0_7] : memref<512x1024xbf16, #tpu.memory_space<vmem>>, vector<512x1024xbf16>
    %cst_8 = arith.constant dense<0.000000e+00> : vector<2x1024xf32>
    %14 = tpu.matmul %12, %13, %cst_8 {dimension_numbers = #tpu.dot_dimension_numbers<[1], [0], [0], [1], [0, 0, 1, 1], [], []>} : vector<2x512xbf16>, vector<512x1024xbf16>, vector<2x1024xf32> -> vector<2x1024xf32>
    %c0_9 = arith.constant 0 : index
    %c0_10 = arith.constant 0 : index
    %15 = vector.load %arg5[%c0_9, %c0_10] : memref<2x1024xf32, #tpu.memory_space<vmem>>, vector<2x1024xf32>
    tpu.vector_store %arg5[%c0_9, %c0_10], %14 {strides = array<i32>} : memref<2x1024xf32, #tpu.memory_space<vmem>>, vector<2x1024xf32>,
    %c0_11 = arith.constant 0 : index
    %c0_12 = arith.constant 0 : index
    %16 = vector.load %arg6[%c0_11, %c0_12] : memref<1x1024xf32, #tpu.memory_space<vmem>>, vector<1x1024xf32>
    %cst_13 = arith.constant dense<0.000000e+00> : vector<1024xf32>
    %17 = vector.multi_reduction <add>, %14, %cst_13 [0] : vector<2x1024xf32> to vector<1024xf32>
    %18 = vector.shape_cast %17 : vector<1024xf32> to vector<1x1024xf32>
    %19 = arith.addf %16, %18 : vector<1x1024xf32>
    %c0_14 = arith.constant 0 : index
    %c0_15 = arith.constant 0 : index
    %20 = vector.load %arg6[%c0_14, %c0_15] : memref<1x1024xf32, #tpu.memory_space<vmem>>, vector<1x1024xf32>
    tpu.vector_store %arg6[%c0_14, %c0_15], %19 {strides = array<i32>} : memref<1x1024xf32, #tpu.memory_space<vmem>>, vector<1x1024xf32>,
    %c0_16 = arith.constant 0 : index
    %c0_17 = arith.constant 0 : index
    %21 = vector.load %arg7[%c0_16, %c0_17] : memref<1x1024xf32, #tpu.memory_space<vmem>>, vector<1x1024xf32>
    %22 = arith.mulf %14, %14 : vector<2x1024xf32>
    %cst_18 = arith.constant dense<0.000000e+00> : vector<1024xf32>
    %23 = vector.multi_reduction <add>, %22, %cst_18 [0] : vector<2x1024xf32> to vector<1024xf32>
    %24 = vector.shape_cast %23 : vector<1024xf32> to vector<1x1024xf32>
    %25 = arith.addf %21, %24 : vector<1x1024xf32>
    %c0_19 = arith.constant 0 : index
    %c0_20 = arith.constant 0 : index
    %26 = vector.load %arg7[%c0_19, %c0_20] : memref<1x1024xf32, #tpu.memory_space<vmem>>, vector<1x1024xf32>
    tpu.vector_store %arg7[%c0_19, %c0_20], %25 {strides = array<i32>} : memref<1x1024xf32, #tpu.memory_space<vmem>>, vector<1x1024xf32>,
    return
  }
  func.func @transform_0(%arg0: i32) -> (i32, i32) {
    %c0_i32 = arith.constant 0 : i32
    %c0_i32_0 = arith.constant 0 : i32
    %c0_i32_1 = arith.constant 0 : i32
    return %c0_i32, %c0_i32_0 : i32, i32
  }
  func.func @transform_1(%arg0: i32) -> (i32, i32) {
    %c0_i32 = arith.constant 0 : i32
    %c0_i32_0 = arith.constant 0 : i32
    %c0_i32_1 = arith.constant 0 : i32
    return %c0_i32, %c0_i32_0 : i32, i32
  }
  func.func @transform_2(%arg0: i32) -> (i32, i32) {
    %c0_i32 = arith.constant 0 : i32
    %c0_i32_0 = arith.constant 0 : i32
    return %arg0, %c0_i32 : i32, i32
  }
  func.func @transform_3(%arg0: i32) -> (i32, i32) {
    %c0_i32 = arith.constant 0 : i32
    %c0_i32_0 = arith.constant 0 : i32
    %c0_i32_1 = arith.constant 0 : i32
    return %c0_i32, %c0_i32_0 : i32, i32
  }
  func.func @transform_4(%arg0: i32) -> (i32, i32) {
    %c0_i32 = arith.constant 0 : i32
    %c0_i32_0 = arith.constant 0 : i32
    return %arg0, %c0_i32 : i32, i32
  }
  func.func @transform_5(%arg0: i32) -> (i32, i32) {
    %c0_i32 = arith.constant 0 : i32
    %c0_i32_0 = arith.constant 0 : i32
    %c0_i32_1 = arith.constant 0 : i32
    return %c0_i32, %c0_i32_0 : i32, i32
  }
  func.func @transform_6(%arg0: i32) -> (i32, i32) {
    %c0_i32 = arith.constant 0 : i32
    %c0_i32_0 = arith.constant 0 : i32
    %c0_i32_1 = arith.constant 0 : i32
    return %c0_i32, %c0_i32_0 : i32, i32
  }
}

module attributes {stable_mosaic.version = 11 : i64} {
  func.func @bnrelu_pool_linear_kernel(%arg0: i32, %arg1: memref<1x1024xf32, #tpu.memory_space<vmem>>, %arg2: memref<1x1024xf32, #tpu.memory_space<vmem>>, %arg3: memref<2x1x1024xf32, #tpu.memory_space<vmem>>, %arg4: memref<1024x10xbf16, #tpu.memory_space<vmem>>, %arg5: memref<1x10xf32, #tpu.memory_space<vmem>>, %arg6: memref<2x10xf32, #tpu.memory_space<vmem>>) attributes {dimension_semantics = [#tpu.dimension_semantics<arbitrary>], iteration_bounds = array<i64: 1>, scalar_prefetch = 0 : i64, scratch_operands = 0 : i64, tpu.core_type = #tpu.core_type<tc>, window_params = [{pipeline_mode = #tpu.pipeline_mode<synchronous>, transform_indices = @transform_0, window_bounds = array<i64: 1, 1024>}, {pipeline_mode = #tpu.pipeline_mode<synchronous>, transform_indices = @transform_1, window_bounds = array<i64: 1, 1024>}, {pipeline_mode = #tpu.pipeline_mode<synchronous>, transform_indices = @transform_2, window_bounds = array<i64: 2, 1, 1024>}, {pipeline_mode = #tpu.pipeline_mode<synchronous>, transform_indices = @transform_3, window_bounds = array<i64: 1024, 10>}, {pipeline_mode = #tpu.pipeline_mode<synchronous>, transform_indices = @transform_4, window_bounds = array<i64: 1, 10>}, {pipeline_mode = #tpu.pipeline_mode<synchronous>, transform_indices = @transform_5, window_bounds = array<i64: 2, 10>}]} {
    %c0 = arith.constant 0 : index
    %c0_0 = arith.constant 0 : index
    %c0_1 = arith.constant 0 : index
    %0 = vector.load %arg3[%c0, %c0_0, %c0_1] : memref<2x1x1024xf32, #tpu.memory_space<vmem>>, vector<2x1x1024xf32>
    %c0_2 = arith.constant 0 : index
    %c0_3 = arith.constant 0 : index
    %1 = vector.load %arg1[%c0_2, %c0_3] : memref<1x1024xf32, #tpu.memory_space<vmem>>, vector<1x1024xf32>
    %2 = vector.shape_cast %1 : vector<1x1024xf32> to vector<1x1x1024xf32>
    %3 = vector.broadcast %2 : vector<1x1x1024xf32> to vector<2x1x1024xf32>
    %4 = arith.mulf %0, %3 : vector<2x1x1024xf32>
    %c0_4 = arith.constant 0 : index
    %c0_5 = arith.constant 0 : index
    %5 = vector.load %arg2[%c0_4, %c0_5] : memref<1x1024xf32, #tpu.memory_space<vmem>>, vector<1x1024xf32>
    %6 = vector.shape_cast %5 : vector<1x1024xf32> to vector<1x1x1024xf32>
    %7 = vector.broadcast %6 : vector<1x1x1024xf32> to vector<2x1x1024xf32>
    %8 = arith.addf %4, %7 : vector<2x1x1024xf32>
    %cst = arith.constant 0.000000e+00 : f32
    %9 = vector.broadcast %cst : f32 to vector<2x1x1024xf32>
    %10 = arith.maximumf %8, %9 : vector<2x1x1024xf32>
    %cst_6 = arith.constant dense<0.000000e+00> : vector<2x1024xf32>
    %11 = vector.multi_reduction <add>, %10, %cst_6 [1] : vector<2x1x1024xf32> to vector<2x1024xf32>
    %cst_7 = arith.constant 1.000000e+00 : f32
    %12 = vector.broadcast %cst_7 : f32 to vector<2x1024xf32>
    %13 = arith.divf %11, %12 : vector<2x1024xf32>
    %14 = arith.truncf %13 : vector<2x1024xf32> to vector<2x1024xbf16>
    %c0_8 = arith.constant 0 : index
    %c0_9 = arith.constant 0 : index
    %15 = vector.load %arg4[%c0_8, %c0_9] : memref<1024x10xbf16, #tpu.memory_space<vmem>>, vector<1024x10xbf16>
    %cst_10 = arith.constant dense<0.000000e+00> : vector<2x10xf32>
    %16 = tpu.matmul %14, %15, %cst_10 {dimension_numbers = #tpu.dot_dimension_numbers<[1], [0], [0], [1], [0, 0, 1, 1], [], []>} : vector<2x1024xbf16>, vector<1024x10xbf16>, vector<2x10xf32> -> vector<2x10xf32>
    %c0_11 = arith.constant 0 : index
    %c0_12 = arith.constant 0 : index
    %17 = vector.load %arg5[%c0_11, %c0_12] : memref<1x10xf32, #tpu.memory_space<vmem>>, vector<1x10xf32>
    %18 = vector.broadcast %17 : vector<1x10xf32> to vector<2x10xf32>
    %19 = arith.addf %16, %18 : vector<2x10xf32>
    %c0_13 = arith.constant 0 : index
    %c0_14 = arith.constant 0 : index
    %20 = vector.load %arg6[%c0_13, %c0_14] : memref<2x10xf32, #tpu.memory_space<vmem>>, vector<2x10xf32>
    tpu.vector_store %arg6[%c0_13, %c0_14], %19 {strides = array<i32>} : memref<2x10xf32, #tpu.memory_space<vmem>>, vector<2x10xf32>,
    return
  }
  func.func @transform_0(%arg0: i32) -> (i32, i32) {
    %c0_i32 = arith.constant 0 : i32
    %c0_i32_0 = arith.constant 0 : i32
    %c0_i32_1 = arith.constant 0 : i32
    return %c0_i32, %c0_i32_0 : i32, i32
  }
  func.func @transform_1(%arg0: i32) -> (i32, i32) {
    %c0_i32 = arith.constant 0 : i32
    %c0_i32_0 = arith.constant 0 : i32
    %c0_i32_1 = arith.constant 0 : i32
    return %c0_i32, %c0_i32_0 : i32, i32
  }
  func.func @transform_2(%arg0: i32) -> (i32, i32, i32) {
    %c0_i32 = arith.constant 0 : i32
    %c0_i32_0 = arith.constant 0 : i32
    %c0_i32_1 = arith.constant 0 : i32
    %c0_i32_2 = arith.constant 0 : i32
    return %c0_i32, %c0_i32_0, %c0_i32_1 : i32, i32, i32
  }
  func.func @transform_3(%arg0: i32) -> (i32, i32) {
    %c0_i32 = arith.constant 0 : i32
    %c0_i32_0 = arith.constant 0 : i32
    %c0_i32_1 = arith.constant 0 : i32
    return %c0_i32, %c0_i32_0 : i32, i32
  }
  func.func @transform_4(%arg0: i32) -> (i32, i32) {
    %c0_i32 = arith.constant 0 : i32
    %c0_i32_0 = arith.constant 0 : i32
    %c0_i32_1 = arith.constant 0 : i32
    return %c0_i32, %c0_i32_0 : i32, i32
  }
  func.func @transform_5(%arg0: i32) -> (i32, i32) {
    %c0_i32 = arith.constant 0 : i32
    %c0_i32_0 = arith.constant 0 : i32
    %c0_i32_1 = arith.constant 0 : i32
    return %c0_i32, %c0_i32_0 : i32, i32
  }
}

</mosaic_0001>

<llo_original>
// kernel: mnet_forward.12
$region0: #{mnet_forward.12}
  #allocation0 [shape = 'u32[]', space=smem, size = 0x4, offset = 0x4, fixed_abs, tag = 'smem constant byte address 0x4 - core index']
  #allocation1 [shape = 'u32[144,128]{1,0:T(1,128)}', space=vmem, size = 0x12000, scoped, tag = 'internal scratch']
  %s0 = inlined_call_operand.vmem [shape: bf16[128,32], index: 0, kind: input, shape index: {}]
  %s1 = inlined_call_operand.vmem [shape: bf16[32,32], index: 1, kind: input, shape index: {}]
  %s2 = inlined_call_operand.vmem [shape: f32[128,32], index: 2, kind: output, shape index: {0}]
  %s3 = inlined_call_operand.vmem [shape: f32[1,32], index: 3, kind: output, shape index: {1}]
  %s4 = inlined_call_operand.vmem [shape: f32[1,32], index: 4, kind: output, shape index: {2}]
  %5 = xla_tuple %s2, %s3, %s4
  %s6 = sld [smem:[#allocation0]]
  $region38: #{mnet_forward.12} parent=0
    _
  %s8 = ssub.s32 1, %s6
  %s9 = scalar_select 0, %s8, %s6
  // Predicated region
  $region2: #{mnet_forward.12} parent=0 // pred_check
    _
  $region3: #{mnet_forward.12} parent=0 // pred_check_branch
    %11 = sbr.rel (0) target = $region5
  $region4: #{mnet_forward.12} parent=0 // pred_region
    _
  $region5: #{mnet_forward.12} parent=0 // pred_fallthru
    _
  // Predicated region
  $region6: #{mnet_forward.12} parent=0 // pred_check
    _
  $region7: #{mnet_forward.12} parent=0 // pred_check_branch
    %13 = sbr.rel (0) target = $region9
  $region8: #{mnet_forward.12} parent=0 // pred_region
    _
  $region9: #{mnet_forward.12} parent=0 // pred_fallthru
    _
  %p15 = scmp.eq.s32.totalorder 0, 0
  // Predicated region
  $region10: #{mnet_forward.12} parent=0 // pred_check
    %p16 = pneg %p15
  $region11: #{mnet_forward.12} parent=0 // pred_check_branch
    %18 = sbr.rel (%p16) target = $region13
  $region12: #{mnet_forward.12} parent=0 // pred_region
    %vm19 = vcmask 253952
    %20 = vst.msk [vmem:[%s3] sm:$0x1] %vm19, 0.0
    %21 = vst.msk [vmem:[%s4] sm:$0x1] %vm19, 0.0
  $region13: #{mnet_forward.12} parent=0 // pred_fallthru
    _
  %v22 = vld [vmem:[%s0] sm:$0xf]
  %v23 = vld [vmem:[%s0 + $0x4] sm:$0xf]
  %v24 = vld [vmem:[%s0 + $0x8] sm:$0xf]
  %v25 = vld [vmem:[%s0 + $0xc] sm:$0xf]
  %v26 = vld [vmem:[%s0 + $0x10] sm:$0xf]
  %v27 = vld [vmem:[%s0 + $0x14] sm:$0xf]
  %v28 = vld [vmem:[%s0 + $0x18] sm:$0xf]
  %v29 = vld [vmem:[%s0 + $0x1c] sm:$0xf]
  %v30 = vld [vmem:[%s0 + $0x20] sm:$0xf]
  %v31 = vld [vmem:[%s0 + $0x24] sm:$0xf]
  %v32 = vld [vmem:[%s0 + $0x28] sm:$0xf]
  %v33 = vld [vmem:[%s0 + $0x2c] sm:$0xf]
  %v34 = vld [vmem:[%s0 + $0x30] sm:$0xf]
  %v35 = vld [vmem:[%s0 + $0x34] sm:$0xf]
  %v36 = vld [vmem:[%s0 + $0x38] sm:$0xf]
  %v37 = vld [vmem:[%s0 + $0x3c] sm:$0xf]
  %v38 = vld [vmem:[%s1] sm:$0xf]
  %v39 = vld [vmem:[%s1 + $0x4] sm:$0xf]
  %v40 = vld [vmem:[%s1 + $0x8] sm:$0xf]
  %v41 = vld [vmem:[%s1 + $0xc] sm:$0xf]
  %v58 = vunpack.c.l.b16 %v22
  %v59 = vunpack.c.l.b16 %v23
  %v60 = vunpack.c.l.b16 %v24
  %v61 = vunpack.c.l.b16 %v25
  %v62 = vunpack.c.l.b16 %v26
  %v63 = vunpack.c.l.b16 %v27
  %v64 = vunpack.c.l.b16 %v28
  %v65 = vunpack.c.l.b16 %v29
  %v66 = vunpack.c.l.b16 %v30
  %v67 = vunpack.c.l.b16 %v31
  %v68 = vunpack.c.l.b16 %v32
  %v69 = vunpack.c.l.b16 %v33
  %v70 = vunpack.c.l.b16 %v34
  %v71 = vunpack.c.l.b16 %v35
  %v72 = vunpack.c.l.b16 %v36
  %v73 = vunpack.c.l.b16 %v37
  %v74 = vpack.c.b16 %v59, %v58
  %v75 = vpack.c.b16 %v61, %v60
  %v76 = vpack.c.b16 %v63, %v62
  %v77 = vpack.c.b16 %v65, %v64
  %v78 = vpack.c.b16 %v67, %v66
  %v79 = vpack.c.b16 %v69, %v68
  %v80 = vpack.c.b16 %v71, %v70
  %v81 = vpack.c.b16 %v73, %v72
  %v86 = vunpack.c.l.b16 %v38
  %v87 = vunpack.c.l.b16 %v39
  %v88 = vunpack.c.l.b16 %v40
  %v89 = vunpack.c.l.b16 %v41
  %v90 = vpack.c.b16 %v87, %v86
  %v91 = vpack.c.b16 %v89, %v88
  %vm94 = vcmask 261120
  %v96 = vsel %vm94, %v74, 0
  %v99 = vsel %vm94, %v75, 0
  %v102 = vsel %vm94, %v76, 0
  %v105 = vsel %vm94, %v77, 0
  %v108 = vsel %vm94, %v78, 0
  %v111 = vsel %vm94, %v79, 0
  %v114 = vsel %vm94, %v80, 0
  %v117 = vsel %vm94, %v81, 0
  %119 = vmatprep.subr.bf16.mxu0 0
  %120 = vmatpush1.bf16.msra.mxu0 %v90
  %121 = vmatprep.subr.bf16.mxu0 0
  %122 = vmatpush1.bf16.msra.mxu0 %v91
  %123 = vmatprep.subr.bf16.mxu0 0
  %124 = vmatpush1.bf16.msra.mxu0 0
  %125 = vmatprep.subr.bf16.mxu0 0
  %126 = vmatpush1.bf16.msra.mxu0 0
  %127 = vmatprep.subr.bf16.mxu0 0
  %128 = vmatpush1.bf16.msra.mxu0 0
  %129 = vmatprep.subr.bf16.mxu0 0
  %130 = vmatpush1.bf16.msra.mxu0 0
  %131 = vmatprep.subr.bf16.mxu0 0
  %132 = vmatpush1.bf16.msra.mxu0 0
  %133 = vmatprep.subr.bf16.mxu0 0
  %134 = vmatpush1.bf16.msra.mxu0 0
  %135 = vmatprep.subr.bf16.mxu0 0
  %136 = vmatpush1.bf16.msra.mxu0 0
  %137 = vmatprep.subr.bf16.mxu0 0
  %138 = vmatpush1.bf16.msra.mxu0 0
  %139 = vmatprep.subr.bf16.mxu0 0
  %140 = vmatpush1.bf16.msra.mxu0 0
  %141 = vmatprep.subr.bf16.mxu0 0
  %142 = vmatpush1.bf16.msra.mxu0 0
  %143 = vmatprep.subr.bf16.mxu0 0
  %144 = vmatpush1.bf16.msra.mxu0 0
  %145 = vmatprep.subr.bf16.mxu0 0
  %146 = vmatpush1.bf16.msra.mxu0 0
  %147 = vmatprep.subr.bf16.mxu0 0
  %148 = vmatpush1.bf16.msra.mxu0 0
  %149 = vmatprep.subr.bf16.mxu0 0
  %150 = vmatpush1.bf16.msra.mxu0 0
  %151 = vmatprep.mubr.bf16.mxu0 0
  %152 = vmatmul.mubr.bf16.gmra.mrb[0].mxu0 %v96
  %v153 = vpop.f32.mrb[0].mxu0
  %v154 = vadd.f32 0.0, %v153
  %v155 = vpop.f32.mrb[0].mxu0
  %v156 = vpop.f32.mrb[0].mxu0
  %v157 = vadd.f32 0.0, %v156
  %v158 = vpop.f32.mrb[0].mxu0
  %159 = vmatprep.mubr.bf16.mxu0 0
  %160 = vmatmul.mubr.bf16.gmra.mrb[0].mxu0 %v99
  %v161 = vpop.f32.mrb[0].mxu0
  %v162 = vadd.f32 0.0, %v161
  %v163 = vpop.f32.mrb[0].mxu0
  %v164 = vpop.f32.mrb[0].mxu0
  %v165 = vadd.f32 0.0, %v164
  %v166 = vpop.f32.mrb[0].mxu0
  %167 = vmatprep.mubr.bf16.mxu0 0
  %168 = vmatmul.mubr.bf16.gmra.mrb[0].mxu0 %v102
  %v169 = vpop.f32.mrb[0].mxu0
  %v170 = vadd.f32 0.0, %v169
  %v171 = vpop.f32.mrb[0].mxu0
  %v172 = vpop.f32.mrb[0].mxu0
  %v173 = vadd.f32 0.0, %v172
  %v174 = vpop.f32.mrb[0].mxu0
  %175 = vmatprep.mubr.bf16.mxu0 0
  %176 = vmatmul.mubr.bf16.gmra.mrb[0].mxu0 %v105
  %v177 = vpop.f32.mrb[0].mxu0
  %v178 = vadd.f32 0.0, %v177
  %v179 = vpop.f32.mrb[0].mxu0
  %v180 = vpop.f32.mrb[0].mxu0
  %v181 = vadd.f32 0.0, %v180
  %v182 = vpop.f32.mrb[0].mxu0
  %183 = vmatprep.mubr.bf16.mxu0 0
  %184 = vmatmul.mubr.bf16.gmra.mrb[0].mxu0 %v108
  %v185 = vpop.f32.mrb[0].mxu0
  %v186 = vadd.f32 0.0, %v185
  %v187 = vpop.f32.mrb[0].mxu0
  %v188 = vpop.f32.mrb[0].mxu0
  %v189 = vadd.f32 0.0, %v188
  %v190 = vpop.f32.mrb[0].mxu0
  %191 = vmatprep.mubr.bf16.mxu0 0
  %192 = vmatmul.mubr.bf16.gmra.mrb[0].mxu0 %v111
  %v193 = vpop.f32.mrb[0].mxu0
  %v194 = vadd.f32 0.0, %v193
  %v195 = vpop.f32.mrb[0].mxu0
  %v196 = vpop.f32.mrb[0].mxu0
  %v197 = vadd.f32 0.0, %v196
  %v198 = vpop.f32.mrb[0].mxu0
  %199 = vmatprep.mubr.bf16.mxu0 0
  %200 = vmatmul.mubr.bf16.gmra.mrb[0].mxu0 %v114
  %v201 = vpop.f32.mrb[0].mxu0
  %v202 = vadd.f32 0.0, %v201
  %v203 = vpop.f32.mrb[0].mxu0
  %v204 = vpop.f32.mrb[0].mxu0
  %v205 = vadd.f32 0.0, %v204
  %v206 = vpop.f32.mrb[0].mxu0
  %207 = vmatprep.mubr.bf16.mxu0 0
  %208 = vmatmul.mubr.bf16.gmra.mrb[0].mxu0 %v117
  %v209 = vpop.f32.mrb[0].mxu0
  %v210 = vadd.f32 0.0, %v209
  %v211 = vpop.f32.mrb[0].mxu0
  %v212 = vpop.f32.mrb[0].mxu0
  %v213 = vadd.f32 0.0, %v212
  %v214 = vpop.f32.mrb[0].mxu0
  %215 = vdwg.mxu0
  %216 = vst.msk [vmem:[%s2] sm:$0xff] %vm94, %v154
  %217 = vst.msk [vmem:[%s2 + $0x8] sm:$0xff] %vm94, %v157
  %218 = vst.msk [vmem:[%s2 + $0x10] sm:$0xff] %vm94, %v162
  %219 = vst.msk [vmem:[%s2 + $0x18] sm:$0xff] %vm94, %v165
  %220 = vst.msk [vmem:[%s2 + $0x20] sm:$0xff] %vm94, %v170
  %221 = vst.msk [vmem:[%s2 + $0x28] sm:$0xff] %vm94, %v173
  %222 = vst.msk [vmem:[%s2 + $0x30] sm:$0xff] %vm94, %v178
  %223 = vst.msk [vmem:[%s2 + $0x38] sm:$0xff] %vm94, %v181
  %224 = vst.msk [vmem:[%s2 + $0x40] sm:$0xff] %vm94, %v186
  %225 = vst.msk [vmem:[%s2 + $0x48] sm:$0xff] %vm94, %v189
  %226 = vst.msk [vmem:[%s2 + $0x50] sm:$0xff] %vm94, %v194
  %227 = vst.msk [vmem:[%s2 + $0x58] sm:$0xff] %vm94, %v197
  %228 = vst.msk [vmem:[%s2 + $0x60] sm:$0xff] %vm94, %v202
  %229 = vst.msk [vmem:[%s2 + $0x68] sm:$0xff] %vm94, %v205
  %230 = vst.msk [vmem:[%s2 + $0x70] sm:$0xff] %vm94, %v210
  %231 = vst.msk [vmem:[%s2 + $0x78] sm:$0xff] %vm94, %v213
  %v232 = vld [vmem:[%s3] sm:$0x1]
  %v233 = vsel %vm94, %v154, 0.0
  %v234 = vsel %vm94, %v157, 0.0
  %v235 = vadd.f32 %v233, %v234
  %v236 = vsel %vm94, %v162, 0.0
  %v237 = vadd.f32 %v235, %v236
  %v238 = vsel %vm94, %v165, 0.0
  %v239 = vadd.f32 %v237, %v238
  %v240 = vsel %vm94, %v170, 0.0
  %v241 = vadd.f32 %v239, %v240
  %v242 = vsel %vm94, %v173, 0.0
  %v243 = vadd.f32 %v241, %v242
  %v244 = vsel %vm94, %v178, 0.0
  %v245 = vadd.f32 %v243, %v244
  %v246 = vsel %vm94, %v181, 0.0
  %v247 = vadd.f32 %v245, %v246
  %v248 = vsel %vm94, %v186, 0.0
  %v249 = vadd.f32 %v247, %v248
  %v250 = vsel %vm94, %v189, 0.0
  %v251 = vadd.f32 %v249, %v250
  %v252 = vsel %vm94, %v194, 0.0
  %v253 = vadd.f32 %v251, %v252
  %v254 = vsel %vm94, %v197, 0.0
  %v255 = vadd.f32 %v253, %v254
  %v256 = vsel %vm94, %v202, 0.0
  %v257 = vadd.f32 %v255, %v256
  %v258 = vsel %vm94, %v205, 0.0
  %v259 = vadd.f32 %v257, %v258
  %v260 = vsel %vm94, %v210, 0.0
  %v261 = vadd.f32 %v259, %v260
  %v262 = vsel %vm94, %v213, 0.0
  %v263 = vadd.f32 %v261, %v262
  %v264 = vrot.slane %v263, 4
  %v265 = vadd.f32 %v263, %v264
  %v266 = vrot.slane %v265, 2
  %v267 = vadd.f32 %v265, %v266
  %v268 = vrot.slane %v267, 1
  %v269 = vadd.f32 %v267, %v268
  %v270 = vadd.f32 %v232, %v269
  %vm271 = vcmask 253952
  %272 = vst.msk [vmem:[%s3] sm:$0x1] %vm271, %v270
  %v273 = vld [vmem:[%s4] sm:$0x1]
  %v274 = vmul.f32 %v154, %v154
  %v275 = vmul.f32 %v157, %v157
  %v276 = vmul.f32 %v162, %v162
  %v277 = vmul.f32 %v165, %v165
  %v278 = vmul.f32 %v170, %v170
  %v279 = vmul.f32 %v173, %v173
  %v280 = vmul.f32 %v178, %v178
  %v281 = vmul.f32 %v181, %v181
  %v282 = vmul.f32 %v186, %v186
  %v283 = vmul.f32 %v189, %v189
  %v284 = vmul.f32 %v194, %v194
  %v285 = vmul.f32 %v197, %v197
  %v286 = vmul.f32 %v202, %v202
  %v287 = vmul.f32 %v205, %v205
  %v288 = vmul.f32 %v210, %v210
  %v289 = vmul.f32 %v213, %v213
  %v290 = vsel %vm94, %v274, 0.0
  %v291 = vsel %vm94, %v275, 0.0
  %v292 = vadd.f32 %v290, %v291
  %v293 = vsel %vm94, %v276, 0.0
  %v294 = vadd.f32 %v292, %v293
  %v295 = vsel %vm94, %v277, 0.0
  %v296 = vadd.f32 %v294, %v295
  %v297 = vsel %vm94, %v278, 0.0
  %v298 = vadd.f32 %v296, %v297
  %v299 = vsel %vm94, %v279, 0.0
  %v300 = vadd.f32 %v298, %v299
  %v301 = vsel %vm94, %v280, 0.0
  %v302 = vadd.f32 %v300, %v301
  %v303 = vsel %vm94, %v281, 0.0
  %v304 = vadd.f32 %v302, %v303
  %v305 = vsel %vm94, %v282, 0.0
  %v306 = vadd.f32 %v304, %v305
  %v307 = vsel %vm94, %v283, 0.0
  %v308 = vadd.f32 %v306, %v307
  %v309 = vsel %vm94, %v284, 0.0
  %v310 = vadd.f32 %v308, %v309
  %v311 = vsel %vm94, %v285, 0.0
  %v312 = vadd.f32 %v310, %v311
  %v313 = vsel %vm94, %v286, 0.0
  %v314 = vadd.f32 %v312, %v313
  %v315 = vsel %vm94, %v287, 0.0
  %v316 = vadd.f32 %v314, %v315
  %v317 = vsel %vm94, %v288, 0.0
  %v318 = vadd.f32 %v316, %v317
  %v319 = vsel %vm94, %v289, 0.0
  %v320 = vadd.f32 %v318, %v319
  %v321 = vrot.slane %v320, 4
  %v322 = vadd.f32 %v320, %v321
  %v323 = vrot.slane %v322, 2
  %v324 = vadd.f32 %v322, %v323
  %v325 = vrot.slane %v324, 1
  %v326 = vadd.f32 %v324, %v325
  %v327 = vadd.f32 %v273, %v326
  %328 = vst.msk [vmem:[%s4] sm:$0x1] %vm271, %v327
  // Predicated region
  $region14: #{mnet_forward.12} parent=0 // pred_check
    _
  $region15: #{mnet_forward.12} parent=0 // pred_check_branch
    %330 = sbr.rel (0) target = $region17
  $region16: #{mnet_forward.12} parent=0 // pred_region
    _
  $region17: #{mnet_forward.12} parent=0 // pred_fallthru
    _
  // Predicated region
  $region18: #{mnet_forward.12} parent=0 // pred_check
    _
  $region19: #{mnet_forward.12} parent=0 // pred_check_branch
    %332 = sbr.rel (0) target = $region21
  $region20: #{mnet_forward.12} parent=0 // pred_region
    _
  $region21: #{mnet_forward.12} parent=0 // pred_fallthru
    _
  // Predicated region
  $region22: #{mnet_forward.12} parent=0 // pred_check
    _
  $region23: #{mnet_forward.12} parent=0 // pred_check_branch
    %334 = sbr.rel (0) target = $region25
  $region24: #{mnet_forward.12} parent=0 // pred_region
    _
  $region25: #{mnet_forward.12} parent=0 // pred_fallthru
    _
  // Predicated region
  $region26: #{mnet_forward.12} parent=0 // pred_check
    _
  $region27: #{mnet_forward.12} parent=0 // pred_check_branch
    %336 = sbr.rel (0) target = $region29
  $region28: #{mnet_forward.12} parent=0 // pred_region
    _
  $region29: #{mnet_forward.12} parent=0 // pred_fallthru
    _
  // Predicated region
  $region30: #{mnet_forward.12} parent=0 // pred_check
    _
  $region31: #{mnet_forward.12} parent=0 // pred_check_branch
    %338 = sbr.rel (0) target = $region33
  $region32: #{mnet_forward.12} parent=0 // pred_region
    _
  $region33: #{mnet_forward.12} parent=0 // pred_fallthru
    _
  // Predicated region
  $region34: #{mnet_forward.12} parent=0 // pred_check
    _
  $region35: #{mnet_forward.12} parent=0 // pred_check_branch
    %340 = sbr.rel (0) target = $region37
  $region36: #{mnet_forward.12} parent=0 // pred_region
    _
  $region37: #{mnet_forward.12} parent=0 // pred_fallthru
    _

// kernel: mnet_forward.14
$region0: #{mnet_forward.14}
  #allocation0 [shape = 'u32[]', space=smem, size = 0x4, offset = 0x4, fixed_abs, tag = 'smem constant byte address 0x4 - core index']
  #allocation1 [shape = 'u32[144,128]{1,0:T(1,128)}', space=vmem, size = 0x12000, scoped, tag = 'internal scratch']
  %s0 = inlined_call_operand.vmem [shape: f32[1,32], index: 0, kind: input, shape index: {}]
  %s1 = inlined_call_operand.vmem [shape: f32[1,32], index: 1, kind: input, shape index: {}]
  %s2 = inlined_call_operand.vmem [shape: f32[128,32], index: 2, kind: input, shape index: {}]
  %s3 = inlined_call_operand.vmem [shape: bf16[32,64], index: 3, kind: input, shape index: {}]
  %s4 = inlined_call_operand.vmem [shape: f32[128,64], index: 4, kind: output, shape index: {0}]
  %s5 = inlined_call_operand.vmem [shape: f32[1,64], index: 5, kind: output, shape index: {1}]
  %s6 = inlined_call_operand.vmem [shape: f32[1,64], index: 6, kind: output, shape index: {2}]
  %7 = xla_tuple %s4, %s5, %s6
  %s8 = sld [smem:[#allocation0]]
  $region46: #{mnet_forward.14} parent=0
    _
  %s10 = ssub.s32 1, %s8
  %s11 = scalar_select 0, %s10, %s8
  // Predicated region
  $region2: #{mnet_forward.14} parent=0 // pred_check
    _
  $region3: #{mnet_forward.14} parent=0 // pred_check_branch
    %13 = sbr.rel (0) target = $region5
  $region4: #{mnet_forward.14} parent=0 // pred_region
    _
  $region5: #{mnet_forward.14} parent=0 // pred_fallthru
    _
  // Predicated region
  $region6: #{mnet_forward.14} parent=0 // pred_check
    _
  $region7: #{mnet_forward.14} parent=0 // pred_check_branch
    %15 = sbr.rel (0) target = $region9
  $region8: #{mnet_forward.14} parent=0 // pred_region
    _
  $region9: #{mnet_forward.14} parent=0 // pred_fallthru
    _
  // Predicated region
  $region10: #{mnet_forward.14} parent=0 // pred_check
    _
  $region11: #{mnet_forward.14} parent=0 // pred_check_branch
    %17 = sbr.rel (0) target = $region13
  $region12: #{mnet_forward.14} parent=0 // pred_region
    _
  $region13: #{mnet_forward.14} parent=0 // pred_fallthru
    _
  // Predicated region
  $region14: #{mnet_forward.14} parent=0 // pred_check
    _
  $region15: #{mnet_forward.14} parent=0 // pred_check_branch
    %19 = sbr.rel (0) target = $region17
  $region16: #{mnet_forward.14} parent=0 // pred_region
    _
  $region17: #{mnet_forward.14} parent=0 // pred_fallthru
    _
  %p21 = scmp.eq.s32.totalorder 0, 0
  // Predicated region
  $region18: #{mnet_forward.14} parent=0 // pred_check
    %p22 = pneg %p21
  $region19: #{mnet_forward.14} parent=0 // pred_check_branch
    %24 = sbr.rel (%p22) target = $region21
  $region20: #{mnet_forward.14} parent=0 // pred_region
    %vm25 = vcmask 516096
    %26 = vst.msk [vmem:[%s5] sm:$0x1] %vm25, 0.0
    %27 = vst.msk [vmem:[%s6] sm:$0x1] %vm25, 0.0
  $region21: #{mnet_forward.14} parent=0 // pred_fallthru
    _
  %v28 = vld [vmem:[%s2] sm:$0xff]
  %v29 = vld [vmem:[%s2 + $0x8] sm:$0xff]
  %v30 = vld [vmem:[%s2 + $0x10] sm:$0xff]
  %v31 = vld [vmem:[%s2 + $0x18] sm:$0xff]
  %v32 = vld [vmem:[%s2 + $0x20] sm:$0xff]
  %v33 = vld [vmem:[%s2 + $0x28] sm:$0xff]
  %v34 = vld [vmem:[%s2 + $0x30] sm:$0xff]
  %v35 = vld [vmem:[%s2 + $0x38] sm:$0xff]
  %v36 = vld [vmem:[%s2 + $0x40] sm:$0xff]
  %v37 = vld [vmem:[%s2 + $0x48] sm:$0xff]
  %v38 = vld [vmem:[%s2 + $0x50] sm:$0xff]
  %v39 = vld [vmem:[%s2 + $0x58] sm:$0xff]
  %v40 = vld [vmem:[%s2 + $0x60] sm:$0xff]
  %v41 = vld [vmem:[%s2 + $0x68] sm:$0xff]
  %v42 = vld [vmem:[%s2 + $0x70] sm:$0xff]
  %v43 = vld [vmem:[%s2 + $0x78] sm:$0xff]
  %v44 = vld [vmem:[%s0] sm:$0x1]
  %v46 = vlaneseq
  %v47 = vshrl.u32 %v46, 7
  %v48 = vsub.s32 0, %v47
  %v49 = vrot.slane %v44, %v48
  %v51 = vmul.f32 %v28, %v49
  %v52 = vmul.f32 %v29, %v49
  %v53 = vmul.f32 %v30, %v49
  %v54 = vmul.f32 %v31, %v49
  %v55 = vmul.f32 %v32, %v49
  %v56 = vmul.f32 %v33, %v49
  %v57 = vmul.f32 %v34, %v49
  %v58 = vmul.f32 %v35, %v49
  %v59 = vmul.f32 %v36, %v49
  %v60 = vmul.f32 %v37, %v49
  %v61 = vmul.f32 %v38, %v49
  %v62 = vmul.f32 %v39, %v49
  %v63 = vmul.f32 %v40, %v49
  %v64 = vmul.f32 %v41, %v49
  %v65 = vmul.f32 %v42, %v49
  %v66 = vmul.f32 %v43, %v49
  %v67 = vld [vmem:[%s1] sm:$0x1]
  %v69 = vlaneseq
  %v70 = vshrl.u32 %v69, 7
  %v71 = vsub.s32 0, %v70
  %v72 = vrot.slane %v67, %v71
  %v74 = vadd.f32 %v51, %v72
  %v75 = vadd.f32 %v52, %v72
  %v76 = vadd.f32 %v53, %v72
  %v77 = vadd.f32 %v54, %v72
  %v78 = vadd.f32 %v55, %v72
  %v79 = vadd.f32 %v56, %v72
  %v80 = vadd.f32 %v57, %v72
  %v81 = vadd.f32 %v58, %v72
  %v82 = vadd.f32 %v59, %v72
  %v83 = vadd.f32 %v60, %v72
  %v84 = vadd.f32 %v61, %v72
  %v85 = vadd.f32 %v62, %v72
  %v86 = vadd.f32 %v63, %v72
  %v87 = vadd.f32 %v64, %v72
  %v88 = vadd.f32 %v65, %v72
  %v89 = vadd.f32 %v66, %v72
  %v90 = vmax.f32 %v74, 0.0
  %v91 = vmax.f32 %v75, 0.0
  %v92 = vmax.f32 %v76, 0.0
  %v93 = vmax.f32 %v77, 0.0
  %v94 = vmax.f32 %v78, 0.0
  %v95 = vmax.f32 %v79, 0.0
  %v96 = vmax.f32 %v80, 0.0
  %v97 = vmax.f32 %v81, 0.0
  %v98 = vmax.f32 %v82, 0.0
  %v99 = vmax.f32 %v83, 0.0
  %v100 = vmax.f32 %v84, 0.0
  %v101 = vmax.f32 %v85, 0.0
  %v102 = vmax.f32 %v86, 0.0
  %v103 = vmax.f32 %v87, 0.0
  %v104 = vmax.f32 %v88, 0.0
  %v105 = vmax.f32 %v89, 0.0
  %v106 = vpack.c.bf16 %v91, %v90
  %v107 = vpack.c.bf16 %v93, %v92
  %v108 = vpack.c.bf16 %v95, %v94
  %v109 = vpack.c.bf16 %v97, %v96
  %v110 = vpack.c.bf16 %v99, %v98
  %v111 = vpack.c.bf16 %v101, %v100
  %v112 = vpack.c.bf16 %v103, %v102
  %v113 = vpack.c.bf16 %v105, %v104
  %v114 = vld [vmem:[%s3] sm:$0xf]
  %v115 = vld [vmem:[%s3 + $0x4] sm:$0xf]
  %v116 = vld [vmem:[%s3 + $0x8] sm:$0xf]
  %v117 = vld [vmem:[%s3 + $0xc] sm:$0xf]
  %v122 = vunpack.c.l.b16 %v114
  %v123 = vunpack.c.l.b16 %v115
  %v124 = vunpack.c.l.b16 %v116
  %v125 = vunpack.c.l.b16 %v117
  %v126 = vpack.c.b16 %v123, %v122
  %v127 = vpack.c.b16 %v125, %v124
  %vm130 = vcmask 261120
  %v132 = vsel %vm130, %v106, 0
  %v135 = vsel %vm130, %v107, 0
  %v138 = vsel %vm130, %v108, 0
  %v141 = vsel %vm130, %v109, 0
  %v144 = vsel %vm130, %v110, 0
  %v147 = vsel %vm130, %v111, 0
  %v150 = vsel %vm130, %v112, 0
  %v153 = vsel %vm130, %v113, 0
  %155 = vmatprep.subr.bf16.mxu0 0
  %156 = vmatpush1.bf16.msra.mxu0 %v126
  %157 = vmatprep.subr.bf16.mxu0 0
  %158 = vmatpush1.bf16.msra.mxu0 %v127
  %159 = vmatprep.subr.bf16.mxu0 0
  %160 = vmatpush1.bf16.msra.mxu0 0
  %161 = vmatprep.subr.bf16.mxu0 0
  %162 = vmatpush1.bf16.msra.mxu0 0
  %163 = vmatprep.subr.bf16.mxu0 0
  %164 = vmatpush1.bf16.msra.mxu0 0
  %165 = vmatprep.subr.bf16.mxu0 0
  %166 = vmatpush1.bf16.msra.mxu0 0
  %167 = vmatprep.subr.bf16.mxu0 0
  %168 = vmatpush1.bf16.msra.mxu0 0
  %169 = vmatprep.subr.bf16.mxu0 0
  %170 = vmatpush1.bf16.msra.mxu0 0
  %171 = vmatprep.subr.bf16.mxu0 0
  %172 = vmatpush1.bf16.msra.mxu0 0
  %173 = vmatprep.subr.bf16.mxu0 0
  %174 = vmatpush1.bf16.msra.mxu0 0
  %175 = vmatprep.subr.bf16.mxu0 0
  %176 = vmatpush1.bf16.msra.mxu0 0
  %177 = vmatprep.subr.bf16.mxu0 0
  %178 = vmatpush1.bf16.msra.mxu0 0
  %179 = vmatprep.subr.bf16.mxu0 0
  %180 = vmatpush1.bf16.msra.mxu0 0
  %181 = vmatprep.subr.bf16.mxu0 0
  %182 = vmatpush1.bf16.msra.mxu0 0
  %183 = vmatprep.subr.bf16.mxu0 0
  %184 = vmatpush1.bf16.msra.mxu0 0
  %185 = vmatprep.subr.bf16.mxu0 0
  %186 = vmatpush1.bf16.msra.mxu0 0
  %187 = vmatprep.mubr.bf16.mxu0 0
  %188 = vmatmul.mubr.bf16.gmra.mrb[0].mxu0 %v132
  %v189 = vpop.f32.mrb[0].mxu0
  %v190 = vadd.f32 0.0, %v189
  %v191 = vpop.f32.mrb[0].mxu0
  %v192 = vpop.f32.mrb[0].mxu0
  %v193 = vadd.f32 0.0, %v192
  %v194 = vpop.f32.mrb[0].mxu0
  %195 = vmatprep.mubr.bf16.mxu0 0
  %196 = vmatmul.mubr.bf16.gmra.mrb[0].mxu0 %v135
  %v197 = vpop.f32.mrb[0].mxu0
  %v198 = vadd.f32 0.0, %v197
  %v199 = vpop.f32.mrb[0].mxu0
  %v200 = vpop.f32.mrb[0].mxu0
  %v201 = vadd.f32 0.0, %v200
  %v202 = vpop.f32.mrb[0].mxu0
  %203 = vmatprep.mubr.bf16.mxu0 0
  %204 = vmatmul.mubr.bf16.gmra.mrb[0].mxu0 %v138
  %v205 = vpop.f32.mrb[0].mxu0
  %v206 = vadd.f32 0.0, %v205
  %v207 = vpop.f32.mrb[0].mxu0
  %v208 = vpop.f32.mrb[0].mxu0
  %v209 = vadd.f32 0.0, %v208
  %v210 = vpop.f32.mrb[0].mxu0
  %211 = vmatprep.mubr.bf16.mxu0 0
  %212 = vmatmul.mubr.bf16.gmra.mrb[0].mxu0 %v141
  %v213 = vpop.f32.mrb[0].mxu0
  %v214 = vadd.f32 0.0, %v213
  %v215 = vpop.f32.mrb[0].mxu0
  %v216 = vpop.f32.mrb[0].mxu0
  %v217 = vadd.f32 0.0, %v216
  %v218 = vpop.f32.mrb[0].mxu0
  %219 = vmatprep.mubr.bf16.mxu0 0
  %220 = vmatmul.mubr.bf16.gmra.mrb[0].mxu0 %v144
  %v221 = vpop.f32.mrb[0].mxu0
  %v222 = vadd.f32 0.0, %v221
  %v223 = vpop.f32.mrb[0].mxu0
  %v224 = vpop.f32.mrb[0].mxu0
  %v225 = vadd.f32 0.0, %v224
  %v226 = vpop.f32.mrb[0].mxu0
  %227 = vmatprep.mubr.bf16.mxu0 0
  %228 = vmatmul.mubr.bf16.gmra.mrb[0].mxu0 %v147
  %v229 = vpop.f32.mrb[0].mxu0
  %v230 = vadd.f32 0.0, %v229
  %v231 = vpop.f32.mrb[0].mxu0
  %v232 = vpop.f32.mrb[0].mxu0
  %v233 = vadd.f32 0.0, %v232
  %v234 = vpop.f32.mrb[0].mxu0
  %235 = vmatprep.mubr.bf16.mxu0 0
  %236 = vmatmul.mubr.bf16.gmra.mrb[0].mxu0 %v150
  %v237 = vpop.f32.mrb[0].mxu0
  %v238 = vadd.f32 0.0, %v237
  %v239 = vpop.f32.mrb[0].mxu0
  %v240 = vpop.f32.mrb[0].mxu0
  %v241 = vadd.f32 0.0, %v240
  %v242 = vpop.f32.mrb[0].mxu0
  %243 = vmatprep.mubr.bf16.mxu0 0
  %244 = vmatmul.mubr.bf16.gmra.mrb[0].mxu0 %v153
  %v245 = vpop.f32.mrb[0].mxu0
  %v246 = vadd.f32 0.0, %v245
  %v247 = vpop.f32.mrb[0].mxu0
  %v248 = vpop.f32.mrb[0].mxu0
  %v249 = vadd.f32 0.0, %v248
  %v250 = vpop.f32.mrb[0].mxu0
  %251 = vdwg.mxu0
  %vm252 = vcmask 523264
  %253 = vst.msk [vmem:[%s4] sm:$0xff] %vm252, %v190
  %254 = vst.msk [vmem:[%s4 + $0x8] sm:$0xff] %vm252, %v193
  %255 = vst.msk [vmem:[%s4 + $0x10] sm:$0xff] %vm252, %v198
  %256 = vst.msk [vmem:[%s4 + $0x18] sm:$0xff] %vm252, %v201
  %257 = vst.msk [vmem:[%s4 + $0x20] sm:$0xff] %vm252, %v206
  %258 = vst.msk [vmem:[%s4 + $0x28] sm:$0xff] %vm252, %v209
  %259 = vst.msk [vmem:[%s4 + $0x30] sm:$0xff] %vm252, %v214
  %260 = vst.msk [vmem:[%s4 + $0x38] sm:$0xff] %vm252, %v217
  %261 = vst.msk [vmem:[%s4 + $0x40] sm:$0xff] %vm252, %v222
  %262 = vst.msk [vmem:[%s4 + $0x48] sm:$0xff] %vm252, %v225
  %263 = vst.msk [vmem:[%s4 + $0x50] sm:$0xff] %vm252, %v230
  %264 = vst.msk [vmem:[%s4 + $0x58] sm:$0xff] %vm252, %v233
  %265 = vst.msk [vmem:[%s4 + $0x60] sm:$0xff] %vm252, %v238
  %266 = vst.msk [vmem:[%s4 + $0x68] sm:$0xff] %vm252, %v241
  %267 = vst.msk [vmem:[%s4 + $0x70] sm:$0xff] %vm252, %v246
  %268 = vst.msk [vmem:[%s4 + $0x78] sm:$0xff] %vm252, %v249
  %v269 = vld [vmem:[%s5] sm:$0x1]
  %v270 = vsel %vm252, %v190, 0.0
  %v271 = vsel %vm252, %v193, 0.0
  %v272 = vadd.f32 %v270, %v271
  %v273 = vsel %vm252, %v198, 0.0
  %v274 = vadd.f32 %v272, %v273
  %v275 = vsel %vm252, %v201, 0.0
  %v276 = vadd.f32 %v274, %v275
  %v277 = vsel %vm252, %v206, 0.0
  %v278 = vadd.f32 %v276, %v277
  %v279 = vsel %vm252, %v209, 0.0
  %v280 = vadd.f32 %v278, %v279
  %v281 = vsel %vm252, %v214, 0.0
  %v282 = vadd.f32 %v280, %v281
  %v283 = vsel %vm252, %v217, 0.0
  %v284 = vadd.f32 %v282, %v283
  %v285 = vsel %vm252, %v222, 0.0
  %v286 = vadd.f32 %v284, %v285
  %v287 = vsel %vm252, %v225, 0.0
  %v288 = vadd.f32 %v286, %v287
  %v289 = vsel %vm252, %v230, 0.0
  %v290 = vadd.f32 %v288, %v289
  %v291 = vsel %vm252, %v233, 0.0
  %v292 = vadd.f32 %v290, %v291
  %v293 = vsel %vm252, %v238, 0.0
  %v294 = vadd.f32 %v292, %v293
  %v295 = vsel %vm252, %v241, 0.0
  %v296 = vadd.f32 %v294, %v295
  %v297 = vsel %vm252, %v246, 0.0
  %v298 = vadd.f32 %v296, %v297
  %v299 = vsel %vm252, %v249, 0.0
  %v300 = vadd.f32 %v298, %v299
  %v301 = vrot.slane %v300, 4
  %v302 = vadd.f32 %v300, %v301
  %v303 = vrot.slane %v302, 2
  %v304 = vadd.f32 %v302, %v303
  %v305 = vrot.slane %v304, 1
  %v306 = vadd.f32 %v304, %v305
  %v307 = vadd.f32 %v269, %v306
  %vm308 = vcmask 516096
  %309 = vst.msk [vmem:[%s5] sm:$0x1] %vm308, %v307
  %v310 = vld [vmem:[%s6] sm:$0x1]
  %v311 = vmul.f32 %v190, %v190
  %v312 = vmul.f32 %v193, %v193
  %v313 = vmul.f32 %v198, %v198
  %v314 = vmul.f32 %v201, %v201
  %v315 = vmul.f32 %v206, %v206
  %v316 = vmul.f32 %v209, %v209
  %v317 = vmul.f32 %v214, %v214
  %v318 = vmul.f32 %v217, %v217
  %v319 = vmul.f32 %v222, %v222
  %v320 = vmul.f32 %v225, %v225
  %v321 = vmul.f32 %v230, %v230
  %v322 = vmul.f32 %v233, %v233
  %v323 = vmul.f32 %v238, %v238
  %v324 = vmul.f32 %v241, %v241
  %v325 = vmul.f32 %v246, %v246
  %v326 = vmul.f32 %v249, %v249
  %v327 = vsel %vm252, %v311, 0.0
  %v328 = vsel %vm252, %v312, 0.0
  %v329 = vadd.f32 %v327, %v328
  %v330 = vsel %vm252, %v313, 0.0
  %v331 = vadd.f32 %v329, %v330
  %v332 = vsel %vm252, %v314, 0.0
  %v333 = vadd.f32 %v331, %v332
  %v334 = vsel %vm252, %v315, 0.0
  %v335 = vadd.f32 %v333, %v334
  %v336 = vsel %vm252, %v316, 0.0
  %v337 = vadd.f32 %v335, %v336
  %v338 = vsel %vm252, %v317, 0.0
  %v339 = vadd.f32 %v337, %v338
  %v340 = vsel %vm252, %v318, 0.0
  %v341 = vadd.f32 %v339, %v340
  %v342 = vsel %vm252, %v319, 0.0
  %v343 = vadd.f32 %v341, %v342
  %v344 = vsel %vm252, %v320, 0.0
  %v345 = vadd.f32 %v343, %v344
  %v346 = vsel %vm252, %v321, 0.0
  %v347 = vadd.f32 %v345, %v346
  %v348 = vsel %vm252, %v322, 0.0
  %v349 = vadd.f32 %v347, %v348
  %v350 = vsel %vm252, %v323, 0.0
  %v351 = vadd.f32 %v349, %v350
  %v352 = vsel %vm252, %v324, 0.0
  %v353 = vadd.f32 %v351, %v352
  %v354 = vsel %vm252, %v325, 0.0
  %v355 = vadd.f32 %v353, %v354
  %v356 = vsel %vm252, %v326, 0.0
  %v357 = vadd.f32 %v355, %v356
  %v358 = vrot.slane %v357, 4
  %v359 = vadd.f32 %v357, %v358
  %v360 = vrot.slane %v359, 2
  %v361 = vadd.f32 %v359, %v360
  %v362 = vrot.slane %v361, 1
  %v363 = vadd.f32 %v361, %v362
  %v364 = vadd.f32 %v310, %v363
  %365 = vst.msk [vmem:[%s6] sm:$0x1] %vm308, %v364
  // Predicated region
  $region22: #{mnet_forward.14} parent=0 // pred_check
    _
  $region23: #{mnet_forward.14} parent=0 // pred_check_branch
    %367 = sbr.rel (0) target = $region25
  $region24: #{mnet_forward.14} parent=0 // pred_region
    _
  $region25: #{mnet_forward.14} parent=0 // pred_fallthru
    _
  // Predicated region
  $region26: #{mnet_forward.14} parent=0 // pred_check
    _
  $region27: #{mnet_forward.14} parent=0 // pred_check_branch
    %369 = sbr.rel (0) target = $region29
  $region28: #{mnet_forward.14} parent=0 // pred_region
    _
  $region29: #{mnet_forward.14} parent=0 // pred_fallthru
    _
  // Predicated region
  $region30: #{mnet_forward.14} parent=0 // pred_check
    _
  $region31: #{mnet_forward.14} parent=0 // pred_check_branch
    %371 = sbr.rel (0) target = $region33
  $region32: #{mnet_forward.14} parent=0 // pred_region
    _
  $region33: #{mnet_forward.14} parent=0 // pred_fallthru
    _
  // Predicated region
  $region34: #{mnet_forward.14} parent=0 // pred_check
    _
  $region35: #{mnet_forward.14} parent=0 // pred_check_branch
    %373 = sbr.rel (0) target = $region37
  $region36: #{mnet_forward.14} parent=0 // pred_region
    _
  $region37: #{mnet_forward.14} parent=0 // pred_fallthru
    _
  // Predicated region
  $region38: #{mnet_forward.14} parent=0 // pred_check
    _
  $region39: #{mnet_forward.14} parent=0 // pred_check_branch
    %375 = sbr.rel (0) target = $region41
  $region40: #{mnet_forward.14} parent=0 // pred_region
    _
  $region41: #{mnet_forward.14} parent=0 // pred_fallthru
    _
  // Predicated region
  $region42: #{mnet_forward.14} parent=0 // pred_check
    _
  $region43: #{mnet_forward.14} parent=0 // pred_check_branch
    %377 = sbr.rel (0) target = $region45
  $region44: #{mnet_forward.14} parent=0 // pred_region
    _
  $region45: #{mnet_forward.14} parent=0 // pred_fallthru
    _

// kernel: mnet_forward.13
$region0: #{mnet_forward.13}
  #allocation0 [shape = 'u32[]', space=smem, size = 0x4, offset = 0x4, fixed_abs, tag = 'smem constant byte address 0x4 - core index']
  #allocation1 [shape = 'u32[144,128]{1,0:T(1,128)}', space=vmem, size = 0x12000, scoped, tag = 'internal scratch']
  %s0 = inlined_call_operand.vmem [shape: f32[1,32], index: 0, kind: input, shape index: {}]
  %s1 = inlined_call_operand.vmem [shape: f32[1,32], index: 1, kind: input, shape index: {}]
  %s2 = inlined_call_operand.vmem [shape: f32[2,1,10,10,32], index: 2, kind: input, shape index: {}]
  %s3 = inlined_call_operand.vmem [shape: f32[3,3,1,32], index: 3, kind: input, shape index: {}]
  %s4 = inlined_call_operand.vmem [shape: f32[2,8,8,32], index: 4, kind: output, shape index: {0}]
  %s5 = inlined_call_operand.vmem [shape: f32[1,32], index: 5, kind: output, shape index: {1}]
  %s6 = inlined_call_operand.vmem [shape: f32[1,32], index: 6, kind: output, shape index: {2}]
  %7 = xla_tuple %s4, %s5, %s6
  %s8 = sld [smem:[#allocation0]]
  $region69: #{mnet_forward.13} parent=0
    _
  %s10 = ssub.s32 1, %s8
  %s11 = scalar_select 0, %s10, %s8
  loop: start=0, step=1, limit=4
  $region2: #{mnet_forward.13} parent=0 // loop_pre_header
    _
  $region3: #{mnet_forward.13} parent=0 // loop_header
    %s13 = sphi 0, %s17
    %p14 = scmp.ge.s32.totalorder %s13, 4
    %s21 = sphi 0, %s21
    %s23 = sphi 0, %s21
    %s24 = sphi 0, %s23
    %s38 = sphi 0, %s24
    %s42 = sphi 0, %s42
    %s44 = sphi 0, %s42
    %s45 = sphi 0, %s44
    %s59 = sphi 0, %s45
    %s65 = sphi 0, %s67
    %s68 = sphi 0, %s65
    %s69 = sphi 0, %s68
    %s85 = sphi 0, %s69
    %s89 = sphi 0, %s89
    %s91 = sphi 0, %s89
    %s92 = sphi 0, %s91
    %s106 = sphi 0, %s92
    %s112 = sphi 0, %s114
    %s115 = sphi 0, %s112
    %s116 = sphi 0, %s115
    %s132 = sphi 0, %s116
    %s136 = sphi 0, %s136
    %s138 = sphi 0, %s136
    %s139 = sphi 0, %s138
    %s153 = sphi 0, %s139
    %s157 = sphi 0, %s157
    %s159 = sphi 0, %s157
    %s160 = sphi 0, %s159
    %s174 = sphi 0, %s160
  $region4: #{mnet_forward.13} parent=0 // loop_header_branch
    %16 = sbr.rel (%p14) target = $region8
  $region5: #{mnet_forward.13} parent=0 // loop_body
    %s18 = ssub.s32 %s13, 1
    %s19 = ssub.s32 %s13, 2
    %s20 = sadd.s32 %s13, 1
    %s22 = sadd.s32 %s21, 1
    %p25 = scmp.eq.s32.totalorder %s13, 1
    %p26 = scmp.ne.s32.totalorder %s21, %s23
    %p27 = scmp.eq.s32.totalorder %s13, 0
    %p28 = por %p26, %p27
    %p29 = scmp.ne.s32.totalorder %s21, %s23
    %p30 = scmp.eq.s32.totalorder %s18, 1
    %p31 = por %p29, %p30
    %p32 = scmp.ne.s32.totalorder %s23, %s24
    %p33 = scmp.eq.s32.totalorder %s18, 0
    %p34 = por %p32, %p33
    %p35 = scmp.ne.s32.totalorder %s23, %s24
    %p36 = scmp.eq.s32.totalorder %s19, 1
    %p37 = por %p35, %p36
    %p39 = scmp.ne.s32.totalorder %s24, %s38
    %p40 = scmp.eq.s32.totalorder %s19, 0
    %p41 = por %p39, %p40
    %s43 = sadd.s32 %s42, 1
    %p46 = scmp.eq.s32.totalorder %s13, 1
    %p47 = scmp.ne.s32.totalorder %s42, %s44
    %p48 = scmp.eq.s32.totalorder %s13, 0
    %p49 = por %p47, %p48
    %p50 = scmp.ne.s32.totalorder %s42, %s44
    %p51 = scmp.eq.s32.totalorder %s18, 1
    %p52 = por %p50, %p51
    %p53 = scmp.ne.s32.totalorder %s44, %s45
    %p54 = scmp.eq.s32.totalorder %s18, 0
    %p55 = por %p53, %p54
    %p56 = scmp.ne.s32.totalorder %s44, %s45
    %p57 = scmp.eq.s32.totalorder %s19, 1
    %p58 = por %p56, %p57
    %p60 = scmp.ne.s32.totalorder %s45, %s59
    %p61 = scmp.eq.s32.totalorder %s19, 0
    %p62 = por %p60, %p61
    %s63 = ssub.s32 %s13, %s20
    %p64 = scmp.eq.s32.totalorder %s63, 0
    %s66 = sadd.s32 %s65, 1
    %s67 = scalar_select %p64, %s65, %s66
    %p70 = pneg %p64
    %p71 = scmp.eq.s32.totalorder %s13, 1
    %p72 = por %p70, %p71
    %p73 = scmp.ne.s32.totalorder %s65, %s68
    %p74 = scmp.eq.s32.totalorder %s13, 0
    %p75 = por %p73, %p74
    %p76 = scmp.ne.s32.totalorder %s65, %s68
    %p77 = scmp.eq.s32.totalorder %s18, 1
    %p78 = por %p76, %p77
    %p79 = scmp.ne.s32.totalorder %s68, %s69
    %p80 = scmp.eq.s32.totalorder %s18, 0
    %p81 = por %p79, %p80
    %p82 = scmp.ne.s32.totalorder %s68, %s69
    %p83 = scmp.eq.s32.totalorder %s19, 1
    %p84 = por %p82, %p83
    %p86 = scmp.ne.s32.totalorder %s69, %s85
    %p87 = scmp.eq.s32.totalorder %s19, 0
    %p88 = por %p86, %p87
    %s90 = sadd.s32 %s89, 1
    %p93 = scmp.eq.s32.totalorder %s13, 1
    %p94 = scmp.ne.s32.totalorder %s89, %s91
    %p95 = scmp.eq.s32.totalorder %s13, 0
    %p96 = por %p94, %p95
    %p97 = scmp.ne.s32.totalorder %s89, %s91
    %p98 = scmp.eq.s32.totalorder %s18, 1
    %p99 = por %p97, %p98
    %p100 = scmp.ne.s32.totalorder %s91, %s92
    %p101 = scmp.eq.s32.totalorder %s18, 0
    %p102 = por %p100, %p101
    %p103 = scmp.ne.s32.totalorder %s91, %s92
    %p104 = scmp.eq.s32.totalorder %s19, 1
    %p105 = por %p103, %p104
    %p107 = scmp.ne.s32.totalorder %s92, %s106
    %p108 = scmp.eq.s32.totalorder %s19, 0
    %p109 = por %p107, %p108
    %s110 = ssub.s32 %s13, %s20
    %p111 = scmp.eq.s32.totalorder %s110, 0
    %s113 = sadd.s32 %s112, 1
    %s114 = scalar_select %p111, %s112, %s113
    %p117 = pneg %p111
    %p118 = scmp.eq.s32.totalorder %s13, 1
    %p119 = por %p117, %p118
    %p120 = scmp.ne.s32.totalorder %s112, %s115
    %p121 = scmp.eq.s32.totalorder %s13, 0
    %p122 = por %p120, %p121
    %p123 = scmp.ne.s32.totalorder %s112, %s115
    %p124 = scmp.eq.s32.totalorder %s18, 1
    %p125 = por %p123, %p124
    %p126 = scmp.ne.s32.totalorder %s115, %s116
    %p127 = scmp.eq.s32.totalorder %s18, 0
    %p128 = por %p126, %p127
    %p129 = scmp.ne.s32.totalorder %s115, %s116
    %p130 = scmp.eq.s32.totalorder %s19, 1
    %p131 = por %p129, %p130
    %p133 = scmp.ne.s32.totalorder %s116, %s132
    %p134 = scmp.eq.s32.totalorder %s19, 0
    %p135 = por %p133, %p134
    %s137 = sadd.s32 %s136, 1
    %p140 = scmp.eq.s32.totalorder %s13, 1
    %p141 = scmp.ne.s32.totalorder %s136, %s138
    %p142 = scmp.eq.s32.totalorder %s13, 0
    %p143 = por %p141, %p142
    %p144 = scmp.ne.s32.totalorder %s136, %s138
    %p145 = scmp.eq.s32.totalorder %s18, 1
    %p146 = por %p144, %p145
    %p147 = scmp.ne.s32.totalorder %s138, %s139
    %p148 = scmp.eq.s32.totalorder %s18, 0
    %p149 = por %p147, %p148
    %p150 = scmp.ne.s32.totalorder %s138, %s139
    %p151 = scmp.eq.s32.totalorder %s19, 1
    %p152 = por %p150, %p151
    %p154 = scmp.ne.s32.totalorder %s139, %s153
    %p155 = scmp.eq.s32.totalorder %s19, 0
    %p156 = por %p154, %p155
    %s158 = sadd.s32 %s157, 1
    %p161 = scmp.eq.s32.totalorder %s13, 1
    %p162 = scmp.ne.s32.totalorder %s157, %s159
    %p163 = scmp.eq.s32.totalorder %s13, 0
    %p164 = por %p162, %p163
    %p165 = scmp.ne.s32.totalorder %s157, %s159
    %p166 = scmp.eq.s32.totalorder %s18, 1
    %p167 = por %p165, %p166
    %p168 = scmp.ne.s32.totalorder %s159, %s160
    %p169 = scmp.eq.s32.totalorder %s18, 0
    %p170 = por %p168, %p169
    %p171 = scmp.ne.s32.totalorder %s159, %s160
    %p172 = scmp.eq.s32.totalorder %s19, 1
    %p173 = por %p171, %p172
    %p175 = scmp.ne.s32.totalorder %s160, %s174
    %p176 = scmp.eq.s32.totalorder %s19, 0
    %p177 = por %p175, %p176
    %p178 = scmp.le.s32.totalorder 1, %s13
    %p179 = scmp.lt.s32.totalorder %s13, 3
    %p180 = pnand %p178, %p179
    %p181 = pneg %p180
    // Predicated region
    $region9: #{mnet_forward.13} parent=5 // pred_check
      _
    $region10: #{mnet_forward.13} parent=5 // pred_check_branch
      %183 = sbr.rel (%p180) target = $region12
    $region11: #{mnet_forward.13} parent=5 // pred_region
      %s184 = ssub.s32 %s13, 1
      // Predicated region
      $region13: #{mnet_forward.13} parent=11 // pred_check
        %p185 = pneg %p34
      $region14: #{mnet_forward.13} parent=11 // pred_check_branch
        %187 = sbr.rel (%p185) target = $region16
      $region15: #{mnet_forward.13} parent=11 // pred_region
        _
      $region16: #{mnet_forward.13} parent=11 // pred_fallthru
        _
      // Predicated region
      $region17: #{mnet_forward.13} parent=11 // pred_check
        %p188 = pneg %p55
      $region18: #{mnet_forward.13} parent=11 // pred_check_branch
        %190 = sbr.rel (%p188) target = $region20
      $region19: #{mnet_forward.13} parent=11 // pred_region
        _
      $region20: #{mnet_forward.13} parent=11 // pred_fallthru
        _
      // Predicated region
      $region21: #{mnet_forward.13} parent=11 // pred_check
        %p191 = pneg %p102
      $region22: #{mnet_forward.13} parent=11 // pred_check_branch
        %193 = sbr.rel (%p191) target = $region24
      $region23: #{mnet_forward.13} parent=11 // pred_region
        _
      $region24: #{mnet_forward.13} parent=11 // pred_fallthru
        _
    $region12: #{mnet_forward.13} parent=5 // pred_fallthru
      _
    %p194 = scmp.lt.s32.totalorder %s13, 2
    // Predicated region
    $region25: #{mnet_forward.13} parent=5 // pred_check
      %p195 = pneg %p194
    $region26: #{mnet_forward.13} parent=5 // pred_check_branch
      %197 = sbr.rel (%p195) target = $region28
    $region27: #{mnet_forward.13} parent=5 // pred_region
      // Predicated region
      $region29: #{mnet_forward.13} parent=27 // pred_check
        %p198 = pneg %p75
      $region30: #{mnet_forward.13} parent=27 // pred_check_branch
        %200 = sbr.rel (%p198) target = $region32
      $region31: #{mnet_forward.13} parent=27 // pred_region
        %p201 = scmp.lt.s32.totalorder %s13, 1
        %s202 = scalar_select %p201, %s13, 1
        %s203 = smul.addr %s202, 20
        %s204 = smul.addr %s203, 8
        %s205 = scalar_lea.vmem %s2, %s204
      $region32: #{mnet_forward.13} parent=27 // pred_fallthru
        _
    $region28: #{mnet_forward.13} parent=5 // pred_fallthru
      _
    %p206 = scmp.le.s32.totalorder 1, %s13
    %p207 = scmp.lt.s32.totalorder %s13, 3
    %p208 = pnand %p206, %p207
    %p209 = pneg %p208
    // Predicated region
    $region33: #{mnet_forward.13} parent=5 // pred_check
      _
    $region34: #{mnet_forward.13} parent=5 // pred_check_branch
      %211 = sbr.rel (%p208) target = $region36
    $region35: #{mnet_forward.13} parent=5 // pred_region
      %s212 = ssub.s32 %s13, 1
      %p213 = pneg %p34
      %p214 = pneg %p31
      %p215 = pneg %p55
      %p216 = pneg %p52
      %p217 = scmp.lt.s32.totalorder %s18, 1
      %s218 = scalar_select %p217, %s18, 1
      %s219 = smul.addr %s218, 20
      %s220 = smul.addr %s219, 8
      %s221 = scalar_lea.vmem %s2, %s220
      %p222 = pneg %p81
      %p223 = pneg %p78
      %p224 = pneg %p102
      %p225 = pneg %p99
      %p226 = pneg %p128
      %p227 = pneg %p125
      %p228 = scmp.lt.s32.totalorder %s18, 1
      %s229 = scalar_select %p228, %s18, 1
      %s230 = smul.addr %s229, 8
      %s231 = smul.addr %s230, 8
      %s232 = scalar_lea.vmem %s4, %s231
      %p233 = pneg %p149
      %p234 = pneg %p146
      %p235 = pneg %p170
      %p236 = pneg %p167
      %p237 = scmp.lt.s32.totalorder %s18, 1
      %s238 = scalar_select %p237, %s18, 1
      %s239 = smul.addr %s238, 20
      %s240 = smul.addr %s239, 8
      %s241 = scalar_lea.vmem %s2, %s240
      %p242 = scmp.lt.s32.totalorder %s18, 1
      %s243 = scalar_select %p242, %s18, 1
      %s244 = smul.addr %s243, 8
      %s245 = smul.addr %s244, 8
      %s246 = scalar_lea.vmem %s4, %s245
      %p247 = scmp.eq.s32.totalorder %s18, 0
      // Predicated region
      $region37: #{mnet_forward.13} parent=35 // pred_check
        %p248 = pneg %p247
      $region38: #{mnet_forward.13} parent=35 // pred_check_branch
        %250 = sbr.rel (%p248) target = $region40
      $region39: #{mnet_forward.13} parent=35 // pred_region
        %vm251 = vcmask 253952
        %252 = vst.msk [vmem:[%s5] sm:$0x1] %vm251, 0.0
        %253 = vst.msk [vmem:[%s6] sm:$0x1] %vm251, 0.0
      $region40: #{mnet_forward.13} parent=35 // pred_fallthru
        _
      %v254 = vld [vmem:[%s0] sm:$0x1]
      %v255 = vld [vmem:[%s1] sm:$0x1]
      %v256 = vlaneseq
      %v257 = vshrl.u32 %v256, 7
      %v258 = vadd.s32 %v257, 8
      %vm259 = vcmp.ge.s32.totalorder %v257, 1
      %vm260 = vcmp.ge.s32.totalorder %v258, 1
      %vm261 = vmand 0, %vm259
      %vm262 = vmand 0, %vm260
      %vm263 = vmand 1, %vm259
      %vm264 = vmand 1, %vm260
      %vm265 = vcmp.le.s32.totalorder %v257, 8
      %vm266 = vcmp.le.s32.totalorder %v258, 8
      %vm267 = vmand %vm261, %vm265
      %vm268 = vmand %vm262, %vm266
      %vm269 = vmand %vm263, %vm265
      %vm270 = vmand %vm264, %vm266
      %v271 = vld [vmem:[%s241] sm:$0xff]
      %v272 = vld [vmem:[%s241 + $0x8] sm:$0x3]
      %v273 = vld [vmem:[%s241 + $0x10] sm:$0xff]
      %v274 = vld [vmem:[%s241 + $0x18] sm:$0x3]
      %v275 = vld [vmem:[%s241 + $0x20] sm:$0xff]
      %v276 = vld [vmem:[%s241 + $0x28] sm:$0x3]
      %v277 = vld [vmem:[%s241 + $0x30] sm:$0xff]
      %v278 = vld [vmem:[%s241 + $0x38] sm:$0x3]
      %v279 = vld [vmem:[%s241 + $0x40] sm:$0xff]
      %v280 = vld [vmem:[%s241 + $0x48] sm:$0x3]
      %v281 = vld [vmem:[%s241 + $0x50] sm:$0xff]
      %v282 = vld [vmem:[%s241 + $0x58] sm:$0x3]
      %v283 = vld [vmem:[%s241 + $0x60] sm:$0xff]
      %v284 = vld [vmem:[%s241 + $0x68] sm:$0x3]
      %v285 = vld [vmem:[%s241 + $0x70] sm:$0xff]
      %v286 = vld [vmem:[%s241 + $0x78] sm:$0x3]
      %v287 = vld [vmem:[%s241 + $0x80] sm:$0xff]
      %v288 = vld [vmem:[%s241 + $0x88] sm:$0x3]
      %v289 = vld [vmem:[%s241 + $0x90] sm:$0xff]
      %v290 = vld [vmem:[%s241 + $0x98] sm:$0x3]
      %v292 = vlaneseq
      %v293 = vshrl.u32 %v292, 7
      %v294 = vsub.s32 0, %v293
      %v295 = vrot.slane %v254, %v294
      %v297 = vmul.f32 %v271, %v295
      %v298 = vmul.f32 %v272, %v295
      %v299 = vmul.f32 %v273, %v295
      %v300 = vmul.f32 %v274, %v295
      %v301 = vmul.f32 %v275, %v295
      %v302 = vmul.f32 %v276, %v295
      %v303 = vmul.f32 %v277, %v295
      %v304 = vmul.f32 %v278, %v295
      %v305 = vmul.f32 %v279, %v295
      %v306 = vmul.f32 %v280, %v295
      %v307 = vmul.f32 %v281, %v295
      %v308 = vmul.f32 %v282, %v295
      %v309 = vmul.f32 %v283, %v295
      %v310 = vmul.f32 %v284, %v295
      %v311 = vmul.f32 %v285, %v295
      %v312 = vmul.f32 %v286, %v295
      %v313 = vmul.f32 %v287, %v295
      %v314 = vmul.f32 %v288, %v295
      %v315 = vmul.f32 %v289, %v295
      %v316 = vmul.f32 %v290, %v295
      %v318 = vlaneseq
      %v319 = vshrl.u32 %v318, 7
      %v320 = vsub.s32 0, %v319
      %v321 = vrot.slane %v255, %v320
      %v323 = vadd.f32 %v297, %v321
      %v324 = vadd.f32 %v298, %v321
      %v325 = vadd.f32 %v299, %v321
      %v326 = vadd.f32 %v300, %v321
      %v327 = vadd.f32 %v301, %v321
      %v328 = vadd.f32 %v302, %v321
      %v329 = vadd.f32 %v303, %v321
      %v330 = vadd.f32 %v304, %v321
      %v331 = vadd.f32 %v305, %v321
      %v332 = vadd.f32 %v306, %v321
      %v333 = vadd.f32 %v307, %v321
      %v334 = vadd.f32 %v308, %v321
      %v335 = vadd.f32 %v309, %v321
      %v336 = vadd.f32 %v310, %v321
      %v337 = vadd.f32 %v311, %v321
      %v338 = vadd.f32 %v312, %v321
      %v339 = vadd.f32 %v313, %v321
      %v340 = vadd.f32 %v314, %v321
      %v341 = vadd.f32 %v315, %v321
      %v342 = vadd.f32 %v316, %v321
      %v343 = vmax.f32 %v323, 0.0
      %v344 = vmax.f32 %v324, 0.0
      %v345 = vmax.f32 %v325, 0.0
      %v346 = vmax.f32 %v326, 0.0
      %v347 = vmax.f32 %v327, 0.0
      %v348 = vmax.f32 %v328, 0.0
      %v349 = vmax.f32 %v329, 0.0
      %v350 = vmax.f32 %v330, 0.0
      %v351 = vmax.f32 %v331, 0.0
      %v352 = vmax.f32 %v332, 0.0
      %v353 = vmax.f32 %v333, 0.0
      %v354 = vmax.f32 %v334, 0.0
      %v355 = vmax.f32 %v335, 0.0
      %v356 = vmax.f32 %v336, 0.0
      %v357 = vmax.f32 %v337, 0.0
      %v358 = vmax.f32 %v338, 0.0
      %v359 = vmax.f32 %v339, 0.0
      %v360 = vmax.f32 %v340, 0.0
      %v361 = vmax.f32 %v341, 0.0
      %v362 = vmax.f32 %v342, 0.0
      %v363 = vsel %vm267, 1, 0
      %v364 = vsel %vm268, 1, 0
      %v365 = vsel %vm269, 1, 0
      %v366 = vsel %vm270, 1, 0
      %v367 = vcvt.s32.f32 %v363
      %v368 = vcvt.s32.f32 %v364
      %v369 = vcvt.s32.f32 %v365
      %v370 = vcvt.s32.f32 %v366
      %v371 = vmul.f32 %v343, %v367
      %v372 = vmul.f32 %v344, %v368
      %v373 = vmul.f32 %v345, %v369
      %v374 = vmul.f32 %v346, %v370
      %v375 = vmul.f32 %v347, %v369
      %v376 = vmul.f32 %v348, %v370
      %v377 = vmul.f32 %v349, %v369
      %v378 = vmul.f32 %v350, %v370
      %v379 = vmul.f32 %v351, %v369
      %v380 = vmul.f32 %v352, %v370
      %v381 = vmul.f32 %v353, %v369
      %v382 = vmul.f32 %v354, %v370
      %v383 = vmul.f32 %v355, %v369
      %v384 = vmul.f32 %v356, %v370
      %v385 = vmul.f32 %v357, %v369
      %v386 = vmul.f32 %v358, %v370
      %v387 = vmul.f32 %v359, %v369
      %v388 = vmul.f32 %v360, %v370
      %v389 = vmul.f32 %v361, %v367
      %v390 = vmul.f32 %v362, %v368
      %v391 = vld [vmem:[%s3] sm:$0x1]
      %v393 = vlaneseq
      %v394 = vshrl.u32 %v393, 7
      %v395 = vsub.s32 0, %v394
      %v396 = vrot.slane %v391, %v395
      %v398 = vmul.f32 %v371, %v396
      %v399 = vmul.f32 %v373, %v396
      %v400 = vmul.f32 %v375, %v396
      %v401 = vmul.f32 %v377, %v396
      %v402 = vmul.f32 %v379, %v396
      %v403 = vmul.f32 %v381, %v396
      %v404 = vmul.f32 %v383, %v396
      %v405 = vmul.f32 %v385, %v396
      %v406 = vadd.f32 %v398, 0.0
      %v407 = vadd.f32 %v399, 0.0
      %v408 = vadd.f32 %v400, 0.0
      %v409 = vadd.f32 %v401, 0.0
      %v410 = vadd.f32 %v402, 0.0
      %v411 = vadd.f32 %v403, 0.0
      %v412 = vadd.f32 %v404, 0.0
      %v413 = vadd.f32 %v405, 0.0
      %s414 = scalar_lea.vmem %s3, 1
      %v415 = vld [vmem:[%s414] sm:$0x1]
      %v417 = vlaneseq
      %v418 = vshrl.u32 %v417, 7
      %v419 = vsub.s32 0, %v418
      %v420 = vrot.slane %v415, %v419
      %v422 = vmul.f32 %v371, %v420
      %v423 = vmul.f32 %v372, %v420
      %v424 = vmul.f32 %v373, %v420
      %v425 = vmul.f32 %v374, %v420
      %v426 = vmul.f32 %v375, %v420
      %v427 = vmul.f32 %v376, %v420
      %v428 = vmul.f32 %v377, %v420
      %v429 = vmul.f32 %v378, %v420
      %v430 = vmul.f32 %v379, %v420
      %v431 = vmul.f32 %v380, %v420
      %v432 = vmul.f32 %v381, %v420
      %v433 = vmul.f32 %v382, %v420
      %v434 = vmul.f32 %v383, %v420
      %v435 = vmul.f32 %v384, %v420
      %v436 = vmul.f32 %v385, %v420
      %v437 = vmul.f32 %v386, %v420
      %vm454 = vcmask 1046528
      %v455 = vrot.slane %v422, 1
      %v456 = vrot.slane %v423, 1
      %v457 = vsel %vm454, %v455, %v456
      %v458 = vrot.slane %v424, 1
      %v459 = vrot.slane %v425, 1
      %v460 = vsel %vm454, %v458, %v459
      %v461 = vrot.slane %v426, 1
      %v462 = vrot.slane %v427, 1
      %v463 = vsel %vm454, %v461, %v462
      %v464 = vrot.slane %v428, 1
      %v465 = vrot.slane %v429, 1
      %v466 = vsel %vm454, %v464, %v465
      %v467 = vrot.slane %v430, 1
      %v468 = vrot.slane %v431, 1
      %v469 = vsel %vm454, %v467, %v468
      %v470 = vrot.slane %v432, 1
      %v471 = vrot.slane %v433, 1
      %v472 = vsel %vm454, %v470, %v471
      %v473 = vrot.slane %v434, 1
      %v474 = vrot.slane %v435, 1
      %v475 = vsel %vm454, %v473, %v474
      %v476 = vrot.slane %v436, 1
      %v477 = vrot.slane %v437, 1
      %v478 = vsel %vm454, %v476, %v477
      %v487 = vadd.f32 %v406, %v457
      %v488 = vadd.f32 %v407, %v460
      %v489 = vadd.f32 %v408, %v463
      %v490 = vadd.f32 %v409, %v466
      %v491 = vadd.f32 %v410, %v469
      %v492 = vadd.f32 %v411, %v472
      %v493 = vadd.f32 %v412, %v475
      %v494 = vadd.f32 %v413, %v478
      %s495 = scalar_lea.vmem %s3, 2
      %v496 = vld [vmem:[%s495] sm:$0x1]
      %v498 = vlaneseq
      %v499 = vshrl.u32 %v498, 7
      %v500 = vsub.s32 0, %v499
      %v501 = vrot.slane %v496, %v500
      %v503 = vmul.f32 %v371, %v501
      %v504 = vmul.f32 %v372, %v501
      %v505 = vmul.f32 %v373, %v501
      %v506 = vmul.f32 %v374, %v501
      %v507 = vmul.f32 %v375, %v501
      %v508 = vmul.f32 %v376, %v501
      %v509 = vmul.f32 %v377, %v501
      %v510 = vmul.f32 %v378, %v501
      %v511 = vmul.f32 %v379, %v501
      %v512 = vmul.f32 %v380, %v501
      %v513 = vmul.f32 %v381, %v501
      %v514 = vmul.f32 %v382, %v501
      %v515 = vmul.f32 %v383, %v501
      %v516 = vmul.f32 %v384, %v501
      %v517 = vmul.f32 %v385, %v501
      %v518 = vmul.f32 %v386, %v501
      %vm535 = vcmask 1045504
      %v536 = vrot.slane %v503, 2
      %v537 = vrot.slane %v504, 2
      %v538 = vsel %vm535, %v536, %v537
      %v539 = vrot.slane %v505, 2
      %v540 = vrot.slane %v506, 2
      %v541 = vsel %vm535, %v539, %v540
      %v542 = vrot.slane %v507, 2
      %v543 = vrot.slane %v508, 2
      %v544 = vsel %vm535, %v542, %v543
      %v545 = vrot.slane %v509, 2
      %v546 = vrot.slane %v510, 2
      %v547 = vsel %vm535, %v545, %v546
      %v548 = vrot.slane %v511, 2
      %v549 = vrot.slane %v512, 2
      %v550 = vsel %vm535, %v548, %v549
      %v551 = vrot.slane %v513, 2
      %v552 = vrot.slane %v514, 2
      %v553 = vsel %vm535, %v551, %v552
      %v554 = vrot.slane %v515, 2
      %v555 = vrot.slane %v516, 2
      %v556 = vsel %vm535, %v554, %v555
      %v557 = vrot.slane %v517, 2
      %v558 = vrot.slane %v518, 2
      %v559 = vsel %vm535, %v557, %v558
      %v568 = vadd.f32 %v487, %v538
      %v569 = vadd.f32 %v488, %v541
      %v570 = vadd.f32 %v489, %v544
      %v571 = vadd.f32 %v490, %v547
      %v572 = vadd.f32 %v491, %v550
      %v573 = vadd.f32 %v492, %v553
      %v574 = vadd.f32 %v493, %v556
      %v575 = vadd.f32 %v494, %v559
      %s576 = scalar_lea.vmem %s3, 3
      %v577 = vld [vmem:[%s576] sm:$0x1]
      %v579 = vlaneseq
      %v580 = vshrl.u32 %v579, 7
      %v581 = vsub.s32 0, %v580
      %v582 = vrot.slane %v577, %v581
      %v584 = vmul.f32 %v373, %v582
      %v585 = vmul.f32 %v375, %v582
      %v586 = vmul.f32 %v377, %v582
      %v587 = vmul.f32 %v379, %v582
      %v588 = vmul.f32 %v381, %v582
      %v589 = vmul.f32 %v383, %v582
      %v590 = vmul.f32 %v385, %v582
      %v591 = vmul.f32 %v387, %v582
      %v592 = vadd.f32 %v568, %v584
      %v593 = vadd.f32 %v569, %v585
      %v594 = vadd.f32 %v570, %v586
      %v595 = vadd.f32 %v571, %v587
      %v596 = vadd.f32 %v572, %v588
      %v597 = vadd.f32 %v573, %v589
      %v598 = vadd.f32 %v574, %v590
      %v599 = vadd.f32 %v575, %v591
      %s600 = scalar_lea.vmem %s3, 4
      %v601 = vld [vmem:[%s600] sm:$0x1]
      %v603 = vlaneseq
      %v604 = vshrl.u32 %v603, 7
      %v605 = vsub.s32 0, %v604
      %v606 = vrot.slane %v601, %v605
      %v608 = vmul.f32 %v373, %v606
      %v609 = vmul.f32 %v374, %v606
      %v610 = vmul.f32 %v375, %v606
      %v611 = vmul.f32 %v376, %v606
      %v612 = vmul.f32 %v377, %v606
      %v613 = vmul.f32 %v378, %v606
      %v614 = vmul.f32 %v379, %v606
      %v615 = vmul.f32 %v380, %v606
      %v616 = vmul.f32 %v381, %v606
      %v617 = vmul.f32 %v382, %v606
      %v618 = vmul.f32 %v383, %v606
      %v619 = vmul.f32 %v384, %v606
      %v620 = vmul.f32 %v385, %v606
      %v621 = vmul.f32 %v386, %v606
      %v622 = vmul.f32 %v387, %v606
      %v623 = vmul.f32 %v388, %v606
      %v640 = vrot.slane %v608, 1
      %v641 = vrot.slane %v609, 1
      %v642 = vsel %vm454, %v640, %v641
      %v643 = vrot.slane %v610, 1
      %v644 = vrot.slane %v611, 1
      %v645 = vsel %vm454, %v643, %v644
      %v646 = vrot.slane %v612, 1
      %v647 = vrot.slane %v613, 1
      %v648 = vsel %vm454, %v646, %v647
      %v649 = vrot.slane %v614, 1
      %v650 = vrot.slane %v615, 1
      %v651 = vsel %vm454, %v649, %v650
      %v652 = vrot.slane %v616, 1
      %v653 = vrot.slane %v617, 1
      %v654 = vsel %vm454, %v652, %v653
      %v655 = vrot.slane %v618, 1
      %v656 = vrot.slane %v619, 1
      %v657 = vsel %vm454, %v655, %v656
      %v658 = vrot.slane %v620, 1
      %v659 = vrot.slane %v621, 1
      %v660 = vsel %vm454, %v658, %v659
      %v661 = vrot.slane %v622, 1
      %v662 = vrot.slane %v623, 1
      %v663 = vsel %vm454, %v661, %v662
      %v672 = vadd.f32 %v592, %v642
      %v673 = vadd.f32 %v593, %v645
      %v674 = vadd.f32 %v594, %v648
      %v675 = vadd.f32 %v595, %v651
      %v676 = vadd.f32 %v596, %v654
      %v677 = vadd.f32 %v597, %v657
      %v678 = vadd.f32 %v598, %v660
      %v679 = vadd.f32 %v599, %v663
      %s680 = scalar_lea.vmem %s3, 5
      %v681 = vld [vmem:[%s680] sm:$0x1]
      %v683 = vlaneseq
      %v684 = vshrl.u32 %v683, 7
      %v685 = vsub.s32 0, %v684
      %v686 = vrot.slane %v681, %v685
      %v688 = vmul.f32 %v373, %v686
      %v689 = vmul.f32 %v374, %v686
      %v690 = vmul.f32 %v375, %v686
      %v691 = vmul.f32 %v376, %v686
      %v692 = vmul.f32 %v377, %v686
      %v693 = vmul.f32 %v378, %v686
      %v694 = vmul.f32 %v379, %v686
      %v695 = vmul.f32 %v380, %v686
      %v696 = vmul.f32 %v381, %v686
      %v697 = vmul.f32 %v382, %v686
      %v698 = vmul.f32 %v383, %v686
      %v699 = vmul.f32 %v384, %v686
      %v700 = vmul.f32 %v385, %v686
      %v701 = vmul.f32 %v386, %v686
      %v702 = vmul.f32 %v387, %v686
      %v703 = vmul.f32 %v388, %v686
      %v720 = vrot.slane %v688, 2
      %v721 = vrot.slane %v689, 2
      %v722 = vsel %vm535, %v720, %v721
      %v723 = vrot.slane %v690, 2
      %v724 = vrot.slane %v691, 2
      %v725 = vsel %vm535, %v723, %v724
      %v726 = vrot.slane %v692, 2
      %v727 = vrot.slane %v693, 2
      %v728 = vsel %vm535, %v726, %v727
      %v729 = vrot.slane %v694, 2
      %v730 = vrot.slane %v695, 2
      %v731 = vsel %vm535, %v729, %v730
      %v732 = vrot.slane %v696, 2
      %v733 = vrot.slane %v697, 2
      %v734 = vsel %vm535, %v732, %v733
      %v735 = vrot.slane %v698, 2
      %v736 = vrot.slane %v699, 2
      %v737 = vsel %vm535, %v735, %v736
      %v738 = vrot.slane %v700, 2
      %v739 = vrot.slane %v701, 2
      %v740 = vsel %vm535, %v738, %v739
      %v741 = vrot.slane %v702, 2
      %v742 = vrot.slane %v703, 2
      %v743 = vsel %vm535, %v741, %v742
      %v752 = vadd.f32 %v672, %v722
      %v753 = vadd.f32 %v673, %v725
      %v754 = vadd.f32 %v674, %v728
      %v755 = vadd.f32 %v675, %v731
      %v756 = vadd.f32 %v676, %v734
      %v757 = vadd.f32 %v677, %v737
      %v758 = vadd.f32 %v678, %v740
      %v759 = vadd.f32 %v679, %v743
      %s760 = scalar_lea.vmem %s3, 6
      %v761 = vld [vmem:[%s760] sm:$0x1]
      %v763 = vlaneseq
      %v764 = vshrl.u32 %v763, 7
      %v765 = vsub.s32 0, %v764
      %v766 = vrot.slane %v761, %v765
      %v768 = vmul.f32 %v375, %v766
      %v769 = vmul.f32 %v377, %v766
      %v770 = vmul.f32 %v379, %v766
      %v771 = vmul.f32 %v381, %v766
      %v772 = vmul.f32 %v383, %v766
      %v773 = vmul.f32 %v385, %v766
      %v774 = vmul.f32 %v387, %v766
      %v775 = vmul.f32 %v389, %v766
      %v776 = vadd.f32 %v752, %v768
      %v777 = vadd.f32 %v753, %v769
      %v778 = vadd.f32 %v754, %v770
      %v779 = vadd.f32 %v755, %v771
      %v780 = vadd.f32 %v756, %v772
      %v781 = vadd.f32 %v757, %v773
      %v782 = vadd.f32 %v758, %v774
      %v783 = vadd.f32 %v759, %v775
      %s784 = scalar_lea.vmem %s3, 7
      %v785 = vld [vmem:[%s784] sm:$0x1]
      %v787 = vlaneseq
      %v788 = vshrl.u32 %v787, 7
      %v789 = vsub.s32 0, %v788
      %v790 = vrot.slane %v785, %v789
      %v792 = vmul.f32 %v375, %v790
      %v793 = vmul.f32 %v376, %v790
      %v794 = vmul.f32 %v377, %v790
      %v795 = vmul.f32 %v378, %v790
      %v796 = vmul.f32 %v379, %v790
      %v797 = vmul.f32 %v380, %v790
      %v798 = vmul.f32 %v381, %v790
      %v799 = vmul.f32 %v382, %v790
      %v800 = vmul.f32 %v383, %v790
      %v801 = vmul.f32 %v384, %v790
      %v802 = vmul.f32 %v385, %v790
      %v803 = vmul.f32 %v386, %v790
      %v804 = vmul.f32 %v387, %v790
      %v805 = vmul.f32 %v388, %v790
      %v806 = vmul.f32 %v389, %v790
      %v807 = vmul.f32 %v390, %v790
      %v824 = vrot.slane %v792, 1
      %v825 = vrot.slane %v793, 1
      %v826 = vsel %vm454, %v824, %v825
      %v827 = vrot.slane %v794, 1
      %v828 = vrot.slane %v795, 1
      %v829 = vsel %vm454, %v827, %v828
      %v830 = vrot.slane %v796, 1
      %v831 = vrot.slane %v797, 1
      %v832 = vsel %vm454, %v830, %v831
      %v833 = vrot.slane %v798, 1
      %v834 = vrot.slane %v799, 1
      %v835 = vsel %vm454, %v833, %v834
      %v836 = vrot.slane %v800, 1
      %v837 = vrot.slane %v801, 1
      %v838 = vsel %vm454, %v836, %v837
      %v839 = vrot.slane %v802, 1
      %v840 = vrot.slane %v803, 1
      %v841 = vsel %vm454, %v839, %v840
      %v842 = vrot.slane %v804, 1
      %v843 = vrot.slane %v805, 1
      %v844 = vsel %vm454, %v842, %v843
      %v845 = vrot.slane %v806, 1
      %v846 = vrot.slane %v807, 1
      %v847 = vsel %vm454, %v845, %v846
      %v856 = vadd.f32 %v776, %v826
      %v857 = vadd.f32 %v777, %v829
      %v858 = vadd.f32 %v778, %v832
      %v859 = vadd.f32 %v779, %v835
      %v860 = vadd.f32 %v780, %v838
      %v861 = vadd.f32 %v781, %v841
      %v862 = vadd.f32 %v782, %v844
      %v863 = vadd.f32 %v783, %v847
      %s864 = scalar_lea.vmem %s3, 8
      %v865 = vld [vmem:[%s864] sm:$0x1]
      %v867 = vlaneseq
      %v868 = vshrl.u32 %v867, 7
      %v869 = vsub.s32 0, %v868
      %v870 = vrot.slane %v865, %v869
      %v872 = vmul.f32 %v375, %v870
      %v873 = vmul.f32 %v376, %v870
      %v874 = vmul.f32 %v377, %v870
      %v875 = vmul.f32 %v378, %v870
      %v876 = vmul.f32 %v379, %v870
      %v877 = vmul.f32 %v380, %v870
      %v878 = vmul.f32 %v381, %v870
      %v879 = vmul.f32 %v382, %v870
      %v880 = vmul.f32 %v383, %v870
      %v881 = vmul.f32 %v384, %v870
      %v882 = vmul.f32 %v385, %v870
      %v883 = vmul.f32 %v386, %v870
      %v884 = vmul.f32 %v387, %v870
      %v885 = vmul.f32 %v388, %v870
      %v886 = vmul.f32 %v389, %v870
      %v887 = vmul.f32 %v390, %v870
      %v904 = vrot.slane %v872, 2
      %v905 = vrot.slane %v873, 2
      %v906 = vsel %vm535, %v904, %v905
      %v907 = vrot.slane %v874, 2
      %v908 = vrot.slane %v875, 2
      %v909 = vsel %vm535, %v907, %v908
      %v910 = vrot.slane %v876, 2
      %v911 = vrot.slane %v877, 2
      %v912 = vsel %vm535, %v910, %v911
      %v913 = vrot.slane %v878, 2
      %v914 = vrot.slane %v879, 2
      %v915 = vsel %vm535, %v913, %v914
      %v916 = vrot.slane %v880, 2
      %v917 = vrot.slane %v881, 2
      %v918 = vsel %vm535, %v916, %v917
      %v919 = vrot.slane %v882, 2
      %v920 = vrot.slane %v883, 2
      %v921 = vsel %vm535, %v919, %v920
      %v922 = vrot.slane %v884, 2
      %v923 = vrot.slane %v885, 2
      %v924 = vsel %vm535, %v922, %v923
      %v925 = vrot.slane %v886, 2
      %v926 = vrot.slane %v887, 2
      %v927 = vsel %vm535, %v925, %v926
      %v936 = vadd.f32 %v856, %v906
      %v937 = vadd.f32 %v857, %v909
      %v938 = vadd.f32 %v858, %v912
      %v939 = vadd.f32 %v859, %v915
      %v940 = vadd.f32 %v860, %v918
      %v941 = vadd.f32 %v861, %v921
      %v942 = vadd.f32 %v862, %v924
      %v943 = vadd.f32 %v863, %v927
      %vm944 = vcmask 261120
      %945 = vst.msk [vmem:[%s246] sm:$0xff] %vm944, %v936
      %946 = vst.msk [vmem:[%s246 + $0x8] sm:$0xff] %vm944, %v937
      %947 = vst.msk [vmem:[%s246 + $0x10] sm:$0xff] %vm944, %v938
      %948 = vst.msk [vmem:[%s246 + $0x18] sm:$0xff] %vm944, %v939
      %949 = vst.msk [vmem:[%s246 + $0x20] sm:$0xff] %vm944, %v940
      %950 = vst.msk [vmem:[%s246 + $0x28] sm:$0xff] %vm944, %v941
      %951 = vst.msk [vmem:[%s246 + $0x30] sm:$0xff] %vm944, %v942
      %952 = vst.msk [vmem:[%s246 + $0x38] sm:$0xff] %vm944, %v943
      %v953 = vld [vmem:[%s5] sm:$0x1]
      %v954 = vsel %vm944, %v936, 0.0
      %v955 = vsel %vm944, %v937, 0.0
      %v956 = vadd.f32 %v954, %v955
      %v957 = vsel %vm944, %v938, 0.0
      %v958 = vadd.f32 %v956, %v957
      %v959 = vsel %vm944, %v939, 0.0
      %v960 = vadd.f32 %v958, %v959
      %v961 = vsel %vm944, %v940, 0.0
      %v962 = vadd.f32 %v960, %v961
      %v963 = vsel %vm944, %v941, 0.0
      %v964 = vadd.f32 %v962, %v963
      %v965 = vsel %vm944, %v942, 0.0
      %v966 = vadd.f32 %v964, %v965
      %v967 = vsel %vm944, %v943, 0.0
      %v968 = vadd.f32 %v966, %v967
      %v969 = vsel %vm944, %v968, 0.0
      %v970 = vrot.slane %v969, 4
      %v971 = vadd.f32 %v969, %v970
      %v972 = vrot.slane %v971, 2
      %v973 = vadd.f32 %v971, %v972
      %v974 = vrot.slane %v973, 1
      %v975 = vadd.f32 %v973, %v974
      %v976 = vadd.f32 %v953, %v975
      %vm977 = vcmask 253952
      %978 = vst.msk [vmem:[%s5] sm:$0x1] %vm977, %v976
      %v979 = vld [vmem:[%s6] sm:$0x1]
      %v980 = vmul.f32 %v936, %v936
      %v981 = vmul.f32 %v937, %v937
      %v982 = vmul.f32 %v938, %v938
      %v983 = vmul.f32 %v939, %v939
      %v984 = vmul.f32 %v940, %v940
      %v985 = vmul.f32 %v941, %v941
      %v986 = vmul.f32 %v942, %v942
      %v987 = vmul.f32 %v943, %v943
      %v988 = vsel %vm944, %v980, 0.0
      %v989 = vsel %vm944, %v981, 0.0
      %v990 = vadd.f32 %v988, %v989
      %v991 = vsel %vm944, %v982, 0.0
      %v992 = vadd.f32 %v990, %v991
      %v993 = vsel %vm944, %v983, 0.0
      %v994 = vadd.f32 %v992, %v993
      %v995 = vsel %vm944, %v984, 0.0
      %v996 = vadd.f32 %v994, %v995
      %v997 = vsel %vm944, %v985, 0.0
      %v998 = vadd.f32 %v996, %v997
      %v999 = vsel %vm944, %v986, 0.0
      %v1000 = vadd.f32 %v998, %v999
      %v1001 = vsel %vm944, %v987, 0.0
      %v1002 = vadd.f32 %v1000, %v1001
      %v1003 = vsel %vm944, %v1002, 0.0
      %v1004 = vrot.slane %v1003, 4
      %v1005 = vadd.f32 %v1003, %v1004
      %v1006 = vrot.slane %v1005, 2
      %v1007 = vadd.f32 %v1005, %v1006
      %v1008 = vrot.slane %v1007, 1
      %v1009 = vadd.f32 %v1007, %v1008
      %v1010 = vadd.f32 %v979, %v1009
      %1011 = vst.msk [vmem:[%s6] sm:$0x1] %vm977, %v1010
      %p1012 = scmp.lt.s32.totalorder %s18, 1
      %s1013 = scalar_select %p1012, %s18, 1
      %s1014 = smul.addr %s1013, 8
      %s1015 = smul.addr %s1014, 8
      %s1016 = scalar_lea.vmem %s4, %s1015
      // Predicated region
      $region41: #{mnet_forward.13} parent=35 // pred_check
        %p1017 = pneg %p125
      $region42: #{mnet_forward.13} parent=35 // pred_check_branch
        %1019 = sbr.rel (%p1017) target = $region44
      $region43: #{mnet_forward.13} parent=35 // pred_region
        _
      $region44: #{mnet_forward.13} parent=35 // pred_fallthru
        _
      // Predicated region
      $region45: #{mnet_forward.13} parent=35 // pred_check
        %p1020 = pneg %p146
      $region46: #{mnet_forward.13} parent=35 // pred_check_branch
        %1022 = sbr.rel (%p1020) target = $region48
      $region47: #{mnet_forward.13} parent=35 // pred_region
        _
      $region48: #{mnet_forward.13} parent=35 // pred_fallthru
        _
      // Predicated region
      $region49: #{mnet_forward.13} parent=35 // pred_check
        %p1023 = pneg %p167
      $region50: #{mnet_forward.13} parent=35 // pred_check_branch
        %1025 = sbr.rel (%p1023) target = $region52
      $region51: #{mnet_forward.13} parent=35 // pred_region
        _
      $region52: #{mnet_forward.13} parent=35 // pred_fallthru
        _
      // Predicated region
      $region53: #{mnet_forward.13} parent=35 // pred_check
        %p1026 = pneg %p146
      $region54: #{mnet_forward.13} parent=35 // pred_check_branch
        %1028 = sbr.rel (%p1026) target = $region56
      $region55: #{mnet_forward.13} parent=35 // pred_region
        _
      $region56: #{mnet_forward.13} parent=35 // pred_fallthru
        _
      // Predicated region
      $region57: #{mnet_forward.13} parent=35 // pred_check
        %p1029 = pneg %p167
      $region58: #{mnet_forward.13} parent=35 // pred_check_branch
        %1031 = sbr.rel (%p1029) target = $region60
      $region59: #{mnet_forward.13} parent=35 // pred_region
        _
      $region60: #{mnet_forward.13} parent=35 // pred_fallthru
        _
    $region36: #{mnet_forward.13} parent=5 // pred_fallthru
      _
    %p1032 = scmp.le.s32.totalorder 2, %s13
    // Predicated region
    $region61: #{mnet_forward.13} parent=5 // pred_check
      %p1033 = pneg %p1032
    $region62: #{mnet_forward.13} parent=5 // pred_check_branch
      %1035 = sbr.rel (%p1033) target = $region64
    $region63: #{mnet_forward.13} parent=5 // pred_region
      %s1036 = ssub.s32 %s13, 2
      // Predicated region
      $region65: #{mnet_forward.13} parent=63 // pred_check
        %p1037 = pneg %p131
      $region66: #{mnet_forward.13} parent=63 // pred_check_branch
        %1039 = sbr.rel (%p1037) target = $region68
      $region67: #{mnet_forward.13} parent=63 // pred_region
        %p1040 = scmp.lt.s32.totalorder %s19, 1
        %s1041 = scalar_select %p1040, %s19, 1
        %s1042 = smul.addr %s1041, 8
        %s1043 = smul.addr %s1042, 8
        %s1044 = scalar_lea.vmem %s4, %s1043
      $region68: #{mnet_forward.13} parent=63 // pred_fallthru
        _
    $region64: #{mnet_forward.13} parent=5 // pred_fallthru
      _
  $region6: #{mnet_forward.13} parent=0 // loop_footer
    %s17 = sadd.s32 1, %s13
  $region7: #{mnet_forward.13} parent=0 // loop_footer_branch
    %12 = sbr.rel target = $region3
  $region8: #{mnet_forward.13} parent=0 // loop_exit
    _

// kernel: mnet_forward.16
$region0: #{mnet_forward.16}
  #allocation0 [shape = 'u32[]', space=smem, size = 0x4, offset = 0x4, fixed_abs, tag = 'smem constant byte address 0x4 - core index']
  #allocation1 [shape = 'u32[144,128]{1,0:T(1,128)}', space=vmem, size = 0x12000, scoped, tag = 'internal scratch']
  %s0 = inlined_call_operand.vmem [shape: f32[1,64], index: 0, kind: input, shape index: {}]
  %s1 = inlined_call_operand.vmem [shape: f32[1,64], index: 1, kind: input, shape index: {}]
  %s2 = inlined_call_operand.vmem [shape: f32[32,64], index: 2, kind: input, shape index: {}]
  %s3 = inlined_call_operand.vmem [shape: bf16[64,128], index: 3, kind: input, shape index: {}]
  %s4 = inlined_call_operand.vmem [shape: f32[32,128], index: 4, kind: output, shape index: {0}]
  %s5 = inlined_call_operand.vmem [shape: f32[1,128], index: 5, kind: output, shape index: {1}]
  %s6 = inlined_call_operand.vmem [shape: f32[1,128], index: 6, kind: output, shape index: {2}]
  %7 = xla_tuple %s4, %s5, %s6
  %s8 = sld [smem:[#allocation0]]
  $region46: #{mnet_forward.16} parent=0
    _
  %s10 = ssub.s32 1, %s8
  %s11 = scalar_select 0, %s10, %s8
  // Predicated region
  $region2: #{mnet_forward.16} parent=0 // pred_check
    _
  $region3: #{mnet_forward.16} parent=0 // pred_check_branch
    %13 = sbr.rel (0) target = $region5
  $region4: #{mnet_forward.16} parent=0 // pred_region
    _
  $region5: #{mnet_forward.16} parent=0 // pred_fallthru
    _
  // Predicated region
  $region6: #{mnet_forward.16} parent=0 // pred_check
    _
  $region7: #{mnet_forward.16} parent=0 // pred_check_branch
    %15 = sbr.rel (0) target = $region9
  $region8: #{mnet_forward.16} parent=0 // pred_region
    _
  $region9: #{mnet_forward.16} parent=0 // pred_fallthru
    _
  // Predicated region
  $region10: #{mnet_forward.16} parent=0 // pred_check
    _
  $region11: #{mnet_forward.16} parent=0 // pred_check_branch
    %17 = sbr.rel (0) target = $region13
  $region12: #{mnet_forward.16} parent=0 // pred_region
    _
  $region13: #{mnet_forward.16} parent=0 // pred_fallthru
    _
  // Predicated region
  $region14: #{mnet_forward.16} parent=0 // pred_check
    _
  $region15: #{mnet_forward.16} parent=0 // pred_check_branch
    %19 = sbr.rel (0) target = $region17
  $region16: #{mnet_forward.16} parent=0 // pred_region
    _
  $region17: #{mnet_forward.16} parent=0 // pred_fallthru
    _
  %p21 = scmp.eq.s32.totalorder 0, 0
  // Predicated region
  $region18: #{mnet_forward.16} parent=0 // pred_check
    %p22 = pneg %p21
  $region19: #{mnet_forward.16} parent=0 // pred_check_branch
    %24 = sbr.rel (%p22) target = $region21
  $region20: #{mnet_forward.16} parent=0 // pred_region
    %25 = vst [vmem:[%s5] sm:$0x1] 0.0
    %26 = vst [vmem:[%s6] sm:$0x1] 0.0
  $region21: #{mnet_forward.16} parent=0 // pred_fallthru
    _
  %v27 = vld [vmem:[%s2] sm:$0xff]
  %v28 = vld [vmem:[%s2 + $0x8] sm:$0xff]
  %v29 = vld [vmem:[%s2 + $0x10] sm:$0xff]
  %v30 = vld [vmem:[%s2 + $0x18] sm:$0xff]
  %v31 = vld [vmem:[%s0] sm:$0x1]
  %v33 = vlaneseq
  %v34 = vshrl.u32 %v33, 7
  %v35 = vsub.s32 0, %v34
  %v36 = vrot.slane %v31, %v35
  %v38 = vmul.f32 %v27, %v36
  %v39 = vmul.f32 %v28, %v36
  %v40 = vmul.f32 %v29, %v36
  %v41 = vmul.f32 %v30, %v36
  %v42 = vld [vmem:[%s1] sm:$0x1]
  %v44 = vlaneseq
  %v45 = vshrl.u32 %v44, 7
  %v46 = vsub.s32 0, %v45
  %v47 = vrot.slane %v42, %v46
  %v49 = vadd.f32 %v38, %v47
  %v50 = vadd.f32 %v39, %v47
  %v51 = vadd.f32 %v40, %v47
  %v52 = vadd.f32 %v41, %v47
  %v53 = vmax.f32 %v49, 0.0
  %v54 = vmax.f32 %v50, 0.0
  %v55 = vmax.f32 %v51, 0.0
  %v56 = vmax.f32 %v52, 0.0
  %v57 = vpack.c.bf16 %v54, %v53
  %v58 = vpack.c.bf16 %v56, %v55
  %v59 = vld [vmem:[%s3] sm:$0xf]
  %v60 = vld [vmem:[%s3 + $0x4] sm:$0xf]
  %v61 = vld [vmem:[%s3 + $0x8] sm:$0xf]
  %v62 = vld [vmem:[%s3 + $0xc] sm:$0xf]
  %v63 = vld [vmem:[%s3 + $0x10] sm:$0xf]
  %v64 = vld [vmem:[%s3 + $0x14] sm:$0xf]
  %v65 = vld [vmem:[%s3 + $0x18] sm:$0xf]
  %v66 = vld [vmem:[%s3 + $0x1c] sm:$0xf]
  %v75 = vunpack.c.l.b16 %v59
  %v76 = vunpack.c.l.b16 %v60
  %v77 = vunpack.c.l.b16 %v61
  %v78 = vunpack.c.l.b16 %v62
  %v79 = vunpack.c.l.b16 %v63
  %v80 = vunpack.c.l.b16 %v64
  %v81 = vunpack.c.l.b16 %v65
  %v82 = vunpack.c.l.b16 %v66
  %v83 = vpack.c.b16 %v76, %v75
  %v84 = vpack.c.b16 %v78, %v77
  %v85 = vpack.c.b16 %v80, %v79
  %v86 = vpack.c.b16 %v82, %v81
  %vm91 = vcmask 523264
  %v93 = vsel %vm91, %v57, 0
  %v96 = vsel %vm91, %v58, 0
  %98 = vmatprep.subr.bf16.mxu0 0
  %99 = vmatpush1.bf16.msra.mxu0 %v83
  %100 = vmatprep.subr.bf16.mxu0 0
  %101 = vmatpush1.bf16.msra.mxu0 %v84
  %102 = vmatprep.subr.bf16.mxu0 0
  %103 = vmatpush1.bf16.msra.mxu0 %v85
  %104 = vmatprep.subr.bf16.mxu0 0
  %105 = vmatpush1.bf16.msra.mxu0 %v86
  %106 = vmatprep.subr.bf16.mxu0 0
  %107 = vmatpush1.bf16.msra.mxu0 0
  %108 = vmatprep.subr.bf16.mxu0 0
  %109 = vmatpush1.bf16.msra.mxu0 0
  %110 = vmatprep.subr.bf16.mxu0 0
  %111 = vmatpush1.bf16.msra.mxu0 0
  %112 = vmatprep.subr.bf16.mxu0 0
  %113 = vmatpush1.bf16.msra.mxu0 0
  %114 = vmatprep.subr.bf16.mxu0 0
  %115 = vmatpush1.bf16.msra.mxu0 0
  %116 = vmatprep.subr.bf16.mxu0 0
  %117 = vmatpush1.bf16.msra.mxu0 0
  %118 = vmatprep.subr.bf16.mxu0 0
  %119 = vmatpush1.bf16.msra.mxu0 0
  %120 = vmatprep.subr.bf16.mxu0 0
  %121 = vmatpush1.bf16.msra.mxu0 0
  %122 = vmatprep.subr.bf16.mxu0 0
  %123 = vmatpush1.bf16.msra.mxu0 0
  %124 = vmatprep.subr.bf16.mxu0 0
  %125 = vmatpush1.bf16.msra.mxu0 0
  %126 = vmatprep.subr.bf16.mxu0 0
  %127 = vmatpush1.bf16.msra.mxu0 0
  %128 = vmatprep.subr.bf16.mxu0 0
  %129 = vmatpush1.bf16.msra.mxu0 0
  %130 = vmatprep.mubr.bf16.mxu0 0
  %131 = vmatmul.mubr.bf16.gmra.mrb[0].mxu0 %v93
  %v132 = vpop.f32.mrb[0].mxu0
  %v133 = vadd.f32 0.0, %v132
  %v134 = vpop.f32.mrb[0].mxu0
  %v135 = vpop.f32.mrb[0].mxu0
  %v136 = vadd.f32 0.0, %v135
  %v137 = vpop.f32.mrb[0].mxu0
  %138 = vmatprep.mubr.bf16.mxu0 0
  %139 = vmatmul.mubr.bf16.gmra.mrb[0].mxu0 %v96
  %v140 = vpop.f32.mrb[0].mxu0
  %v141 = vadd.f32 0.0, %v140
  %v142 = vpop.f32.mrb[0].mxu0
  %v143 = vpop.f32.mrb[0].mxu0
  %v144 = vadd.f32 0.0, %v143
  %v145 = vpop.f32.mrb[0].mxu0
  %146 = vdwg.mxu0
  %147 = vst [vmem:[%s4] sm:$0xff] %v133
  %148 = vst [vmem:[%s4 + $0x8] sm:$0xff] %v136
  %149 = vst [vmem:[%s4 + $0x10] sm:$0xff] %v141
  %150 = vst [vmem:[%s4 + $0x18] sm:$0xff] %v144
  %v151 = vld [vmem:[%s5] sm:$0x1]
  %v152 = vadd.f32 %v133, %v136
  %v153 = vadd.f32 %v152, %v141
  %v154 = vadd.f32 %v153, %v144
  %v155 = vrot.slane %v154, 4
  %v156 = vadd.f32 %v154, %v155
  %v157 = vrot.slane %v156, 2
  %v158 = vadd.f32 %v156, %v157
  %v159 = vrot.slane %v158, 1
  %v160 = vadd.f32 %v158, %v159
  %v161 = vadd.f32 %v151, %v160
  %162 = vst [vmem:[%s5] sm:$0x1] %v161
  %v163 = vld [vmem:[%s6] sm:$0x1]
  %v164 = vmul.f32 %v133, %v133
  %v165 = vmul.f32 %v136, %v136
  %v166 = vmul.f32 %v141, %v141
  %v167 = vmul.f32 %v144, %v144
  %v168 = vadd.f32 %v164, %v165
  %v169 = vadd.f32 %v168, %v166
  %v170 = vadd.f32 %v169, %v167
  %v171 = vrot.slane %v170, 4
  %v172 = vadd.f32 %v170, %v171
  %v173 = vrot.slane %v172, 2
  %v174 = vadd.f32 %v172, %v173
  %v175 = vrot.slane %v174, 1
  %v176 = vadd.f32 %v174, %v175
  %v177 = vadd.f32 %v163, %v176
  %178 = vst [vmem:[%s6] sm:$0x1] %v177
  // Predicated region
  $region22: #{mnet_forward.16} parent=0 // pred_check
    _
  $region23: #{mnet_forward.16} parent=0 // pred_check_branch
    %180 = sbr.rel (0) target = $region25
  $region24: #{mnet_forward.16} parent=0 // pred_region
    _
  $region25: #{mnet_forward.16} parent=0 // pred_fallthru
    _
  // Predicated region
  $region26: #{mnet_forward.16} parent=0 // pred_check
    _
  $region27: #{mnet_forward.16} parent=0 // pred_check_branch
    %182 = sbr.rel (0) target = $region29
  $region28: #{mnet_forward.16} parent=0 // pred_region
    _
  $region29: #{mnet_forward.16} parent=0 // pred_fallthru
    _
  // Predicated region
  $region30: #{mnet_forward.16} parent=0 // pred_check
    _
  $region31: #{mnet_forward.16} parent=0 // pred_check_branch
    %184 = sbr.rel (0) target = $region33
  $region32: #{mnet_forward.16} parent=0 // pred_region
    _
  $region33: #{mnet_forward.16} parent=0 // pred_fallthru
    _
  // Predicated region
  $region34: #{mnet_forward.16} parent=0 // pred_check
    _
  $region35: #{mnet_forward.16} parent=0 // pred_check_branch
    %186 = sbr.rel (0) target = $region37
  $region36: #{mnet_forward.16} parent=0 // pred_region
    _
  $region37: #{mnet_forward.16} parent=0 // pred_fallthru
    _
  // Predicated region
  $region38: #{mnet_forward.16} parent=0 // pred_check
    _
  $region39: #{mnet_forward.16} parent=0 // pred_check_branch
    %188 = sbr.rel (0) target = $region41
  $region40: #{mnet_forward.16} parent=0 // pred_region
    _
  $region41: #{mnet_forward.16} parent=0 // pred_fallthru
    _
  // Predicated region
  $region42: #{mnet_forward.16} parent=0 // pred_check
    _
  $region43: #{mnet_forward.16} parent=0 // pred_check_branch
    %190 = sbr.rel (0) target = $region45
  $region44: #{mnet_forward.16} parent=0 // pred_region
    _
  $region45: #{mnet_forward.16} parent=0 // pred_fallthru
    _

// kernel: mnet_forward.15
$region0: #{mnet_forward.15}
  #allocation0 [shape = 'u32[]', space=smem, size = 0x4, offset = 0x4, fixed_abs, tag = 'smem constant byte address 0x4 - core index']
  #allocation1 [shape = 'u32[144,128]{1,0:T(1,128)}', space=vmem, size = 0x12000, scoped, tag = 'internal scratch']
  %s0 = inlined_call_operand.vmem [shape: f32[1,64], index: 0, kind: input, shape index: {}]
  %s1 = inlined_call_operand.vmem [shape: f32[1,64], index: 1, kind: input, shape index: {}]
  %s2 = inlined_call_operand.vmem [shape: f32[2,4,5,5,64], index: 2, kind: input, shape index: {}]
  %s3 = inlined_call_operand.vmem [shape: f32[3,3,1,64], index: 3, kind: input, shape index: {}]
  %s4 = inlined_call_operand.vmem [shape: f32[2,4,4,64], index: 4, kind: output, shape index: {0}]
  %s5 = inlined_call_operand.vmem [shape: f32[1,64], index: 5, kind: output, shape index: {1}]
  %s6 = inlined_call_operand.vmem [shape: f32[1,64], index: 6, kind: output, shape index: {2}]
  %7 = xla_tuple %s4, %s5, %s6
  %s8 = sld [smem:[#allocation0]]
  $region69: #{mnet_forward.15} parent=0
    _
  %s10 = ssub.s32 1, %s8
  %s11 = scalar_select 0, %s10, %s8
  loop: start=0, step=1, limit=4
  $region2: #{mnet_forward.15} parent=0 // loop_pre_header
    _
  $region3: #{mnet_forward.15} parent=0 // loop_header
    %s13 = sphi 0, %s17
    %p14 = scmp.ge.s32.totalorder %s13, 4
    %s21 = sphi 0, %s21
    %s23 = sphi 0, %s21
    %s24 = sphi 0, %s23
    %s38 = sphi 0, %s24
    %s42 = sphi 0, %s42
    %s44 = sphi 0, %s42
    %s45 = sphi 0, %s44
    %s59 = sphi 0, %s45
    %s65 = sphi 0, %s67
    %s68 = sphi 0, %s65
    %s69 = sphi 0, %s68
    %s85 = sphi 0, %s69
    %s89 = sphi 0, %s89
    %s91 = sphi 0, %s89
    %s92 = sphi 0, %s91
    %s106 = sphi 0, %s92
    %s112 = sphi 0, %s114
    %s115 = sphi 0, %s112
    %s116 = sphi 0, %s115
    %s132 = sphi 0, %s116
    %s136 = sphi 0, %s136
    %s138 = sphi 0, %s136
    %s139 = sphi 0, %s138
    %s153 = sphi 0, %s139
    %s157 = sphi 0, %s157
    %s159 = sphi 0, %s157
    %s160 = sphi 0, %s159
    %s174 = sphi 0, %s160
  $region4: #{mnet_forward.15} parent=0 // loop_header_branch
    %16 = sbr.rel (%p14) target = $region8
  $region5: #{mnet_forward.15} parent=0 // loop_body
    %s18 = ssub.s32 %s13, 1
    %s19 = ssub.s32 %s13, 2
    %s20 = sadd.s32 %s13, 1
    %s22 = sadd.s32 %s21, 1
    %p25 = scmp.eq.s32.totalorder %s13, 1
    %p26 = scmp.ne.s32.totalorder %s21, %s23
    %p27 = scmp.eq.s32.totalorder %s13, 0
    %p28 = por %p26, %p27
    %p29 = scmp.ne.s32.totalorder %s21, %s23
    %p30 = scmp.eq.s32.totalorder %s18, 1
    %p31 = por %p29, %p30
    %p32 = scmp.ne.s32.totalorder %s23, %s24
    %p33 = scmp.eq.s32.totalorder %s18, 0
    %p34 = por %p32, %p33
    %p35 = scmp.ne.s32.totalorder %s23, %s24
    %p36 = scmp.eq.s32.totalorder %s19, 1
    %p37 = por %p35, %p36
    %p39 = scmp.ne.s32.totalorder %s24, %s38
    %p40 = scmp.eq.s32.totalorder %s19, 0
    %p41 = por %p39, %p40
    %s43 = sadd.s32 %s42, 1
    %p46 = scmp.eq.s32.totalorder %s13, 1
    %p47 = scmp.ne.s32.totalorder %s42, %s44
    %p48 = scmp.eq.s32.totalorder %s13, 0
    %p49 = por %p47, %p48
    %p50 = scmp.ne.s32.totalorder %s42, %s44
    %p51 = scmp.eq.s32.totalorder %s18, 1
    %p52 = por %p50, %p51
    %p53 = scmp.ne.s32.totalorder %s44, %s45
    %p54 = scmp.eq.s32.totalorder %s18, 0
    %p55 = por %p53, %p54
    %p56 = scmp.ne.s32.totalorder %s44, %s45
    %p57 = scmp.eq.s32.totalorder %s19, 1
    %p58 = por %p56, %p57
    %p60 = scmp.ne.s32.totalorder %s45, %s59
    %p61 = scmp.eq.s32.totalorder %s19, 0
    %p62 = por %p60, %p61
    %s63 = ssub.s32 %s13, %s20
    %p64 = scmp.eq.s32.totalorder %s63, 0
    %s66 = sadd.s32 %s65, 1
    %s67 = scalar_select %p64, %s65, %s66
    %p70 = pneg %p64
    %p71 = scmp.eq.s32.totalorder %s13, 1
    %p72 = por %p70, %p71
    %p73 = scmp.ne.s32.totalorder %s65, %s68
    %p74 = scmp.eq.s32.totalorder %s13, 0
    %p75 = por %p73, %p74
    %p76 = scmp.ne.s32.totalorder %s65, %s68
    %p77 = scmp.eq.s32.totalorder %s18, 1
    %p78 = por %p76, %p77
    %p79 = scmp.ne.s32.totalorder %s68, %s69
    %p80 = scmp.eq.s32.totalorder %s18, 0
    %p81 = por %p79, %p80
    %p82 = scmp.ne.s32.totalorder %s68, %s69
    %p83 = scmp.eq.s32.totalorder %s19, 1
    %p84 = por %p82, %p83
    %p86 = scmp.ne.s32.totalorder %s69, %s85
    %p87 = scmp.eq.s32.totalorder %s19, 0
    %p88 = por %p86, %p87
    %s90 = sadd.s32 %s89, 1
    %p93 = scmp.eq.s32.totalorder %s13, 1
    %p94 = scmp.ne.s32.totalorder %s89, %s91
    %p95 = scmp.eq.s32.totalorder %s13, 0
    %p96 = por %p94, %p95
    %p97 = scmp.ne.s32.totalorder %s89, %s91
    %p98 = scmp.eq.s32.totalorder %s18, 1
    %p99 = por %p97, %p98
    %p100 = scmp.ne.s32.totalorder %s91, %s92
    %p101 = scmp.eq.s32.totalorder %s18, 0
    %p102 = por %p100, %p101
    %p103 = scmp.ne.s32.totalorder %s91, %s92
    %p104 = scmp.eq.s32.totalorder %s19, 1
    %p105 = por %p103, %p104
    %p107 = scmp.ne.s32.totalorder %s92, %s106
    %p108 = scmp.eq.s32.totalorder %s19, 0
    %p109 = por %p107, %p108
    %s110 = ssub.s32 %s13, %s20
    %p111 = scmp.eq.s32.totalorder %s110, 0
    %s113 = sadd.s32 %s112, 1
    %s114 = scalar_select %p111, %s112, %s113
    %p117 = pneg %p111
    %p118 = scmp.eq.s32.totalorder %s13, 1
    %p119 = por %p117, %p118
    %p120 = scmp.ne.s32.totalorder %s112, %s115
    %p121 = scmp.eq.s32.totalorder %s13, 0
    %p122 = por %p120, %p121
    %p123 = scmp.ne.s32.totalorder %s112, %s115
    %p124 = scmp.eq.s32.totalorder %s18, 1
    %p125 = por %p123, %p124
    %p126 = scmp.ne.s32.totalorder %s115, %s116
    %p127 = scmp.eq.s32.totalorder %s18, 0
    %p128 = por %p126, %p127
    %p129 = scmp.ne.s32.totalorder %s115, %s116
    %p130 = scmp.eq.s32.totalorder %s19, 1
    %p131 = por %p129, %p130
    %p133 = scmp.ne.s32.totalorder %s116, %s132
    %p134 = scmp.eq.s32.totalorder %s19, 0
    %p135 = por %p133, %p134
    %s137 = sadd.s32 %s136, 1
    %p140 = scmp.eq.s32.totalorder %s13, 1
    %p141 = scmp.ne.s32.totalorder %s136, %s138
    %p142 = scmp.eq.s32.totalorder %s13, 0
    %p143 = por %p141, %p142
    %p144 = scmp.ne.s32.totalorder %s136, %s138
    %p145 = scmp.eq.s32.totalorder %s18, 1
    %p146 = por %p144, %p145
    %p147 = scmp.ne.s32.totalorder %s138, %s139
    %p148 = scmp.eq.s32.totalorder %s18, 0
    %p149 = por %p147, %p148
    %p150 = scmp.ne.s32.totalorder %s138, %s139
    %p151 = scmp.eq.s32.totalorder %s19, 1
    %p152 = por %p150, %p151
    %p154 = scmp.ne.s32.totalorder %s139, %s153
    %p155 = scmp.eq.s32.totalorder %s19, 0
    %p156 = por %p154, %p155
    %s158 = sadd.s32 %s157, 1
    %p161 = scmp.eq.s32.totalorder %s13, 1
    %p162 = scmp.ne.s32.totalorder %s157, %s159
    %p163 = scmp.eq.s32.totalorder %s13, 0
    %p164 = por %p162, %p163
    %p165 = scmp.ne.s32.totalorder %s157, %s159
    %p166 = scmp.eq.s32.totalorder %s18, 1
    %p167 = por %p165, %p166
    %p168 = scmp.ne.s32.totalorder %s159, %s160
    %p169 = scmp.eq.s32.totalorder %s18, 0
    %p170 = por %p168, %p169
    %p171 = scmp.ne.s32.totalorder %s159, %s160
    %p172 = scmp.eq.s32.totalorder %s19, 1
    %p173 = por %p171, %p172
    %p175 = scmp.ne.s32.totalorder %s160, %s174
    %p176 = scmp.eq.s32.totalorder %s19, 0
    %p177 = por %p175, %p176
    %p178 = scmp.le.s32.totalorder 1, %s13
    %p179 = scmp.lt.s32.totalorder %s13, 3
    %p180 = pnand %p178, %p179
    %p181 = pneg %p180
    // Predicated region
    $region9: #{mnet_forward.15} parent=5 // pred_check
      _
    $region10: #{mnet_forward.15} parent=5 // pred_check_branch
      %183 = sbr.rel (%p180) target = $region12
    $region11: #{mnet_forward.15} parent=5 // pred_region
      %s184 = ssub.s32 %s13, 1
      // Predicated region
      $region13: #{mnet_forward.15} parent=11 // pred_check
        %p185 = pneg %p34
      $region14: #{mnet_forward.15} parent=11 // pred_check_branch
        %187 = sbr.rel (%p185) target = $region16
      $region15: #{mnet_forward.15} parent=11 // pred_region
        _
      $region16: #{mnet_forward.15} parent=11 // pred_fallthru
        _
      // Predicated region
      $region17: #{mnet_forward.15} parent=11 // pred_check
        %p188 = pneg %p55
      $region18: #{mnet_forward.15} parent=11 // pred_check_branch
        %190 = sbr.rel (%p188) target = $region20
      $region19: #{mnet_forward.15} parent=11 // pred_region
        _
      $region20: #{mnet_forward.15} parent=11 // pred_fallthru
        _
      // Predicated region
      $region21: #{mnet_forward.15} parent=11 // pred_check
        %p191 = pneg %p102
      $region22: #{mnet_forward.15} parent=11 // pred_check_branch
        %193 = sbr.rel (%p191) target = $region24
      $region23: #{mnet_forward.15} parent=11 // pred_region
        _
      $region24: #{mnet_forward.15} parent=11 // pred_fallthru
        _
    $region12: #{mnet_forward.15} parent=5 // pred_fallthru
      _
    %p194 = scmp.lt.s32.totalorder %s13, 2
    // Predicated region
    $region25: #{mnet_forward.15} parent=5 // pred_check
      %p195 = pneg %p194
    $region26: #{mnet_forward.15} parent=5 // pred_check_branch
      %197 = sbr.rel (%p195) target = $region28
    $region27: #{mnet_forward.15} parent=5 // pred_region
      // Predicated region
      $region29: #{mnet_forward.15} parent=27 // pred_check
        %p198 = pneg %p75
      $region30: #{mnet_forward.15} parent=27 // pred_check_branch
        %200 = sbr.rel (%p198) target = $region32
      $region31: #{mnet_forward.15} parent=27 // pred_region
        %p201 = scmp.lt.s32.totalorder %s13, 1
        %s202 = scalar_select %p201, %s13, 1
        %s203 = smul.addr %s202, 20
        %s204 = smul.addr %s203, 8
        %s205 = scalar_lea.vmem %s2, %s204
      $region32: #{mnet_forward.15} parent=27 // pred_fallthru
        _
    $region28: #{mnet_forward.15} parent=5 // pred_fallthru
      _
    %p206 = scmp.le.s32.totalorder 1, %s13
    %p207 = scmp.lt.s32.totalorder %s13, 3
    %p208 = pnand %p206, %p207
    %p209 = pneg %p208
    // Predicated region
    $region33: #{mnet_forward.15} parent=5 // pred_check
      _
    $region34: #{mnet_forward.15} parent=5 // pred_check_branch
      %211 = sbr.rel (%p208) target = $region36
    $region35: #{mnet_forward.15} parent=5 // pred_region
      %s212 = ssub.s32 %s13, 1
      %p213 = pneg %p34
      %p214 = pneg %p31
      %p215 = pneg %p55
      %p216 = pneg %p52
      %p217 = scmp.lt.s32.totalorder %s18, 1
      %s218 = scalar_select %p217, %s18, 1
      %s219 = smul.addr %s218, 20
      %s220 = smul.addr %s219, 8
      %s221 = scalar_lea.vmem %s2, %s220
      %p222 = pneg %p81
      %p223 = pneg %p78
      %p224 = pneg %p102
      %p225 = pneg %p99
      %p226 = pneg %p128
      %p227 = pneg %p125
      %p228 = scmp.lt.s32.totalorder %s18, 1
      %s229 = scalar_select %p228, %s18, 1
      %s230 = smul.addr %s229, 4
      %s231 = smul.addr %s230, 4
      %s232 = scalar_lea.vmem %s4, %s231
      %p233 = pneg %p149
      %p234 = pneg %p146
      %p235 = pneg %p170
      %p236 = pneg %p167
      %p237 = scmp.lt.s32.totalorder %s18, 1
      %s238 = scalar_select %p237, %s18, 1
      %s239 = smul.addr %s238, 20
      %s240 = smul.addr %s239, 8
      %s241 = scalar_lea.vmem %s2, %s240
      %p242 = scmp.lt.s32.totalorder %s18, 1
      %s243 = scalar_select %p242, %s18, 1
      %s244 = smul.addr %s243, 4
      %s245 = smul.addr %s244, 4
      %s246 = scalar_lea.vmem %s4, %s245
      %p247 = scmp.eq.s32.totalorder %s18, 0
      // Predicated region
      $region37: #{mnet_forward.15} parent=35 // pred_check
        %p248 = pneg %p247
      $region38: #{mnet_forward.15} parent=35 // pred_check_branch
        %250 = sbr.rel (%p248) target = $region40
      $region39: #{mnet_forward.15} parent=35 // pred_region
        %vm251 = vcmask 516096
        %252 = vst.msk [vmem:[%s5] sm:$0x1] %vm251, 0.0
        %253 = vst.msk [vmem:[%s6] sm:$0x1] %vm251, 0.0
      $region40: #{mnet_forward.15} parent=35 // pred_fallthru
        _
      %v254 = vld [vmem:[%s0] sm:$0x1]
      %v255 = vld [vmem:[%s1] sm:$0x1]
      %v256 = vlaneseq
      %v257 = vshrl.u32 %v256, 7
      %v258 = vmul.u32 %v257, 2
      %vm259 = vcmp.ge.s32.totalorder %v258, 1
      %vm260 = vmand 0, %vm259
      %vm261 = vmand 1, %vm259
      %vm262 = vcmp.le.s32.totalorder %v258, 8
      %vm263 = vmand %vm260, %vm262
      %vm264 = vmand %vm261, %vm262
      %v265 = vld [vmem:[%s241] sm:$0x1f]
      %v266 = vld [vmem:[%s241 + $0x8] sm:$0x1f]
      %v267 = vld [vmem:[%s241 + $0x10] sm:$0x1f]
      %v268 = vld [vmem:[%s241 + $0x18] sm:$0x1f]
      %v269 = vld [vmem:[%s241 + $0x20] sm:$0x1f]
      %v271 = vlaneseq
      %v272 = vshrl.u32 %v271, 7
      %v273 = vsub.s32 0, %v272
      %v274 = vrot.slane %v254, %v273
      %v276 = vmul.f32 %v265, %v274
      %v277 = vmul.f32 %v266, %v274
      %v278 = vmul.f32 %v267, %v274
      %v279 = vmul.f32 %v268, %v274
      %v280 = vmul.f32 %v269, %v274
      %v282 = vlaneseq
      %v283 = vshrl.u32 %v282, 7
      %v284 = vsub.s32 0, %v283
      %v285 = vrot.slane %v255, %v284
      %v287 = vadd.f32 %v276, %v285
      %v288 = vadd.f32 %v277, %v285
      %v289 = vadd.f32 %v278, %v285
      %v290 = vadd.f32 %v279, %v285
      %v291 = vadd.f32 %v280, %v285
      %v292 = vmax.f32 %v287, 0.0
      %v293 = vmax.f32 %v288, 0.0
      %v294 = vmax.f32 %v289, 0.0
      %v295 = vmax.f32 %v290, 0.0
      %v296 = vmax.f32 %v291, 0.0
      %v297 = vsel %vm263, 1, 0
      %v298 = vsel %vm264, 1, 0
      %v299 = vcvt.s32.f32 %v297
      %v300 = vcvt.s32.f32 %v298
      %v301 = vmul.f32 %v292, %v299
      %v302 = vmul.f32 %v293, %v300
      %v303 = vmul.f32 %v294, %v300
      %v304 = vmul.f32 %v295, %v300
      %v305 = vmul.f32 %v296, %v300
      %v306 = vadd.s32 %v258, 1
      %vm307 = vcmp.ge.s32.totalorder %v306, 1
      %vm308 = vmand 0, %vm307
      %vm309 = vmand 1, %vm307
      %vm310 = vcmp.le.s32.totalorder %v306, 8
      %vm311 = vmand %vm308, %vm310
      %vm312 = vmand %vm309, %vm310
      %s313 = scalar_lea.vmem %s241, 40
      %v314 = vld [vmem:[%s313] sm:$0x1f]
      %v315 = vld [vmem:[%s313 + $0x8] sm:$0x1f]
      %v316 = vld [vmem:[%s313 + $0x10] sm:$0x1f]
      %v317 = vld [vmem:[%s313 + $0x18] sm:$0x1f]
      %v318 = vld [vmem:[%s313 + $0x20] sm:$0x1f]
      %v319 = vmul.f32 %v314, %v274
      %v320 = vmul.f32 %v315, %v274
      %v321 = vmul.f32 %v316, %v274
      %v322 = vmul.f32 %v317, %v274
      %v323 = vmul.f32 %v318, %v274
      %v324 = vadd.f32 %v319, %v285
      %v325 = vadd.f32 %v320, %v285
      %v326 = vadd.f32 %v321, %v285
      %v327 = vadd.f32 %v322, %v285
      %v328 = vadd.f32 %v323, %v285
      %v329 = vmax.f32 %v324, 0.0
      %v330 = vmax.f32 %v325, 0.0
      %v331 = vmax.f32 %v326, 0.0
      %v332 = vmax.f32 %v327, 0.0
      %v333 = vmax.f32 %v328, 0.0
      %v334 = vsel %vm311, 1, 0
      %v335 = vsel %vm312, 1, 0
      %v336 = vcvt.s32.f32 %v334
      %v337 = vcvt.s32.f32 %v335
      %v338 = vmul.f32 %v329, %v336
      %v339 = vmul.f32 %v330, %v337
      %v340 = vmul.f32 %v331, %v337
      %v341 = vmul.f32 %v332, %v337
      %v342 = vmul.f32 %v333, %v337
      %s343 = scalar_lea.vmem %s241, 80
      %v344 = vld [vmem:[%s343] sm:$0x1f]
      %v345 = vld [vmem:[%s343 + $0x8] sm:$0x1f]
      %v346 = vld [vmem:[%s343 + $0x10] sm:$0x1f]
      %v347 = vld [vmem:[%s343 + $0x18] sm:$0x1f]
      %v348 = vmul.f32 %v344, %v274
      %v349 = vmul.f32 %v345, %v274
      %v350 = vmul.f32 %v346, %v274
      %v351 = vmul.f32 %v347, %v274
      %v352 = vadd.f32 %v348, %v285
      %v353 = vadd.f32 %v349, %v285
      %v354 = vadd.f32 %v350, %v285
      %v355 = vadd.f32 %v351, %v285
      %v356 = vmax.f32 %v352, 0.0
      %v357 = vmax.f32 %v353, 0.0
      %v358 = vmax.f32 %v354, 0.0
      %v359 = vmax.f32 %v355, 0.0
      %v360 = vmul.f32 %v356, %v300
      %v361 = vmul.f32 %v357, %v300
      %v362 = vmul.f32 %v358, %v300
      %v363 = vmul.f32 %v359, %v300
      %s364 = scalar_lea.vmem %s241, 120
      %v365 = vld [vmem:[%s364] sm:$0x1f]
      %v366 = vld [vmem:[%s364 + $0x8] sm:$0x1f]
      %v367 = vld [vmem:[%s364 + $0x10] sm:$0x1f]
      %v368 = vld [vmem:[%s364 + $0x18] sm:$0x1f]
      %v369 = vmul.f32 %v365, %v274
      %v370 = vmul.f32 %v366, %v274
      %v371 = vmul.f32 %v367, %v274
      %v372 = vmul.f32 %v368, %v274
      %v373 = vadd.f32 %v369, %v285
      %v374 = vadd.f32 %v370, %v285
      %v375 = vadd.f32 %v371, %v285
      %v376 = vadd.f32 %v372, %v285
      %v377 = vmax.f32 %v373, 0.0
      %v378 = vmax.f32 %v374, 0.0
      %v379 = vmax.f32 %v375, 0.0
      %v380 = vmax.f32 %v376, 0.0
      %v381 = vmul.f32 %v377, %v337
      %v382 = vmul.f32 %v378, %v337
      %v383 = vmul.f32 %v379, %v337
      %v384 = vmul.f32 %v380, %v337
      %v385 = vld [vmem:[%s3] sm:$0x1]
      %v387 = vlaneseq
      %v388 = vshrl.u32 %v387, 7
      %v389 = vsub.s32 0, %v388
      %v390 = vrot.slane %v385, %v389
      %v392 = vmul.f32 %v301, %v390
      %v393 = vmul.f32 %v302, %v390
      %v394 = vmul.f32 %v303, %v390
      %v395 = vmul.f32 %v304, %v390
      %v396 = vadd.f32 %v392, 0.0
      %v397 = vadd.f32 %v393, 0.0
      %v398 = vadd.f32 %v394, 0.0
      %v399 = vadd.f32 %v395, 0.0
      %s400 = scalar_lea.vmem %s3, 1
      %v401 = vld [vmem:[%s400] sm:$0x1]
      %v403 = vlaneseq
      %v404 = vshrl.u32 %v403, 7
      %v405 = vsub.s32 0, %v404
      %v406 = vrot.slane %v401, %v405
      %v408 = vmul.f32 %v338, %v406
      %v409 = vmul.f32 %v339, %v406
      %v410 = vmul.f32 %v340, %v406
      %v411 = vmul.f32 %v341, %v406
      %v412 = vadd.f32 %v396, %v408
      %v413 = vadd.f32 %v397, %v409
      %v414 = vadd.f32 %v398, %v410
      %v415 = vadd.f32 %v399, %v411
      %s416 = scalar_lea.vmem %s3, 2
      %v417 = vld [vmem:[%s416] sm:$0x1]
      %v419 = vlaneseq
      %v420 = vshrl.u32 %v419, 7
      %v421 = vsub.s32 0, %v420
      %v422 = vrot.slane %v417, %v421
      %v424 = vmul.f32 %v301, %v422
      %v425 = vmul.f32 %v302, %v422
      %v426 = vmul.f32 %v303, %v422
      %v427 = vmul.f32 %v304, %v422
      %v432 = vrot.slane %v424, 1
      %v433 = vrot.slane %v425, 1
      %v434 = vrot.slane %v426, 1
      %v435 = vrot.slane %v427, 1
      %v440 = vadd.f32 %v412, %v432
      %v441 = vadd.f32 %v413, %v433
      %v442 = vadd.f32 %v414, %v434
      %v443 = vadd.f32 %v415, %v435
      %s444 = scalar_lea.vmem %s3, 3
      %v445 = vld [vmem:[%s444] sm:$0x1]
      %v447 = vlaneseq
      %v448 = vshrl.u32 %v447, 7
      %v449 = vsub.s32 0, %v448
      %v450 = vrot.slane %v445, %v449
      %v452 = vmul.f32 %v360, %v450
      %v453 = vmul.f32 %v361, %v450
      %v454 = vmul.f32 %v362, %v450
      %v455 = vmul.f32 %v363, %v450
      %v456 = vadd.f32 %v440, %v452
      %v457 = vadd.f32 %v441, %v453
      %v458 = vadd.f32 %v442, %v454
      %v459 = vadd.f32 %v443, %v455
      %s460 = scalar_lea.vmem %s3, 4
      %v461 = vld [vmem:[%s460] sm:$0x1]
      %v463 = vlaneseq
      %v464 = vshrl.u32 %v463, 7
      %v465 = vsub.s32 0, %v464
      %v466 = vrot.slane %v461, %v465
      %v468 = vmul.f32 %v381, %v466
      %v469 = vmul.f32 %v382, %v466
      %v470 = vmul.f32 %v383, %v466
      %v471 = vmul.f32 %v384, %v466
      %v472 = vadd.f32 %v456, %v468
      %v473 = vadd.f32 %v457, %v469
      %v474 = vadd.f32 %v458, %v470
      %v475 = vadd.f32 %v459, %v471
      %s476 = scalar_lea.vmem %s3, 5
      %v477 = vld [vmem:[%s476] sm:$0x1]
      %v479 = vlaneseq
      %v480 = vshrl.u32 %v479, 7
      %v481 = vsub.s32 0, %v480
      %v482 = vrot.slane %v477, %v481
      %v484 = vmul.f32 %v360, %v482
      %v485 = vmul.f32 %v361, %v482
      %v486 = vmul.f32 %v362, %v482
      %v487 = vmul.f32 %v363, %v482
      %v492 = vrot.slane %v484, 1
      %v493 = vrot.slane %v485, 1
      %v494 = vrot.slane %v486, 1
      %v495 = vrot.slane %v487, 1
      %v500 = vadd.f32 %v472, %v492
      %v501 = vadd.f32 %v473, %v493
      %v502 = vadd.f32 %v474, %v494
      %v503 = vadd.f32 %v475, %v495
      %s504 = scalar_lea.vmem %s3, 6
      %v505 = vld [vmem:[%s504] sm:$0x1]
      %v507 = vlaneseq
      %v508 = vshrl.u32 %v507, 7
      %v509 = vsub.s32 0, %v508
      %v510 = vrot.slane %v505, %v509
      %v512 = vmul.f32 %v302, %v510
      %v513 = vmul.f32 %v303, %v510
      %v514 = vmul.f32 %v304, %v510
      %v515 = vmul.f32 %v305, %v510
      %v516 = vadd.f32 %v500, %v512
      %v517 = vadd.f32 %v501, %v513
      %v518 = vadd.f32 %v502, %v514
      %v519 = vadd.f32 %v503, %v515
      %s520 = scalar_lea.vmem %s3, 7
      %v521 = vld [vmem:[%s520] sm:$0x1]
      %v523 = vlaneseq
      %v524 = vshrl.u32 %v523, 7
      %v525 = vsub.s32 0, %v524
      %v526 = vrot.slane %v521, %v525
      %v528 = vmul.f32 %v339, %v526
      %v529 = vmul.f32 %v340, %v526
      %v530 = vmul.f32 %v341, %v526
      %v531 = vmul.f32 %v342, %v526
      %v532 = vadd.f32 %v516, %v528
      %v533 = vadd.f32 %v517, %v529
      %v534 = vadd.f32 %v518, %v530
      %v535 = vadd.f32 %v519, %v531
      %s536 = scalar_lea.vmem %s3, 8
      %v537 = vld [vmem:[%s536] sm:$0x1]
      %v539 = vlaneseq
      %v540 = vshrl.u32 %v539, 7
      %v541 = vsub.s32 0, %v540
      %v542 = vrot.slane %v537, %v541
      %v544 = vmul.f32 %v302, %v542
      %v545 = vmul.f32 %v303, %v542
      %v546 = vmul.f32 %v304, %v542
      %v547 = vmul.f32 %v305, %v542
      %v552 = vrot.slane %v544, 1
      %v553 = vrot.slane %v545, 1
      %v554 = vrot.slane %v546, 1
      %v555 = vrot.slane %v547, 1
      %v560 = vadd.f32 %v532, %v552
      %v561 = vadd.f32 %v533, %v553
      %v562 = vadd.f32 %v534, %v554
      %v563 = vadd.f32 %v535, %v555
      %vm564 = vcmask 519168
      %565 = vst.msk [vmem:[%s246] sm:$0xf] %vm564, %v560
      %566 = vst.msk [vmem:[%s246 + $0x4] sm:$0xf] %vm564, %v561
      %567 = vst.msk [vmem:[%s246 + $0x8] sm:$0xf] %vm564, %v562
      %568 = vst.msk [vmem:[%s246 + $0xc] sm:$0xf] %vm564, %v563
      %v569 = vld [vmem:[%s5] sm:$0x1]
      %v570 = vsel %vm564, %v560, 0.0
      %v571 = vsel %vm564, %v561, 0.0
      %v572 = vadd.f32 %v570, %v571
      %v573 = vsel %vm564, %v562, 0.0
      %v574 = vadd.f32 %v572, %v573
      %v575 = vsel %vm564, %v563, 0.0
      %v576 = vadd.f32 %v574, %v575
      %v577 = vsel %vm564, %v576, 0.0
      %v578 = vrot.slane %v577, 4
      %v579 = vadd.f32 %v577, %v578
      %v580 = vrot.slane %v579, 2
      %v581 = vadd.f32 %v579, %v580
      %v582 = vrot.slane %v581, 1
      %v583 = vadd.f32 %v581, %v582
      %v584 = vadd.f32 %v569, %v583
      %vm585 = vcmask 516096
      %586 = vst.msk [vmem:[%s5] sm:$0x1] %vm585, %v584
      %v587 = vld [vmem:[%s6] sm:$0x1]
      %v588 = vmul.f32 %v560, %v560
      %v589 = vmul.f32 %v561, %v561
      %v590 = vmul.f32 %v562, %v562
      %v591 = vmul.f32 %v563, %v563
      %v592 = vsel %vm564, %v588, 0.0
      %v593 = vsel %vm564, %v589, 0.0
      %v594 = vadd.f32 %v592, %v593
      %v595 = vsel %vm564, %v590, 0.0
      %v596 = vadd.f32 %v594, %v595
      %v597 = vsel %vm564, %v591, 0.0
      %v598 = vadd.f32 %v596, %v597
      %v599 = vsel %vm564, %v598, 0.0
      %v600 = vrot.slane %v599, 4
      %v601 = vadd.f32 %v599, %v600
      %v602 = vrot.slane %v601, 2
      %v603 = vadd.f32 %v601, %v602
      %v604 = vrot.slane %v603, 1
      %v605 = vadd.f32 %v603, %v604
      %v606 = vadd.f32 %v587, %v605
      %607 = vst.msk [vmem:[%s6] sm:$0x1] %vm585, %v606
      %p608 = scmp.lt.s32.totalorder %s18, 1
      %s609 = scalar_select %p608, %s18, 1
      %s610 = smul.addr %s609, 4
      %s611 = smul.addr %s610, 4
      %s612 = scalar_lea.vmem %s4, %s611
      // Predicated region
      $region41: #{mnet_forward.15} parent=35 // pred_check
        %p613 = pneg %p125
      $region42: #{mnet_forward.15} parent=35 // pred_check_branch
        %615 = sbr.rel (%p613) target = $region44
      $region43: #{mnet_forward.15} parent=35 // pred_region
        _
      $region44: #{mnet_forward.15} parent=35 // pred_fallthru
        _
      // Predicated region
      $region45: #{mnet_forward.15} parent=35 // pred_check
        %p616 = pneg %p146
      $region46: #{mnet_forward.15} parent=35 // pred_check_branch
        %618 = sbr.rel (%p616) target = $region48
      $region47: #{mnet_forward.15} parent=35 // pred_region
        _
      $region48: #{mnet_forward.15} parent=35 // pred_fallthru
        _
      // Predicated region
      $region49: #{mnet_forward.15} parent=35 // pred_check
        %p619 = pneg %p167
      $region50: #{mnet_forward.15} parent=35 // pred_check_branch
        %621 = sbr.rel (%p619) target = $region52
      $region51: #{mnet_forward.15} parent=35 // pred_region
        _
      $region52: #{mnet_forward.15} parent=35 // pred_fallthru
        _
      // Predicated region
      $region53: #{mnet_forward.15} parent=35 // pred_check
        %p622 = pneg %p146
      $region54: #{mnet_forward.15} parent=35 // pred_check_branch
        %624 = sbr.rel (%p622) target = $region56
      $region55: #{mnet_forward.15} parent=35 // pred_region
        _
      $region56: #{mnet_forward.15} parent=35 // pred_fallthru
        _
      // Predicated region
      $region57: #{mnet_forward.15} parent=35 // pred_check
        %p625 = pneg %p167
      $region58: #{mnet_forward.15} parent=35 // pred_check_branch
        %627 = sbr.rel (%p625) target = $region60
      $region59: #{mnet_forward.15} parent=35 // pred_region
        _
      $region60: #{mnet_forward.15} parent=35 // pred_fallthru
        _
    $region36: #{mnet_forward.15} parent=5 // pred_fallthru
      _
    %p628 = scmp.le.s32.totalorder 2, %s13
    // Predicated region
    $region61: #{mnet_forward.15} parent=5 // pred_check
      %p629 = pneg %p628
    $region62: #{mnet_forward.15} parent=5 // pred_check_branch
      %631 = sbr.rel (%p629) target = $region64
    $region63: #{mnet_forward.15} parent=5 // pred_region
      %s632 = ssub.s32 %s13, 2
      // Predicated region
      $region65: #{mnet_forward.15} parent=63 // pred_check
        %p633 = pneg %p131
      $region66: #{mnet_forward.15} parent=63 // pred_check_branch
        %635 = sbr.rel (%p633) target = $region68
      $region67: #{mnet_forward.15} parent=63 // pred_region
        %p636 = scmp.lt.s32.totalorder %s19, 1
        %s637 = scalar_select %p636, %s19, 1
        %s638 = smul.addr %s637, 4
        %s639 = smul.addr %s638, 4
        %s640 = scalar_lea.vmem %s4, %s639
      $region68: #{mnet_forward.15} parent=63 // pred_fallthru
        _
    $region64: #{mnet_forward.15} parent=5 // pred_fallthru
      _
  $region6: #{mnet_forward.15} parent=0 // loop_footer
    %s17 = sadd.s32 1, %s13
  $region7: #{mnet_forward.15} parent=0 // loop_footer_branch
    %12 = sbr.rel target = $region3
  $region8: #{mnet_forward.15} parent=0 // loop_exit
    _

// kernel: mnet_forward.17
$region0: #{mnet_forward.17}
  #allocation0 [shape = 'u32[]', space=smem, size = 0x4, offset = 0x4, fixed_abs, tag = 'smem constant byte address 0x4 - core index']
  #allocation1 [shape = 'u32[144,128]{1,0:T(1,128)}', space=vmem, size = 0x12000, scoped, tag = 'internal scratch']
  %s0 = inlined_call_operand.vmem [shape: f32[1,128], index: 0, kind: input, shape index: {}]
  %s1 = inlined_call_operand.vmem [shape: f32[1,128], index: 1, kind: input, shape index: {}]
  %s2 = inlined_call_operand.vmem [shape: f32[2,4,3,3,128], index: 2, kind: input, shape index: {}]
  %s3 = inlined_call_operand.vmem [shape: f32[3,3,1,128], index: 3, kind: input, shape index: {}]
  %s4 = inlined_call_operand.vmem [shape: f32[2,2,2,128], index: 4, kind: output, shape index: {0}]
  %s5 = inlined_call_operand.vmem [shape: f32[1,128], index: 5, kind: output, shape index: {1}]
  %s6 = inlined_call_operand.vmem [shape: f32[1,128], index: 6, kind: output, shape index: {2}]
  %7 = xla_tuple %s4, %s5, %s6
  %s8 = sld [smem:[#allocation0]]
  $region69: #{mnet_forward.17} parent=0
    _
  %s10 = ssub.s32 1, %s8
  %s11 = scalar_select 0, %s10, %s8
  loop: start=0, step=1, limit=4
  $region2: #{mnet_forward.17} parent=0 // loop_pre_header
    _
  $region3: #{mnet_forward.17} parent=0 // loop_header
    %s13 = sphi 0, %s17
    %p14 = scmp.ge.s32.totalorder %s13, 4
    %s21 = sphi 0, %s21
    %s23 = sphi 0, %s21
    %s24 = sphi 0, %s23
    %s38 = sphi 0, %s24
    %s42 = sphi 0, %s42
    %s44 = sphi 0, %s42
    %s45 = sphi 0, %s44
    %s59 = sphi 0, %s45
    %s65 = sphi 0, %s67
    %s68 = sphi 0, %s65
    %s69 = sphi 0, %s68
    %s85 = sphi 0, %s69
    %s89 = sphi 0, %s89
    %s91 = sphi 0, %s89
    %s92 = sphi 0, %s91
    %s106 = sphi 0, %s92
    %s112 = sphi 0, %s114
    %s115 = sphi 0, %s112
    %s116 = sphi 0, %s115
    %s132 = sphi 0, %s116
    %s136 = sphi 0, %s136
    %s138 = sphi 0, %s136
    %s139 = sphi 0, %s138
    %s153 = sphi 0, %s139
    %s157 = sphi 0, %s157
    %s159 = sphi 0, %s157
    %s160 = sphi 0, %s159
    %s174 = sphi 0, %s160
  $region4: #{mnet_forward.17} parent=0 // loop_header_branch
    %16 = sbr.rel (%p14) target = $region8
  $region5: #{mnet_forward.17} parent=0 // loop_body
    %s18 = ssub.s32 %s13, 1
    %s19 = ssub.s32 %s13, 2
    %s20 = sadd.s32 %s13, 1
    %s22 = sadd.s32 %s21, 1
    %p25 = scmp.eq.s32.totalorder %s13, 1
    %p26 = scmp.ne.s32.totalorder %s21, %s23
    %p27 = scmp.eq.s32.totalorder %s13, 0
    %p28 = por %p26, %p27
    %p29 = scmp.ne.s32.totalorder %s21, %s23
    %p30 = scmp.eq.s32.totalorder %s18, 1
    %p31 = por %p29, %p30
    %p32 = scmp.ne.s32.totalorder %s23, %s24
    %p33 = scmp.eq.s32.totalorder %s18, 0
    %p34 = por %p32, %p33
    %p35 = scmp.ne.s32.totalorder %s23, %s24
    %p36 = scmp.eq.s32.totalorder %s19, 1
    %p37 = por %p35, %p36
    %p39 = scmp.ne.s32.totalorder %s24, %s38
    %p40 = scmp.eq.s32.totalorder %s19, 0
    %p41 = por %p39, %p40
    %s43 = sadd.s32 %s42, 1
    %p46 = scmp.eq.s32.totalorder %s13, 1
    %p47 = scmp.ne.s32.totalorder %s42, %s44
    %p48 = scmp.eq.s32.totalorder %s13, 0
    %p49 = por %p47, %p48
    %p50 = scmp.ne.s32.totalorder %s42, %s44
    %p51 = scmp.eq.s32.totalorder %s18, 1
    %p52 = por %p50, %p51
    %p53 = scmp.ne.s32.totalorder %s44, %s45
    %p54 = scmp.eq.s32.totalorder %s18, 0
    %p55 = por %p53, %p54
    %p56 = scmp.ne.s32.totalorder %s44, %s45
    %p57 = scmp.eq.s32.totalorder %s19, 1
    %p58 = por %p56, %p57
    %p60 = scmp.ne.s32.totalorder %s45, %s59
    %p61 = scmp.eq.s32.totalorder %s19, 0
    %p62 = por %p60, %p61
    %s63 = ssub.s32 %s13, %s20
    %p64 = scmp.eq.s32.totalorder %s63, 0
    %s66 = sadd.s32 %s65, 1
    %s67 = scalar_select %p64, %s65, %s66
    %p70 = pneg %p64
    %p71 = scmp.eq.s32.totalorder %s13, 1
    %p72 = por %p70, %p71
    %p73 = scmp.ne.s32.totalorder %s65, %s68
    %p74 = scmp.eq.s32.totalorder %s13, 0
    %p75 = por %p73, %p74
    %p76 = scmp.ne.s32.totalorder %s65, %s68
    %p77 = scmp.eq.s32.totalorder %s18, 1
    %p78 = por %p76, %p77
    %p79 = scmp.ne.s32.totalorder %s68, %s69
    %p80 = scmp.eq.s32.totalorder %s18, 0
    %p81 = por %p79, %p80
    %p82 = scmp.ne.s32.totalorder %s68, %s69
    %p83 = scmp.eq.s32.totalorder %s19, 1
    %p84 = por %p82, %p83
    %p86 = scmp.ne.s32.totalorder %s69, %s85
    %p87 = scmp.eq.s32.totalorder %s19, 0
    %p88 = por %p86, %p87
    %s90 = sadd.s32 %s89, 1
    %p93 = scmp.eq.s32.totalorder %s13, 1
    %p94 = scmp.ne.s32.totalorder %s89, %s91
    %p95 = scmp.eq.s32.totalorder %s13, 0
    %p96 = por %p94, %p95
    %p97 = scmp.ne.s32.totalorder %s89, %s91
    %p98 = scmp.eq.s32.totalorder %s18, 1
    %p99 = por %p97, %p98
    %p100 = scmp.ne.s32.totalorder %s91, %s92
    %p101 = scmp.eq.s32.totalorder %s18, 0
    %p102 = por %p100, %p101
    %p103 = scmp.ne.s32.totalorder %s91, %s92
    %p104 = scmp.eq.s32.totalorder %s19, 1
    %p105 = por %p103, %p104
    %p107 = scmp.ne.s32.totalorder %s92, %s106
    %p108 = scmp.eq.s32.totalorder %s19, 0
    %p109 = por %p107, %p108
    %s110 = ssub.s32 %s13, %s20
    %p111 = scmp.eq.s32.totalorder %s110, 0
    %s113 = sadd.s32 %s112, 1
    %s114 = scalar_select %p111, %s112, %s113
    %p117 = pneg %p111
    %p118 = scmp.eq.s32.totalorder %s13, 1
    %p119 = por %p117, %p118
    %p120 = scmp.ne.s32.totalorder %s112, %s115
    %p121 = scmp.eq.s32.totalorder %s13, 0
    %p122 = por %p120, %p121
    %p123 = scmp.ne.s32.totalorder %s112, %s115
    %p124 = scmp.eq.s32.totalorder %s18, 1
    %p125 = por %p123, %p124
    %p126 = scmp.ne.s32.totalorder %s115, %s116
    %p127 = scmp.eq.s32.totalorder %s18, 0
    %p128 = por %p126, %p127
    %p129 = scmp.ne.s32.totalorder %s115, %s116
    %p130 = scmp.eq.s32.totalorder %s19, 1
    %p131 = por %p129, %p130
    %p133 = scmp.ne.s32.totalorder %s116, %s132
    %p134 = scmp.eq.s32.totalorder %s19, 0
    %p135 = por %p133, %p134
    %s137 = sadd.s32 %s136, 1
    %p140 = scmp.eq.s32.totalorder %s13, 1
    %p141 = scmp.ne.s32.totalorder %s136, %s138
    %p142 = scmp.eq.s32.totalorder %s13, 0
    %p143 = por %p141, %p142
    %p144 = scmp.ne.s32.totalorder %s136, %s138
    %p145 = scmp.eq.s32.totalorder %s18, 1
    %p146 = por %p144, %p145
    %p147 = scmp.ne.s32.totalorder %s138, %s139
    %p148 = scmp.eq.s32.totalorder %s18, 0
    %p149 = por %p147, %p148
    %p150 = scmp.ne.s32.totalorder %s138, %s139
    %p151 = scmp.eq.s32.totalorder %s19, 1
    %p152 = por %p150, %p151
    %p154 = scmp.ne.s32.totalorder %s139, %s153
    %p155 = scmp.eq.s32.totalorder %s19, 0
    %p156 = por %p154, %p155
    %s158 = sadd.s32 %s157, 1
    %p161 = scmp.eq.s32.totalorder %s13, 1
    %p162 = scmp.ne.s32.totalorder %s157, %s159
    %p163 = scmp.eq.s32.totalorder %s13, 0
    %p164 = por %p162, %p163
    %p165 = scmp.ne.s32.totalorder %s157, %s159
    %p166 = scmp.eq.s32.totalorder %s18, 1
    %p167 = por %p165, %p166
    %p168 = scmp.ne.s32.totalorder %s159, %s160
    %p169 = scmp.eq.s32.totalorder %s18, 0
    %p170 = por %p168, %p169
    %p171 = scmp.ne.s32.totalorder %s159, %s160
    %p172 = scmp.eq.s32.totalorder %s19, 1
    %p173 = por %p171, %p172
    %p175 = scmp.ne.s32.totalorder %s160, %s174
    %p176 = scmp.eq.s32.totalorder %s19, 0
    %p177 = por %p175, %p176
    %p178 = scmp.le.s32.totalorder 1, %s13
    %p179 = scmp.lt.s32.totalorder %s13, 3
    %p180 = pnand %p178, %p179
    %p181 = pneg %p180
    // Predicated region
    $region9: #{mnet_forward.17} parent=5 // pred_check
      _
    $region10: #{mnet_forward.17} parent=5 // pred_check_branch
      %183 = sbr.rel (%p180) target = $region12
    $region11: #{mnet_forward.17} parent=5 // pred_region
      %s184 = ssub.s32 %s13, 1
      // Predicated region
      $region13: #{mnet_forward.17} parent=11 // pred_check
        %p185 = pneg %p34
      $region14: #{mnet_forward.17} parent=11 // pred_check_branch
        %187 = sbr.rel (%p185) target = $region16
      $region15: #{mnet_forward.17} parent=11 // pred_region
        _
      $region16: #{mnet_forward.17} parent=11 // pred_fallthru
        _
      // Predicated region
      $region17: #{mnet_forward.17} parent=11 // pred_check
        %p188 = pneg %p55
      $region18: #{mnet_forward.17} parent=11 // pred_check_branch
        %190 = sbr.rel (%p188) target = $region20
      $region19: #{mnet_forward.17} parent=11 // pred_region
        _
      $region20: #{mnet_forward.17} parent=11 // pred_fallthru
        _
      // Predicated region
      $region21: #{mnet_forward.17} parent=11 // pred_check
        %p191 = pneg %p102
      $region22: #{mnet_forward.17} parent=11 // pred_check_branch
        %193 = sbr.rel (%p191) target = $region24
      $region23: #{mnet_forward.17} parent=11 // pred_region
        _
      $region24: #{mnet_forward.17} parent=11 // pred_fallthru
        _
    $region12: #{mnet_forward.17} parent=5 // pred_fallthru
      _
    %p194 = scmp.lt.s32.totalorder %s13, 2
    // Predicated region
    $region25: #{mnet_forward.17} parent=5 // pred_check
      %p195 = pneg %p194
    $region26: #{mnet_forward.17} parent=5 // pred_check_branch
      %197 = sbr.rel (%p195) target = $region28
    $region27: #{mnet_forward.17} parent=5 // pred_region
      // Predicated region
      $region29: #{mnet_forward.17} parent=27 // pred_check
        %p198 = pneg %p75
      $region30: #{mnet_forward.17} parent=27 // pred_check_branch
        %200 = sbr.rel (%p198) target = $region32
      $region31: #{mnet_forward.17} parent=27 // pred_region
        %p201 = scmp.lt.s32.totalorder %s13, 1
        %s202 = scalar_select %p201, %s13, 1
        %s203 = smul.addr %s202, 12
        %s204 = smul.addr %s203, 4
        %s205 = scalar_lea.vmem %s2, %s204
      $region32: #{mnet_forward.17} parent=27 // pred_fallthru
        _
    $region28: #{mnet_forward.17} parent=5 // pred_fallthru
      _
    %p206 = scmp.le.s32.totalorder 1, %s13
    %p207 = scmp.lt.s32.totalorder %s13, 3
    %p208 = pnand %p206, %p207
    %p209 = pneg %p208
    // Predicated region
    $region33: #{mnet_forward.17} parent=5 // pred_check
      _
    $region34: #{mnet_forward.17} parent=5 // pred_check_branch
      %211 = sbr.rel (%p208) target = $region36
    $region35: #{mnet_forward.17} parent=5 // pred_region
      %s212 = ssub.s32 %s13, 1
      %p213 = pneg %p34
      %p214 = pneg %p31
      %p215 = pneg %p55
      %p216 = pneg %p52
      %p217 = scmp.lt.s32.totalorder %s18, 1
      %s218 = scalar_select %p217, %s18, 1
      %s219 = smul.addr %s218, 12
      %s220 = smul.addr %s219, 4
      %s221 = scalar_lea.vmem %s2, %s220
      %p222 = pneg %p81
      %p223 = pneg %p78
      %p224 = pneg %p102
      %p225 = pneg %p99
      %p226 = pneg %p128
      %p227 = pneg %p125
      %p228 = scmp.lt.s32.totalorder %s18, 1
      %s229 = scalar_select %p228, %s18, 1
      %s230 = smul.addr %s229, 2
      %s231 = smul.addr %s230, 2
      %s232 = scalar_lea.vmem %s4, %s231
      %p233 = pneg %p149
      %p234 = pneg %p146
      %p235 = pneg %p170
      %p236 = pneg %p167
      %p237 = scmp.lt.s32.totalorder %s18, 1
      %s238 = scalar_select %p237, %s18, 1
      %s239 = smul.addr %s238, 12
      %s240 = smul.addr %s239, 4
      %s241 = scalar_lea.vmem %s2, %s240
      %p242 = scmp.lt.s32.totalorder %s18, 1
      %s243 = scalar_select %p242, %s18, 1
      %s244 = smul.addr %s243, 2
      %s245 = smul.addr %s244, 2
      %s246 = scalar_lea.vmem %s4, %s245
      %p247 = scmp.eq.s32.totalorder %s18, 0
      // Predicated region
      $region37: #{mnet_forward.17} parent=35 // pred_check
        %p248 = pneg %p247
      $region38: #{mnet_forward.17} parent=35 // pred_check_branch
        %250 = sbr.rel (%p248) target = $region40
      $region39: #{mnet_forward.17} parent=35 // pred_region
        %251 = vst [vmem:[%s5] sm:$0x1] 0.0
        %252 = vst [vmem:[%s6] sm:$0x1] 0.0
      $region40: #{mnet_forward.17} parent=35 // pred_fallthru
        _
      %v253 = vld [vmem:[%s0] sm:$0x1]
      %v254 = vld [vmem:[%s1] sm:$0x1]
      %v255 = vlaneseq
      %v256 = vshrl.u32 %v255, 7
      %v257 = vmul.u32 %v256, 2
      %vm258 = vcmp.ge.s32.totalorder %v257, 1
      %vm259 = vmand 0, %vm258
      %vm260 = vmand 1, %vm258
      %vm261 = vcmp.le.s32.totalorder %v257, 4
      %vm262 = vmand %vm259, %vm261
      %vm263 = vmand %vm260, %vm261
      %v264 = vld [vmem:[%s241] sm:$0x7]
      %v265 = vld [vmem:[%s241 + $0x4] sm:$0x7]
      %v266 = vld [vmem:[%s241 + $0x8] sm:$0x7]
      %v268 = vlaneseq
      %v269 = vshrl.u32 %v268, 7
      %v270 = vsub.s32 0, %v269
      %v271 = vrot.slane %v253, %v270
      %v273 = vmul.f32 %v264, %v271
      %v274 = vmul.f32 %v265, %v271
      %v275 = vmul.f32 %v266, %v271
      %v277 = vlaneseq
      %v278 = vshrl.u32 %v277, 7
      %v279 = vsub.s32 0, %v278
      %v280 = vrot.slane %v254, %v279
      %v282 = vadd.f32 %v273, %v280
      %v283 = vadd.f32 %v274, %v280
      %v284 = vadd.f32 %v275, %v280
      %v285 = vmax.f32 %v282, 0.0
      %v286 = vmax.f32 %v283, 0.0
      %v287 = vmax.f32 %v284, 0.0
      %v288 = vsel %vm262, 1, 0
      %v289 = vsel %vm263, 1, 0
      %v290 = vcvt.s32.f32 %v288
      %v291 = vcvt.s32.f32 %v289
      %v292 = vmul.f32 %v285, %v290
      %v293 = vmul.f32 %v286, %v291
      %v294 = vmul.f32 %v287, %v291
      %v295 = vadd.s32 %v257, 1
      %vm296 = vcmp.ge.s32.totalorder %v295, 1
      %vm297 = vmand 0, %vm296
      %vm298 = vmand 1, %vm296
      %vm299 = vcmp.le.s32.totalorder %v295, 4
      %vm300 = vmand %vm297, %vm299
      %vm301 = vmand %vm298, %vm299
      %s302 = scalar_lea.vmem %s241, 12
      %v303 = vld [vmem:[%s302] sm:$0x7]
      %v304 = vld [vmem:[%s302 + $0x4] sm:$0x7]
      %v305 = vld [vmem:[%s302 + $0x8] sm:$0x7]
      %v306 = vmul.f32 %v303, %v271
      %v307 = vmul.f32 %v304, %v271
      %v308 = vmul.f32 %v305, %v271
      %v309 = vadd.f32 %v306, %v280
      %v310 = vadd.f32 %v307, %v280
      %v311 = vadd.f32 %v308, %v280
      %v312 = vmax.f32 %v309, 0.0
      %v313 = vmax.f32 %v310, 0.0
      %v314 = vmax.f32 %v311, 0.0
      %v315 = vsel %vm300, 1, 0
      %v316 = vsel %vm301, 1, 0
      %v317 = vcvt.s32.f32 %v315
      %v318 = vcvt.s32.f32 %v316
      %v319 = vmul.f32 %v312, %v317
      %v320 = vmul.f32 %v313, %v318
      %v321 = vmul.f32 %v314, %v318
      %s322 = scalar_lea.vmem %s241, 24
      %v323 = vld [vmem:[%s322] sm:$0x7]
      %v324 = vld [vmem:[%s322 + $0x4] sm:$0x7]
      %v325 = vmul.f32 %v323, %v271
      %v326 = vmul.f32 %v324, %v271
      %v327 = vadd.f32 %v325, %v280
      %v328 = vadd.f32 %v326, %v280
      %v329 = vmax.f32 %v327, 0.0
      %v330 = vmax.f32 %v328, 0.0
      %v331 = vmul.f32 %v329, %v291
      %v332 = vmul.f32 %v330, %v291
      %s333 = scalar_lea.vmem %s241, 36
      %v334 = vld [vmem:[%s333] sm:$0x7]
      %v335 = vld [vmem:[%s333 + $0x4] sm:$0x7]
      %v336 = vmul.f32 %v334, %v271
      %v337 = vmul.f32 %v335, %v271
      %v338 = vadd.f32 %v336, %v280
      %v339 = vadd.f32 %v337, %v280
      %v340 = vmax.f32 %v338, 0.0
      %v341 = vmax.f32 %v339, 0.0
      %v342 = vmul.f32 %v340, %v318
      %v343 = vmul.f32 %v341, %v318
      %v344 = vld [vmem:[%s3] sm:$0x1]
      %v346 = vlaneseq
      %v347 = vshrl.u32 %v346, 7
      %v348 = vsub.s32 0, %v347
      %v349 = vrot.slane %v344, %v348
      %v351 = vmul.f32 %v292, %v349
      %v352 = vmul.f32 %v293, %v349
      %v353 = vadd.f32 %v351, 0.0
      %v354 = vadd.f32 %v352, 0.0
      %s355 = scalar_lea.vmem %s3, 1
      %v356 = vld [vmem:[%s355] sm:$0x1]
      %v358 = vlaneseq
      %v359 = vshrl.u32 %v358, 7
      %v360 = vsub.s32 0, %v359
      %v361 = vrot.slane %v356, %v360
      %v363 = vmul.f32 %v319, %v361
      %v364 = vmul.f32 %v320, %v361
      %v365 = vadd.f32 %v353, %v363
      %v366 = vadd.f32 %v354, %v364
      %s367 = scalar_lea.vmem %s3, 2
      %v368 = vld [vmem:[%s367] sm:$0x1]
      %v370 = vlaneseq
      %v371 = vshrl.u32 %v370, 7
      %v372 = vsub.s32 0, %v371
      %v373 = vrot.slane %v368, %v372
      %v375 = vmul.f32 %v292, %v373
      %v376 = vmul.f32 %v293, %v373
      %v379 = vrot.slane %v375, 1
      %v380 = vrot.slane %v376, 1
      %v383 = vadd.f32 %v365, %v379
      %v384 = vadd.f32 %v366, %v380
      %s385 = scalar_lea.vmem %s3, 3
      %v386 = vld [vmem:[%s385] sm:$0x1]
      %v388 = vlaneseq
      %v389 = vshrl.u32 %v388, 7
      %v390 = vsub.s32 0, %v389
      %v391 = vrot.slane %v386, %v390
      %v393 = vmul.f32 %v331, %v391
      %v394 = vmul.f32 %v332, %v391
      %v395 = vadd.f32 %v383, %v393
      %v396 = vadd.f32 %v384, %v394
      %s397 = scalar_lea.vmem %s3, 4
      %v398 = vld [vmem:[%s397] sm:$0x1]
      %v400 = vlaneseq
      %v401 = vshrl.u32 %v400, 7
      %v402 = vsub.s32 0, %v401
      %v403 = vrot.slane %v398, %v402
      %v405 = vmul.f32 %v342, %v403
      %v406 = vmul.f32 %v343, %v403
      %v407 = vadd.f32 %v395, %v405
      %v408 = vadd.f32 %v396, %v406
      %s409 = scalar_lea.vmem %s3, 5
      %v410 = vld [vmem:[%s409] sm:$0x1]
      %v412 = vlaneseq
      %v413 = vshrl.u32 %v412, 7
      %v414 = vsub.s32 0, %v413
      %v415 = vrot.slane %v410, %v414
      %v417 = vmul.f32 %v331, %v415
      %v418 = vmul.f32 %v332, %v415
      %v421 = vrot.slane %v417, 1
      %v422 = vrot.slane %v418, 1
      %v425 = vadd.f32 %v407, %v421
      %v426 = vadd.f32 %v408, %v422
      %s427 = scalar_lea.vmem %s3, 6
      %v428 = vld [vmem:[%s427] sm:$0x1]
      %v430 = vlaneseq
      %v431 = vshrl.u32 %v430, 7
      %v432 = vsub.s32 0, %v431
      %v433 = vrot.slane %v428, %v432
      %v435 = vmul.f32 %v293, %v433
      %v436 = vmul.f32 %v294, %v433
      %v437 = vadd.f32 %v425, %v435
      %v438 = vadd.f32 %v426, %v436
      %s439 = scalar_lea.vmem %s3, 7
      %v440 = vld [vmem:[%s439] sm:$0x1]
      %v442 = vlaneseq
      %v443 = vshrl.u32 %v442, 7
      %v444 = vsub.s32 0, %v443
      %v445 = vrot.slane %v440, %v444
      %v447 = vmul.f32 %v320, %v445
      %v448 = vmul.f32 %v321, %v445
      %v449 = vadd.f32 %v437, %v447
      %v450 = vadd.f32 %v438, %v448
      %s451 = scalar_lea.vmem %s3, 8
      %v452 = vld [vmem:[%s451] sm:$0x1]
      %v454 = vlaneseq
      %v455 = vshrl.u32 %v454, 7
      %v456 = vsub.s32 0, %v455
      %v457 = vrot.slane %v452, %v456
      %v459 = vmul.f32 %v293, %v457
      %v460 = vmul.f32 %v294, %v457
      %v463 = vrot.slane %v459, 1
      %v464 = vrot.slane %v460, 1
      %v467 = vadd.f32 %v449, %v463
      %v468 = vadd.f32 %v450, %v464
      %469 = vst [vmem:[%s246] sm:$0x3] %v467
      %470 = vst [vmem:[%s246 + $0x2] sm:$0x3] %v468
      %v471 = vld [vmem:[%s5] sm:$0x1]
      %vm472 = vcmask 1041408
      %v473 = vsel %vm472, %v467, 0.0
      %v474 = vsel %vm472, %v468, 0.0
      %v475 = vadd.f32 %v473, %v474
      %v476 = vsel %vm472, %v475, 0.0
      %v477 = vrot.slane %v476, 4
      %v478 = vadd.f32 %v476, %v477
      %v479 = vrot.slane %v478, 2
      %v480 = vadd.f32 %v478, %v479
      %v481 = vrot.slane %v480, 1
      %v482 = vadd.f32 %v480, %v481
      %v483 = vadd.f32 %v471, %v482
      %484 = vst [vmem:[%s5] sm:$0x1] %v483
      %v485 = vld [vmem:[%s6] sm:$0x1]
      %v486 = vmul.f32 %v467, %v467
      %v487 = vmul.f32 %v468, %v468
      %v488 = vsel %vm472, %v486, 0.0
      %v489 = vsel %vm472, %v487, 0.0
      %v490 = vadd.f32 %v488, %v489
      %v491 = vsel %vm472, %v490, 0.0
      %v492 = vrot.slane %v491, 4
      %v493 = vadd.f32 %v491, %v492
      %v494 = vrot.slane %v493, 2
      %v495 = vadd.f32 %v493, %v494
      %v496 = vrot.slane %v495, 1
      %v497 = vadd.f32 %v495, %v496
      %v498 = vadd.f32 %v485, %v497
      %499 = vst [vmem:[%s6] sm:$0x1] %v498
      %p500 = scmp.lt.s32.totalorder %s18, 1
      %s501 = scalar_select %p500, %s18, 1
      %s502 = smul.addr %s501, 2
      %s503 = smul.addr %s502, 2
      %s504 = scalar_lea.vmem %s4, %s503
      // Predicated region
      $region41: #{mnet_forward.17} parent=35 // pred_check
        %p505 = pneg %p125
      $region42: #{mnet_forward.17} parent=35 // pred_check_branch
        %507 = sbr.rel (%p505) target = $region44
      $region43: #{mnet_forward.17} parent=35 // pred_region
        _
      $region44: #{mnet_forward.17} parent=35 // pred_fallthru
        _
      // Predicated region
      $region45: #{mnet_forward.17} parent=35 // pred_check
        %p508 = pneg %p146
      $region46: #{mnet_forward.17} parent=35 // pred_check_branch
        %510 = sbr.rel (%p508) target = $region48
      $region47: #{mnet_forward.17} parent=35 // pred_region
        _
      $region48: #{mnet_forward.17} parent=35 // pred_fallthru
        _
      // Predicated region
      $region49: #{mnet_forward.17} parent=35 // pred_check
        %p511 = pneg %p167
      $region50: #{mnet_forward.17} parent=35 // pred_check_branch
        %513 = sbr.rel (%p511) target = $region52
      $region51: #{mnet_forward.17} parent=35 // pred_region
        _
      $region52: #{mnet_forward.17} parent=35 // pred_fallthru
        _
      // Predicated region
      $region53: #{mnet_forward.17} parent=35 // pred_check
        %p514 = pneg %p146
      $region54: #{mnet_forward.17} parent=35 // pred_check_branch
        %516 = sbr.rel (%p514) target = $region56
      $region55: #{mnet_forward.17} parent=35 // pred_region
        _
      $region56: #{mnet_forward.17} parent=35 // pred_fallthru
        _
      // Predicated region
      $region57: #{mnet_forward.17} parent=35 // pred_check
        %p517 = pneg %p167
      $region58: #{mnet_forward.17} parent=35 // pred_check_branch
        %519 = sbr.rel (%p517) target = $region60
      $region59: #{mnet_forward.17} parent=35 // pred_region
        _
      $region60: #{mnet_forward.17} parent=35 // pred_fallthru
        _
    $region36: #{mnet_forward.17} parent=5 // pred_fallthru
      _
    %p520 = scmp.le.s32.totalorder 2, %s13
    // Predicated region
    $region61: #{mnet_forward.17} parent=5 // pred_check
      %p521 = pneg %p520
    $region62: #{mnet_forward.17} parent=5 // pred_check_branch
      %523 = sbr.rel (%p521) target = $region64
    $region63: #{mnet_forward.17} parent=5 // pred_region
      %s524 = ssub.s32 %s13, 2
      // Predicated region
      $region65: #{mnet_forward.17} parent=63 // pred_check
        %p525 = pneg %p131
      $region66: #{mnet_forward.17} parent=63 // pred_check_branch
        %527 = sbr.rel (%p525) target = $region68
      $region67: #{mnet_forward.17} parent=63 // pred_region
        %p528 = scmp.lt.s32.totalorder %s19, 1
        %s529 = scalar_select %p528, %s19, 1
        %s530 = smul.addr %s529, 2
        %s531 = smul.addr %s530, 2
        %s532 = scalar_lea.vmem %s4, %s531
      $region68: #{mnet_forward.17} parent=63 // pred_fallthru
        _
    $region64: #{mnet_forward.17} parent=5 // pred_fallthru
      _
  $region6: #{mnet_forward.17} parent=0 // loop_footer
    %s17 = sadd.s32 1, %s13
  $region7: #{mnet_forward.17} parent=0 // loop_footer_branch
    %12 = sbr.rel target = $region3
  $region8: #{mnet_forward.17} parent=0 // loop_exit
    _

// kernel: mnet_forward.18
$region0: #{mnet_forward.18}
  #allocation0 [shape = 'u32[]', space=smem, size = 0x4, offset = 0x4, fixed_abs, tag = 'smem constant byte address 0x4 - core index']
  #allocation1 [shape = 'u32[144,128]{1,0:T(1,128)}', space=vmem, size = 0x12000, scoped, tag = 'internal scratch']
  %s0 = inlined_call_operand.vmem [shape: f32[1,128], index: 0, kind: input, shape index: {}]
  %s1 = inlined_call_operand.vmem [shape: f32[1,128], index: 1, kind: input, shape index: {}]
  %s2 = inlined_call_operand.vmem [shape: f32[8,128], index: 2, kind: input, shape index: {}]
  %s3 = inlined_call_operand.vmem [shape: bf16[128,256], index: 3, kind: input, shape index: {}]
  %s4 = inlined_call_operand.vmem [shape: f32[8,256], index: 4, kind: output, shape index: {0}]
  %s5 = inlined_call_operand.vmem [shape: f32[1,256], index: 5, kind: output, shape index: {1}]
  %s6 = inlined_call_operand.vmem [shape: f32[1,256], index: 6, kind: output, shape index: {2}]
  %7 = xla_tuple %s4, %s5, %s6
  %s8 = sld [smem:[#allocation0]]
  $region46: #{mnet_forward.18} parent=0
    _
  %s10 = ssub.s32 1, %s8
  %s11 = scalar_select 0, %s10, %s8
  // Predicated region
  $region2: #{mnet_forward.18} parent=0 // pred_check
    _
  $region3: #{mnet_forward.18} parent=0 // pred_check_branch
    %13 = sbr.rel (0) target = $region5
  $region4: #{mnet_forward.18} parent=0 // pred_region
    _
  $region5: #{mnet_forward.18} parent=0 // pred_fallthru
    _
  // Predicated region
  $region6: #{mnet_forward.18} parent=0 // pred_check
    _
  $region7: #{mnet_forward.18} parent=0 // pred_check_branch
    %15 = sbr.rel (0) target = $region9
  $region8: #{mnet_forward.18} parent=0 // pred_region
    _
  $region9: #{mnet_forward.18} parent=0 // pred_fallthru
    _
  // Predicated region
  $region10: #{mnet_forward.18} parent=0 // pred_check
    _
  $region11: #{mnet_forward.18} parent=0 // pred_check_branch
    %17 = sbr.rel (0) target = $region13
  $region12: #{mnet_forward.18} parent=0 // pred_region
    _
  $region13: #{mnet_forward.18} parent=0 // pred_fallthru
    _
  // Predicated region
  $region14: #{mnet_forward.18} parent=0 // pred_check
    _
  $region15: #{mnet_forward.18} parent=0 // pred_check_branch
    %19 = sbr.rel (0) target = $region17
  $region16: #{mnet_forward.18} parent=0 // pred_region
    _
  $region17: #{mnet_forward.18} parent=0 // pred_fallthru
    _
  %p21 = scmp.eq.s32.totalorder 0, 0
  // Predicated region
  $region18: #{mnet_forward.18} parent=0 // pred_check
    %p22 = pneg %p21
  $region19: #{mnet_forward.18} parent=0 // pred_check_branch
    %24 = sbr.rel (%p22) target = $region21
  $region20: #{mnet_forward.18} parent=0 // pred_region
    %v25 = vlaneseq
    %vm26 = vcmp.ge.s32.totalorder %v25, 0
    %vm27 = vcmp.lt.s32.totalorder %v25, 256
    %vm28 = vmand %vm26, %vm27
    %29 = vst.msk [vmem:[%s5] sm:$0x3] %vm28, 0.0
    %30 = vst.msk [vmem:[%s6] sm:$0x3] %vm28, 0.0
  $region21: #{mnet_forward.18} parent=0 // pred_fallthru
    _
  %v31 = vld [vmem:[%s2] sm:$0xff]
  %v32 = vld [vmem:[%s0] sm:$0x1]
  %v34 = vlaneseq
  %v35 = vshrl.u32 %v34, 7
  %v36 = vsub.s32 0, %v35
  %v37 = vrot.slane %v32, %v36
  %v39 = vmul.f32 %v31, %v37
  %v40 = vld [vmem:[%s1] sm:$0x1]
  %v42 = vlaneseq
  %v43 = vshrl.u32 %v42, 7
  %v44 = vsub.s32 0, %v43
  %v45 = vrot.slane %v40, %v44
  %v47 = vadd.f32 %v39, %v45
  %v48 = vmax.f32 %v47, 0.0
  %v49 = vpack.c.bf16 %v48, %v48
  %v50 = vld [vmem:[%s3] sm:$0xff]
  %v51 = vld [vmem:[%s3 + $0x8] sm:$0xff]
  %v52 = vld [vmem:[%s3 + $0x10] sm:$0xff]
  %v53 = vld [vmem:[%s3 + $0x18] sm:$0xff]
  %v54 = vld [vmem:[%s3 + $0x20] sm:$0xff]
  %v55 = vld [vmem:[%s3 + $0x28] sm:$0xff]
  %v56 = vld [vmem:[%s3 + $0x30] sm:$0xff]
  %v57 = vld [vmem:[%s3 + $0x38] sm:$0xff]
  %v58 = vld [vmem:[%s3 + $0x40] sm:$0xff]
  %v59 = vld [vmem:[%s3 + $0x48] sm:$0xff]
  %v60 = vld [vmem:[%s3 + $0x50] sm:$0xff]
  %v61 = vld [vmem:[%s3 + $0x58] sm:$0xff]
  %v62 = vld [vmem:[%s3 + $0x60] sm:$0xff]
  %v63 = vld [vmem:[%s3 + $0x68] sm:$0xff]
  %v64 = vld [vmem:[%s3 + $0x70] sm:$0xff]
  %v65 = vld [vmem:[%s3 + $0x78] sm:$0xff]
  %v82 = vunpack.c.l.b16 %v50
  %v83 = vunpack.c.h.b16 %v50
  %v84 = vunpack.c.l.b16 %v51
  %v85 = vunpack.c.h.b16 %v51
  %v86 = vunpack.c.l.b16 %v52
  %v87 = vunpack.c.h.b16 %v52
  %v88 = vunpack.c.l.b16 %v53
  %v89 = vunpack.c.h.b16 %v53
  %v90 = vunpack.c.l.b16 %v54
  %v91 = vunpack.c.h.b16 %v54
  %v92 = vunpack.c.l.b16 %v55
  %v93 = vunpack.c.h.b16 %v55
  %v94 = vunpack.c.l.b16 %v56
  %v95 = vunpack.c.h.b16 %v56
  %v96 = vunpack.c.l.b16 %v57
  %v97 = vunpack.c.h.b16 %v57
  %v98 = vunpack.c.l.b16 %v58
  %v99 = vunpack.c.h.b16 %v58
  %v100 = vunpack.c.l.b16 %v59
  %v101 = vunpack.c.h.b16 %v59
  %v102 = vunpack.c.l.b16 %v60
  %v103 = vunpack.c.h.b16 %v60
  %v104 = vunpack.c.l.b16 %v61
  %v105 = vunpack.c.h.b16 %v61
  %v106 = vunpack.c.l.b16 %v62
  %v107 = vunpack.c.h.b16 %v62
  %v108 = vunpack.c.l.b16 %v63
  %v109 = vunpack.c.h.b16 %v63
  %v110 = vunpack.c.l.b16 %v64
  %v111 = vunpack.c.h.b16 %v64
  %v112 = vunpack.c.l.b16 %v65
  %v113 = vunpack.c.h.b16 %v65
  %v114 = vpack.c.b16 %v84, %v82
  %v115 = vpack.c.b16 %v85, %v83
  %v116 = vpack.c.b16 %v88, %v86
  %v117 = vpack.c.b16 %v89, %v87
  %v118 = vpack.c.b16 %v92, %v90
  %v119 = vpack.c.b16 %v93, %v91
  %v120 = vpack.c.b16 %v96, %v94
  %v121 = vpack.c.b16 %v97, %v95
  %v122 = vpack.c.b16 %v100, %v98
  %v123 = vpack.c.b16 %v101, %v99
  %v124 = vpack.c.b16 %v104, %v102
  %v125 = vpack.c.b16 %v105, %v103
  %v126 = vpack.c.b16 %v108, %v106
  %v127 = vpack.c.b16 %v109, %v107
  %v128 = vpack.c.b16 %v112, %v110
  %v129 = vpack.c.b16 %v113, %v111
  %146 = vmatprep.subr.bf16.mxu0 %v115
  %147 = vmatpush1.bf16.msra.mxu0 %v114
  %148 = vmatprep.subr.bf16.mxu0 %v117
  %149 = vmatpush1.bf16.msra.mxu0 %v116
  %150 = vmatprep.subr.bf16.mxu0 %v119
  %151 = vmatpush1.bf16.msra.mxu0 %v118
  %152 = vmatprep.subr.bf16.mxu0 %v121
  %153 = vmatpush1.bf16.msra.mxu0 %v120
  %154 = vmatprep.subr.bf16.mxu0 %v123
  %155 = vmatpush1.bf16.msra.mxu0 %v122
  %156 = vmatprep.subr.bf16.mxu0 %v125
  %157 = vmatpush1.bf16.msra.mxu0 %v124
  %158 = vmatprep.subr.bf16.mxu0 %v127
  %159 = vmatpush1.bf16.msra.mxu0 %v126
  %160 = vmatprep.subr.bf16.mxu0 %v129
  %161 = vmatpush1.bf16.msra.mxu0 %v128
  %162 = vmatprep.subr.bf16.mxu0 0
  %163 = vmatpush1.bf16.msra.mxu0 0
  %164 = vmatprep.subr.bf16.mxu0 0
  %165 = vmatpush1.bf16.msra.mxu0 0
  %166 = vmatprep.subr.bf16.mxu0 0
  %167 = vmatpush1.bf16.msra.mxu0 0
  %168 = vmatprep.subr.bf16.mxu0 0
  %169 = vmatpush1.bf16.msra.mxu0 0
  %170 = vmatprep.subr.bf16.mxu0 0
  %171 = vmatpush1.bf16.msra.mxu0 0
  %172 = vmatprep.subr.bf16.mxu0 0
  %173 = vmatpush1.bf16.msra.mxu0 0
  %174 = vmatprep.subr.bf16.mxu0 0
  %175 = vmatpush1.bf16.msra.mxu0 0
  %176 = vmatprep.subr.bf16.mxu0 0
  %177 = vmatpush1.bf16.msra.mxu0 0
  %178 = vmatprep.mubr.bf16.mxu0 0
  %179 = vmatmul.mubr.bf16.gmra.mrb[0].mxu0 %v49
  %v180 = vpop.f32.mrb[0].mxu0
  %v181 = vadd.f32 0.0, %v180
  %v182 = vpop.f32.mrb[0].mxu0
  %v183 = vadd.f32 0.0, %v182
  %v184 = vpop.f32.mrb[0].mxu0
  %v185 = vpop.f32.mrb[0].mxu0
  %186 = vdwg.mxu0
  %187 = vst [vmem:[%s4] sm:$0xff] %v181
  %188 = vst [vmem:[%s4 + $0x8] sm:$0xff] %v183
  %v189 = vld [vmem:[%s5] sm:$0x3]
  %v190 = vrot.slane %v181, 4
  %v191 = vadd.f32 %v181, %v190
  %v192 = vrot.slane %v191, 2
  %v193 = vadd.f32 %v191, %v192
  %v194 = vrot.slane %v193, 1
  %v195 = vadd.f32 %v193, %v194
  %v196 = vrot.slane %v183, 4
  %v197 = vadd.f32 %v183, %v196
  %v198 = vrot.slane %v197, 2
  %v199 = vadd.f32 %v197, %v198
  %v200 = vrot.slane %v199, 1
  %v201 = vadd.f32 %v199, %v200
  %v204 = vcombine.low %v195, %v201
  %v206 = vunpack.c.l.s4 1966171168
  %v207 = vunpack.c.0.s8 %v206
  %v208 = vlaneseq
  %v209 = vshrl.u32 %v208, 7
  %v210 = vsub.s32 %v207, %v209
  %v211 = vrot.slane %v204, %v210
  %v213 = vunpack.c.l.s4 1966171168
  %v214 = vunpack.c.0.s8 %v213
  %v215 = vlaneseq
  %v216 = vshrl.u32 %v215, 7
  %v217 = vsub.s32 %v214, %v216
  %v218 = vrot.slane %v211, %v217
  %v220 = vadd.f32 %v189, %v218
  %v221 = vlaneseq
  %vm222 = vcmp.ge.s32.totalorder %v221, 0
  %vm223 = vcmp.lt.s32.totalorder %v221, 256
  %vm224 = vmand %vm222, %vm223
  %225 = vst.msk [vmem:[%s5] sm:$0x3] %vm224, %v220
  %v226 = vld [vmem:[%s6] sm:$0x3]
  %v227 = vmul.f32 %v181, %v181
  %v228 = vmul.f32 %v183, %v183
  %v229 = vrot.slane %v227, 4
  %v230 = vadd.f32 %v227, %v229
  %v231 = vrot.slane %v230, 2
  %v232 = vadd.f32 %v230, %v231
  %v233 = vrot.slane %v232, 1
  %v234 = vadd.f32 %v232, %v233
  %v235 = vrot.slane %v228, 4
  %v236 = vadd.f32 %v228, %v235
  %v237 = vrot.slane %v236, 2
  %v238 = vadd.f32 %v236, %v237
  %v239 = vrot.slane %v238, 1
  %v240 = vadd.f32 %v238, %v239
  %v243 = vcombine.low %v234, %v240
  %v245 = vunpack.c.l.s4 1966171168
  %v246 = vunpack.c.0.s8 %v245
  %v247 = vlaneseq
  %v248 = vshrl.u32 %v247, 7
  %v249 = vsub.s32 %v246, %v248
  %v250 = vrot.slane %v243, %v249
  %v252 = vunpack.c.l.s4 1966171168
  %v253 = vunpack.c.0.s8 %v252
  %v254 = vlaneseq
  %v255 = vshrl.u32 %v254, 7
  %v256 = vsub.s32 %v253, %v255
  %v257 = vrot.slane %v250, %v256
  %v259 = vadd.f32 %v226, %v257
  %260 = vst.msk [vmem:[%s6] sm:$0x3] %vm224, %v259
  // Predicated region
  $region22: #{mnet_forward.18} parent=0 // pred_check
    _
  $region23: #{mnet_forward.18} parent=0 // pred_check_branch
    %262 = sbr.rel (0) target = $region25
  $region24: #{mnet_forward.18} parent=0 // pred_region
    _
  $region25: #{mnet_forward.18} parent=0 // pred_fallthru
    _
  // Predicated region
  $region26: #{mnet_forward.18} parent=0 // pred_check
    _
  $region27: #{mnet_forward.18} parent=0 // pred_check_branch
    %264 = sbr.rel (0) target = $region29
  $region28: #{mnet_forward.18} parent=0 // pred_region
    _
  $region29: #{mnet_forward.18} parent=0 // pred_fallthru
    _
  // Predicated region
  $region30: #{mnet_forward.18} parent=0 // pred_check
    _
  $region31: #{mnet_forward.18} parent=0 // pred_check_branch
    %266 = sbr.rel (0) target = $region33
  $region32: #{mnet_forward.18} parent=0 // pred_region
    _
  $region33: #{mnet_forward.18} parent=0 // pred_fallthru
    _
  // Predicated region
  $region34: #{mnet_forward.18} parent=0 // pred_check
    _
  $region35: #{mnet_forward.18} parent=0 // pred_check_branch
    %268 = sbr.rel (0) target = $region37
  $region36: #{mnet_forward.18} parent=0 // pred_region
    _
  $region37: #{mnet_forward.18} parent=0 // pred_fallthru
    _
  // Predicated region
  $region38: #{mnet_forward.18} parent=0 // pred_check
    _
  $region39: #{mnet_forward.18} parent=0 // pred_check_branch
    %270 = sbr.rel (0) target = $region41
  $region40: #{mnet_forward.18} parent=0 // pred_region
    _
  $region41: #{mnet_forward.18} parent=0 // pred_fallthru
    _
  // Predicated region
  $region42: #{mnet_forward.18} parent=0 // pred_check
    _
  $region43: #{mnet_forward.18} parent=0 // pred_check_branch
    %272 = sbr.rel (0) target = $region45
  $region44: #{mnet_forward.18} parent=0 // pred_region
    _
  $region45: #{mnet_forward.18} parent=0 // pred_fallthru
    _

// kernel: mnet_forward.19
$region0: #{mnet_forward.19}
  #allocation0 [shape = 'u32[]', space=smem, size = 0x4, offset = 0x4, fixed_abs, tag = 'smem constant byte address 0x4 - core index']
  #allocation1 [shape = 'u32[144,128]{1,0:T(1,128)}', space=vmem, size = 0x12000, scoped, tag = 'internal scratch']
  %s0 = inlined_call_operand.vmem [shape: f32[1,256], index: 0, kind: input, shape index: {}]
  %s1 = inlined_call_operand.vmem [shape: f32[1,256], index: 1, kind: input, shape index: {}]
  %s2 = inlined_call_operand.vmem [shape: f32[2,4,2,2,256], index: 2, kind: input, shape index: {}]
  %s3 = inlined_call_operand.vmem [shape: f32[3,3,1,256], index: 3, kind: input, shape index: {}]
  %s4 = inlined_call_operand.vmem [shape: f32[2,1,1,256], index: 4, kind: output, shape index: {0}]
  %s5 = inlined_call_operand.vmem [shape: f32[1,256], index: 5, kind: output, shape index: {1}]
  %s6 = inlined_call_operand.vmem [shape: f32[1,256], index: 6, kind: output, shape index: {2}]
  %7 = xla_tuple %s4, %s5, %s6
  %s8 = sld [smem:[#allocation0]]
  $region69: #{mnet_forward.19} parent=0
    _
  %s10 = ssub.s32 1, %s8
  %s11 = scalar_select 0, %s10, %s8
  loop: start=0, step=1, limit=4
  $region2: #{mnet_forward.19} parent=0 // loop_pre_header
    _
  $region3: #{mnet_forward.19} parent=0 // loop_header
    %s13 = sphi 0, %s17
    %p14 = scmp.ge.s32.totalorder %s13, 4
    %s21 = sphi 0, %s21
    %s23 = sphi 0, %s21
    %s24 = sphi 0, %s23
    %s38 = sphi 0, %s24
    %s42 = sphi 0, %s42
    %s44 = sphi 0, %s42
    %s45 = sphi 0, %s44
    %s59 = sphi 0, %s45
    %s65 = sphi 0, %s67
    %s68 = sphi 0, %s65
    %s69 = sphi 0, %s68
    %s85 = sphi 0, %s69
    %s89 = sphi 0, %s89
    %s91 = sphi 0, %s89
    %s92 = sphi 0, %s91
    %s106 = sphi 0, %s92
    %s112 = sphi 0, %s114
    %s115 = sphi 0, %s112
    %s116 = sphi 0, %s115
    %s132 = sphi 0, %s116
    %s136 = sphi 0, %s136
    %s138 = sphi 0, %s136
    %s139 = sphi 0, %s138
    %s153 = sphi 0, %s139
    %s157 = sphi 0, %s157
    %s159 = sphi 0, %s157
    %s160 = sphi 0, %s159
    %s174 = sphi 0, %s160
  $region4: #{mnet_forward.19} parent=0 // loop_header_branch
    %16 = sbr.rel (%p14) target = $region8
  $region5: #{mnet_forward.19} parent=0 // loop_body
    %s18 = ssub.s32 %s13, 1
    %s19 = ssub.s32 %s13, 2
    %s20 = sadd.s32 %s13, 1
    %s22 = sadd.s32 %s21, 1
    %p25 = scmp.eq.s32.totalorder %s13, 1
    %p26 = scmp.ne.s32.totalorder %s21, %s23
    %p27 = scmp.eq.s32.totalorder %s13, 0
    %p28 = por %p26, %p27
    %p29 = scmp.ne.s32.totalorder %s21, %s23
    %p30 = scmp.eq.s32.totalorder %s18, 1
    %p31 = por %p29, %p30
    %p32 = scmp.ne.s32.totalorder %s23, %s24
    %p33 = scmp.eq.s32.totalorder %s18, 0
    %p34 = por %p32, %p33
    %p35 = scmp.ne.s32.totalorder %s23, %s24
    %p36 = scmp.eq.s32.totalorder %s19, 1
    %p37 = por %p35, %p36
    %p39 = scmp.ne.s32.totalorder %s24, %s38
    %p40 = scmp.eq.s32.totalorder %s19, 0
    %p41 = por %p39, %p40
    %s43 = sadd.s32 %s42, 1
    %p46 = scmp.eq.s32.totalorder %s13, 1
    %p47 = scmp.ne.s32.totalorder %s42, %s44
    %p48 = scmp.eq.s32.totalorder %s13, 0
    %p49 = por %p47, %p48
    %p50 = scmp.ne.s32.totalorder %s42, %s44
    %p51 = scmp.eq.s32.totalorder %s18, 1
    %p52 = por %p50, %p51
    %p53 = scmp.ne.s32.totalorder %s44, %s45
    %p54 = scmp.eq.s32.totalorder %s18, 0
    %p55 = por %p53, %p54
    %p56 = scmp.ne.s32.totalorder %s44, %s45
    %p57 = scmp.eq.s32.totalorder %s19, 1
    %p58 = por %p56, %p57
    %p60 = scmp.ne.s32.totalorder %s45, %s59
    %p61 = scmp.eq.s32.totalorder %s19, 0
    %p62 = por %p60, %p61
    %s63 = ssub.s32 %s13, %s20
    %p64 = scmp.eq.s32.totalorder %s63, 0
    %s66 = sadd.s32 %s65, 1
    %s67 = scalar_select %p64, %s65, %s66
    %p70 = pneg %p64
    %p71 = scmp.eq.s32.totalorder %s13, 1
    %p72 = por %p70, %p71
    %p73 = scmp.ne.s32.totalorder %s65, %s68
    %p74 = scmp.eq.s32.totalorder %s13, 0
    %p75 = por %p73, %p74
    %p76 = scmp.ne.s32.totalorder %s65, %s68
    %p77 = scmp.eq.s32.totalorder %s18, 1
    %p78 = por %p76, %p77
    %p79 = scmp.ne.s32.totalorder %s68, %s69
    %p80 = scmp.eq.s32.totalorder %s18, 0
    %p81 = por %p79, %p80
    %p82 = scmp.ne.s32.totalorder %s68, %s69
    %p83 = scmp.eq.s32.totalorder %s19, 1
    %p84 = por %p82, %p83
    %p86 = scmp.ne.s32.totalorder %s69, %s85
    %p87 = scmp.eq.s32.totalorder %s19, 0
    %p88 = por %p86, %p87
    %s90 = sadd.s32 %s89, 1
    %p93 = scmp.eq.s32.totalorder %s13, 1
    %p94 = scmp.ne.s32.totalorder %s89, %s91
    %p95 = scmp.eq.s32.totalorder %s13, 0
    %p96 = por %p94, %p95
    %p97 = scmp.ne.s32.totalorder %s89, %s91
    %p98 = scmp.eq.s32.totalorder %s18, 1
    %p99 = por %p97, %p98
    %p100 = scmp.ne.s32.totalorder %s91, %s92
    %p101 = scmp.eq.s32.totalorder %s18, 0
    %p102 = por %p100, %p101
    %p103 = scmp.ne.s32.totalorder %s91, %s92
    %p104 = scmp.eq.s32.totalorder %s19, 1
    %p105 = por %p103, %p104
    %p107 = scmp.ne.s32.totalorder %s92, %s106
    %p108 = scmp.eq.s32.totalorder %s19, 0
    %p109 = por %p107, %p108
    %s110 = ssub.s32 %s13, %s20
    %p111 = scmp.eq.s32.totalorder %s110, 0
    %s113 = sadd.s32 %s112, 1
    %s114 = scalar_select %p111, %s112, %s113
    %p117 = pneg %p111
    %p118 = scmp.eq.s32.totalorder %s13, 1
    %p119 = por %p117, %p118
    %p120 = scmp.ne.s32.totalorder %s112, %s115
    %p121 = scmp.eq.s32.totalorder %s13, 0
    %p122 = por %p120, %p121
    %p123 = scmp.ne.s32.totalorder %s112, %s115
    %p124 = scmp.eq.s32.totalorder %s18, 1
    %p125 = por %p123, %p124
    %p126 = scmp.ne.s32.totalorder %s115, %s116
    %p127 = scmp.eq.s32.totalorder %s18, 0
    %p128 = por %p126, %p127
    %p129 = scmp.ne.s32.totalorder %s115, %s116
    %p130 = scmp.eq.s32.totalorder %s19, 1
    %p131 = por %p129, %p130
    %p133 = scmp.ne.s32.totalorder %s116, %s132
    %p134 = scmp.eq.s32.totalorder %s19, 0
    %p135 = por %p133, %p134
    %s137 = sadd.s32 %s136, 1
    %p140 = scmp.eq.s32.totalorder %s13, 1
    %p141 = scmp.ne.s32.totalorder %s136, %s138
    %p142 = scmp.eq.s32.totalorder %s13, 0
    %p143 = por %p141, %p142
    %p144 = scmp.ne.s32.totalorder %s136, %s138
    %p145 = scmp.eq.s32.totalorder %s18, 1
    %p146 = por %p144, %p145
    %p147 = scmp.ne.s32.totalorder %s138, %s139
    %p148 = scmp.eq.s32.totalorder %s18, 0
    %p149 = por %p147, %p148
    %p150 = scmp.ne.s32.totalorder %s138, %s139
    %p151 = scmp.eq.s32.totalorder %s19, 1
    %p152 = por %p150, %p151
    %p154 = scmp.ne.s32.totalorder %s139, %s153
    %p155 = scmp.eq.s32.totalorder %s19, 0
    %p156 = por %p154, %p155
    %s158 = sadd.s32 %s157, 1
    %p161 = scmp.eq.s32.totalorder %s13, 1
    %p162 = scmp.ne.s32.totalorder %s157, %s159
    %p163 = scmp.eq.s32.totalorder %s13, 0
    %p164 = por %p162, %p163
    %p165 = scmp.ne.s32.totalorder %s157, %s159
    %p166 = scmp.eq.s32.totalorder %s18, 1
    %p167 = por %p165, %p166
    %p168 = scmp.ne.s32.totalorder %s159, %s160
    %p169 = scmp.eq.s32.totalorder %s18, 0
    %p170 = por %p168, %p169
    %p171 = scmp.ne.s32.totalorder %s159, %s160
    %p172 = scmp.eq.s32.totalorder %s19, 1
    %p173 = por %p171, %p172
    %p175 = scmp.ne.s32.totalorder %s160, %s174
    %p176 = scmp.eq.s32.totalorder %s19, 0
    %p177 = por %p175, %p176
    %p178 = scmp.le.s32.totalorder 1, %s13
    %p179 = scmp.lt.s32.totalorder %s13, 3
    %p180 = pnand %p178, %p179
    %p181 = pneg %p180
    // Predicated region
    $region9: #{mnet_forward.19} parent=5 // pred_check
      _
    $region10: #{mnet_forward.19} parent=5 // pred_check_branch
      %183 = sbr.rel (%p180) target = $region12
    $region11: #{mnet_forward.19} parent=5 // pred_region
      %s184 = ssub.s32 %s13, 1
      // Predicated region
      $region13: #{mnet_forward.19} parent=11 // pred_check
        %p185 = pneg %p34
      $region14: #{mnet_forward.19} parent=11 // pred_check_branch
        %187 = sbr.rel (%p185) target = $region16
      $region15: #{mnet_forward.19} parent=11 // pred_region
        _
      $region16: #{mnet_forward.19} parent=11 // pred_fallthru
        _
      // Predicated region
      $region17: #{mnet_forward.19} parent=11 // pred_check
        %p188 = pneg %p55
      $region18: #{mnet_forward.19} parent=11 // pred_check_branch
        %190 = sbr.rel (%p188) target = $region20
      $region19: #{mnet_forward.19} parent=11 // pred_region
        _
      $region20: #{mnet_forward.19} parent=11 // pred_fallthru
        _
      // Predicated region
      $region21: #{mnet_forward.19} parent=11 // pred_check
        %p191 = pneg %p102
      $region22: #{mnet_forward.19} parent=11 // pred_check_branch
        %193 = sbr.rel (%p191) target = $region24
      $region23: #{mnet_forward.19} parent=11 // pred_region
        _
      $region24: #{mnet_forward.19} parent=11 // pred_fallthru
        _
    $region12: #{mnet_forward.19} parent=5 // pred_fallthru
      _
    %p194 = scmp.lt.s32.totalorder %s13, 2
    // Predicated region
    $region25: #{mnet_forward.19} parent=5 // pred_check
      %p195 = pneg %p194
    $region26: #{mnet_forward.19} parent=5 // pred_check_branch
      %197 = sbr.rel (%p195) target = $region28
    $region27: #{mnet_forward.19} parent=5 // pred_region
      // Predicated region
      $region29: #{mnet_forward.19} parent=27 // pred_check
        %p198 = pneg %p75
      $region30: #{mnet_forward.19} parent=27 // pred_check_branch
        %200 = sbr.rel (%p198) target = $region32
      $region31: #{mnet_forward.19} parent=27 // pred_region
        %p201 = scmp.lt.s32.totalorder %s13, 1
        %s202 = scalar_select %p201, %s13, 1
        %s203 = smul.addr %s202, 16
        %s204 = smul.addr %s203, 2
        %s205 = scalar_lea.vmem %s2, %s204
      $region32: #{mnet_forward.19} parent=27 // pred_fallthru
        _
    $region28: #{mnet_forward.19} parent=5 // pred_fallthru
      _
    %p206 = scmp.le.s32.totalorder 1, %s13
    %p207 = scmp.lt.s32.totalorder %s13, 3
    %p208 = pnand %p206, %p207
    %p209 = pneg %p208
    // Predicated region
    $region33: #{mnet_forward.19} parent=5 // pred_check
      _
    $region34: #{mnet_forward.19} parent=5 // pred_check_branch
      %211 = sbr.rel (%p208) target = $region36
    $region35: #{mnet_forward.19} parent=5 // pred_region
      %s212 = ssub.s32 %s13, 1
      %p213 = pneg %p34
      %p214 = pneg %p31
      %p215 = pneg %p55
      %p216 = pneg %p52
      %p217 = scmp.lt.s32.totalorder %s18, 1
      %s218 = scalar_select %p217, %s18, 1
      %s219 = smul.addr %s218, 16
      %s220 = smul.addr %s219, 2
      %s221 = scalar_lea.vmem %s2, %s220
      %p222 = pneg %p81
      %p223 = pneg %p78
      %p224 = pneg %p102
      %p225 = pneg %p99
      %p226 = pneg %p128
      %p227 = pneg %p125
      %p228 = scmp.lt.s32.totalorder %s18, 1
      %s229 = scalar_select %p228, %s18, 1
      %s230 = smul.addr %s229, 2
      %s231 = scalar_lea.vmem %s4, %s230
      %p232 = pneg %p149
      %p233 = pneg %p146
      %p234 = pneg %p170
      %p235 = pneg %p167
      %p236 = scmp.lt.s32.totalorder %s18, 1
      %s237 = scalar_select %p236, %s18, 1
      %s238 = smul.addr %s237, 16
      %s239 = smul.addr %s238, 2
      %s240 = scalar_lea.vmem %s2, %s239
      %p241 = scmp.lt.s32.totalorder %s18, 1
      %s242 = scalar_select %p241, %s18, 1
      %s243 = smul.addr %s242, 2
      %s244 = scalar_lea.vmem %s4, %s243
      %p245 = scmp.eq.s32.totalorder %s18, 0
      // Predicated region
      $region37: #{mnet_forward.19} parent=35 // pred_check
        %p246 = pneg %p245
      $region38: #{mnet_forward.19} parent=35 // pred_check_branch
        %248 = sbr.rel (%p246) target = $region40
      $region39: #{mnet_forward.19} parent=35 // pred_region
        %v249 = vlaneseq
        %vm250 = vcmp.ge.s32.totalorder %v249, 0
        %vm251 = vcmp.lt.s32.totalorder %v249, 256
        %vm252 = vmand %vm250, %vm251
        %253 = vst.msk [vmem:[%s5] sm:$0x3] %vm252, 0.0
        %254 = vst.msk [vmem:[%s6] sm:$0x3] %vm252, 0.0
      $region40: #{mnet_forward.19} parent=35 // pred_fallthru
        _
      %v255 = vld [vmem:[%s0] sm:$0x3]
      %v256 = vld [vmem:[%s1] sm:$0x3]
      %v257 = vlaneseq
      %v258 = vshrl.u32 %v257, 7
      %v259 = vmul.u32 %v258, 2
      %vm260 = vcmp.ge.s32.totalorder %v259, 1
      %vm261 = vmand 0, %vm260
      %vm262 = vmand 1, %vm260
      %vm263 = vcmp.le.s32.totalorder %v259, 2
      %vm264 = vmand %vm261, %vm263
      %vm265 = vmand %vm262, %vm263
      %v266 = vld [vmem:[%s240] sm:$0xf]
      %v267 = vld [vmem:[%s240 + $0x4] sm:$0xf]
      %v269 = vlaneseq
      %v270 = vshrl.u32 %v269, 7
      %v271 = vsub.s32 0, %v270
      %v272 = vrot.slane %v255, %v271
      %v273 = vlaneseq
      %v274 = vshrl.u32 %v273, 7
      %v275 = vsub.s32 1, %v274
      %v276 = vrot.slane %v255, %v275
      %v277 = vcombine.low %v272, %v276
      %v279 = vunpack.c.l.s4 1983009808
      %v280 = vunpack.c.0.s8 %v279
      %v281 = vlaneseq
      %v282 = vshrl.u32 %v281, 7
      %v283 = vsub.s32 %v280, %v282
      %v284 = vrot.slane %v277, %v283
      %v286 = vmul.f32 %v266, %v284
      %v287 = vmul.f32 %v267, %v284
      %v289 = vlaneseq
      %v290 = vshrl.u32 %v289, 7
      %v291 = vsub.s32 0, %v290
      %v292 = vrot.slane %v256, %v291
      %v293 = vlaneseq
      %v294 = vshrl.u32 %v293, 7
      %v295 = vsub.s32 1, %v294
      %v296 = vrot.slane %v256, %v295
      %v297 = vcombine.low %v292, %v296
      %v299 = vunpack.c.l.s4 1983009808
      %v300 = vunpack.c.0.s8 %v299
      %v301 = vlaneseq
      %v302 = vshrl.u32 %v301, 7
      %v303 = vsub.s32 %v300, %v302
      %v304 = vrot.slane %v297, %v303
      %v306 = vadd.f32 %v286, %v304
      %v307 = vadd.f32 %v287, %v304
      %v308 = vmax.f32 %v306, 0.0
      %v309 = vmax.f32 %v307, 0.0
      %v310 = vsel %vm264, 1, 0
      %v311 = vsel %vm265, 1, 0
      %v312 = vcvt.s32.f32 %v310
      %v313 = vcvt.s32.f32 %v311
      %v317 = vunpack.c.l.s4 269488144
      %v318 = vunpack.c.0.s8 %v317
      %v319 = vlaneseq
      %v320 = vshrl.u32 %v319, 7
      %v321 = vsub.s32 %v318, %v320
      %v322 = vrot.slane %v312, %v321
      %v324 = vunpack.c.l.s4 269488144
      %v325 = vunpack.c.0.s8 %v324
      %v326 = vlaneseq
      %v327 = vshrl.u32 %v326, 7
      %v328 = vsub.s32 %v325, %v327
      %v329 = vrot.slane %v313, %v328
      %v332 = vmul.f32 %v308, %v322
      %v333 = vmul.f32 %v309, %v329
      %v334 = vadd.s32 %v259, 1
      %vm335 = vcmp.ge.s32.totalorder %v334, 1
      %vm336 = vmand 0, %vm335
      %vm337 = vmand 1, %vm335
      %vm338 = vcmp.le.s32.totalorder %v334, 2
      %vm339 = vmand %vm336, %vm338
      %vm340 = vmand %vm337, %vm338
      %s341 = scalar_lea.vmem %s240, 8
      %v342 = vld [vmem:[%s341] sm:$0xf]
      %v343 = vld [vmem:[%s341 + $0x4] sm:$0xf]
      %v344 = vmul.f32 %v342, %v284
      %v345 = vmul.f32 %v343, %v284
      %v346 = vadd.f32 %v344, %v304
      %v347 = vadd.f32 %v345, %v304
      %v348 = vmax.f32 %v346, 0.0
      %v349 = vmax.f32 %v347, 0.0
      %v350 = vsel %vm339, 1, 0
      %v351 = vsel %vm340, 1, 0
      %v352 = vcvt.s32.f32 %v350
      %v353 = vcvt.s32.f32 %v351
      %v357 = vunpack.c.l.s4 269488144
      %v358 = vunpack.c.0.s8 %v357
      %v359 = vlaneseq
      %v360 = vshrl.u32 %v359, 7
      %v361 = vsub.s32 %v358, %v360
      %v362 = vrot.slane %v352, %v361
      %v364 = vunpack.c.l.s4 269488144
      %v365 = vunpack.c.0.s8 %v364
      %v366 = vlaneseq
      %v367 = vshrl.u32 %v366, 7
      %v368 = vsub.s32 %v365, %v367
      %v369 = vrot.slane %v353, %v368
      %v372 = vmul.f32 %v348, %v362
      %v373 = vmul.f32 %v349, %v369
      %s374 = scalar_lea.vmem %s240, 16
      %v375 = vld [vmem:[%s374] sm:$0xf]
      %v376 = vmul.f32 %v375, %v284
      %v377 = vadd.f32 %v376, %v304
      %v378 = vmax.f32 %v377, 0.0
      %v379 = vmul.f32 %v378, %v329
      %s380 = scalar_lea.vmem %s240, 24
      %v381 = vld [vmem:[%s380] sm:$0xf]
      %v382 = vmul.f32 %v381, %v284
      %v383 = vadd.f32 %v382, %v304
      %v384 = vmax.f32 %v383, 0.0
      %v385 = vmul.f32 %v384, %v369
      %v386 = vld [vmem:[%s3] sm:$0x3]
      %v389 = vunpack.c.l.s4 857870592
      %v390 = vunpack.c.0.s8 %v389
      %v391 = vlaneseq
      %v392 = vshrl.u32 %v391, 7
      %v393 = vsub.s32 %v390, %v392
      %v394 = vrot.slane %v386, %v393
      %v396 = vmul.f32 %v332, %v394
      %v397 = vadd.f32 %v396, 0.0
      %s398 = scalar_lea.vmem %s3, 2
      %v399 = vld [vmem:[%s398] sm:$0x3]
      %v402 = vunpack.c.l.s4 857870592
      %v403 = vunpack.c.0.s8 %v402
      %v404 = vlaneseq
      %v405 = vshrl.u32 %v404, 7
      %v406 = vsub.s32 %v403, %v405
      %v407 = vrot.slane %v399, %v406
      %v409 = vmul.f32 %v372, %v407
      %v410 = vadd.f32 %v397, %v409
      %s411 = scalar_lea.vmem %s3, 4
      %v412 = vld [vmem:[%s411] sm:$0x3]
      %v415 = vunpack.c.l.s4 857870592
      %v416 = vunpack.c.0.s8 %v415
      %v417 = vlaneseq
      %v418 = vshrl.u32 %v417, 7
      %v419 = vsub.s32 %v416, %v418
      %v420 = vrot.slane %v412, %v419
      %v422 = vmul.f32 %v332, %v420
      %v424 = vrot.slane %v422, 7
      %v425 = vrot.slane %v424, 2
      %v427 = vadd.f32 %v410, %v425
      %s428 = scalar_lea.vmem %s3, 6
      %v429 = vld [vmem:[%s428] sm:$0x3]
      %v432 = vunpack.c.l.s4 857870592
      %v433 = vunpack.c.0.s8 %v432
      %v434 = vlaneseq
      %v435 = vshrl.u32 %v434, 7
      %v436 = vsub.s32 %v433, %v435
      %v437 = vrot.slane %v429, %v436
      %v439 = vmul.f32 %v379, %v437
      %v440 = vadd.f32 %v427, %v439
      %s441 = scalar_lea.vmem %s3, 8
      %v442 = vld [vmem:[%s441] sm:$0x3]
      %v445 = vunpack.c.l.s4 857870592
      %v446 = vunpack.c.0.s8 %v445
      %v447 = vlaneseq
      %v448 = vshrl.u32 %v447, 7
      %v449 = vsub.s32 %v446, %v448
      %v450 = vrot.slane %v442, %v449
      %v452 = vmul.f32 %v385, %v450
      %v453 = vadd.f32 %v440, %v452
      %s454 = scalar_lea.vmem %s3, 10
      %v455 = vld [vmem:[%s454] sm:$0x3]
      %v458 = vunpack.c.l.s4 857870592
      %v459 = vunpack.c.0.s8 %v458
      %v460 = vlaneseq
      %v461 = vshrl.u32 %v460, 7
      %v462 = vsub.s32 %v459, %v461
      %v463 = vrot.slane %v455, %v462
      %v465 = vmul.f32 %v379, %v463
      %v467 = vrot.slane %v465, 7
      %v468 = vrot.slane %v467, 2
      %v470 = vadd.f32 %v453, %v468
      %s471 = scalar_lea.vmem %s3, 12
      %v472 = vld [vmem:[%s471] sm:$0x3]
      %v475 = vunpack.c.l.s4 857870592
      %v476 = vunpack.c.0.s8 %v475
      %v477 = vlaneseq
      %v478 = vshrl.u32 %v477, 7
      %v479 = vsub.s32 %v476, %v478
      %v480 = vrot.slane %v472, %v479
      %v482 = vmul.f32 %v333, %v480
      %v483 = vadd.f32 %v470, %v482
      %s484 = scalar_lea.vmem %s3, 14
      %v485 = vld [vmem:[%s484] sm:$0x3]
      %v488 = vunpack.c.l.s4 857870592
      %v489 = vunpack.c.0.s8 %v488
      %v490 = vlaneseq
      %v491 = vshrl.u32 %v490, 7
      %v492 = vsub.s32 %v489, %v491
      %v493 = vrot.slane %v485, %v492
      %v495 = vmul.f32 %v373, %v493
      %v496 = vadd.f32 %v483, %v495
      %s497 = scalar_lea.vmem %s3, 16
      %v498 = vld [vmem:[%s497] sm:$0x3]
      %v501 = vunpack.c.l.s4 857870592
      %v502 = vunpack.c.0.s8 %v501
      %v503 = vlaneseq
      %v504 = vshrl.u32 %v503, 7
      %v505 = vsub.s32 %v502, %v504
      %v506 = vrot.slane %v498, %v505
      %v508 = vmul.f32 %v333, %v506
      %v510 = vrot.slane %v508, 7
      %v511 = vrot.slane %v510, 2
      %v513 = vadd.f32 %v496, %v511
      %v516 = vunpack.c.l.s4 1966171168
      %v517 = vunpack.c.0.s8 %v516
      %v518 = vlaneseq
      %v519 = vshrl.u32 %v518, 7
      %v520 = vsub.s32 %v517, %v519
      %v521 = vrot.slane %v513, %v520
      %v523 = vlaneseq
      %vm524 = vcmp.ge.s32.totalorder %v523, 0
      %vm525 = vcmp.lt.s32.totalorder %v523, 256
      %vm526 = vmand %vm524, %vm525
      %527 = vst.msk [vmem:[%s244] sm:$0x3] %vm526, %v521
      %v528 = vld [vmem:[%s5] sm:$0x3]
      %v529 = vadd.f32 %v513, 0.0
      %v530 = vadd.f32 %v529, 0.0
      %v533 = vunpack.c.l.s4 1966171168
      %v534 = vunpack.c.0.s8 %v533
      %v535 = vlaneseq
      %v536 = vshrl.u32 %v535, 7
      %v537 = vsub.s32 %v534, %v536
      %v538 = vrot.slane %v530, %v537
      %v540 = vadd.f32 %v528, %v538
      %541 = vst.msk [vmem:[%s5] sm:$0x3] %vm526, %v540
      %v542 = vld [vmem:[%s6] sm:$0x3]
      %v543 = vmul.f32 %v513, %v513
      %v544 = vadd.f32 %v543, 0.0
      %v545 = vadd.f32 %v544, 0.0
      %v548 = vunpack.c.l.s4 1966171168
      %v549 = vunpack.c.0.s8 %v548
      %v550 = vlaneseq
      %v551 = vshrl.u32 %v550, 7
      %v552 = vsub.s32 %v549, %v551
      %v553 = vrot.slane %v545, %v552
      %v555 = vadd.f32 %v542, %v553
      %556 = vst.msk [vmem:[%s6] sm:$0x3] %vm526, %v555
      %p557 = scmp.lt.s32.totalorder %s18, 1
      %s558 = scalar_select %p557, %s18, 1
      %s559 = smul.addr %s558, 2
      %s560 = scalar_lea.vmem %s4, %s559
      // Predicated region
      $region41: #{mnet_forward.19} parent=35 // pred_check
        %p561 = pneg %p125
      $region42: #{mnet_forward.19} parent=35 // pred_check_branch
        %563 = sbr.rel (%p561) target = $region44
      $region43: #{mnet_forward.19} parent=35 // pred_region
        _
      $region44: #{mnet_forward.19} parent=35 // pred_fallthru
        _
      // Predicated region
      $region45: #{mnet_forward.19} parent=35 // pred_check
        %p564 = pneg %p146
      $region46: #{mnet_forward.19} parent=35 // pred_check_branch
        %566 = sbr.rel (%p564) target = $region48
      $region47: #{mnet_forward.19} parent=35 // pred_region
        _
      $region48: #{mnet_forward.19} parent=35 // pred_fallthru
        _
      // Predicated region
      $region49: #{mnet_forward.19} parent=35 // pred_check
        %p567 = pneg %p167
      $region50: #{mnet_forward.19} parent=35 // pred_check_branch
        %569 = sbr.rel (%p567) target = $region52
      $region51: #{mnet_forward.19} parent=35 // pred_region
        _
      $region52: #{mnet_forward.19} parent=35 // pred_fallthru
        _
      // Predicated region
      $region53: #{mnet_forward.19} parent=35 // pred_check
        %p570 = pneg %p146
      $region54: #{mnet_forward.19} parent=35 // pred_check_branch
        %572 = sbr.rel (%p570) target = $region56
      $region55: #{mnet_forward.19} parent=35 // pred_region
        _
      $region56: #{mnet_forward.19} parent=35 // pred_fallthru
        _
      // Predicated region
      $region57: #{mnet_forward.19} parent=35 // pred_check
        %p573 = pneg %p167
      $region58: #{mnet_forward.19} parent=35 // pred_check_branch
        %575 = sbr.rel (%p573) target = $region60
      $region59: #{mnet_forward.19} parent=35 // pred_region
        _
      $region60: #{mnet_forward.19} parent=35 // pred_fallthru
        _
    $region36: #{mnet_forward.19} parent=5 // pred_fallthru
      _
    %p576 = scmp.le.s32.totalorder 2, %s13
    // Predicated region
    $region61: #{mnet_forward.19} parent=5 // pred_check
      %p577 = pneg %p576
    $region62: #{mnet_forward.19} parent=5 // pred_check_branch
      %579 = sbr.rel (%p577) target = $region64
    $region63: #{mnet_forward.19} parent=5 // pred_region
      %s580 = ssub.s32 %s13, 2
      // Predicated region
      $region65: #{mnet_forward.19} parent=63 // pred_check
        %p581 = pneg %p131
      $region66: #{mnet_forward.19} parent=63 // pred_check_branch
        %583 = sbr.rel (%p581) target = $region68
      $region67: #{mnet_forward.19} parent=63 // pred_region
        %p584 = scmp.lt.s32.totalorder %s19, 1
        %s585 = scalar_select %p584, %s19, 1
        %s586 = smul.addr %s585, 2
        %s587 = scalar_lea.vmem %s4, %s586
      $region68: #{mnet_forward.19} parent=63 // pred_fallthru
        _
    $region64: #{mnet_forward.19} parent=5 // pred_fallthru
      _
  $region6: #{mnet_forward.19} parent=0 // loop_footer
    %s17 = sadd.s32 1, %s13
  $region7: #{mnet_forward.19} parent=0 // loop_footer_branch
    %12 = sbr.rel target = $region3
  $region8: #{mnet_forward.19} parent=0 // loop_exit
    _

// kernel: mnet_forward.20
$region0: #{mnet_forward.20}
  #allocation0 [shape = 'u32[]', space=smem, size = 0x4, offset = 0x4, fixed_abs, tag = 'smem constant byte address 0x4 - core index']
  #allocation1 [shape = 'u32[144,128]{1,0:T(1,128)}', space=vmem, size = 0x12000, scoped, tag = 'internal scratch']
  %s0 = inlined_call_operand.vmem [shape: f32[1,256], index: 0, kind: input, shape index: {}]
  %s1 = inlined_call_operand.vmem [shape: f32[1,256], index: 1, kind: input, shape index: {}]
  %s2 = inlined_call_operand.vmem [shape: f32[2,256], index: 2, kind: input, shape index: {}]
  %s3 = inlined_call_operand.vmem [shape: bf16[256,512], index: 3, kind: input, shape index: {}]
  %s4 = inlined_call_operand.vmem [shape: f32[2,512], index: 4, kind: output, shape index: {0}]
  %s5 = inlined_call_operand.vmem [shape: f32[1,512], index: 5, kind: output, shape index: {1}]
  %s6 = inlined_call_operand.vmem [shape: f32[1,512], index: 6, kind: output, shape index: {2}]
  %7 = xla_tuple %s4, %s5, %s6
  %s8 = sld [smem:[#allocation0]]
  $region46: #{mnet_forward.20} parent=0
    _
  %s10 = ssub.s32 1, %s8
  %s11 = scalar_select 0, %s10, %s8
  // Predicated region
  $region2: #{mnet_forward.20} parent=0 // pred_check
    _
  $region3: #{mnet_forward.20} parent=0 // pred_check_branch
    %13 = sbr.rel (0) target = $region5
  $region4: #{mnet_forward.20} parent=0 // pred_region
    _
  $region5: #{mnet_forward.20} parent=0 // pred_fallthru
    _
  // Predicated region
  $region6: #{mnet_forward.20} parent=0 // pred_check
    _
  $region7: #{mnet_forward.20} parent=0 // pred_check_branch
    %15 = sbr.rel (0) target = $region9
  $region8: #{mnet_forward.20} parent=0 // pred_region
    _
  $region9: #{mnet_forward.20} parent=0 // pred_fallthru
    _
  // Predicated region
  $region10: #{mnet_forward.20} parent=0 // pred_check
    _
  $region11: #{mnet_forward.20} parent=0 // pred_check_branch
    %17 = sbr.rel (0) target = $region13
  $region12: #{mnet_forward.20} parent=0 // pred_region
    _
  $region13: #{mnet_forward.20} parent=0 // pred_fallthru
    _
  // Predicated region
  $region14: #{mnet_forward.20} parent=0 // pred_check
    _
  $region15: #{mnet_forward.20} parent=0 // pred_check_branch
    %19 = sbr.rel (0) target = $region17
  $region16: #{mnet_forward.20} parent=0 // pred_region
    _
  $region17: #{mnet_forward.20} parent=0 // pred_fallthru
    _
  %p20 = scmp.eq.s32.totalorder 0, 0
  // Predicated region
  $region18: #{mnet_forward.20} parent=0 // pred_check
    %p21 = pneg %p20
  $region19: #{mnet_forward.20} parent=0 // pred_check_branch
    %23 = sbr.rel (%p21) target = $region21
  $region20: #{mnet_forward.20} parent=0 // pred_region
    %v24 = vlaneseq
    %vm25 = vcmp.ge.s32.totalorder %v24, 0
    %vm26 = vcmp.lt.s32.totalorder %v24, 512
    %vm27 = vmand %vm25, %vm26
    %28 = vst.msk [vmem:[%s5] sm:$0xf] %vm27, 0.0
    %29 = vst.msk [vmem:[%s6] sm:$0xf] %vm27, 0.0
  $region21: #{mnet_forward.20} parent=0 // pred_fallthru
    _
  %v30 = vld [vmem:[%s2] sm:$0xf]
  %v31 = vld [vmem:[%s0] sm:$0x3]
  %v33 = vlaneseq
  %v34 = vshrl.u32 %v33, 7
  %v35 = vsub.s32 0, %v34
  %v36 = vrot.slane %v31, %v35
  %v37 = vlaneseq
  %v38 = vshrl.u32 %v37, 7
  %v39 = vsub.s32 1, %v38
  %v40 = vrot.slane %v31, %v39
  %v41 = vcombine.low %v36, %v40
  %v43 = vunpack.c.l.s4 1983009808
  %v44 = vunpack.c.0.s8 %v43
  %v45 = vlaneseq
  %v46 = vshrl.u32 %v45, 7
  %v47 = vsub.s32 %v44, %v46
  %v48 = vrot.slane %v41, %v47
  %v50 = vmul.f32 %v30, %v48
  %v51 = vld [vmem:[%s1] sm:$0x3]
  %v53 = vlaneseq
  %v54 = vshrl.u32 %v53, 7
  %v55 = vsub.s32 0, %v54
  %v56 = vrot.slane %v51, %v55
  %v57 = vlaneseq
  %v58 = vshrl.u32 %v57, 7
  %v59 = vsub.s32 1, %v58
  %v60 = vrot.slane %v51, %v59
  %v61 = vcombine.low %v56, %v60
  %v63 = vunpack.c.l.s4 1983009808
  %v64 = vunpack.c.0.s8 %v63
  %v65 = vlaneseq
  %v66 = vshrl.u32 %v65, 7
  %v67 = vsub.s32 %v64, %v66
  %v68 = vrot.slane %v61, %v67
  %v70 = vadd.f32 %v50, %v68
  %v71 = vmax.f32 %v70, 0.0
  %v74 = vunpack.c.l.s4 1983009808
  %v75 = vunpack.c.0.s8 %v74
  %v76 = vlaneseq
  %v77 = vshrl.u32 %v76, 7
  %v78 = vsub.s32 %v75, %v77
  %v79 = vrot.slane %v71, %v78
  %v80 = vcombine.high %v79, %v79
  %v83 = vpack.c.bf16 %v79, %v79
  %v84 = vpack.c.bf16 %v80, %v80
  %v85 = vld [vmem:[%s3] sm:$0xff]
  %v86 = vld [vmem:[%s3 + $0x8] sm:$0xff]
  %v87 = vld [vmem:[%s3 + $0x10] sm:$0xff]
  %v88 = vld [vmem:[%s3 + $0x18] sm:$0xff]
  %v89 = vld [vmem:[%s3 + $0x20] sm:$0xff]
  %v90 = vld [vmem:[%s3 + $0x28] sm:$0xff]
  %v91 = vld [vmem:[%s3 + $0x30] sm:$0xff]
  %v92 = vld [vmem:[%s3 + $0x38] sm:$0xff]
  %v93 = vld [vmem:[%s3 + $0x40] sm:$0xff]
  %v94 = vld [vmem:[%s3 + $0x48] sm:$0xff]
  %v95 = vld [vmem:[%s3 + $0x50] sm:$0xff]
  %v96 = vld [vmem:[%s3 + $0x58] sm:$0xff]
  %v97 = vld [vmem:[%s3 + $0x60] sm:$0xff]
  %v98 = vld [vmem:[%s3 + $0x68] sm:$0xff]
  %v99 = vld [vmem:[%s3 + $0x70] sm:$0xff]
  %v100 = vld [vmem:[%s3 + $0x78] sm:$0xff]
  %v101 = vld [vmem:[%s3 + $0x80] sm:$0xff]
  %v102 = vld [vmem:[%s3 + $0x88] sm:$0xff]
  %v103 = vld [vmem:[%s3 + $0x90] sm:$0xff]
  %v104 = vld [vmem:[%s3 + $0x98] sm:$0xff]
  %v105 = vld [vmem:[%s3 + $0xa0] sm:$0xff]
  %v106 = vld [vmem:[%s3 + $0xa8] sm:$0xff]
  %v107 = vld [vmem:[%s3 + $0xb0] sm:$0xff]
  %v108 = vld [vmem:[%s3 + $0xb8] sm:$0xff]
  %v109 = vld [vmem:[%s3 + $0xc0] sm:$0xff]
  %v110 = vld [vmem:[%s3 + $0xc8] sm:$0xff]
  %v111 = vld [vmem:[%s3 + $0xd0] sm:$0xff]
  %v112 = vld [vmem:[%s3 + $0xd8] sm:$0xff]
  %v113 = vld [vmem:[%s3 + $0xe0] sm:$0xff]
  %v114 = vld [vmem:[%s3 + $0xe8] sm:$0xff]
  %v115 = vld [vmem:[%s3 + $0xf0] sm:$0xff]
  %v116 = vld [vmem:[%s3 + $0xf8] sm:$0xff]
  %v117 = vld [vmem:[%s3 + $0x100] sm:$0xff]
  %v118 = vld [vmem:[%s3 + $0x108] sm:$0xff]
  %v119 = vld [vmem:[%s3 + $0x110] sm:$0xff]
  %v120 = vld [vmem:[%s3 + $0x118] sm:$0xff]
  %v121 = vld [vmem:[%s3 + $0x120] sm:$0xff]
  %v122 = vld [vmem:[%s3 + $0x128] sm:$0xff]
  %v123 = vld [vmem:[%s3 + $0x130] sm:$0xff]
  %v124 = vld [vmem:[%s3 + $0x138] sm:$0xff]
  %v125 = vld [vmem:[%s3 + $0x140] sm:$0xff]
  %v126 = vld [vmem:[%s3 + $0x148] sm:$0xff]
  %v127 = vld [vmem:[%s3 + $0x150] sm:$0xff]
  %v128 = vld [vmem:[%s3 + $0x158] sm:$0xff]
  %v129 = vld [vmem:[%s3 + $0x160] sm:$0xff]
  %v130 = vld [vmem:[%s3 + $0x168] sm:$0xff]
  %v131 = vld [vmem:[%s3 + $0x170] sm:$0xff]
  %v132 = vld [vmem:[%s3 + $0x178] sm:$0xff]
  %v133 = vld [vmem:[%s3 + $0x180] sm:$0xff]
  %v134 = vld [vmem:[%s3 + $0x188] sm:$0xff]
  %v135 = vld [vmem:[%s3 + $0x190] sm:$0xff]
  %v136 = vld [vmem:[%s3 + $0x198] sm:$0xff]
  %v137 = vld [vmem:[%s3 + $0x1a0] sm:$0xff]
  %v138 = vld [vmem:[%s3 + $0x1a8] sm:$0xff]
  %v139 = vld [vmem:[%s3 + $0x1b0] sm:$0xff]
  %v140 = vld [vmem:[%s3 + $0x1b8] sm:$0xff]
  %v141 = vld [vmem:[%s3 + $0x1c0] sm:$0xff]
  %v142 = vld [vmem:[%s3 + $0x1c8] sm:$0xff]
  %v143 = vld [vmem:[%s3 + $0x1d0] sm:$0xff]
  %v144 = vld [vmem:[%s3 + $0x1d8] sm:$0xff]
  %v145 = vld [vmem:[%s3 + $0x1e0] sm:$0xff]
  %v146 = vld [vmem:[%s3 + $0x1e8] sm:$0xff]
  %v147 = vld [vmem:[%s3 + $0x1f0] sm:$0xff]
  %v148 = vld [vmem:[%s3 + $0x1f8] sm:$0xff]
  %v213 = vunpack.c.l.b16 %v85
  %v214 = vunpack.c.h.b16 %v85
  %v215 = vunpack.c.l.b16 %v86
  %v216 = vunpack.c.h.b16 %v86
  %v217 = vunpack.c.l.b16 %v87
  %v218 = vunpack.c.h.b16 %v87
  %v219 = vunpack.c.l.b16 %v88
  %v220 = vunpack.c.h.b16 %v88
  %v221 = vunpack.c.l.b16 %v89
  %v222 = vunpack.c.h.b16 %v89
  %v223 = vunpack.c.l.b16 %v90
  %v224 = vunpack.c.h.b16 %v90
  %v225 = vunpack.c.l.b16 %v91
  %v226 = vunpack.c.h.b16 %v91
  %v227 = vunpack.c.l.b16 %v92
  %v228 = vunpack.c.h.b16 %v92
  %v229 = vunpack.c.l.b16 %v93
  %v230 = vunpack.c.h.b16 %v93
  %v231 = vunpack.c.l.b16 %v94
  %v232 = vunpack.c.h.b16 %v94
  %v233 = vunpack.c.l.b16 %v95
  %v234 = vunpack.c.h.b16 %v95
  %v235 = vunpack.c.l.b16 %v96
  %v236 = vunpack.c.h.b16 %v96
  %v237 = vunpack.c.l.b16 %v97
  %v238 = vunpack.c.h.b16 %v97
  %v239 = vunpack.c.l.b16 %v98
  %v240 = vunpack.c.h.b16 %v98
  %v241 = vunpack.c.l.b16 %v99
  %v242 = vunpack.c.h.b16 %v99
  %v243 = vunpack.c.l.b16 %v100
  %v244 = vunpack.c.h.b16 %v100
  %v245 = vunpack.c.l.b16 %v101
  %v246 = vunpack.c.h.b16 %v101
  %v247 = vunpack.c.l.b16 %v102
  %v248 = vunpack.c.h.b16 %v102
  %v249 = vunpack.c.l.b16 %v103
  %v250 = vunpack.c.h.b16 %v103
  %v251 = vunpack.c.l.b16 %v104
  %v252 = vunpack.c.h.b16 %v104
  %v253 = vunpack.c.l.b16 %v105
  %v254 = vunpack.c.h.b16 %v105
  %v255 = vunpack.c.l.b16 %v106
  %v256 = vunpack.c.h.b16 %v106
  %v257 = vunpack.c.l.b16 %v107
  %v258 = vunpack.c.h.b16 %v107
  %v259 = vunpack.c.l.b16 %v108
  %v260 = vunpack.c.h.b16 %v108
  %v261 = vunpack.c.l.b16 %v109
  %v262 = vunpack.c.h.b16 %v109
  %v263 = vunpack.c.l.b16 %v110
  %v264 = vunpack.c.h.b16 %v110
  %v265 = vunpack.c.l.b16 %v111
  %v266 = vunpack.c.h.b16 %v111
  %v267 = vunpack.c.l.b16 %v112
  %v268 = vunpack.c.h.b16 %v112
  %v269 = vunpack.c.l.b16 %v113
  %v270 = vunpack.c.h.b16 %v113
  %v271 = vunpack.c.l.b16 %v114
  %v272 = vunpack.c.h.b16 %v114
  %v273 = vunpack.c.l.b16 %v115
  %v274 = vunpack.c.h.b16 %v115
  %v275 = vunpack.c.l.b16 %v116
  %v276 = vunpack.c.h.b16 %v116
  %v277 = vunpack.c.l.b16 %v117
  %v278 = vunpack.c.h.b16 %v117
  %v279 = vunpack.c.l.b16 %v118
  %v280 = vunpack.c.h.b16 %v118
  %v281 = vunpack.c.l.b16 %v119
  %v282 = vunpack.c.h.b16 %v119
  %v283 = vunpack.c.l.b16 %v120
  %v284 = vunpack.c.h.b16 %v120
  %v285 = vunpack.c.l.b16 %v121
  %v286 = vunpack.c.h.b16 %v121
  %v287 = vunpack.c.l.b16 %v122
  %v288 = vunpack.c.h.b16 %v122
  %v289 = vunpack.c.l.b16 %v123
  %v290 = vunpack.c.h.b16 %v123
  %v291 = vunpack.c.l.b16 %v124
  %v292 = vunpack.c.h.b16 %v124
  %v293 = vunpack.c.l.b16 %v125
  %v294 = vunpack.c.h.b16 %v125
  %v295 = vunpack.c.l.b16 %v126
  %v296 = vunpack.c.h.b16 %v126
  %v297 = vunpack.c.l.b16 %v127
  %v298 = vunpack.c.h.b16 %v127
  %v299 = vunpack.c.l.b16 %v128
  %v300 = vunpack.c.h.b16 %v128
  %v301 = vunpack.c.l.b16 %v129
  %v302 = vunpack.c.h.b16 %v129
  %v303 = vunpack.c.l.b16 %v130
  %v304 = vunpack.c.h.b16 %v130
  %v305 = vunpack.c.l.b16 %v131
  %v306 = vunpack.c.h.b16 %v131
  %v307 = vunpack.c.l.b16 %v132
  %v308 = vunpack.c.h.b16 %v132
  %v309 = vunpack.c.l.b16 %v133
  %v310 = vunpack.c.h.b16 %v133
  %v311 = vunpack.c.l.b16 %v134
  %v312 = vunpack.c.h.b16 %v134
  %v313 = vunpack.c.l.b16 %v135
  %v314 = vunpack.c.h.b16 %v135
  %v315 = vunpack.c.l.b16 %v136
  %v316 = vunpack.c.h.b16 %v136
  %v317 = vunpack.c.l.b16 %v137
  %v318 = vunpack.c.h.b16 %v137
  %v319 = vunpack.c.l.b16 %v138
  %v320 = vunpack.c.h.b16 %v138
  %v321 = vunpack.c.l.b16 %v139
  %v322 = vunpack.c.h.b16 %v139
  %v323 = vunpack.c.l.b16 %v140
  %v324 = vunpack.c.h.b16 %v140
  %v325 = vunpack.c.l.b16 %v141
  %v326 = vunpack.c.h.b16 %v141
  %v327 = vunpack.c.l.b16 %v142
  %v328 = vunpack.c.h.b16 %v142
  %v329 = vunpack.c.l.b16 %v143
  %v330 = vunpack.c.h.b16 %v143
  %v331 = vunpack.c.l.b16 %v144
  %v332 = vunpack.c.h.b16 %v144
  %v333 = vunpack.c.l.b16 %v145
  %v334 = vunpack.c.h.b16 %v145
  %v335 = vunpack.c.l.b16 %v146
  %v336 = vunpack.c.h.b16 %v146
  %v337 = vunpack.c.l.b16 %v147
  %v338 = vunpack.c.h.b16 %v147
  %v339 = vunpack.c.l.b16 %v148
  %v340 = vunpack.c.h.b16 %v148
  %v341 = vpack.c.b16 %v217, %v213
  %v342 = vpack.c.b16 %v218, %v214
  %v343 = vpack.c.b16 %v219, %v215
  %v344 = vpack.c.b16 %v220, %v216
  %v345 = vpack.c.b16 %v225, %v221
  %v346 = vpack.c.b16 %v226, %v222
  %v347 = vpack.c.b16 %v227, %v223
  %v348 = vpack.c.b16 %v228, %v224
  %v349 = vpack.c.b16 %v233, %v229
  %v350 = vpack.c.b16 %v234, %v230
  %v351 = vpack.c.b16 %v235, %v231
  %v352 = vpack.c.b16 %v236, %v232
  %v353 = vpack.c.b16 %v241, %v237
  %v354 = vpack.c.b16 %v242, %v238
  %v355 = vpack.c.b16 %v243, %v239
  %v356 = vpack.c.b16 %v244, %v240
  %v357 = vpack.c.b16 %v249, %v245
  %v358 = vpack.c.b16 %v250, %v246
  %v359 = vpack.c.b16 %v251, %v247
  %v360 = vpack.c.b16 %v252, %v248
  %v361 = vpack.c.b16 %v257, %v253
  %v362 = vpack.c.b16 %v258, %v254
  %v363 = vpack.c.b16 %v259, %v255
  %v364 = vpack.c.b16 %v260, %v256
  %v365 = vpack.c.b16 %v265, %v261
  %v366 = vpack.c.b16 %v266, %v262
  %v367 = vpack.c.b16 %v267, %v263
  %v368 = vpack.c.b16 %v268, %v264
  %v369 = vpack.c.b16 %v273, %v269
  %v370 = vpack.c.b16 %v274, %v270
  %v371 = vpack.c.b16 %v275, %v271
  %v372 = vpack.c.b16 %v276, %v272
  %v373 = vpack.c.b16 %v281, %v277
  %v374 = vpack.c.b16 %v282, %v278
  %v375 = vpack.c.b16 %v283, %v279
  %v376 = vpack.c.b16 %v284, %v280
  %v377 = vpack.c.b16 %v289, %v285
  %v378 = vpack.c.b16 %v290, %v286
  %v379 = vpack.c.b16 %v291, %v287
  %v380 = vpack.c.b16 %v292, %v288
  %v381 = vpack.c.b16 %v297, %v293
  %v382 = vpack.c.b16 %v298, %v294
  %v383 = vpack.c.b16 %v299, %v295
  %v384 = vpack.c.b16 %v300, %v296
  %v385 = vpack.c.b16 %v305, %v301
  %v386 = vpack.c.b16 %v306, %v302
  %v387 = vpack.c.b16 %v307, %v303
  %v388 = vpack.c.b16 %v308, %v304
  %v389 = vpack.c.b16 %v313, %v309
  %v390 = vpack.c.b16 %v314, %v310
  %v391 = vpack.c.b16 %v315, %v311
  %v392 = vpack.c.b16 %v316, %v312
  %v393 = vpack.c.b16 %v321, %v317
  %v394 = vpack.c.b16 %v322, %v318
  %v395 = vpack.c.b16 %v323, %v319
  %v396 = vpack.c.b16 %v324, %v320
  %v397 = vpack.c.b16 %v329, %v325
  %v398 = vpack.c.b16 %v330, %v326
  %v399 = vpack.c.b16 %v331, %v327
  %v400 = vpack.c.b16 %v332, %v328
  %v401 = vpack.c.b16 %v337, %v333
  %v402 = vpack.c.b16 %v338, %v334
  %v403 = vpack.c.b16 %v339, %v335
  %v404 = vpack.c.b16 %v340, %v336
  %469 = vmatprep.subr.bf16.mxu0 %v342
  %470 = vmatpush1.bf16.msra.mxu0 %v341
  %471 = vmatprep.subr.bf16.mxu0 %v346
  %472 = vmatpush1.bf16.msra.mxu0 %v345
  %473 = vmatprep.subr.bf16.mxu0 %v350
  %474 = vmatpush1.bf16.msra.mxu0 %v349
  %475 = vmatprep.subr.bf16.mxu0 %v354
  %476 = vmatpush1.bf16.msra.mxu0 %v353
  %477 = vmatprep.subr.bf16.mxu0 %v358
  %478 = vmatpush1.bf16.msra.mxu0 %v357
  %479 = vmatprep.subr.bf16.mxu0 %v362
  %480 = vmatpush1.bf16.msra.mxu0 %v361
  %481 = vmatprep.subr.bf16.mxu0 %v366
  %482 = vmatpush1.bf16.msra.mxu0 %v365
  %483 = vmatprep.subr.bf16.mxu0 %v370
  %484 = vmatpush1.bf16.msra.mxu0 %v369
  %485 = vmatprep.subr.bf16.mxu0 %v374
  %486 = vmatpush1.bf16.msra.mxu0 %v373
  %487 = vmatprep.subr.bf16.mxu0 %v378
  %488 = vmatpush1.bf16.msra.mxu0 %v377
  %489 = vmatprep.subr.bf16.mxu0 %v382
  %490 = vmatpush1.bf16.msra.mxu0 %v381
  %491 = vmatprep.subr.bf16.mxu0 %v386
  %492 = vmatpush1.bf16.msra.mxu0 %v385
  %493 = vmatprep.subr.bf16.mxu0 %v390
  %494 = vmatpush1.bf16.msra.mxu0 %v389
  %495 = vmatprep.subr.bf16.mxu0 %v394
  %496 = vmatpush1.bf16.msra.mxu0 %v393
  %497 = vmatprep.subr.bf16.mxu0 %v398
  %498 = vmatpush1.bf16.msra.mxu0 %v397
  %499 = vmatprep.subr.bf16.mxu0 %v402
  %500 = vmatpush1.bf16.msra.mxu0 %v401
  %501 = vmatprep.mubr.bf16.mxu0 %v84
  %502 = vmatmul.mubr.bf16.gmra.mrb[0].mxu0 %v83
  %v503 = vpop.f32.mrb[0].mxu0
  %v504 = vadd.f32 0.0, %v503
  %v505 = vpop.f32.mrb[0].mxu0
  %v506 = vadd.f32 0.0, %v505
  %v507 = vpop.f32.mrb[0].mxu0
  %v508 = vpop.f32.mrb[0].mxu0
  %509 = vdwg.mxu0
  %510 = vmatprep.subr.bf16.mxu0 %v344
  %511 = vmatpush1.bf16.msra.mxu0 %v343
  %512 = vmatprep.subr.bf16.mxu0 %v348
  %513 = vmatpush1.bf16.msra.mxu0 %v347
  %514 = vmatprep.subr.bf16.mxu0 %v352
  %515 = vmatpush1.bf16.msra.mxu0 %v351
  %516 = vmatprep.subr.bf16.mxu0 %v356
  %517 = vmatpush1.bf16.msra.mxu0 %v355
  %518 = vmatprep.subr.bf16.mxu0 %v360
  %519 = vmatpush1.bf16.msra.mxu0 %v359
  %520 = vmatprep.subr.bf16.mxu0 %v364
  %521 = vmatpush1.bf16.msra.mxu0 %v363
  %522 = vmatprep.subr.bf16.mxu0 %v368
  %523 = vmatpush1.bf16.msra.mxu0 %v367
  %524 = vmatprep.subr.bf16.mxu0 %v372
  %525 = vmatpush1.bf16.msra.mxu0 %v371
  %526 = vmatprep.subr.bf16.mxu0 %v376
  %527 = vmatpush1.bf16.msra.mxu0 %v375
  %528 = vmatprep.subr.bf16.mxu0 %v380
  %529 = vmatpush1.bf16.msra.mxu0 %v379
  %530 = vmatprep.subr.bf16.mxu0 %v384
  %531 = vmatpush1.bf16.msra.mxu0 %v383
  %532 = vmatprep.subr.bf16.mxu0 %v388
  %533 = vmatpush1.bf16.msra.mxu0 %v387
  %534 = vmatprep.subr.bf16.mxu0 %v392
  %535 = vmatpush1.bf16.msra.mxu0 %v391
  %536 = vmatprep.subr.bf16.mxu0 %v396
  %537 = vmatpush1.bf16.msra.mxu0 %v395
  %538 = vmatprep.subr.bf16.mxu0 %v400
  %539 = vmatpush1.bf16.msra.mxu0 %v399
  %540 = vmatprep.subr.bf16.mxu0 %v404
  %541 = vmatpush1.bf16.msra.mxu0 %v403
  %542 = vmatprep.mubr.bf16.mxu0 %v84
  %543 = vmatmul.mubr.bf16.gmra.mrb[0].mxu0 %v83
  %v544 = vpop.f32.mrb[0].mxu0
  %v545 = vadd.f32 0.0, %v544
  %v546 = vpop.f32.mrb[0].mxu0
  %v547 = vadd.f32 0.0, %v546
  %v548 = vpop.f32.mrb[0].mxu0
  %v549 = vpop.f32.mrb[0].mxu0
  %550 = vdwg.mxu0
  %v555 = vcombine.low %v504, %v506
  %v556 = vcombine.low %v545, %v547
  %v558 = vunpack.c.l.s4 1983009808
  %v559 = vunpack.c.0.s8 %v558
  %v560 = vlaneseq
  %v561 = vshrl.u32 %v560, 7
  %v562 = vsub.s32 %v559, %v561
  %v563 = vrot.slane %v555, %v562
  %v565 = vunpack.c.l.s4 1983009808
  %v566 = vunpack.c.0.s8 %v565
  %v567 = vlaneseq
  %v568 = vshrl.u32 %v567, 7
  %v569 = vsub.s32 %v566, %v568
  %v570 = vrot.slane %v556, %v569
  %v571 = vcombine.low %v563, %v570
  %573 = vst [vmem:[%s4] sm:$0xff] %v571
  %v574 = vld [vmem:[%s5] sm:$0xf]
  %vm575 = vcmask 1041408
  %v576 = vsel %vm575, %v504, 0.0
  %v577 = vrot.slane %v576, 4
  %v578 = vadd.f32 %v576, %v577
  %v579 = vrot.slane %v578, 2
  %v580 = vadd.f32 %v578, %v579
  %v581 = vrot.slane %v580, 1
  %v582 = vadd.f32 %v580, %v581
  %v583 = vsel %vm575, %v506, 0.0
  %v584 = vrot.slane %v583, 4
  %v585 = vadd.f32 %v583, %v584
  %v586 = vrot.slane %v585, 2
  %v587 = vadd.f32 %v585, %v586
  %v588 = vrot.slane %v587, 1
  %v589 = vadd.f32 %v587, %v588
  %v590 = vsel %vm575, %v545, 0.0
  %v591 = vrot.slane %v590, 4
  %v592 = vadd.f32 %v590, %v591
  %v593 = vrot.slane %v592, 2
  %v594 = vadd.f32 %v592, %v593
  %v595 = vrot.slane %v594, 1
  %v596 = vadd.f32 %v594, %v595
  %v597 = vsel %vm575, %v547, 0.0
  %v598 = vrot.slane %v597, 4
  %v599 = vadd.f32 %v597, %v598
  %v600 = vrot.slane %v599, 2
  %v601 = vadd.f32 %v599, %v600
  %v602 = vrot.slane %v601, 1
  %v603 = vadd.f32 %v601, %v602
  %v608 = vcombine.low %v582, %v589
  %v609 = vcombine.low %v596, %v603
  %v611 = vunpack.c.l.s4 1966171168
  %v612 = vunpack.c.0.s8 %v611
  %v613 = vlaneseq
  %v614 = vshrl.u32 %v613, 7
  %v615 = vsub.s32 %v612, %v614
  %v616 = vrot.slane %v608, %v615
  %v618 = vunpack.c.l.s4 1966171168
  %v619 = vunpack.c.0.s8 %v618
  %v620 = vlaneseq
  %v621 = vshrl.u32 %v620, 7
  %v622 = vsub.s32 %v619, %v621
  %v623 = vrot.slane %v609, %v622
  %v624 = vcombine.low %v616, %v623
  %v626 = vunpack.c.l.s4 1966171168
  %v627 = vunpack.c.0.s8 %v626
  %v628 = vlaneseq
  %v629 = vshrl.u32 %v628, 7
  %v630 = vsub.s32 %v627, %v629
  %v631 = vrot.slane %v624, %v630
  %v633 = vadd.f32 %v574, %v631
  %v634 = vlaneseq
  %vm635 = vcmp.ge.s32.totalorder %v634, 0
  %vm636 = vcmp.lt.s32.totalorder %v634, 512
  %vm637 = vmand %vm635, %vm636
  %638 = vst.msk [vmem:[%s5] sm:$0xf] %vm637, %v633
  %v639 = vld [vmem:[%s6] sm:$0xf]
  %v640 = vmul.f32 %v504, %v504
  %v641 = vmul.f32 %v506, %v506
  %v642 = vmul.f32 %v545, %v545
  %v643 = vmul.f32 %v547, %v547
  %v644 = vsel %vm575, %v640, 0.0
  %v645 = vrot.slane %v644, 4
  %v646 = vadd.f32 %v644, %v645
  %v647 = vrot.slane %v646, 2
  %v648 = vadd.f32 %v646, %v647
  %v649 = vrot.slane %v648, 1
  %v650 = vadd.f32 %v648, %v649
  %v651 = vsel %vm575, %v641, 0.0
  %v652 = vrot.slane %v651, 4
  %v653 = vadd.f32 %v651, %v652
  %v654 = vrot.slane %v653, 2
  %v655 = vadd.f32 %v653, %v654
  %v656 = vrot.slane %v655, 1
  %v657 = vadd.f32 %v655, %v656
  %v658 = vsel %vm575, %v642, 0.0
  %v659 = vrot.slane %v658, 4
  %v660 = vadd.f32 %v658, %v659
  %v661 = vrot.slane %v660, 2
  %v662 = vadd.f32 %v660, %v661
  %v663 = vrot.slane %v662, 1
  %v664 = vadd.f32 %v662, %v663
  %v665 = vsel %vm575, %v643, 0.0
  %v666 = vrot.slane %v665, 4
  %v667 = vadd.f32 %v665, %v666
  %v668 = vrot.slane %v667, 2
  %v669 = vadd.f32 %v667, %v668
  %v670 = vrot.slane %v669, 1
  %v671 = vadd.f32 %v669, %v670
  %v676 = vcombine.low %v650, %v657
  %v677 = vcombine.low %v664, %v671
  %v679 = vunpack.c.l.s4 1966171168
  %v680 = vunpack.c.0.s8 %v679
  %v681 = vlaneseq
  %v682 = vshrl.u32 %v681, 7
  %v683 = vsub.s32 %v680, %v682
  %v684 = vrot.slane %v676, %v683
  %v686 = vunpack.c.l.s4 1966171168
  %v687 = vunpack.c.0.s8 %v686
  %v688 = vlaneseq
  %v689 = vshrl.u32 %v688, 7
  %v690 = vsub.s32 %v687, %v689
  %v691 = vrot.slane %v677, %v690
  %v692 = vcombine.low %v684, %v691
  %v694 = vunpack.c.l.s4 1966171168
  %v695 = vunpack.c.0.s8 %v694
  %v696 = vlaneseq
  %v697 = vshrl.u32 %v696, 7
  %v698 = vsub.s32 %v695, %v697
  %v699 = vrot.slane %v692, %v698
  %v701 = vadd.f32 %v639, %v699
  %702 = vst.msk [vmem:[%s6] sm:$0xf] %vm637, %v701
  // Predicated region
  $region22: #{mnet_forward.20} parent=0 // pred_check
    _
  $region23: #{mnet_forward.20} parent=0 // pred_check_branch
    %704 = sbr.rel (0) target = $region25
  $region24: #{mnet_forward.20} parent=0 // pred_region
    _
  $region25: #{mnet_forward.20} parent=0 // pred_fallthru
    _
  // Predicated region
  $region26: #{mnet_forward.20} parent=0 // pred_check
    _
  $region27: #{mnet_forward.20} parent=0 // pred_check_branch
    %706 = sbr.rel (0) target = $region29
  $region28: #{mnet_forward.20} parent=0 // pred_region
    _
  $region29: #{mnet_forward.20} parent=0 // pred_fallthru
    _
  // Predicated region
  $region30: #{mnet_forward.20} parent=0 // pred_check
    _
  $region31: #{mnet_forward.20} parent=0 // pred_check_branch
    %708 = sbr.rel (0) target = $region33
  $region32: #{mnet_forward.20} parent=0 // pred_region
    _
  $region33: #{mnet_forward.20} parent=0 // pred_fallthru
    _
  // Predicated region
  $region34: #{mnet_forward.20} parent=0 // pred_check
    _
  $region35: #{mnet_forward.20} parent=0 // pred_check_branch
    %710 = sbr.rel (0) target = $region37
  $region36: #{mnet_forward.20} parent=0 // pred_region
    _
  $region37: #{mnet_forward.20} parent=0 // pred_fallthru
    _
  // Predicated region
  $region38: #{mnet_forward.20} parent=0 // pred_check
    _
  $region39: #{mnet_forward.20} parent=0 // pred_check_branch
    %712 = sbr.rel (0) target = $region41
  $region40: #{mnet_forward.20} parent=0 // pred_region
    _
  $region41: #{mnet_forward.20} parent=0 // pred_fallthru
    _
  // Predicated region
  $region42: #{mnet_forward.20} parent=0 // pred_check
    _
  $region43: #{mnet_forward.20} parent=0 // pred_check_branch
    %714 = sbr.rel (0) target = $region45
  $region44: #{mnet_forward.20} parent=0 // pred_region
    _
  $region45: #{mnet_forward.20} parent=0 // pred_fallthru
    _

// kernel: mnet_forward.21
$region0: #{mnet_forward.21}
  #allocation0 [shape = 'u32[]', space=smem, size = 0x4, offset = 0x4, fixed_abs, tag = 'smem constant byte address 0x4 - core index']
  #allocation1 [shape = 'u32[144,128]{1,0:T(1,128)}', space=vmem, size = 0x12000, scoped, tag = 'internal scratch']
  %s0 = inlined_call_operand.vmem [shape: f32[1,512], index: 0, kind: input, shape index: {}]
  %s1 = inlined_call_operand.vmem [shape: f32[1,512], index: 1, kind: input, shape index: {}]
  %s2 = inlined_call_operand.vmem [shape: f32[2,4,2,2,512], index: 2, kind: input, shape index: {}]
  %s3 = inlined_call_operand.vmem [shape: f32[3,3,1,512], index: 3, kind: input, shape index: {}]
  %s4 = inlined_call_operand.vmem [shape: f32[2,1,1,512], index: 4, kind: output, shape index: {0}]
  %s5 = inlined_call_operand.vmem [shape: f32[1,512], index: 5, kind: output, shape index: {1}]
  %s6 = inlined_call_operand.vmem [shape: f32[1,512], index: 6, kind: output, shape index: {2}]
  %7 = xla_tuple %s4, %s5, %s6
  %s8 = sld [smem:[#allocation0]]
  $region69: #{mnet_forward.21} parent=0
    _
  %s10 = ssub.s32 1, %s8
  %s11 = scalar_select 0, %s10, %s8
  loop: start=0, step=1, limit=4
  $region2: #{mnet_forward.21} parent=0 // loop_pre_header
    _
  $region3: #{mnet_forward.21} parent=0 // loop_header
    %s13 = sphi 0, %s17
    %p14 = scmp.ge.s32.totalorder %s13, 4
    %s21 = sphi 0, %s21
    %s23 = sphi 0, %s21
    %s24 = sphi 0, %s23
    %s38 = sphi 0, %s24
    %s42 = sphi 0, %s42
    %s44 = sphi 0, %s42
    %s45 = sphi 0, %s44
    %s59 = sphi 0, %s45
    %s65 = sphi 0, %s67
    %s68 = sphi 0, %s65
    %s69 = sphi 0, %s68
    %s85 = sphi 0, %s69
    %s89 = sphi 0, %s89
    %s91 = sphi 0, %s89
    %s92 = sphi 0, %s91
    %s106 = sphi 0, %s92
    %s112 = sphi 0, %s114
    %s115 = sphi 0, %s112
    %s116 = sphi 0, %s115
    %s132 = sphi 0, %s116
    %s136 = sphi 0, %s136
    %s138 = sphi 0, %s136
    %s139 = sphi 0, %s138
    %s153 = sphi 0, %s139
    %s157 = sphi 0, %s157
    %s159 = sphi 0, %s157
    %s160 = sphi 0, %s159
    %s174 = sphi 0, %s160
  $region4: #{mnet_forward.21} parent=0 // loop_header_branch
    %16 = sbr.rel (%p14) target = $region8
  $region5: #{mnet_forward.21} parent=0 // loop_body
    %s18 = ssub.s32 %s13, 1
    %s19 = ssub.s32 %s13, 2
    %s20 = sadd.s32 %s13, 1
    %s22 = sadd.s32 %s21, 1
    %p25 = scmp.eq.s32.totalorder %s13, 1
    %p26 = scmp.ne.s32.totalorder %s21, %s23
    %p27 = scmp.eq.s32.totalorder %s13, 0
    %p28 = por %p26, %p27
    %p29 = scmp.ne.s32.totalorder %s21, %s23
    %p30 = scmp.eq.s32.totalorder %s18, 1
    %p31 = por %p29, %p30
    %p32 = scmp.ne.s32.totalorder %s23, %s24
    %p33 = scmp.eq.s32.totalorder %s18, 0
    %p34 = por %p32, %p33
    %p35 = scmp.ne.s32.totalorder %s23, %s24
    %p36 = scmp.eq.s32.totalorder %s19, 1
    %p37 = por %p35, %p36
    %p39 = scmp.ne.s32.totalorder %s24, %s38
    %p40 = scmp.eq.s32.totalorder %s19, 0
    %p41 = por %p39, %p40
    %s43 = sadd.s32 %s42, 1
    %p46 = scmp.eq.s32.totalorder %s13, 1
    %p47 = scmp.ne.s32.totalorder %s42, %s44
    %p48 = scmp.eq.s32.totalorder %s13, 0
    %p49 = por %p47, %p48
    %p50 = scmp.ne.s32.totalorder %s42, %s44
    %p51 = scmp.eq.s32.totalorder %s18, 1
    %p52 = por %p50, %p51
    %p53 = scmp.ne.s32.totalorder %s44, %s45
    %p54 = scmp.eq.s32.totalorder %s18, 0
    %p55 = por %p53, %p54
    %p56 = scmp.ne.s32.totalorder %s44, %s45
    %p57 = scmp.eq.s32.totalorder %s19, 1
    %p58 = por %p56, %p57
    %p60 = scmp.ne.s32.totalorder %s45, %s59
    %p61 = scmp.eq.s32.totalorder %s19, 0
    %p62 = por %p60, %p61
    %s63 = ssub.s32 %s13, %s20
    %p64 = scmp.eq.s32.totalorder %s63, 0
    %s66 = sadd.s32 %s65, 1
    %s67 = scalar_select %p64, %s65, %s66
    %p70 = pneg %p64
    %p71 = scmp.eq.s32.totalorder %s13, 1
    %p72 = por %p70, %p71
    %p73 = scmp.ne.s32.totalorder %s65, %s68
    %p74 = scmp.eq.s32.totalorder %s13, 0
    %p75 = por %p73, %p74
    %p76 = scmp.ne.s32.totalorder %s65, %s68
    %p77 = scmp.eq.s32.totalorder %s18, 1
    %p78 = por %p76, %p77
    %p79 = scmp.ne.s32.totalorder %s68, %s69
    %p80 = scmp.eq.s32.totalorder %s18, 0
    %p81 = por %p79, %p80
    %p82 = scmp.ne.s32.totalorder %s68, %s69
    %p83 = scmp.eq.s32.totalorder %s19, 1
    %p84 = por %p82, %p83
    %p86 = scmp.ne.s32.totalorder %s69, %s85
    %p87 = scmp.eq.s32.totalorder %s19, 0
    %p88 = por %p86, %p87
    %s90 = sadd.s32 %s89, 1
    %p93 = scmp.eq.s32.totalorder %s13, 1
    %p94 = scmp.ne.s32.totalorder %s89, %s91
    %p95 = scmp.eq.s32.totalorder %s13, 0
    %p96 = por %p94, %p95
    %p97 = scmp.ne.s32.totalorder %s89, %s91
    %p98 = scmp.eq.s32.totalorder %s18, 1
    %p99 = por %p97, %p98
    %p100 = scmp.ne.s32.totalorder %s91, %s92
    %p101 = scmp.eq.s32.totalorder %s18, 0
    %p102 = por %p100, %p101
    %p103 = scmp.ne.s32.totalorder %s91, %s92
    %p104 = scmp.eq.s32.totalorder %s19, 1
    %p105 = por %p103, %p104
    %p107 = scmp.ne.s32.totalorder %s92, %s106
    %p108 = scmp.eq.s32.totalorder %s19, 0
    %p109 = por %p107, %p108
    %s110 = ssub.s32 %s13, %s20
    %p111 = scmp.eq.s32.totalorder %s110, 0
    %s113 = sadd.s32 %s112, 1
    %s114 = scalar_select %p111, %s112, %s113
    %p117 = pneg %p111
    %p118 = scmp.eq.s32.totalorder %s13, 1
    %p119 = por %p117, %p118
    %p120 = scmp.ne.s32.totalorder %s112, %s115
    %p121 = scmp.eq.s32.totalorder %s13, 0
    %p122 = por %p120, %p121
    %p123 = scmp.ne.s32.totalorder %s112, %s115
    %p124 = scmp.eq.s32.totalorder %s18, 1
    %p125 = por %p123, %p124
    %p126 = scmp.ne.s32.totalorder %s115, %s116
    %p127 = scmp.eq.s32.totalorder %s18, 0
    %p128 = por %p126, %p127
    %p129 = scmp.ne.s32.totalorder %s115, %s116
    %p130 = scmp.eq.s32.totalorder %s19, 1
    %p131 = por %p129, %p130
    %p133 = scmp.ne.s32.totalorder %s116, %s132
    %p134 = scmp.eq.s32.totalorder %s19, 0
    %p135 = por %p133, %p134
    %s137 = sadd.s32 %s136, 1
    %p140 = scmp.eq.s32.totalorder %s13, 1
    %p141 = scmp.ne.s32.totalorder %s136, %s138
    %p142 = scmp.eq.s32.totalorder %s13, 0
    %p143 = por %p141, %p142
    %p144 = scmp.ne.s32.totalorder %s136, %s138
    %p145 = scmp.eq.s32.totalorder %s18, 1
    %p146 = por %p144, %p145
    %p147 = scmp.ne.s32.totalorder %s138, %s139
    %p148 = scmp.eq.s32.totalorder %s18, 0
    %p149 = por %p147, %p148
    %p150 = scmp.ne.s32.totalorder %s138, %s139
    %p151 = scmp.eq.s32.totalorder %s19, 1
    %p152 = por %p150, %p151
    %p154 = scmp.ne.s32.totalorder %s139, %s153
    %p155 = scmp.eq.s32.totalorder %s19, 0
    %p156 = por %p154, %p155
    %s158 = sadd.s32 %s157, 1
    %p161 = scmp.eq.s32.totalorder %s13, 1
    %p162 = scmp.ne.s32.totalorder %s157, %s159
    %p163 = scmp.eq.s32.totalorder %s13, 0
    %p164 = por %p162, %p163
    %p165 = scmp.ne.s32.totalorder %s157, %s159
    %p166 = scmp.eq.s32.totalorder %s18, 1
    %p167 = por %p165, %p166
    %p168 = scmp.ne.s32.totalorder %s159, %s160
    %p169 = scmp.eq.s32.totalorder %s18, 0
    %p170 = por %p168, %p169
    %p171 = scmp.ne.s32.totalorder %s159, %s160
    %p172 = scmp.eq.s32.totalorder %s19, 1
    %p173 = por %p171, %p172
    %p175 = scmp.ne.s32.totalorder %s160, %s174
    %p176 = scmp.eq.s32.totalorder %s19, 0
    %p177 = por %p175, %p176
    %p178 = scmp.le.s32.totalorder 1, %s13
    %p179 = scmp.lt.s32.totalorder %s13, 3
    %p180 = pnand %p178, %p179
    %p181 = pneg %p180
    // Predicated region
    $region9: #{mnet_forward.21} parent=5 // pred_check
      _
    $region10: #{mnet_forward.21} parent=5 // pred_check_branch
      %183 = sbr.rel (%p180) target = $region12
    $region11: #{mnet_forward.21} parent=5 // pred_region
      %s184 = ssub.s32 %s13, 1
      // Predicated region
      $region13: #{mnet_forward.21} parent=11 // pred_check
        %p185 = pneg %p34
      $region14: #{mnet_forward.21} parent=11 // pred_check_branch
        %187 = sbr.rel (%p185) target = $region16
      $region15: #{mnet_forward.21} parent=11 // pred_region
        _
      $region16: #{mnet_forward.21} parent=11 // pred_fallthru
        _
      // Predicated region
      $region17: #{mnet_forward.21} parent=11 // pred_check
        %p188 = pneg %p55
      $region18: #{mnet_forward.21} parent=11 // pred_check_branch
        %190 = sbr.rel (%p188) target = $region20
      $region19: #{mnet_forward.21} parent=11 // pred_region
        _
      $region20: #{mnet_forward.21} parent=11 // pred_fallthru
        _
      // Predicated region
      $region21: #{mnet_forward.21} parent=11 // pred_check
        %p191 = pneg %p102
      $region22: #{mnet_forward.21} parent=11 // pred_check_branch
        %193 = sbr.rel (%p191) target = $region24
      $region23: #{mnet_forward.21} parent=11 // pred_region
        _
      $region24: #{mnet_forward.21} parent=11 // pred_fallthru
        _
    $region12: #{mnet_forward.21} parent=5 // pred_fallthru
      _
    %p194 = scmp.lt.s32.totalorder %s13, 2
    // Predicated region
    $region25: #{mnet_forward.21} parent=5 // pred_check
      %p195 = pneg %p194
    $region26: #{mnet_forward.21} parent=5 // pred_check_branch
      %197 = sbr.rel (%p195) target = $region28
    $region27: #{mnet_forward.21} parent=5 // pred_region
      // Predicated region
      $region29: #{mnet_forward.21} parent=27 // pred_check
        %p198 = pneg %p75
      $region30: #{mnet_forward.21} parent=27 // pred_check_branch
        %200 = sbr.rel (%p198) target = $region32
      $region31: #{mnet_forward.21} parent=27 // pred_region
        %p201 = scmp.lt.s32.totalorder %s13, 1
        %s202 = scalar_select %p201, %s13, 1
        %s203 = smul.addr %s202, 32
        %s204 = smul.addr %s203, 2
        %s205 = scalar_lea.vmem %s2, %s204
      $region32: #{mnet_forward.21} parent=27 // pred_fallthru
        _
    $region28: #{mnet_forward.21} parent=5 // pred_fallthru
      _
    %p206 = scmp.le.s32.totalorder 1, %s13
    %p207 = scmp.lt.s32.totalorder %s13, 3
    %p208 = pnand %p206, %p207
    %p209 = pneg %p208
    // Predicated region
    $region33: #{mnet_forward.21} parent=5 // pred_check
      _
    $region34: #{mnet_forward.21} parent=5 // pred_check_branch
      %211 = sbr.rel (%p208) target = $region36
    $region35: #{mnet_forward.21} parent=5 // pred_region
      %s212 = ssub.s32 %s13, 1
      %p213 = pneg %p34
      %p214 = pneg %p31
      %p215 = pneg %p55
      %p216 = pneg %p52
      %p217 = scmp.lt.s32.totalorder %s18, 1
      %s218 = scalar_select %p217, %s18, 1
      %s219 = smul.addr %s218, 32
      %s220 = smul.addr %s219, 2
      %s221 = scalar_lea.vmem %s2, %s220
      %p222 = pneg %p81
      %p223 = pneg %p78
      %p224 = pneg %p102
      %p225 = pneg %p99
      %p226 = pneg %p128
      %p227 = pneg %p125
      %p228 = scmp.lt.s32.totalorder %s18, 1
      %s229 = scalar_select %p228, %s18, 1
      %s230 = smul.addr %s229, 4
      %s231 = scalar_lea.vmem %s4, %s230
      %p232 = pneg %p149
      %p233 = pneg %p146
      %p234 = pneg %p170
      %p235 = pneg %p167
      %p236 = scmp.lt.s32.totalorder %s18, 1
      %s237 = scalar_select %p236, %s18, 1
      %s238 = smul.addr %s237, 32
      %s239 = smul.addr %s238, 2
      %s240 = scalar_lea.vmem %s2, %s239
      %p241 = scmp.lt.s32.totalorder %s18, 1
      %s242 = scalar_select %p241, %s18, 1
      %s243 = smul.addr %s242, 4
      %s244 = scalar_lea.vmem %s4, %s243
      %p245 = scmp.eq.s32.totalorder %s18, 0
      // Predicated region
      $region37: #{mnet_forward.21} parent=35 // pred_check
        %p246 = pneg %p245
      $region38: #{mnet_forward.21} parent=35 // pred_check_branch
        %248 = sbr.rel (%p246) target = $region40
      $region39: #{mnet_forward.21} parent=35 // pred_region
        %v249 = vlaneseq
        %vm250 = vcmp.ge.s32.totalorder %v249, 0
        %vm251 = vcmp.lt.s32.totalorder %v249, 512
        %vm252 = vmand %vm250, %vm251
        %253 = vst.msk [vmem:[%s5] sm:$0xf] %vm252, 0.0
        %254 = vst.msk [vmem:[%s6] sm:$0xf] %vm252, 0.0
      $region40: #{mnet_forward.21} parent=35 // pred_fallthru
        _
      %v255 = vld [vmem:[%s0] sm:$0xf]
      %v256 = vld [vmem:[%s1] sm:$0xf]
      %v257 = vlaneseq
      %v258 = vshrl.u32 %v257, 7
      %v259 = vmul.u32 %v258, 2
      %vm260 = vcmp.ge.s32.totalorder %v259, 1
      %vm261 = vmand 0, %vm260
      %vm262 = vcmp.le.s32.totalorder %v259, 1
      %vm263 = vmand %vm261, %vm262
      %v264 = vld [vmem:[%s240] sm:$0xff]
      %v265 = vld [vmem:[%s240 + $0x8] sm:$0xff]
      %v267 = vlaneseq
      %v268 = vshrl.u32 %v267, 7
      %v269 = vsub.s32 0, %v268
      %v270 = vrot.slane %v255, %v269
      %v271 = vlaneseq
      %v272 = vshrl.u32 %v271, 7
      %v273 = vsub.s32 1, %v272
      %v274 = vrot.slane %v255, %v273
      %v275 = vlaneseq
      %v276 = vshrl.u32 %v275, 7
      %v277 = vsub.s32 2, %v276
      %v278 = vrot.slane %v255, %v277
      %v279 = vlaneseq
      %v280 = vshrl.u32 %v279, 7
      %v281 = vsub.s32 3, %v280
      %v282 = vrot.slane %v255, %v281
      %v283 = vcombine.low %v270, %v274
      %v284 = vcombine.low %v278, %v282
      %v286 = vunpack.c.l.s4 1983009808
      %v287 = vunpack.c.0.s8 %v286
      %v288 = vlaneseq
      %v289 = vshrl.u32 %v288, 7
      %v290 = vsub.s32 %v287, %v289
      %v291 = vrot.slane %v283, %v290
      %v293 = vunpack.c.l.s4 1983009808
      %v294 = vunpack.c.0.s8 %v293
      %v295 = vlaneseq
      %v296 = vshrl.u32 %v295, 7
      %v297 = vsub.s32 %v294, %v296
      %v298 = vrot.slane %v284, %v297
      %v299 = vcombine.low %v291, %v298
      %v301 = vmul.f32 %v264, %v299
      %v302 = vmul.f32 %v265, %v299
      %v304 = vlaneseq
      %v305 = vshrl.u32 %v304, 7
      %v306 = vsub.s32 0, %v305
      %v307 = vrot.slane %v256, %v306
      %v308 = vlaneseq
      %v309 = vshrl.u32 %v308, 7
      %v310 = vsub.s32 1, %v309
      %v311 = vrot.slane %v256, %v310
      %v312 = vlaneseq
      %v313 = vshrl.u32 %v312, 7
      %v314 = vsub.s32 2, %v313
      %v315 = vrot.slane %v256, %v314
      %v316 = vlaneseq
      %v317 = vshrl.u32 %v316, 7
      %v318 = vsub.s32 3, %v317
      %v319 = vrot.slane %v256, %v318
      %v320 = vcombine.low %v307, %v311
      %v321 = vcombine.low %v315, %v319
      %v323 = vunpack.c.l.s4 1983009808
      %v324 = vunpack.c.0.s8 %v323
      %v325 = vlaneseq
      %v326 = vshrl.u32 %v325, 7
      %v327 = vsub.s32 %v324, %v326
      %v328 = vrot.slane %v320, %v327
      %v330 = vunpack.c.l.s4 1983009808
      %v331 = vunpack.c.0.s8 %v330
      %v332 = vlaneseq
      %v333 = vshrl.u32 %v332, 7
      %v334 = vsub.s32 %v331, %v333
      %v335 = vrot.slane %v321, %v334
      %v336 = vcombine.low %v328, %v335
      %v338 = vadd.f32 %v301, %v336
      %v339 = vadd.f32 %v302, %v336
      %v340 = vmax.f32 %v338, 0.0
      %v341 = vmax.f32 %v339, 0.0
      %v342 = vsel %vm263, 1, 0
      %v343 = vcvt.s32.f32 %v342
      %v346 = vunpack.c.l.s4 269488144
      %v347 = vunpack.c.0.s8 %v346
      %v348 = vlaneseq
      %v349 = vshrl.u32 %v348, 7
      %v350 = vsub.s32 %v347, %v349
      %v351 = vrot.slane %v343, %v350
      %v353 = vmul.f32 %v340, %v351
      %v354 = vmul.f32 %v341, %v351
      %v355 = vadd.s32 %v259, 1
      %vm356 = vcmp.ge.s32.totalorder %v355, 1
      %vm357 = vmand 0, %vm356
      %vm358 = vcmp.le.s32.totalorder %v355, 1
      %vm359 = vmand %vm357, %vm358
      %s360 = scalar_lea.vmem %s240, 16
      %v361 = vld [vmem:[%s360] sm:$0xff]
      %v362 = vld [vmem:[%s360 + $0x8] sm:$0xff]
      %v363 = vmul.f32 %v361, %v299
      %v364 = vmul.f32 %v362, %v299
      %v365 = vadd.f32 %v363, %v336
      %v366 = vadd.f32 %v364, %v336
      %v367 = vmax.f32 %v365, 0.0
      %v368 = vmax.f32 %v366, 0.0
      %v369 = vsel %vm359, 1, 0
      %v370 = vcvt.s32.f32 %v369
      %v373 = vunpack.c.l.s4 269488144
      %v374 = vunpack.c.0.s8 %v373
      %v375 = vlaneseq
      %v376 = vshrl.u32 %v375, 7
      %v377 = vsub.s32 %v374, %v376
      %v378 = vrot.slane %v370, %v377
      %v380 = vmul.f32 %v367, %v378
      %v381 = vmul.f32 %v368, %v378
      %vm382 = vmand 1, %vm260
      %vm383 = vmand %vm382, %vm262
      %s384 = scalar_lea.vmem %s240, 32
      %v385 = vld [vmem:[%s384] sm:$0xff]
      %v386 = vmul.f32 %v385, %v299
      %v387 = vadd.f32 %v386, %v336
      %v388 = vmax.f32 %v387, 0.0
      %v389 = vsel %vm383, 1, 0
      %v390 = vcvt.s32.f32 %v389
      %v393 = vunpack.c.l.s4 269488144
      %v394 = vunpack.c.0.s8 %v393
      %v395 = vlaneseq
      %v396 = vshrl.u32 %v395, 7
      %v397 = vsub.s32 %v394, %v396
      %v398 = vrot.slane %v390, %v397
      %v400 = vmul.f32 %v388, %v398
      %vm401 = vmand 1, %vm356
      %vm402 = vmand %vm401, %vm358
      %s403 = scalar_lea.vmem %s240, 48
      %v404 = vld [vmem:[%s403] sm:$0xff]
      %v405 = vmul.f32 %v404, %v299
      %v406 = vadd.f32 %v405, %v336
      %v407 = vmax.f32 %v406, 0.0
      %v408 = vsel %vm402, 1, 0
      %v409 = vcvt.s32.f32 %v408
      %v412 = vunpack.c.l.s4 269488144
      %v413 = vunpack.c.0.s8 %v412
      %v414 = vlaneseq
      %v415 = vshrl.u32 %v414, 7
      %v416 = vsub.s32 %v413, %v415
      %v417 = vrot.slane %v409, %v416
      %v419 = vmul.f32 %v407, %v417
      %v420 = vld [vmem:[%s3] sm:$0xf]
      %v423 = vunpack.c.l.s4 857870592
      %v424 = vunpack.c.0.s8 %v423
      %v425 = vlaneseq
      %v426 = vshrl.u32 %v425, 7
      %v427 = vsub.s32 %v424, %v426
      %v428 = vrot.slane %v420, %v427
      %v430 = vmul.f32 %v353, %v428
      %v431 = vadd.f32 %v430, 0.0
      %s432 = scalar_lea.vmem %s3, 4
      %v433 = vld [vmem:[%s432] sm:$0xf]
      %v436 = vunpack.c.l.s4 857870592
      %v437 = vunpack.c.0.s8 %v436
      %v438 = vlaneseq
      %v439 = vshrl.u32 %v438, 7
      %v440 = vsub.s32 %v437, %v439
      %v441 = vrot.slane %v433, %v440
      %v443 = vmul.f32 %v380, %v441
      %v444 = vadd.f32 %v431, %v443
      %s445 = scalar_lea.vmem %s3, 8
      %v446 = vld [vmem:[%s445] sm:$0xf]
      %v449 = vunpack.c.l.s4 857870592
      %v450 = vunpack.c.0.s8 %v449
      %v451 = vlaneseq
      %v452 = vshrl.u32 %v451, 7
      %v453 = vsub.s32 %v450, %v452
      %v454 = vrot.slane %v446, %v453
      %v456 = vmul.f32 %v353, %v454
      %v458 = vrot.slane %v456, 7
      %v459 = vrot.slane %v458, 2
      %v461 = vadd.f32 %v444, %v459
      %s462 = scalar_lea.vmem %s3, 12
      %v463 = vld [vmem:[%s462] sm:$0xf]
      %v466 = vunpack.c.l.s4 857870592
      %v467 = vunpack.c.0.s8 %v466
      %v468 = vlaneseq
      %v469 = vshrl.u32 %v468, 7
      %v470 = vsub.s32 %v467, %v469
      %v471 = vrot.slane %v463, %v470
      %v473 = vmul.f32 %v400, %v471
      %v474 = vadd.f32 %v461, %v473
      %s475 = scalar_lea.vmem %s3, 16
      %v476 = vld [vmem:[%s475] sm:$0xf]
      %v479 = vunpack.c.l.s4 857870592
      %v480 = vunpack.c.0.s8 %v479
      %v481 = vlaneseq
      %v482 = vshrl.u32 %v481, 7
      %v483 = vsub.s32 %v480, %v482
      %v484 = vrot.slane %v476, %v483
      %v486 = vmul.f32 %v419, %v484
      %v487 = vadd.f32 %v474, %v486
      %s488 = scalar_lea.vmem %s3, 20
      %v489 = vld [vmem:[%s488] sm:$0xf]
      %v492 = vunpack.c.l.s4 857870592
      %v493 = vunpack.c.0.s8 %v492
      %v494 = vlaneseq
      %v495 = vshrl.u32 %v494, 7
      %v496 = vsub.s32 %v493, %v495
      %v497 = vrot.slane %v489, %v496
      %v499 = vmul.f32 %v400, %v497
      %v501 = vrot.slane %v499, 7
      %v502 = vrot.slane %v501, 2
      %v504 = vadd.f32 %v487, %v502
      %s505 = scalar_lea.vmem %s3, 24
      %v506 = vld [vmem:[%s505] sm:$0xf]
      %v509 = vunpack.c.l.s4 857870592
      %v510 = vunpack.c.0.s8 %v509
      %v511 = vlaneseq
      %v512 = vshrl.u32 %v511, 7
      %v513 = vsub.s32 %v510, %v512
      %v514 = vrot.slane %v506, %v513
      %v516 = vmul.f32 %v354, %v514
      %v517 = vadd.f32 %v504, %v516
      %s518 = scalar_lea.vmem %s3, 28
      %v519 = vld [vmem:[%s518] sm:$0xf]
      %v522 = vunpack.c.l.s4 857870592
      %v523 = vunpack.c.0.s8 %v522
      %v524 = vlaneseq
      %v525 = vshrl.u32 %v524, 7
      %v526 = vsub.s32 %v523, %v525
      %v527 = vrot.slane %v519, %v526
      %v529 = vmul.f32 %v381, %v527
      %v530 = vadd.f32 %v517, %v529
      %s531 = scalar_lea.vmem %s3, 32
      %v532 = vld [vmem:[%s531] sm:$0xf]
      %v535 = vunpack.c.l.s4 857870592
      %v536 = vunpack.c.0.s8 %v535
      %v537 = vlaneseq
      %v538 = vshrl.u32 %v537, 7
      %v539 = vsub.s32 %v536, %v538
      %v540 = vrot.slane %v532, %v539
      %v542 = vmul.f32 %v354, %v540
      %v544 = vrot.slane %v542, 7
      %v545 = vrot.slane %v544, 2
      %v547 = vadd.f32 %v530, %v545
      %v550 = vunpack.c.l.s4 1966171168
      %v551 = vunpack.c.0.s8 %v550
      %v552 = vlaneseq
      %v553 = vshrl.u32 %v552, 7
      %v554 = vsub.s32 %v551, %v553
      %v555 = vrot.slane %v547, %v554
      %v557 = vlaneseq
      %vm558 = vcmp.ge.s32.totalorder %v557, 0
      %vm559 = vcmp.lt.s32.totalorder %v557, 512
      %vm560 = vmand %vm558, %vm559
      %561 = vst.msk [vmem:[%s244] sm:$0xf] %vm560, %v555
      %v562 = vld [vmem:[%s5] sm:$0xf]
      %v563 = vadd.f32 %v547, 0.0
      %v564 = vadd.f32 %v563, 0.0
      %v567 = vunpack.c.l.s4 1966171168
      %v568 = vunpack.c.0.s8 %v567
      %v569 = vlaneseq
      %v570 = vshrl.u32 %v569, 7
      %v571 = vsub.s32 %v568, %v570
      %v572 = vrot.slane %v564, %v571
      %v574 = vadd.f32 %v562, %v572
      %575 = vst.msk [vmem:[%s5] sm:$0xf] %vm560, %v574
      %v576 = vld [vmem:[%s6] sm:$0xf]
      %v577 = vmul.f32 %v547, %v547
      %v578 = vadd.f32 %v577, 0.0
      %v579 = vadd.f32 %v578, 0.0
      %v582 = vunpack.c.l.s4 1966171168
      %v583 = vunpack.c.0.s8 %v582
      %v584 = vlaneseq
      %v585 = vshrl.u32 %v584, 7
      %v586 = vsub.s32 %v583, %v585
      %v587 = vrot.slane %v579, %v586
      %v589 = vadd.f32 %v576, %v587
      %590 = vst.msk [vmem:[%s6] sm:$0xf] %vm560, %v589
      %p591 = scmp.lt.s32.totalorder %s18, 1
      %s592 = scalar_select %p591, %s18, 1
      %s593 = smul.addr %s592, 4
      %s594 = scalar_lea.vmem %s4, %s593
      // Predicated region
      $region41: #{mnet_forward.21} parent=35 // pred_check
        %p595 = pneg %p125
      $region42: #{mnet_forward.21} parent=35 // pred_check_branch
        %597 = sbr.rel (%p595) target = $region44
      $region43: #{mnet_forward.21} parent=35 // pred_region
        _
      $region44: #{mnet_forward.21} parent=35 // pred_fallthru
        _
      // Predicated region
      $region45: #{mnet_forward.21} parent=35 // pred_check
        %p598 = pneg %p146
      $region46: #{mnet_forward.21} parent=35 // pred_check_branch
        %600 = sbr.rel (%p598) target = $region48
      $region47: #{mnet_forward.21} parent=35 // pred_region
        _
      $region48: #{mnet_forward.21} parent=35 // pred_fallthru
        _
      // Predicated region
      $region49: #{mnet_forward.21} parent=35 // pred_check
        %p601 = pneg %p167
      $region50: #{mnet_forward.21} parent=35 // pred_check_branch
        %603 = sbr.rel (%p601) target = $region52
      $region51: #{mnet_forward.21} parent=35 // pred_region
        _
      $region52: #{mnet_forward.21} parent=35 // pred_fallthru
        _
      // Predicated region
      $region53: #{mnet_forward.21} parent=35 // pred_check
        %p604 = pneg %p146
      $region54: #{mnet_forward.21} parent=35 // pred_check_branch
        %606 = sbr.rel (%p604) target = $region56
      $region55: #{mnet_forward.21} parent=35 // pred_region
        _
      $region56: #{mnet_forward.21} parent=35 // pred_fallthru
        _
      // Predicated region
      $region57: #{mnet_forward.21} parent=35 // pred_check
        %p607 = pneg %p167
      $region58: #{mnet_forward.21} parent=35 // pred_check_branch
        %609 = sbr.rel (%p607) target = $region60
      $region59: #{mnet_forward.21} parent=35 // pred_region
        _
      $region60: #{mnet_forward.21} parent=35 // pred_fallthru
        _
    $region36: #{mnet_forward.21} parent=5 // pred_fallthru
      _
    %p610 = scmp.le.s32.totalorder 2, %s13
    // Predicated region
    $region61: #{mnet_forward.21} parent=5 // pred_check
      %p611 = pneg %p610
    $region62: #{mnet_forward.21} parent=5 // pred_check_branch
      %613 = sbr.rel (%p611) target = $region64
    $region63: #{mnet_forward.21} parent=5 // pred_region
      %s614 = ssub.s32 %s13, 2
      // Predicated region
      $region65: #{mnet_forward.21} parent=63 // pred_check
        %p615 = pneg %p131
      $region66: #{mnet_forward.21} parent=63 // pred_check_branch
        %617 = sbr.rel (%p615) target = $region68
      $region67: #{mnet_forward.21} parent=63 // pred_region
        %p618 = scmp.lt.s32.totalorder %s19, 1
        %s619 = scalar_select %p618, %s19, 1
        %s620 = smul.addr %s619, 4
        %s621 = scalar_lea.vmem %s4, %s620
      $region68: #{mnet_forward.21} parent=63 // pred_fallthru
        _
    $region64: #{mnet_forward.21} parent=5 // pred_fallthru
      _
  $region6: #{mnet_forward.21} parent=0 // loop_footer
    %s17 = sadd.s32 1, %s13
  $region7: #{mnet_forward.21} parent=0 // loop_footer_branch
    %12 = sbr.rel target = $region3
  $region8: #{mnet_forward.21} parent=0 // loop_exit
    _

// kernel: mnet_forward.23
$region0: #{mnet_forward.23}
  #allocation0 [shape = 'u32[]', space=smem, size = 0x4, offset = 0x4, fixed_abs, tag = 'smem constant byte address 0x4 - core index']
  #allocation1 [shape = 'u32[144,128]{1,0:T(1,128)}', space=vmem, size = 0x12000, scoped, tag = 'internal scratch']
  %s0 = inlined_call_operand.vmem [shape: f32[1,1024], index: 0, kind: input, shape index: {}]
  %s1 = inlined_call_operand.vmem [shape: f32[1,1024], index: 1, kind: input, shape index: {}]
  %s2 = inlined_call_operand.vmem [shape: f32[2,1,1024], index: 2, kind: input, shape index: {}]
  %s3 = inlined_call_operand.vmem [shape: bf16[1024,10], index: 3, kind: input, shape index: {}]
  %s4 = inlined_call_operand.vmem [shape: f32[1,10], index: 4, kind: input, shape index: {}]
  %s5 = inlined_call_operand.hbm [shape: f32[2,10], index: 5, kind: output, shape index: {}]
  %s6 = sld [smem:[#allocation0]]
  $region30: #{mnet_forward.23} parent=0
    _
  %s8 = ssub.s32 1, %s6
  %s9 = scalar_select 0, %s8, %s6
  $region1: #{mnet_forward.23} parent=0
    #allocation2 [shape = 'u8[1024]{0}', space=vmem, size = 0x400, scoped, tag = 'output window, operand 0, single buffered']
    #allocation3 [shape = 's32[1]{0}', space=sflag, size = 0x4, scoped, tag = 'scoped memory for mnet_forward.23']
    %10 = vsyncpa [#allocation3], 0
    // Predicated region
    $region2: #{mnet_forward.23} parent=1 // pred_check
      _
    $region3: #{mnet_forward.23} parent=1 // pred_check_branch
      %12 = sbr.rel (0) target = $region5
    $region4: #{mnet_forward.23} parent=1 // pred_region
      _
    $region5: #{mnet_forward.23} parent=1 // pred_fallthru
      _
    // Predicated region
    $region6: #{mnet_forward.23} parent=1 // pred_check
      _
    $region7: #{mnet_forward.23} parent=1 // pred_check_branch
      %14 = sbr.rel (0) target = $region9
    $region8: #{mnet_forward.23} parent=1 // pred_region
      _
    $region9: #{mnet_forward.23} parent=1 // pred_fallthru
      _
    // Predicated region
    $region10: #{mnet_forward.23} parent=1 // pred_check
      _
    $region11: #{mnet_forward.23} parent=1 // pred_check_branch
      %16 = sbr.rel (0) target = $region13
    $region12: #{mnet_forward.23} parent=1 // pred_region
      _
    $region13: #{mnet_forward.23} parent=1 // pred_fallthru
      _
    // Predicated region
    $region14: #{mnet_forward.23} parent=1 // pred_check
      _
    $region15: #{mnet_forward.23} parent=1 // pred_check_branch
      %18 = sbr.rel (0) target = $region17
    $region16: #{mnet_forward.23} parent=1 // pred_region
      _
    $region17: #{mnet_forward.23} parent=1 // pred_fallthru
      _
    // Predicated region
    $region18: #{mnet_forward.23} parent=1 // pred_check
      _
    $region19: #{mnet_forward.23} parent=1 // pred_check_branch
      %20 = sbr.rel (0) target = $region21
    $region20: #{mnet_forward.23} parent=1 // pred_region
      _
    $region21: #{mnet_forward.23} parent=1 // pred_fallthru
      _
    %v22 = vld [vmem:[%s2] sm:$0xff]
    %v23 = vld [vmem:[%s2 + $0x8] sm:$0xff]
    %v24 = vld [vmem:[%s0] sm:$0xff]
    %v25 = vmul.f32 %v22, %v24
    %v26 = vmul.f32 %v23, %v24
    %v27 = vld [vmem:[%s1] sm:$0xff]
    %v28 = vadd.f32 %v25, %v27
    %v29 = vadd.f32 %v26, %v27
    %v30 = vmax.f32 %v28, 0.0
    %v31 = vmax.f32 %v29, 0.0
    %v32 = vadd.f32 %v30, 0.0
    %v33 = vadd.f32 %v31, 0.0
    %v36 = vlaneseq
    %v37 = vshrl.u32 %v36, 7
    %v38 = vsub.s32 0, %v37
    %v39 = vrot.slane %v32, %v38
    %v40 = vlaneseq
    %v41 = vshrl.u32 %v40, 7
    %v42 = vsub.s32 1, %v41
    %v43 = vrot.slane %v32, %v42
    %v44 = vlaneseq
    %v45 = vshrl.u32 %v44, 7
    %v46 = vsub.s32 2, %v45
    %v47 = vrot.slane %v32, %v46
    %v48 = vlaneseq
    %v49 = vshrl.u32 %v48, 7
    %v50 = vsub.s32 3, %v49
    %v51 = vrot.slane %v32, %v50
    %v52 = vlaneseq
    %v53 = vshrl.u32 %v52, 7
    %v54 = vsub.s32 4, %v53
    %v55 = vrot.slane %v32, %v54
    %v56 = vlaneseq
    %v57 = vshrl.u32 %v56, 7
    %v58 = vsub.s32 5, %v57
    %v59 = vrot.slane %v32, %v58
    %v60 = vlaneseq
    %v61 = vshrl.u32 %v60, 7
    %v62 = vsub.s32 6, %v61
    %v63 = vrot.slane %v32, %v62
    %v64 = vlaneseq
    %v65 = vshrl.u32 %v64, 7
    %v66 = vsub.s32 7, %v65
    %v67 = vrot.slane %v32, %v66
    %v68 = vlaneseq
    %v69 = vshrl.u32 %v68, 7
    %v70 = vsub.s32 0, %v69
    %v71 = vrot.slane %v33, %v70
    %v72 = vlaneseq
    %v73 = vshrl.u32 %v72, 7
    %v74 = vsub.s32 1, %v73
    %v75 = vrot.slane %v33, %v74
    %v76 = vlaneseq
    %v77 = vshrl.u32 %v76, 7
    %v78 = vsub.s32 2, %v77
    %v79 = vrot.slane %v33, %v78
    %v80 = vlaneseq
    %v81 = vshrl.u32 %v80, 7
    %v82 = vsub.s32 3, %v81
    %v83 = vrot.slane %v33, %v82
    %v84 = vlaneseq
    %v85 = vshrl.u32 %v84, 7
    %v86 = vsub.s32 4, %v85
    %v87 = vrot.slane %v33, %v86
    %v88 = vlaneseq
    %v89 = vshrl.u32 %v88, 7
    %v90 = vsub.s32 5, %v89
    %v91 = vrot.slane %v33, %v90
    %v92 = vlaneseq
    %v93 = vshrl.u32 %v92, 7
    %v94 = vsub.s32 6, %v93
    %v95 = vrot.slane %v33, %v94
    %v96 = vlaneseq
    %v97 = vshrl.u32 %v96, 7
    %v98 = vsub.s32 7, %v97
    %v99 = vrot.slane %v33, %v98
    %v116 = vpack.c.bf16 %v39, %v39
    %v117 = vpack.c.bf16 %v43, %v43
    %v118 = vpack.c.bf16 %v47, %v47
    %v119 = vpack.c.bf16 %v51, %v51
    %v120 = vpack.c.bf16 %v55, %v55
    %v121 = vpack.c.bf16 %v59, %v59
    %v122 = vpack.c.bf16 %v63, %v63
    %v123 = vpack.c.bf16 %v67, %v67
    %v124 = vpack.c.bf16 %v71, %v71
    %v125 = vpack.c.bf16 %v75, %v75
    %v126 = vpack.c.bf16 %v79, %v79
    %v127 = vpack.c.bf16 %v83, %v83
    %v128 = vpack.c.bf16 %v87, %v87
    %v129 = vpack.c.bf16 %v91, %v91
    %v130 = vpack.c.bf16 %v95, %v95
    %v131 = vpack.c.bf16 %v99, %v99
    %v132 = vld [vmem:[%s3] sm:$0xf]
    %v133 = vld [vmem:[%s3 + $0x4] sm:$0xf]
    %v134 = vld [vmem:[%s3 + $0x8] sm:$0xf]
    %v135 = vld [vmem:[%s3 + $0xc] sm:$0xf]
    %v136 = vld [vmem:[%s3 + $0x10] sm:$0xf]
    %v137 = vld [vmem:[%s3 + $0x14] sm:$0xf]
    %v138 = vld [vmem:[%s3 + $0x18] sm:$0xf]
    %v139 = vld [vmem:[%s3 + $0x1c] sm:$0xf]
    %v140 = vld [vmem:[%s3 + $0x20] sm:$0xf]
    %v141 = vld [vmem:[%s3 + $0x24] sm:$0xf]
    %v142 = vld [vmem:[%s3 + $0x28] sm:$0xf]
    %v143 = vld [vmem:[%s3 + $0x2c] sm:$0xf]
    %v144 = vld [vmem:[%s3 + $0x30] sm:$0xf]
    %v145 = vld [vmem:[%s3 + $0x34] sm:$0xf]
    %v146 = vld [vmem:[%s3 + $0x38] sm:$0xf]
    %v147 = vld [vmem:[%s3 + $0x3c] sm:$0xf]
    %v148 = vld [vmem:[%s3 + $0x40] sm:$0xf]
    %v149 = vld [vmem:[%s3 + $0x44] sm:$0xf]
    %v150 = vld [vmem:[%s3 + $0x48] sm:$0xf]
    %v151 = vld [vmem:[%s3 + $0x4c] sm:$0xf]
    %v152 = vld [vmem:[%s3 + $0x50] sm:$0xf]
    %v153 = vld [vmem:[%s3 + $0x54] sm:$0xf]
    %v154 = vld [vmem:[%s3 + $0x58] sm:$0xf]
    %v155 = vld [vmem:[%s3 + $0x5c] sm:$0xf]
    %v156 = vld [vmem:[%s3 + $0x60] sm:$0xf]
    %v157 = vld [vmem:[%s3 + $0x64] sm:$0xf]
    %v158 = vld [vmem:[%s3 + $0x68] sm:$0xf]
    %v159 = vld [vmem:[%s3 + $0x6c] sm:$0xf]
    %v160 = vld [vmem:[%s3 + $0x70] sm:$0xf]
    %v161 = vld [vmem:[%s3 + $0x74] sm:$0xf]
    %v162 = vld [vmem:[%s3 + $0x78] sm:$0xf]
    %v163 = vld [vmem:[%s3 + $0x7c] sm:$0xf]
    %v164 = vld [vmem:[%s3 + $0x80] sm:$0xf]
    %v165 = vld [vmem:[%s3 + $0x84] sm:$0xf]
    %v166 = vld [vmem:[%s3 + $0x88] sm:$0xf]
    %v167 = vld [vmem:[%s3 + $0x8c] sm:$0xf]
    %v168 = vld [vmem:[%s3 + $0x90] sm:$0xf]
    %v169 = vld [vmem:[%s3 + $0x94] sm:$0xf]
    %v170 = vld [vmem:[%s3 + $0x98] sm:$0xf]
    %v171 = vld [vmem:[%s3 + $0x9c] sm:$0xf]
    %v172 = vld [vmem:[%s3 + $0xa0] sm:$0xf]
    %v173 = vld [vmem:[%s3 + $0xa4] sm:$0xf]
    %v174 = vld [vmem:[%s3 + $0xa8] sm:$0xf]
    %v175 = vld [vmem:[%s3 + $0xac] sm:$0xf]
    %v176 = vld [vmem:[%s3 + $0xb0] sm:$0xf]
    %v177 = vld [vmem:[%s3 + $0xb4] sm:$0xf]
    %v178 = vld [vmem:[%s3 + $0xb8] sm:$0xf]
    %v179 = vld [vmem:[%s3 + $0xbc] sm:$0xf]
    %v180 = vld [vmem:[%s3 + $0xc0] sm:$0xf]
    %v181 = vld [vmem:[%s3 + $0xc4] sm:$0xf]
    %v182 = vld [vmem:[%s3 + $0xc8] sm:$0xf]
    %v183 = vld [vmem:[%s3 + $0xcc] sm:$0xf]
    %v184 = vld [vmem:[%s3 + $0xd0] sm:$0xf]
    %v185 = vld [vmem:[%s3 + $0xd4] sm:$0xf]
    %v186 = vld [vmem:[%s3 + $0xd8] sm:$0xf]
    %v187 = vld [vmem:[%s3 + $0xdc] sm:$0xf]
    %v188 = vld [vmem:[%s3 + $0xe0] sm:$0xf]
    %v189 = vld [vmem:[%s3 + $0xe4] sm:$0xf]
    %v190 = vld [vmem:[%s3 + $0xe8] sm:$0xf]
    %v191 = vld [vmem:[%s3 + $0xec] sm:$0xf]
    %v192 = vld [vmem:[%s3 + $0xf0] sm:$0xf]
    %v193 = vld [vmem:[%s3 + $0xf4] sm:$0xf]
    %v194 = vld [vmem:[%s3 + $0xf8] sm:$0xf]
    %v195 = vld [vmem:[%s3 + $0xfc] sm:$0xf]
    %v196 = vld [vmem:[%s3 + $0x100] sm:$0xf]
    %v197 = vld [vmem:[%s3 + $0x104] sm:$0xf]
    %v198 = vld [vmem:[%s3 + $0x108] sm:$0xf]
    %v199 = vld [vmem:[%s3 + $0x10c] sm:$0xf]
    %v200 = vld [vmem:[%s3 + $0x110] sm:$0xf]
    %v201 = vld [vmem:[%s3 + $0x114] sm:$0xf]
    %v202 = vld [vmem:[%s3 + $0x118] sm:$0xf]
    %v203 = vld [vmem:[%s3 + $0x11c] sm:$0xf]
    %v204 = vld [vmem:[%s3 + $0x120] sm:$0xf]
    %v205 = vld [vmem:[%s3 + $0x124] sm:$0xf]
    %v206 = vld [vmem:[%s3 + $0x128] sm:$0xf]
    %v207 = vld [vmem:[%s3 + $0x12c] sm:$0xf]
    %v208 = vld [vmem:[%s3 + $0x130] sm:$0xf]
    %v209 = vld [vmem:[%s3 + $0x134] sm:$0xf]
    %v210 = vld [vmem:[%s3 + $0x138] sm:$0xf]
    %v211 = vld [vmem:[%s3 + $0x13c] sm:$0xf]
    %v212 = vld [vmem:[%s3 + $0x140] sm:$0xf]
    %v213 = vld [vmem:[%s3 + $0x144] sm:$0xf]
    %v214 = vld [vmem:[%s3 + $0x148] sm:$0xf]
    %v215 = vld [vmem:[%s3 + $0x14c] sm:$0xf]
    %v216 = vld [vmem:[%s3 + $0x150] sm:$0xf]
    %v217 = vld [vmem:[%s3 + $0x154] sm:$0xf]
    %v218 = vld [vmem:[%s3 + $0x158] sm:$0xf]
    %v219 = vld [vmem:[%s3 + $0x15c] sm:$0xf]
    %v220 = vld [vmem:[%s3 + $0x160] sm:$0xf]
    %v221 = vld [vmem:[%s3 + $0x164] sm:$0xf]
    %v222 = vld [vmem:[%s3 + $0x168] sm:$0xf]
    %v223 = vld [vmem:[%s3 + $0x16c] sm:$0xf]
    %v224 = vld [vmem:[%s3 + $0x170] sm:$0xf]
    %v225 = vld [vmem:[%s3 + $0x174] sm:$0xf]
    %v226 = vld [vmem:[%s3 + $0x178] sm:$0xf]
    %v227 = vld [vmem:[%s3 + $0x17c] sm:$0xf]
    %v228 = vld [vmem:[%s3 + $0x180] sm:$0xf]
    %v229 = vld [vmem:[%s3 + $0x184] sm:$0xf]
    %v230 = vld [vmem:[%s3 + $0x188] sm:$0xf]
    %v231 = vld [vmem:[%s3 + $0x18c] sm:$0xf]
    %v232 = vld [vmem:[%s3 + $0x190] sm:$0xf]
    %v233 = vld [vmem:[%s3 + $0x194] sm:$0xf]
    %v234 = vld [vmem:[%s3 + $0x198] sm:$0xf]
    %v235 = vld [vmem:[%s3 + $0x19c] sm:$0xf]
    %v236 = vld [vmem:[%s3 + $0x1a0] sm:$0xf]
    %v237 = vld [vmem:[%s3 + $0x1a4] sm:$0xf]
    %v238 = vld [vmem:[%s3 + $0x1a8] sm:$0xf]
    %v239 = vld [vmem:[%s3 + $0x1ac] sm:$0xf]
    %v240 = vld [vmem:[%s3 + $0x1b0] sm:$0xf]
    %v241 = vld [vmem:[%s3 + $0x1b4] sm:$0xf]
    %v242 = vld [vmem:[%s3 + $0x1b8] sm:$0xf]
    %v243 = vld [vmem:[%s3 + $0x1bc] sm:$0xf]
    %v244 = vld [vmem:[%s3 + $0x1c0] sm:$0xf]
    %v245 = vld [vmem:[%s3 + $0x1c4] sm:$0xf]
    %v246 = vld [vmem:[%s3 + $0x1c8] sm:$0xf]
    %v247 = vld [vmem:[%s3 + $0x1cc] sm:$0xf]
    %v248 = vld [vmem:[%s3 + $0x1d0] sm:$0xf]
    %v249 = vld [vmem:[%s3 + $0x1d4] sm:$0xf]
    %v250 = vld [vmem:[%s3 + $0x1d8] sm:$0xf]
    %v251 = vld [vmem:[%s3 + $0x1dc] sm:$0xf]
    %v252 = vld [vmem:[%s3 + $0x1e0] sm:$0xf]
    %v253 = vld [vmem:[%s3 + $0x1e4] sm:$0xf]
    %v254 = vld [vmem:[%s3 + $0x1e8] sm:$0xf]
    %v255 = vld [vmem:[%s3 + $0x1ec] sm:$0xf]
    %v256 = vld [vmem:[%s3 + $0x1f0] sm:$0xf]
    %v257 = vld [vmem:[%s3 + $0x1f4] sm:$0xf]
    %v258 = vld [vmem:[%s3 + $0x1f8] sm:$0xf]
    %v259 = vld [vmem:[%s3 + $0x1fc] sm:$0xf]
    %v260 = vld [vmem:[%s4] sm:$0x1]
    %v262 = vlaneseq
    %v263 = vshrl.u32 %v262, 7
    %v264 = vsub.s32 0, %v263
    %v265 = vrot.slane %v260, %v264
    %v283 = vunpack.c.l.b16 %v116
    %v284 = vunpack.c.l.b16 %v117
    %v285 = vunpack.c.l.b16 %v118
    %v286 = vunpack.c.l.b16 %v119
    %v287 = vunpack.c.l.b16 %v120
    %v288 = vunpack.c.l.b16 %v121
    %v289 = vunpack.c.l.b16 %v122
    %v290 = vunpack.c.l.b16 %v123
    %v291 = vunpack.c.l.b16 %v124
    %v292 = vunpack.c.l.b16 %v125
    %v293 = vunpack.c.l.b16 %v126
    %v294 = vunpack.c.l.b16 %v127
    %v295 = vunpack.c.l.b16 %v128
    %v296 = vunpack.c.l.b16 %v129
    %v297 = vunpack.c.l.b16 %v130
    %v298 = vunpack.c.l.b16 %v131
    %v299 = vrot.slane %v291, 7
    %vm300 = vcmask 1041409
    %v301 = vsel %vm300, %v299, %v283
    %v302 = vrot.slane %v292, 7
    %v303 = vsel %vm300, %v302, %v284
    %v304 = vrot.slane %v293, 7
    %v305 = vsel %vm300, %v304, %v285
    %v306 = vrot.slane %v294, 7
    %v307 = vsel %vm300, %v306, %v286
    %v308 = vrot.slane %v295, 7
    %v309 = vsel %vm300, %v308, %v287
    %v310 = vrot.slane %v296, 7
    %v311 = vsel %vm300, %v310, %v288
    %v312 = vrot.slane %v297, 7
    %v313 = vsel %vm300, %v312, %v289
    %v314 = vrot.slane %v298, 7
    %v315 = vsel %vm300, %v314, %v290
    %v316 = vpack.c.b16 %v301, %v301
    %v317 = vpack.c.b16 %v303, %v303
    %v318 = vpack.c.b16 %v305, %v305
    %v319 = vpack.c.b16 %v307, %v307
    %v320 = vpack.c.b16 %v309, %v309
    %v321 = vpack.c.b16 %v311, %v311
    %v322 = vpack.c.b16 %v313, %v313
    %v323 = vpack.c.b16 %v315, %v315
    %v460 = vunpack.c.l.b16 %v132
    %v461 = vunpack.c.l.b16 %v133
    %v462 = vunpack.c.l.b16 %v134
    %v463 = vunpack.c.l.b16 %v135
    %v464 = vunpack.c.l.b16 %v136
    %v465 = vunpack.c.l.b16 %v137
    %v466 = vunpack.c.l.b16 %v138
    %v467 = vunpack.c.l.b16 %v139
    %v468 = vunpack.c.l.b16 %v140
    %v469 = vunpack.c.l.b16 %v141
    %v470 = vunpack.c.l.b16 %v142
    %v471 = vunpack.c.l.b16 %v143
    %v472 = vunpack.c.l.b16 %v144
    %v473 = vunpack.c.l.b16 %v145
    %v474 = vunpack.c.l.b16 %v146
    %v475 = vunpack.c.l.b16 %v147
    %v476 = vunpack.c.l.b16 %v148
    %v477 = vunpack.c.l.b16 %v149
    %v478 = vunpack.c.l.b16 %v150
    %v479 = vunpack.c.l.b16 %v151
    %v480 = vunpack.c.l.b16 %v152
    %v481 = vunpack.c.l.b16 %v153
    %v482 = vunpack.c.l.b16 %v154
    %v483 = vunpack.c.l.b16 %v155
    %v484 = vunpack.c.l.b16 %v156
    %v485 = vunpack.c.l.b16 %v157
    %v486 = vunpack.c.l.b16 %v158
    %v487 = vunpack.c.l.b16 %v159
    %v488 = vunpack.c.l.b16 %v160
    %v489 = vunpack.c.l.b16 %v161
    %v490 = vunpack.c.l.b16 %v162
    %v491 = vunpack.c.l.b16 %v163
    %v492 = vunpack.c.l.b16 %v164
    %v493 = vunpack.c.l.b16 %v165
    %v494 = vunpack.c.l.b16 %v166
    %v495 = vunpack.c.l.b16 %v167
    %v496 = vunpack.c.l.b16 %v168
    %v497 = vunpack.c.l.b16 %v169
    %v498 = vunpack.c.l.b16 %v170
    %v499 = vunpack.c.l.b16 %v171
    %v500 = vunpack.c.l.b16 %v172
    %v501 = vunpack.c.l.b16 %v173
    %v502 = vunpack.c.l.b16 %v174
    %v503 = vunpack.c.l.b16 %v175
    %v504 = vunpack.c.l.b16 %v176
    %v505 = vunpack.c.l.b16 %v177
    %v506 = vunpack.c.l.b16 %v178
    %v507 = vunpack.c.l.b16 %v179
    %v508 = vunpack.c.l.b16 %v180
    %v509 = vunpack.c.l.b16 %v181
    %v510 = vunpack.c.l.b16 %v182
    %v511 = vunpack.c.l.b16 %v183
    %v512 = vunpack.c.l.b16 %v184
    %v513 = vunpack.c.l.b16 %v185
    %v514 = vunpack.c.l.b16 %v186
    %v515 = vunpack.c.l.b16 %v187
    %v516 = vunpack.c.l.b16 %v188
    %v517 = vunpack.c.l.b16 %v189
    %v518 = vunpack.c.l.b16 %v190
    %v519 = vunpack.c.l.b16 %v191
    %v520 = vunpack.c.l.b16 %v192
    %v521 = vunpack.c.l.b16 %v193
    %v522 = vunpack.c.l.b16 %v194
    %v523 = vunpack.c.l.b16 %v195
    %v524 = vunpack.c.l.b16 %v196
    %v525 = vunpack.c.l.b16 %v197
    %v526 = vunpack.c.l.b16 %v198
    %v527 = vunpack.c.l.b16 %v199
    %v528 = vunpack.c.l.b16 %v200
    %v529 = vunpack.c.l.b16 %v201
    %v530 = vunpack.c.l.b16 %v202
    %v531 = vunpack.c.l.b16 %v203
    %v532 = vunpack.c.l.b16 %v204
    %v533 = vunpack.c.l.b16 %v205
    %v534 = vunpack.c.l.b16 %v206
    %v535 = vunpack.c.l.b16 %v207
    %v536 = vunpack.c.l.b16 %v208
    %v537 = vunpack.c.l.b16 %v209
    %v538 = vunpack.c.l.b16 %v210
    %v539 = vunpack.c.l.b16 %v211
    %v540 = vunpack.c.l.b16 %v212
    %v541 = vunpack.c.l.b16 %v213
    %v542 = vunpack.c.l.b16 %v214
    %v543 = vunpack.c.l.b16 %v215
    %v544 = vunpack.c.l.b16 %v216
    %v545 = vunpack.c.l.b16 %v217
    %v546 = vunpack.c.l.b16 %v218
    %v547 = vunpack.c.l.b16 %v219
    %v548 = vunpack.c.l.b16 %v220
    %v549 = vunpack.c.l.b16 %v221
    %v550 = vunpack.c.l.b16 %v222
    %v551 = vunpack.c.l.b16 %v223
    %v552 = vunpack.c.l.b16 %v224
    %v553 = vunpack.c.l.b16 %v225
    %v554 = vunpack.c.l.b16 %v226
    %v555 = vunpack.c.l.b16 %v227
    %v556 = vunpack.c.l.b16 %v228
    %v557 = vunpack.c.l.b16 %v229
    %v558 = vunpack.c.l.b16 %v230
    %v559 = vunpack.c.l.b16 %v231
    %v560 = vunpack.c.l.b16 %v232
    %v561 = vunpack.c.l.b16 %v233
    %v562 = vunpack.c.l.b16 %v234
    %v563 = vunpack.c.l.b16 %v235
    %v564 = vunpack.c.l.b16 %v236
    %v565 = vunpack.c.l.b16 %v237
    %v566 = vunpack.c.l.b16 %v238
    %v567 = vunpack.c.l.b16 %v239
    %v568 = vunpack.c.l.b16 %v240
    %v569 = vunpack.c.l.b16 %v241
    %v570 = vunpack.c.l.b16 %v242
    %v571 = vunpack.c.l.b16 %v243
    %v572 = vunpack.c.l.b16 %v244
    %v573 = vunpack.c.l.b16 %v245
    %v574 = vunpack.c.l.b16 %v246
    %v575 = vunpack.c.l.b16 %v247
    %v576 = vunpack.c.l.b16 %v248
    %v577 = vunpack.c.l.b16 %v249
    %v578 = vunpack.c.l.b16 %v250
    %v579 = vunpack.c.l.b16 %v251
    %v580 = vunpack.c.l.b16 %v252
    %v581 = vunpack.c.l.b16 %v253
    %v582 = vunpack.c.l.b16 %v254
    %v583 = vunpack.c.l.b16 %v255
    %v584 = vunpack.c.l.b16 %v256
    %v585 = vunpack.c.l.b16 %v257
    %v586 = vunpack.c.l.b16 %v258
    %v587 = vunpack.c.l.b16 %v259
    %v588 = vpack.c.b16 %v461, %v460
    %v589 = vpack.c.b16 %v463, %v462
    %v590 = vpack.c.b16 %v465, %v464
    %v591 = vpack.c.b16 %v467, %v466
    %v592 = vpack.c.b16 %v469, %v468
    %v593 = vpack.c.b16 %v471, %v470
    %v594 = vpack.c.b16 %v473, %v472
    %v595 = vpack.c.b16 %v475, %v474
    %v596 = vpack.c.b16 %v477, %v476
    %v597 = vpack.c.b16 %v479, %v478
    %v598 = vpack.c.b16 %v481, %v480
    %v599 = vpack.c.b16 %v483, %v482
    %v600 = vpack.c.b16 %v485, %v484
    %v601 = vpack.c.b16 %v487, %v486
    %v602 = vpack.c.b16 %v489, %v488
    %v603 = vpack.c.b16 %v491, %v490
    %v604 = vpack.c.b16 %v493, %v492
    %v605 = vpack.c.b16 %v495, %v494
    %v606 = vpack.c.b16 %v497, %v496
    %v607 = vpack.c.b16 %v499, %v498
    %v608 = vpack.c.b16 %v501, %v500
    %v609 = vpack.c.b16 %v503, %v502
    %v610 = vpack.c.b16 %v505, %v504
    %v611 = vpack.c.b16 %v507, %v506
    %v612 = vpack.c.b16 %v509, %v508
    %v613 = vpack.c.b16 %v511, %v510
    %v614 = vpack.c.b16 %v513, %v512
    %v615 = vpack.c.b16 %v515, %v514
    %v616 = vpack.c.b16 %v517, %v516
    %v617 = vpack.c.b16 %v519, %v518
    %v618 = vpack.c.b16 %v521, %v520
    %v619 = vpack.c.b16 %v523, %v522
    %v620 = vpack.c.b16 %v525, %v524
    %v621 = vpack.c.b16 %v527, %v526
    %v622 = vpack.c.b16 %v529, %v528
    %v623 = vpack.c.b16 %v531, %v530
    %v624 = vpack.c.b16 %v533, %v532
    %v625 = vpack.c.b16 %v535, %v534
    %v626 = vpack.c.b16 %v537, %v536
    %v627 = vpack.c.b16 %v539, %v538
    %v628 = vpack.c.b16 %v541, %v540
    %v629 = vpack.c.b16 %v543, %v542
    %v630 = vpack.c.b16 %v545, %v544
    %v631 = vpack.c.b16 %v547, %v546
    %v632 = vpack.c.b16 %v549, %v548
    %v633 = vpack.c.b16 %v551, %v550
    %v634 = vpack.c.b16 %v553, %v552
    %v635 = vpack.c.b16 %v555, %v554
    %v636 = vpack.c.b16 %v557, %v556
    %v637 = vpack.c.b16 %v559, %v558
    %v638 = vpack.c.b16 %v561, %v560
    %v639 = vpack.c.b16 %v563, %v562
    %v640 = vpack.c.b16 %v565, %v564
    %v641 = vpack.c.b16 %v567, %v566
    %v642 = vpack.c.b16 %v569, %v568
    %v643 = vpack.c.b16 %v571, %v570
    %v644 = vpack.c.b16 %v573, %v572
    %v645 = vpack.c.b16 %v575, %v574
    %v646 = vpack.c.b16 %v577, %v576
    %v647 = vpack.c.b16 %v579, %v578
    %v648 = vpack.c.b16 %v581, %v580
    %v649 = vpack.c.b16 %v583, %v582
    %v650 = vpack.c.b16 %v585, %v584
    %v651 = vpack.c.b16 %v587, %v586
    %716 = vmatprep.subr.bf16.mxu0 0
    %717 = vmatpush1.bf16.msra.mxu0 %v588
    %718 = vmatprep.subr.bf16.mxu0 0
    %719 = vmatpush1.bf16.msra.mxu0 %v589
    %720 = vmatprep.subr.bf16.mxu0 0
    %721 = vmatpush1.bf16.msra.mxu0 %v590
    %722 = vmatprep.subr.bf16.mxu0 0
    %723 = vmatpush1.bf16.msra.mxu0 %v591
    %724 = vmatprep.subr.bf16.mxu0 0
    %725 = vmatpush1.bf16.msra.mxu0 %v592
    %726 = vmatprep.subr.bf16.mxu0 0
    %727 = vmatpush1.bf16.msra.mxu0 %v593
    %728 = vmatprep.subr.bf16.mxu0 0
    %729 = vmatpush1.bf16.msra.mxu0 %v594
    %730 = vmatprep.subr.bf16.mxu0 0
    %731 = vmatpush1.bf16.msra.mxu0 %v595
    %732 = vmatprep.subr.bf16.mxu0 0
    %733 = vmatpush1.bf16.msra.mxu0 %v596
    %734 = vmatprep.subr.bf16.mxu0 0
    %735 = vmatpush1.bf16.msra.mxu0 %v597
    %736 = vmatprep.subr.bf16.mxu0 0
    %737 = vmatpush1.bf16.msra.mxu0 %v598
    %738 = vmatprep.subr.bf16.mxu0 0
    %739 = vmatpush1.bf16.msra.mxu0 %v599
    %740 = vmatprep.subr.bf16.mxu0 0
    %741 = vmatpush1.bf16.msra.mxu0 %v600
    %742 = vmatprep.subr.bf16.mxu0 0
    %743 = vmatpush1.bf16.msra.mxu0 %v601
    %744 = vmatprep.subr.bf16.mxu0 0
    %745 = vmatpush1.bf16.msra.mxu0 %v602
    %746 = vmatprep.subr.bf16.mxu0 0
    %747 = vmatpush1.bf16.msra.mxu0 %v603
    %748 = vmatprep.mubr.bf16.mxu0 %v317
    %749 = vmatmul.mubr.bf16.gmra.mrb[0].mxu0 %v316
    %v750 = vpop.f32.mrb[0].mxu0
    %v751 = vadd.f32 %v265, %v750
    %v752 = vpop.f32.mrb[0].mxu0
    %v753 = vpop.f32.mrb[0].mxu0
    %v754 = vpop.f32.mrb[0].mxu0
    %755 = vdwg.mxu0
    %756 = vmatprep.subr.bf16.mxu0 0
    %757 = vmatpush1.bf16.msra.mxu0 %v604
    %758 = vmatprep.subr.bf16.mxu0 0
    %759 = vmatpush1.bf16.msra.mxu0 %v605
    %760 = vmatprep.subr.bf16.mxu0 0
    %761 = vmatpush1.bf16.msra.mxu0 %v606
    %762 = vmatprep.subr.bf16.mxu0 0
    %763 = vmatpush1.bf16.msra.mxu0 %v607
    %764 = vmatprep.subr.bf16.mxu0 0
    %765 = vmatpush1.bf16.msra.mxu0 %v608
    %766 = vmatprep.subr.bf16.mxu0 0
    %767 = vmatpush1.bf16.msra.mxu0 %v609
    %768 = vmatprep.subr.bf16.mxu0 0
    %769 = vmatpush1.bf16.msra.mxu0 %v610
    %770 = vmatprep.subr.bf16.mxu0 0
    %771 = vmatpush1.bf16.msra.mxu0 %v611
    %772 = vmatprep.subr.bf16.mxu0 0
    %773 = vmatpush1.bf16.msra.mxu0 %v612
    %774 = vmatprep.subr.bf16.mxu0 0
    %775 = vmatpush1.bf16.msra.mxu0 %v613
    %776 = vmatprep.subr.bf16.mxu0 0
    %777 = vmatpush1.bf16.msra.mxu0 %v614
    %778 = vmatprep.subr.bf16.mxu0 0
    %779 = vmatpush1.bf16.msra.mxu0 %v615
    %780 = vmatprep.subr.bf16.mxu0 0
    %781 = vmatpush1.bf16.msra.mxu0 %v616
    %782 = vmatprep.subr.bf16.mxu0 0
    %783 = vmatpush1.bf16.msra.mxu0 %v617
    %784 = vmatprep.subr.bf16.mxu0 0
    %785 = vmatpush1.bf16.msra.mxu0 %v618
    %786 = vmatprep.subr.bf16.mxu0 0
    %787 = vmatpush1.bf16.msra.mxu0 %v619
    %788 = vmatprep.mubr.bf16.mxu0 %v319
    %789 = vmatmul.mubr.bf16.gmra.mrb[0].mxu0 %v318
    %v790 = vpop.f32.mrb[0].mxu0
    %v791 = vadd.f32 %v751, %v790
    %v792 = vpop.f32.mrb[0].mxu0
    %v793 = vpop.f32.mrb[0].mxu0
    %v794 = vpop.f32.mrb[0].mxu0
    %795 = vdwg.mxu0
    %796 = vmatprep.subr.bf16.mxu0 0
    %797 = vmatpush1.bf16.msra.mxu0 %v620
    %798 = vmatprep.subr.bf16.mxu0 0
    %799 = vmatpush1.bf16.msra.mxu0 %v621
    %800 = vmatprep.subr.bf16.mxu0 0
    %801 = vmatpush1.bf16.msra.mxu0 %v622
    %802 = vmatprep.subr.bf16.mxu0 0
    %803 = vmatpush1.bf16.msra.mxu0 %v623
    %804 = vmatprep.subr.bf16.mxu0 0
    %805 = vmatpush1.bf16.msra.mxu0 %v624
    %806 = vmatprep.subr.bf16.mxu0 0
    %807 = vmatpush1.bf16.msra.mxu0 %v625
    %808 = vmatprep.subr.bf16.mxu0 0
    %809 = vmatpush1.bf16.msra.mxu0 %v626
    %810 = vmatprep.subr.bf16.mxu0 0
    %811 = vmatpush1.bf16.msra.mxu0 %v627
    %812 = vmatprep.subr.bf16.mxu0 0
    %813 = vmatpush1.bf16.msra.mxu0 %v628
    %814 = vmatprep.subr.bf16.mxu0 0
    %815 = vmatpush1.bf16.msra.mxu0 %v629
    %816 = vmatprep.subr.bf16.mxu0 0
    %817 = vmatpush1.bf16.msra.mxu0 %v630
    %818 = vmatprep.subr.bf16.mxu0 0
    %819 = vmatpush1.bf16.msra.mxu0 %v631
    %820 = vmatprep.subr.bf16.mxu0 0
    %821 = vmatpush1.bf16.msra.mxu0 %v632
    %822 = vmatprep.subr.bf16.mxu0 0
    %823 = vmatpush1.bf16.msra.mxu0 %v633
    %824 = vmatprep.subr.bf16.mxu0 0
    %825 = vmatpush1.bf16.msra.mxu0 %v634
    %826 = vmatprep.subr.bf16.mxu0 0
    %827 = vmatpush1.bf16.msra.mxu0 %v635
    %828 = vmatprep.mubr.bf16.mxu0 %v321
    %829 = vmatmul.mubr.bf16.gmra.mrb[0].mxu0 %v320
    %v830 = vpop.f32.mrb[0].mxu0
    %v831 = vadd.f32 %v791, %v830
    %v832 = vpop.f32.mrb[0].mxu0
    %v833 = vpop.f32.mrb[0].mxu0
    %v834 = vpop.f32.mrb[0].mxu0
    %835 = vdwg.mxu0
    %836 = vmatprep.subr.bf16.mxu0 0
    %837 = vmatpush1.bf16.msra.mxu0 %v636
    %838 = vmatprep.subr.bf16.mxu0 0
    %839 = vmatpush1.bf16.msra.mxu0 %v637
    %840 = vmatprep.subr.bf16.mxu0 0
    %841 = vmatpush1.bf16.msra.mxu0 %v638
    %842 = vmatprep.subr.bf16.mxu0 0
    %843 = vmatpush1.bf16.msra.mxu0 %v639
    %844 = vmatprep.subr.bf16.mxu0 0
    %845 = vmatpush1.bf16.msra.mxu0 %v640
    %846 = vmatprep.subr.bf16.mxu0 0
    %847 = vmatpush1.bf16.msra.mxu0 %v641
    %848 = vmatprep.subr.bf16.mxu0 0
    %849 = vmatpush1.bf16.msra.mxu0 %v642
    %850 = vmatprep.subr.bf16.mxu0 0
    %851 = vmatpush1.bf16.msra.mxu0 %v643
    %852 = vmatprep.subr.bf16.mxu0 0
    %853 = vmatpush1.bf16.msra.mxu0 %v644
    %854 = vmatprep.subr.bf16.mxu0 0
    %855 = vmatpush1.bf16.msra.mxu0 %v645
    %856 = vmatprep.subr.bf16.mxu0 0
    %857 = vmatpush1.bf16.msra.mxu0 %v646
    %858 = vmatprep.subr.bf16.mxu0 0
    %859 = vmatpush1.bf16.msra.mxu0 %v647
    %860 = vmatprep.subr.bf16.mxu0 0
    %861 = vmatpush1.bf16.msra.mxu0 %v648
    %862 = vmatprep.subr.bf16.mxu0 0
    %863 = vmatpush1.bf16.msra.mxu0 %v649
    %864 = vmatprep.subr.bf16.mxu0 0
    %865 = vmatpush1.bf16.msra.mxu0 %v650
    %866 = vmatprep.subr.bf16.mxu0 0
    %867 = vmatpush1.bf16.msra.mxu0 %v651
    %868 = vmatprep.mubr.bf16.mxu0 %v323
    %869 = vmatmul.mubr.bf16.gmra.mrb[0].mxu0 %v322
    %v870 = vpop.f32.mrb[0].mxu0
    %v871 = vadd.f32 %v831, %v870
    %v872 = vpop.f32.mrb[0].mxu0
    %v873 = vpop.f32.mrb[0].mxu0
    %v874 = vpop.f32.mrb[0].mxu0
    %875 = vdwg.mxu0
    %vm876 = vcmask 74752
    %877 = vst.msk [vmem:[#allocation2] sm:$0x3] %vm876, %v871
    // Predicated region
    $region22: #{mnet_forward.23} parent=1 // pred_check
      _
    $region23: #{mnet_forward.23} parent=1 // pred_check_branch
      %879 = sbr.rel (0) target = $region25
    $region24: #{mnet_forward.23} parent=1 // pred_region
      %s881 = ssub.s32 32, 32
      %882 = vsyncadd [#allocation3], %s881
      %s884 = sshll.u32 [#allocation2], 4
      %s885 = int_to_ptr.vmem [resolvable:$true] %s884
      %887 = dma.vmem_to_hbm [thread:$0]  %s885, 32, %s5, [#allocation3]
    $region25: #{mnet_forward.23} parent=1 // pred_fallthru
      _
    // Predicated region
    $region26: #{mnet_forward.23} parent=1 // pred_check
      _
    $region27: #{mnet_forward.23} parent=1 // pred_check_branch
      %889 = sbr.rel (0) target = $region29
    $region28: #{mnet_forward.23} parent=1 // pred_region
      %890 = dma.done [#allocation3], 32
    $region29: #{mnet_forward.23} parent=1 // pred_fallthru
      _
    %891 = vsyncpa [#allocation3], 1

// kernel: mnet_forward.22
$region0: #{mnet_forward.22}
  #allocation0 [shape = 'u32[]', space=smem, size = 0x4, offset = 0x4, fixed_abs, tag = 'smem constant byte address 0x4 - core index']
  #allocation1 [shape = 'u32[144,128]{1,0:T(1,128)}', space=vmem, size = 0x12000, scoped, tag = 'internal scratch']
  %s0 = inlined_call_operand.vmem [shape: f32[1,512], index: 0, kind: input, shape index: {}]
  %s1 = inlined_call_operand.vmem [shape: f32[1,512], index: 1, kind: input, shape index: {}]
  %s2 = inlined_call_operand.vmem [shape: f32[2,512], index: 2, kind: input, shape index: {}]
  %s3 = inlined_call_operand.vmem [shape: bf16[512,1024], index: 3, kind: input, shape index: {}]
  %s4 = inlined_call_operand.vmem [shape: f32[2,1024], index: 4, kind: output, shape index: {0}]
  %s5 = inlined_call_operand.vmem [shape: f32[1,1024], index: 5, kind: output, shape index: {1}]
  %s6 = inlined_call_operand.vmem [shape: f32[1,1024], index: 6, kind: output, shape index: {2}]
  %7 = xla_tuple %s4, %s5, %s6
  %s8 = sld [smem:[#allocation0]]
  $region46: #{mnet_forward.22} parent=0
    _
  %s10 = ssub.s32 1, %s8
  %s11 = scalar_select 0, %s10, %s8
  // Predicated region
  $region2: #{mnet_forward.22} parent=0 // pred_check
    _
  $region3: #{mnet_forward.22} parent=0 // pred_check_branch
    %13 = sbr.rel (0) target = $region5
  $region4: #{mnet_forward.22} parent=0 // pred_region
    _
  $region5: #{mnet_forward.22} parent=0 // pred_fallthru
    _
  // Predicated region
  $region6: #{mnet_forward.22} parent=0 // pred_check
    _
  $region7: #{mnet_forward.22} parent=0 // pred_check_branch
    %15 = sbr.rel (0) target = $region9
  $region8: #{mnet_forward.22} parent=0 // pred_region
    _
  $region9: #{mnet_forward.22} parent=0 // pred_fallthru
    _
  // Predicated region
  $region10: #{mnet_forward.22} parent=0 // pred_check
    _
  $region11: #{mnet_forward.22} parent=0 // pred_check_branch
    %17 = sbr.rel (0) target = $region13
  $region12: #{mnet_forward.22} parent=0 // pred_region
    _
  $region13: #{mnet_forward.22} parent=0 // pred_fallthru
    _
  // Predicated region
  $region14: #{mnet_forward.22} parent=0 // pred_check
    _
  $region15: #{mnet_forward.22} parent=0 // pred_check_branch
    %19 = sbr.rel (0) target = $region17
  $region16: #{mnet_forward.22} parent=0 // pred_region
    _
  $region17: #{mnet_forward.22} parent=0 // pred_fallthru
    _
  %p20 = scmp.eq.s32.totalorder 0, 0
  // Predicated region
  $region18: #{mnet_forward.22} parent=0 // pred_check
    %p21 = pneg %p20
  $region19: #{mnet_forward.22} parent=0 // pred_check_branch
    %23 = sbr.rel (%p21) target = $region21
  $region20: #{mnet_forward.22} parent=0 // pred_region
    %24 = vst [vmem:[%s5] sm:$0xff] 0.0
    %25 = vst [vmem:[%s6] sm:$0xff] 0.0
  $region21: #{mnet_forward.22} parent=0 // pred_fallthru
    _
  %v26 = vld [vmem:[%s2] sm:$0xff]
  %v27 = vld [vmem:[%s0] sm:$0xf]
  %v29 = vlaneseq
  %v30 = vshrl.u32 %v29, 7
  %v31 = vsub.s32 0, %v30
  %v32 = vrot.slane %v27, %v31
  %v33 = vlaneseq
  %v34 = vshrl.u32 %v33, 7
  %v35 = vsub.s32 1, %v34
  %v36 = vrot.slane %v27, %v35
  %v37 = vlaneseq
  %v38 = vshrl.u32 %v37, 7
  %v39 = vsub.s32 2, %v38
  %v40 = vrot.slane %v27, %v39
  %v41 = vlaneseq
  %v42 = vshrl.u32 %v41, 7
  %v43 = vsub.s32 3, %v42
  %v44 = vrot.slane %v27, %v43
  %v45 = vcombine.low %v32, %v36
  %v46 = vcombine.low %v40, %v44
  %v48 = vunpack.c.l.s4 1983009808
  %v49 = vunpack.c.0.s8 %v48
  %v50 = vlaneseq
  %v51 = vshrl.u32 %v50, 7
  %v52 = vsub.s32 %v49, %v51
  %v53 = vrot.slane %v45, %v52
  %v55 = vunpack.c.l.s4 1983009808
  %v56 = vunpack.c.0.s8 %v55
  %v57 = vlaneseq
  %v58 = vshrl.u32 %v57, 7
  %v59 = vsub.s32 %v56, %v58
  %v60 = vrot.slane %v46, %v59
  %v61 = vcombine.low %v53, %v60
  %v63 = vmul.f32 %v26, %v61
  %v64 = vld [vmem:[%s1] sm:$0xf]
  %v66 = vlaneseq
  %v67 = vshrl.u32 %v66, 7
  %v68 = vsub.s32 0, %v67
  %v69 = vrot.slane %v64, %v68
  %v70 = vlaneseq
  %v71 = vshrl.u32 %v70, 7
  %v72 = vsub.s32 1, %v71
  %v73 = vrot.slane %v64, %v72
  %v74 = vlaneseq
  %v75 = vshrl.u32 %v74, 7
  %v76 = vsub.s32 2, %v75
  %v77 = vrot.slane %v64, %v76
  %v78 = vlaneseq
  %v79 = vshrl.u32 %v78, 7
  %v80 = vsub.s32 3, %v79
  %v81 = vrot.slane %v64, %v80
  %v82 = vcombine.low %v69, %v73
  %v83 = vcombine.low %v77, %v81
  %v85 = vunpack.c.l.s4 1983009808
  %v86 = vunpack.c.0.s8 %v85
  %v87 = vlaneseq
  %v88 = vshrl.u32 %v87, 7
  %v89 = vsub.s32 %v86, %v88
  %v90 = vrot.slane %v82, %v89
  %v92 = vunpack.c.l.s4 1983009808
  %v93 = vunpack.c.0.s8 %v92
  %v94 = vlaneseq
  %v95 = vshrl.u32 %v94, 7
  %v96 = vsub.s32 %v93, %v95
  %v97 = vrot.slane %v83, %v96
  %v98 = vcombine.low %v90, %v97
  %v100 = vadd.f32 %v63, %v98
  %v101 = vmax.f32 %v100, 0.0
  %v103 = vcombine.high %v101, %v101
  %v105 = vunpack.c.l.s4 1983009808
  %v106 = vunpack.c.0.s8 %v105
  %v107 = vlaneseq
  %v108 = vshrl.u32 %v107, 7
  %v109 = vsub.s32 %v106, %v108
  %v110 = vrot.slane %v101, %v109
  %v112 = vunpack.c.l.s4 1983009808
  %v113 = vunpack.c.0.s8 %v112
  %v114 = vlaneseq
  %v115 = vshrl.u32 %v114, 7
  %v116 = vsub.s32 %v113, %v115
  %v117 = vrot.slane %v103, %v116
  %v118 = vcombine.high %v110, %v110
  %v119 = vcombine.high %v117, %v117
  %v124 = vpack.c.bf16 %v110, %v110
  %v125 = vpack.c.bf16 %v118, %v118
  %v126 = vpack.c.bf16 %v117, %v117
  %v127 = vpack.c.bf16 %v119, %v119
  %v128 = vld [vmem:[%s3] sm:$0xff]
  %v129 = vld [vmem:[%s3 + $0x8] sm:$0xff]
  %v130 = vld [vmem:[%s3 + $0x10] sm:$0xff]
  %v131 = vld [vmem:[%s3 + $0x18] sm:$0xff]
  %v132 = vld [vmem:[%s3 + $0x20] sm:$0xff]
  %v133 = vld [vmem:[%s3 + $0x28] sm:$0xff]
  %v134 = vld [vmem:[%s3 + $0x30] sm:$0xff]
  %v135 = vld [vmem:[%s3 + $0x38] sm:$0xff]
  %v136 = vld [vmem:[%s3 + $0x40] sm:$0xff]
  %v137 = vld [vmem:[%s3 + $0x48] sm:$0xff]
  %v138 = vld [vmem:[%s3 + $0x50] sm:$0xff]
  %v139 = vld [vmem:[%s3 + $0x58] sm:$0xff]
  %v140 = vld [vmem:[%s3 + $0x60] sm:$0xff]
  %v141 = vld [vmem:[%s3 + $0x68] sm:$0xff]
  %v142 = vld [vmem:[%s3 + $0x70] sm:$0xff]
  %v143 = vld [vmem:[%s3 + $0x78] sm:$0xff]
  %v144 = vld [vmem:[%s3 + $0x80] sm:$0xff]
  %v145 = vld [vmem:[%s3 + $0x88] sm:$0xff]
  %v146 = vld [vmem:[%s3 + $0x90] sm:$0xff]
  %v147 = vld [vmem:[%s3 + $0x98] sm:$0xff]
  %v148 = vld [vmem:[%s3 + $0xa0] sm:$0xff]
  %v149 = vld [vmem:[%s3 + $0xa8] sm:$0xff]
  %v150 = vld [vmem:[%s3 + $0xb0] sm:$0xff]
  %v151 = vld [vmem:[%s3 + $0xb8] sm:$0xff]
  %v152 = vld [vmem:[%s3 + $0xc0] sm:$0xff]
  %v153 = vld [vmem:[%s3 + $0xc8] sm:$0xff]
  %v154 = vld [vmem:[%s3 + $0xd0] sm:$0xff]
  %v155 = vld [vmem:[%s3 + $0xd8] sm:$0xff]
  %v156 = vld [vmem:[%s3 + $0xe0] sm:$0xff]
  %v157 = vld [vmem:[%s3 + $0xe8] sm:$0xff]
  %v158 = vld [vmem:[%s3 + $0xf0] sm:$0xff]
  %v159 = vld [vmem:[%s3 + $0xf8] sm:$0xff]
  %v160 = vld [vmem:[%s3 + $0x100] sm:$0xff]
  %v161 = vld [vmem:[%s3 + $0x108] sm:$0xff]
  %v162 = vld [vmem:[%s3 + $0x110] sm:$0xff]
  %v163 = vld [vmem:[%s3 + $0x118] sm:$0xff]
  %v164 = vld [vmem:[%s3 + $0x120] sm:$0xff]
  %v165 = vld [vmem:[%s3 + $0x128] sm:$0xff]
  %v166 = vld [vmem:[%s3 + $0x130] sm:$0xff]
  %v167 = vld [vmem:[%s3 + $0x138] sm:$0xff]
  %v168 = vld [vmem:[%s3 + $0x140] sm:$0xff]
  %v169 = vld [vmem:[%s3 + $0x148] sm:$0xff]
  %v170 = vld [vmem:[%s3 + $0x150] sm:$0xff]
  %v171 = vld [vmem:[%s3 + $0x158] sm:$0xff]
  %v172 = vld [vmem:[%s3 + $0x160] sm:$0xff]
  %v173 = vld [vmem:[%s3 + $0x168] sm:$0xff]
  %v174 = vld [vmem:[%s3 + $0x170] sm:$0xff]
  %v175 = vld [vmem:[%s3 + $0x178] sm:$0xff]
  %v176 = vld [vmem:[%s3 + $0x180] sm:$0xff]
  %v177 = vld [vmem:[%s3 + $0x188] sm:$0xff]
  %v178 = vld [vmem:[%s3 + $0x190] sm:$0xff]
  %v179 = vld [vmem:[%s3 + $0x198] sm:$0xff]
  %v180 = vld [vmem:[%s3 + $0x1a0] sm:$0xff]
  %v181 = vld [vmem:[%s3 + $0x1a8] sm:$0xff]
  %v182 = vld [vmem:[%s3 + $0x1b0] sm:$0xff]
  %v183 = vld [vmem:[%s3 + $0x1b8] sm:$0xff]
  %v184 = vld [vmem:[%s3 + $0x1c0] sm:$0xff]
  %v185 = vld [vmem:[%s3 + $0x1c8] sm:$0xff]
  %v186 = vld [vmem:[%s3 + $0x1d0] sm:$0xff]
  %v187 = vld [vmem:[%s3 + $0x1d8] sm:$0xff]
  %v188 = vld [vmem:[%s3 + $0x1e0] sm:$0xff]
  %v189 = vld [vmem:[%s3 + $0x1e8] sm:$0xff]
  %v190 = vld [vmem:[%s3 + $0x1f0] sm:$0xff]
  %v191 = vld [vmem:[%s3 + $0x1f8] sm:$0xff]
  %v192 = vld [vmem:[%s3 + $0x200] sm:$0xff]
  %v193 = vld [vmem:[%s3 + $0x208] sm:$0xff]
  %v194 = vld [vmem:[%s3 + $0x210] sm:$0xff]
  %v195 = vld [vmem:[%s3 + $0x218] sm:$0xff]
  %v196 = vld [vmem:[%s3 + $0x220] sm:$0xff]
  %v197 = vld [vmem:[%s3 + $0x228] sm:$0xff]
  %v198 = vld [vmem:[%s3 + $0x230] sm:$0xff]
  %v199 = vld [vmem:[%s3 + $0x238] sm:$0xff]
  %v200 = vld [vmem:[%s3 + $0x240] sm:$0xff]
  %v201 = vld [vmem:[%s3 + $0x248] sm:$0xff]
  %v202 = vld [vmem:[%s3 + $0x250] sm:$0xff]
  %v203 = vld [vmem:[%s3 + $0x258] sm:$0xff]
  %v204 = vld [vmem:[%s3 + $0x260] sm:$0xff]
  %v205 = vld [vmem:[%s3 + $0x268] sm:$0xff]
  %v206 = vld [vmem:[%s3 + $0x270] sm:$0xff]
  %v207 = vld [vmem:[%s3 + $0x278] sm:$0xff]
  %v208 = vld [vmem:[%s3 + $0x280] sm:$0xff]
  %v209 = vld [vmem:[%s3 + $0x288] sm:$0xff]
  %v210 = vld [vmem:[%s3 + $0x290] sm:$0xff]
  %v211 = vld [vmem:[%s3 + $0x298] sm:$0xff]
  %v212 = vld [vmem:[%s3 + $0x2a0] sm:$0xff]
  %v213 = vld [vmem:[%s3 + $0x2a8] sm:$0xff]
  %v214 = vld [vmem:[%s3 + $0x2b0] sm:$0xff]
  %v215 = vld [vmem:[%s3 + $0x2b8] sm:$0xff]
  %v216 = vld [vmem:[%s3 + $0x2c0] sm:$0xff]
  %v217 = vld [vmem:[%s3 + $0x2c8] sm:$0xff]
  %v218 = vld [vmem:[%s3 + $0x2d0] sm:$0xff]
  %v219 = vld [vmem:[%s3 + $0x2d8] sm:$0xff]
  %v220 = vld [vmem:[%s3 + $0x2e0] sm:$0xff]
  %v221 = vld [vmem:[%s3 + $0x2e8] sm:$0xff]
  %v222 = vld [vmem:[%s3 + $0x2f0] sm:$0xff]
  %v223 = vld [vmem:[%s3 + $0x2f8] sm:$0xff]
  %v224 = vld [vmem:[%s3 + $0x300] sm:$0xff]
  %v225 = vld [vmem:[%s3 + $0x308] sm:$0xff]
  %v226 = vld [vmem:[%s3 + $0x310] sm:$0xff]
  %v227 = vld [vmem:[%s3 + $0x318] sm:$0xff]
  %v228 = vld [vmem:[%s3 + $0x320] sm:$0xff]
  %v229 = vld [vmem:[%s3 + $0x328] sm:$0xff]
  %v230 = vld [vmem:[%s3 + $0x330] sm:$0xff]
  %v231 = vld [vmem:[%s3 + $0x338] sm:$0xff]
  %v232 = vld [vmem:[%s3 + $0x340] sm:$0xff]
  %v233 = vld [vmem:[%s3 + $0x348] sm:$0xff]
  %v234 = vld [vmem:[%s3 + $0x350] sm:$0xff]
  %v235 = vld [vmem:[%s3 + $0x358] sm:$0xff]
  %v236 = vld [vmem:[%s3 + $0x360] sm:$0xff]
  %v237 = vld [vmem:[%s3 + $0x368] sm:$0xff]
  %v238 = vld [vmem:[%s3 + $0x370] sm:$0xff]
  %v239 = vld [vmem:[%s3 + $0x378] sm:$0xff]
  %v240 = vld [vmem:[%s3 + $0x380] sm:$0xff]
  %v241 = vld [vmem:[%s3 + $0x388] sm:$0xff]
  %v242 = vld [vmem:[%s3 + $0x390] sm:$0xff]
  %v243 = vld [vmem:[%s3 + $0x398] sm:$0xff]
  %v244 = vld [vmem:[%s3 + $0x3a0] sm:$0xff]
  %v245 = vld [vmem:[%s3 + $0x3a8] sm:$0xff]
  %v246 = vld [vmem:[%s3 + $0x3b0] sm:$0xff]
  %v247 = vld [vmem:[%s3 + $0x3b8] sm:$0xff]
  %v248 = vld [vmem:[%s3 + $0x3c0] sm:$0xff]
  %v249 = vld [vmem:[%s3 + $0x3c8] sm:$0xff]
  %v250 = vld [vmem:[%s3 + $0x3d0] sm:$0xff]
  %v251 = vld [vmem:[%s3 + $0x3d8] sm:$0xff]
  %v252 = vld [vmem:[%s3 + $0x3e0] sm:$0xff]
  %v253 = vld [vmem:[%s3 + $0x3e8] sm:$0xff]
  %v254 = vld [vmem:[%s3 + $0x3f0] sm:$0xff]
  %v255 = vld [vmem:[%s3 + $0x3f8] sm:$0xff]
  %v256 = vld [vmem:[%s3 + $0x400] sm:$0xff]
  %v257 = vld [vmem:[%s3 + $0x408] sm:$0xff]
  %v258 = vld [vmem:[%s3 + $0x410] sm:$0xff]
  %v259 = vld [vmem:[%s3 + $0x418] sm:$0xff]
  %v260 = vld [vmem:[%s3 + $0x420] sm:$0xff]
  %v261 = vld [vmem:[%s3 + $0x428] sm:$0xff]
  %v262 = vld [vmem:[%s3 + $0x430] sm:$0xff]
  %v263 = vld [vmem:[%s3 + $0x438] sm:$0xff]
  %v264 = vld [vmem:[%s3 + $0x440] sm:$0xff]
  %v265 = vld [vmem:[%s3 + $0x448] sm:$0xff]
  %v266 = vld [vmem:[%s3 + $0x450] sm:$0xff]
  %v267 = vld [vmem:[%s3 + $0x458] sm:$0xff]
  %v268 = vld [vmem:[%s3 + $0x460] sm:$0xff]
  %v269 = vld [vmem:[%s3 + $0x468] sm:$0xff]
  %v270 = vld [vmem:[%s3 + $0x470] sm:$0xff]
  %v271 = vld [vmem:[%s3 + $0x478] sm:$0xff]
  %v272 = vld [vmem:[%s3 + $0x480] sm:$0xff]
  %v273 = vld [vmem:[%s3 + $0x488] sm:$0xff]
  %v274 = vld [vmem:[%s3 + $0x490] sm:$0xff]
  %v275 = vld [vmem:[%s3 + $0x498] sm:$0xff]
  %v276 = vld [vmem:[%s3 + $0x4a0] sm:$0xff]
  %v277 = vld [vmem:[%s3 + $0x4a8] sm:$0xff]
  %v278 = vld [vmem:[%s3 + $0x4b0] sm:$0xff]
  %v279 = vld [vmem:[%s3 + $0x4b8] sm:$0xff]
  %v280 = vld [vmem:[%s3 + $0x4c0] sm:$0xff]
  %v281 = vld [vmem:[%s3 + $0x4c8] sm:$0xff]
  %v282 = vld [vmem:[%s3 + $0x4d0] sm:$0xff]
  %v283 = vld [vmem:[%s3 + $0x4d8] sm:$0xff]
  %v284 = vld [vmem:[%s3 + $0x4e0] sm:$0xff]
  %v285 = vld [vmem:[%s3 + $0x4e8] sm:$0xff]
  %v286 = vld [vmem:[%s3 + $0x4f0] sm:$0xff]
  %v287 = vld [vmem:[%s3 + $0x4f8] sm:$0xff]
  %v288 = vld [vmem:[%s3 + $0x500] sm:$0xff]
  %v289 = vld [vmem:[%s3 + $0x508] sm:$0xff]
  %v290 = vld [vmem:[%s3 + $0x510] sm:$0xff]
  %v291 = vld [vmem:[%s3 + $0x518] sm:$0xff]
  %v292 = vld [vmem:[%s3 + $0x520] sm:$0xff]
  %v293 = vld [vmem:[%s3 + $0x528] sm:$0xff]
  %v294 = vld [vmem:[%s3 + $0x530] sm:$0xff]
  %v295 = vld [vmem:[%s3 + $0x538] sm:$0xff]
  %v296 = vld [vmem:[%s3 + $0x540] sm:$0xff]
  %v297 = vld [vmem:[%s3 + $0x548] sm:$0xff]
  %v298 = vld [vmem:[%s3 + $0x550] sm:$0xff]
  %v299 = vld [vmem:[%s3 + $0x558] sm:$0xff]
  %v300 = vld [vmem:[%s3 + $0x560] sm:$0xff]
  %v301 = vld [vmem:[%s3 + $0x568] sm:$0xff]
  %v302 = vld [vmem:[%s3 + $0x570] sm:$0xff]
  %v303 = vld [vmem:[%s3 + $0x578] sm:$0xff]
  %v304 = vld [vmem:[%s3 + $0x580] sm:$0xff]
  %v305 = vld [vmem:[%s3 + $0x588] sm:$0xff]
  %v306 = vld [vmem:[%s3 + $0x590] sm:$0xff]
  %v307 = vld [vmem:[%s3 + $0x598] sm:$0xff]
  %v308 = vld [vmem:[%s3 + $0x5a0] sm:$0xff]
  %v309 = vld [vmem:[%s3 + $0x5a8] sm:$0xff]
  %v310 = vld [vmem:[%s3 + $0x5b0] sm:$0xff]
  %v311 = vld [vmem:[%s3 + $0x5b8] sm:$0xff]
  %v312 = vld [vmem:[%s3 + $0x5c0] sm:$0xff]
  %v313 = vld [vmem:[%s3 + $0x5c8] sm:$0xff]
  %v314 = vld [vmem:[%s3 + $0x5d0] sm:$0xff]
  %v315 = vld [vmem:[%s3 + $0x5d8] sm:$0xff]
  %v316 = vld [vmem:[%s3 + $0x5e0] sm:$0xff]
  %v317 = vld [vmem:[%s3 + $0x5e8] sm:$0xff]
  %v318 = vld [vmem:[%s3 + $0x5f0] sm:$0xff]
  %v319 = vld [vmem:[%s3 + $0x5f8] sm:$0xff]
  %v320 = vld [vmem:[%s3 + $0x600] sm:$0xff]
  %v321 = vld [vmem:[%s3 + $0x608] sm:$0xff]
  %v322 = vld [vmem:[%s3 + $0x610] sm:$0xff]
  %v323 = vld [vmem:[%s3 + $0x618] sm:$0xff]
  %v324 = vld [vmem:[%s3 + $0x620] sm:$0xff]
  %v325 = vld [vmem:[%s3 + $0x628] sm:$0xff]
  %v326 = vld [vmem:[%s3 + $0x630] sm:$0xff]
  %v327 = vld [vmem:[%s3 + $0x638] sm:$0xff]
  %v328 = vld [vmem:[%s3 + $0x640] sm:$0xff]
  %v329 = vld [vmem:[%s3 + $0x648] sm:$0xff]
  %v330 = vld [vmem:[%s3 + $0x650] sm:$0xff]
  %v331 = vld [vmem:[%s3 + $0x658] sm:$0xff]
  %v332 = vld [vmem:[%s3 + $0x660] sm:$0xff]
  %v333 = vld [vmem:[%s3 + $0x668] sm:$0xff]
  %v334 = vld [vmem:[%s3 + $0x670] sm:$0xff]
  %v335 = vld [vmem:[%s3 + $0x678] sm:$0xff]
  %v336 = vld [vmem:[%s3 + $0x680] sm:$0xff]
  %v337 = vld [vmem:[%s3 + $0x688] sm:$0xff]
  %v338 = vld [vmem:[%s3 + $0x690] sm:$0xff]
  %v339 = vld [vmem:[%s3 + $0x698] sm:$0xff]
  %v340 = vld [vmem:[%s3 + $0x6a0] sm:$0xff]
  %v341 = vld [vmem:[%s3 + $0x6a8] sm:$0xff]
  %v342 = vld [vmem:[%s3 + $0x6b0] sm:$0xff]
  %v343 = vld [vmem:[%s3 + $0x6b8] sm:$0xff]
  %v344 = vld [vmem:[%s3 + $0x6c0] sm:$0xff]
  %v345 = vld [vmem:[%s3 + $0x6c8] sm:$0xff]
  %v346 = vld [vmem:[%s3 + $0x6d0] sm:$0xff]
  %v347 = vld [vmem:[%s3 + $0x6d8] sm:$0xff]
  %v348 = vld [vmem:[%s3 + $0x6e0] sm:$0xff]
  %v349 = vld [vmem:[%s3 + $0x6e8] sm:$0xff]
  %v350 = vld [vmem:[%s3 + $0x6f0] sm:$0xff]
  %v351 = vld [vmem:[%s3 + $0x6f8] sm:$0xff]
  %v352 = vld [vmem:[%s3 + $0x700] sm:$0xff]
  %v353 = vld [vmem:[%s3 + $0x708] sm:$0xff]
  %v354 = vld [vmem:[%s3 + $0x710] sm:$0xff]
  %v355 = vld [vmem:[%s3 + $0x718] sm:$0xff]
  %v356 = vld [vmem:[%s3 + $0x720] sm:$0xff]
  %v357 = vld [vmem:[%s3 + $0x728] sm:$0xff]
  %v358 = vld [vmem:[%s3 + $0x730] sm:$0xff]
  %v359 = vld [vmem:[%s3 + $0x738] sm:$0xff]
  %v360 = vld [vmem:[%s3 + $0x740] sm:$0xff]
  %v361 = vld [vmem:[%s3 + $0x748] sm:$0xff]
  %v362 = vld [vmem:[%s3 + $0x750] sm:$0xff]
  %v363 = vld [vmem:[%s3 + $0x758] sm:$0xff]
  %v364 = vld [vmem:[%s3 + $0x760] sm:$0xff]
  %v365 = vld [vmem:[%s3 + $0x768] sm:$0xff]
  %v366 = vld [vmem:[%s3 + $0x770] sm:$0xff]
  %v367 = vld [vmem:[%s3 + $0x778] sm:$0xff]
  %v368 = vld [vmem:[%s3 + $0x780] sm:$0xff]
  %v369 = vld [vmem:[%s3 + $0x788] sm:$0xff]
  %v370 = vld [vmem:[%s3 + $0x790] sm:$0xff]
  %v371 = vld [vmem:[%s3 + $0x798] sm:$0xff]
  %v372 = vld [vmem:[%s3 + $0x7a0] sm:$0xff]
  %v373 = vld [vmem:[%s3 + $0x7a8] sm:$0xff]
  %v374 = vld [vmem:[%s3 + $0x7b0] sm:$0xff]
  %v375 = vld [vmem:[%s3 + $0x7b8] sm:$0xff]
  %v376 = vld [vmem:[%s3 + $0x7c0] sm:$0xff]
  %v377 = vld [vmem:[%s3 + $0x7c8] sm:$0xff]
  %v378 = vld [vmem:[%s3 + $0x7d0] sm:$0xff]
  %v379 = vld [vmem:[%s3 + $0x7d8] sm:$0xff]
  %v380 = vld [vmem:[%s3 + $0x7e0] sm:$0xff]
  %v381 = vld [vmem:[%s3 + $0x7e8] sm:$0xff]
  %v382 = vld [vmem:[%s3 + $0x7f0] sm:$0xff]
  %v383 = vld [vmem:[%s3 + $0x7f8] sm:$0xff]
  %v640 = vunpack.c.l.b16 %v128
  %v641 = vunpack.c.h.b16 %v128
  %v642 = vunpack.c.l.b16 %v129
  %v643 = vunpack.c.h.b16 %v129
  %v644 = vunpack.c.l.b16 %v130
  %v645 = vunpack.c.h.b16 %v130
  %v646 = vunpack.c.l.b16 %v131
  %v647 = vunpack.c.h.b16 %v131
  %v648 = vunpack.c.l.b16 %v132
  %v649 = vunpack.c.h.b16 %v132
  %v650 = vunpack.c.l.b16 %v133
  %v651 = vunpack.c.h.b16 %v133
  %v652 = vunpack.c.l.b16 %v134
  %v653 = vunpack.c.h.b16 %v134
  %v654 = vunpack.c.l.b16 %v135
  %v655 = vunpack.c.h.b16 %v135
  %v656 = vunpack.c.l.b16 %v136
  %v657 = vunpack.c.h.b16 %v136
  %v658 = vunpack.c.l.b16 %v137
  %v659 = vunpack.c.h.b16 %v137
  %v660 = vunpack.c.l.b16 %v138
  %v661 = vunpack.c.h.b16 %v138
  %v662 = vunpack.c.l.b16 %v139
  %v663 = vunpack.c.h.b16 %v139
  %v664 = vunpack.c.l.b16 %v140
  %v665 = vunpack.c.h.b16 %v140
  %v666 = vunpack.c.l.b16 %v141
  %v667 = vunpack.c.h.b16 %v141
  %v668 = vunpack.c.l.b16 %v142
  %v669 = vunpack.c.h.b16 %v142
  %v670 = vunpack.c.l.b16 %v143
  %v671 = vunpack.c.h.b16 %v143
  %v672 = vunpack.c.l.b16 %v144
  %v673 = vunpack.c.h.b16 %v144
  %v674 = vunpack.c.l.b16 %v145
  %v675 = vunpack.c.h.b16 %v145
  %v676 = vunpack.c.l.b16 %v146
  %v677 = vunpack.c.h.b16 %v146
  %v678 = vunpack.c.l.b16 %v147
  %v679 = vunpack.c.h.b16 %v147
  %v680 = vunpack.c.l.b16 %v148
  %v681 = vunpack.c.h.b16 %v148
  %v682 = vunpack.c.l.b16 %v149
  %v683 = vunpack.c.h.b16 %v149
  %v684 = vunpack.c.l.b16 %v150
  %v685 = vunpack.c.h.b16 %v150
  %v686 = vunpack.c.l.b16 %v151
  %v687 = vunpack.c.h.b16 %v151
  %v688 = vunpack.c.l.b16 %v152
  %v689 = vunpack.c.h.b16 %v152
  %v690 = vunpack.c.l.b16 %v153
  %v691 = vunpack.c.h.b16 %v153
  %v692 = vunpack.c.l.b16 %v154
  %v693 = vunpack.c.h.b16 %v154
  %v694 = vunpack.c.l.b16 %v155
  %v695 = vunpack.c.h.b16 %v155
  %v696 = vunpack.c.l.b16 %v156
  %v697 = vunpack.c.h.b16 %v156
  %v698 = vunpack.c.l.b16 %v157
  %v699 = vunpack.c.h.b16 %v157
  %v700 = vunpack.c.l.b16 %v158
  %v701 = vunpack.c.h.b16 %v158
  %v702 = vunpack.c.l.b16 %v159
  %v703 = vunpack.c.h.b16 %v159
  %v704 = vunpack.c.l.b16 %v160
  %v705 = vunpack.c.h.b16 %v160
  %v706 = vunpack.c.l.b16 %v161
  %v707 = vunpack.c.h.b16 %v161
  %v708 = vunpack.c.l.b16 %v162
  %v709 = vunpack.c.h.b16 %v162
  %v710 = vunpack.c.l.b16 %v163
  %v711 = vunpack.c.h.b16 %v163
  %v712 = vunpack.c.l.b16 %v164
  %v713 = vunpack.c.h.b16 %v164
  %v714 = vunpack.c.l.b16 %v165
  %v715 = vunpack.c.h.b16 %v165
  %v716 = vunpack.c.l.b16 %v166
  %v717 = vunpack.c.h.b16 %v166
  %v718 = vunpack.c.l.b16 %v167
  %v719 = vunpack.c.h.b16 %v167
  %v720 = vunpack.c.l.b16 %v168
  %v721 = vunpack.c.h.b16 %v168
  %v722 = vunpack.c.l.b16 %v169
  %v723 = vunpack.c.h.b16 %v169
  %v724 = vunpack.c.l.b16 %v170
  %v725 = vunpack.c.h.b16 %v170
  %v726 = vunpack.c.l.b16 %v171
  %v727 = vunpack.c.h.b16 %v171
  %v728 = vunpack.c.l.b16 %v172
  %v729 = vunpack.c.h.b16 %v172
  %v730 = vunpack.c.l.b16 %v173
  %v731 = vunpack.c.h.b16 %v173
  %v732 = vunpack.c.l.b16 %v174
  %v733 = vunpack.c.h.b16 %v174
  %v734 = vunpack.c.l.b16 %v175
  %v735 = vunpack.c.h.b16 %v175
  %v736 = vunpack.c.l.b16 %v176
  %v737 = vunpack.c.h.b16 %v176
  %v738 = vunpack.c.l.b16 %v177
  %v739 = vunpack.c.h.b16 %v177
  %v740 = vunpack.c.l.b16 %v178
  %v741 = vunpack.c.h.b16 %v178
  %v742 = vunpack.c.l.b16 %v179
  %v743 = vunpack.c.h.b16 %v179
  %v744 = vunpack.c.l.b16 %v180
  %v745 = vunpack.c.h.b16 %v180
  %v746 = vunpack.c.l.b16 %v181
  %v747 = vunpack.c.h.b16 %v181
  %v748 = vunpack.c.l.b16 %v182
  %v749 = vunpack.c.h.b16 %v182
  %v750 = vunpack.c.l.b16 %v183
  %v751 = vunpack.c.h.b16 %v183
  %v752 = vunpack.c.l.b16 %v184
  %v753 = vunpack.c.h.b16 %v184
  %v754 = vunpack.c.l.b16 %v185
  %v755 = vunpack.c.h.b16 %v185
  %v756 = vunpack.c.l.b16 %v186
  %v757 = vunpack.c.h.b16 %v186
  %v758 = vunpack.c.l.b16 %v187
  %v759 = vunpack.c.h.b16 %v187
  %v760 = vunpack.c.l.b16 %v188
  %v761 = vunpack.c.h.b16 %v188
  %v762 = vunpack.c.l.b16 %v189
  %v763 = vunpack.c.h.b16 %v189
  %v764 = vunpack.c.l.b16 %v190
  %v765 = vunpack.c.h.b16 %v190
  %v766 = vunpack.c.l.b16 %v191
  %v767 = vunpack.c.h.b16 %v191
  %v768 = vunpack.c.l.b16 %v192
  %v769 = vunpack.c.h.b16 %v192
  %v770 = vunpack.c.l.b16 %v193
  %v771 = vunpack.c.h.b16 %v193
  %v772 = vunpack.c.l.b16 %v194
  %v773 = vunpack.c.h.b16 %v194
  %v774 = vunpack.c.l.b16 %v195
  %v775 = vunpack.c.h.b16 %v195
  %v776 = vunpack.c.l.b16 %v196
  %v777 = vunpack.c.h.b16 %v196
  %v778 = vunpack.c.l.b16 %v197
  %v779 = vunpack.c.h.b16 %v197
  %v780 = vunpack.c.l.b16 %v198
  %v781 = vunpack.c.h.b16 %v198
  %v782 = vunpack.c.l.b16 %v199
  %v783 = vunpack.c.h.b16 %v199
  %v784 = vunpack.c.l.b16 %v200
  %v785 = vunpack.c.h.b16 %v200
  %v786 = vunpack.c.l.b16 %v201
  %v787 = vunpack.c.h.b16 %v201
  %v788 = vunpack.c.l.b16 %v202
  %v789 = vunpack.c.h.b16 %v202
  %v790 = vunpack.c.l.b16 %v203
  %v791 = vunpack.c.h.b16 %v203
  %v792 = vunpack.c.l.b16 %v204
  %v793 = vunpack.c.h.b16 %v204
  %v794 = vunpack.c.l.b16 %v205
  %v795 = vunpack.c.h.b16 %v205
  %v796 = vunpack.c.l.b16 %v206
  %v797 = vunpack.c.h.b16 %v206
  %v798 = vunpack.c.l.b16 %v207
  %v799 = vunpack.c.h.b16 %v207
  %v800 = vunpack.c.l.b16 %v208
  %v801 = vunpack.c.h.b16 %v208
  %v802 = vunpack.c.l.b16 %v209
  %v803 = vunpack.c.h.b16 %v209
  %v804 = vunpack.c.l.b16 %v210
  %v805 = vunpack.c.h.b16 %v210
  %v806 = vunpack.c.l.b16 %v211
  %v807 = vunpack.c.h.b16 %v211
  %v808 = vunpack.c.l.b16 %v212
  %v809 = vunpack.c.h.b16 %v212
  %v810 = vunpack.c.l.b16 %v213
  %v811 = vunpack.c.h.b16 %v213
  %v812 = vunpack.c.l.b16 %v214
  %v813 = vunpack.c.h.b16 %v214
  %v814 = vunpack.c.l.b16 %v215
  %v815 = vunpack.c.h.b16 %v215
  %v816 = vunpack.c.l.b16 %v216
  %v817 = vunpack.c.h.b16 %v216
  %v818 = vunpack.c.l.b16 %v217
  %v819 = vunpack.c.h.b16 %v217
  %v820 = vunpack.c.l.b16 %v218
  %v821 = vunpack.c.h.b16 %v218
  %v822 = vunpack.c.l.b16 %v219
  %v823 = vunpack.c.h.b16 %v219
  %v824 = vunpack.c.l.b16 %v220
  %v825 = vunpack.c.h.b16 %v220
  %v826 = vunpack.c.l.b16 %v221
  %v827 = vunpack.c.h.b16 %v221
  %v828 = vunpack.c.l.b16 %v222
  %v829 = vunpack.c.h.b16 %v222
  %v830 = vunpack.c.l.b16 %v223
  %v831 = vunpack.c.h.b16 %v223
  %v832 = vunpack.c.l.b16 %v224
  %v833 = vunpack.c.h.b16 %v224
  %v834 = vunpack.c.l.b16 %v225
  %v835 = vunpack.c.h.b16 %v225
  %v836 = vunpack.c.l.b16 %v226
  %v837 = vunpack.c.h.b16 %v226
  %v838 = vunpack.c.l.b16 %v227
  %v839 = vunpack.c.h.b16 %v227
  %v840 = vunpack.c.l.b16 %v228
  %v841 = vunpack.c.h.b16 %v228
  %v842 = vunpack.c.l.b16 %v229
  %v843 = vunpack.c.h.b16 %v229
  %v844 = vunpack.c.l.b16 %v230
  %v845 = vunpack.c.h.b16 %v230
  %v846 = vunpack.c.l.b16 %v231
  %v847 = vunpack.c.h.b16 %v231
  %v848 = vunpack.c.l.b16 %v232
  %v849 = vunpack.c.h.b16 %v232
  %v850 = vunpack.c.l.b16 %v233
  %v851 = vunpack.c.h.b16 %v233
  %v852 = vunpack.c.l.b16 %v234
  %v853 = vunpack.c.h.b16 %v234
  %v854 = vunpack.c.l.b16 %v235
  %v855 = vunpack.c.h.b16 %v235
  %v856 = vunpack.c.l.b16 %v236
  %v857 = vunpack.c.h.b16 %v236
  %v858 = vunpack.c.l.b16 %v237
  %v859 = vunpack.c.h.b16 %v237
  %v860 = vunpack.c.l.b16 %v238
  %v861 = vunpack.c.h.b16 %v238
  %v862 = vunpack.c.l.b16 %v239
  %v863 = vunpack.c.h.b16 %v239
  %v864 = vunpack.c.l.b16 %v240
  %v865 = vunpack.c.h.b16 %v240
  %v866 = vunpack.c.l.b16 %v241
  %v867 = vunpack.c.h.b16 %v241
  %v868 = vunpack.c.l.b16 %v242
  %v869 = vunpack.c.h.b16 %v242
  %v870 = vunpack.c.l.b16 %v243
  %v871 = vunpack.c.h.b16 %v243
  %v872 = vunpack.c.l.b16 %v244
  %v873 = vunpack.c.h.b16 %v244
  %v874 = vunpack.c.l.b16 %v245
  %v875 = vunpack.c.h.b16 %v245
  %v876 = vunpack.c.l.b16 %v246
  %v877 = vunpack.c.h.b16 %v246
  %v878 = vunpack.c.l.b16 %v247
  %v879 = vunpack.c.h.b16 %v247
  %v880 = vunpack.c.l.b16 %v248
  %v881 = vunpack.c.h.b16 %v248
  %v882 = vunpack.c.l.b16 %v249
  %v883 = vunpack.c.h.b16 %v249
  %v884 = vunpack.c.l.b16 %v250
  %v885 = vunpack.c.h.b16 %v250
  %v886 = vunpack.c.l.b16 %v251
  %v887 = vunpack.c.h.b16 %v251
  %v888 = vunpack.c.l.b16 %v252
  %v889 = vunpack.c.h.b16 %v252
  %v890 = vunpack.c.l.b16 %v253
  %v891 = vunpack.c.h.b16 %v253
  %v892 = vunpack.c.l.b16 %v254
  %v893 = vunpack.c.h.b16 %v254
  %v894 = vunpack.c.l.b16 %v255
  %v895 = vunpack.c.h.b16 %v255
  %v896 = vunpack.c.l.b16 %v256
  %v897 = vunpack.c.h.b16 %v256
  %v898 = vunpack.c.l.b16 %v257
  %v899 = vunpack.c.h.b16 %v257
  %v900 = vunpack.c.l.b16 %v258
  %v901 = vunpack.c.h.b16 %v258
  %v902 = vunpack.c.l.b16 %v259
  %v903 = vunpack.c.h.b16 %v259
  %v904 = vunpack.c.l.b16 %v260
  %v905 = vunpack.c.h.b16 %v260
  %v906 = vunpack.c.l.b16 %v261
  %v907 = vunpack.c.h.b16 %v261
  %v908 = vunpack.c.l.b16 %v262
  %v909 = vunpack.c.h.b16 %v262
  %v910 = vunpack.c.l.b16 %v263
  %v911 = vunpack.c.h.b16 %v263
  %v912 = vunpack.c.l.b16 %v264
  %v913 = vunpack.c.h.b16 %v264
  %v914 = vunpack.c.l.b16 %v265
  %v915 = vunpack.c.h.b16 %v265
  %v916 = vunpack.c.l.b16 %v266
  %v917 = vunpack.c.h.b16 %v266
  %v918 = vunpack.c.l.b16 %v267
  %v919 = vunpack.c.h.b16 %v267
  %v920 = vunpack.c.l.b16 %v268
  %v921 = vunpack.c.h.b16 %v268
  %v922 = vunpack.c.l.b16 %v269
  %v923 = vunpack.c.h.b16 %v269
  %v924 = vunpack.c.l.b16 %v270
  %v925 = vunpack.c.h.b16 %v270
  %v926 = vunpack.c.l.b16 %v271
  %v927 = vunpack.c.h.b16 %v271
  %v928 = vunpack.c.l.b16 %v272
  %v929 = vunpack.c.h.b16 %v272
  %v930 = vunpack.c.l.b16 %v273
  %v931 = vunpack.c.h.b16 %v273
  %v932 = vunpack.c.l.b16 %v274
  %v933 = vunpack.c.h.b16 %v274
  %v934 = vunpack.c.l.b16 %v275
  %v935 = vunpack.c.h.b16 %v275
  %v936 = vunpack.c.l.b16 %v276
  %v937 = vunpack.c.h.b16 %v276
  %v938 = vunpack.c.l.b16 %v277
  %v939 = vunpack.c.h.b16 %v277
  %v940 = vunpack.c.l.b16 %v278
  %v941 = vunpack.c.h.b16 %v278
  %v942 = vunpack.c.l.b16 %v279
  %v943 = vunpack.c.h.b16 %v279
  %v944 = vunpack.c.l.b16 %v280
  %v945 = vunpack.c.h.b16 %v280
  %v946 = vunpack.c.l.b16 %v281
  %v947 = vunpack.c.h.b16 %v281
  %v948 = vunpack.c.l.b16 %v282
  %v949 = vunpack.c.h.b16 %v282
  %v950 = vunpack.c.l.b16 %v283
  %v951 = vunpack.c.h.b16 %v283
  %v952 = vunpack.c.l.b16 %v284
  %v953 = vunpack.c.h.b16 %v284
  %v954 = vunpack.c.l.b16 %v285
  %v955 = vunpack.c.h.b16 %v285
  %v956 = vunpack.c.l.b16 %v286
  %v957 = vunpack.c.h.b16 %v286
  %v958 = vunpack.c.l.b16 %v287
  %v959 = vunpack.c.h.b16 %v287
  %v960 = vunpack.c.l.b16 %v288
  %v961 = vunpack.c.h.b16 %v288
  %v962 = vunpack.c.l.b16 %v289
  %v963 = vunpack.c.h.b16 %v289
  %v964 = vunpack.c.l.b16 %v290
  %v965 = vunpack.c.h.b16 %v290
  %v966 = vunpack.c.l.b16 %v291
  %v967 = vunpack.c.h.b16 %v291
  %v968 = vunpack.c.l.b16 %v292
  %v969 = vunpack.c.h.b16 %v292
  %v970 = vunpack.c.l.b16 %v293
  %v971 = vunpack.c.h.b16 %v293
  %v972 = vunpack.c.l.b16 %v294
  %v973 = vunpack.c.h.b16 %v294
  %v974 = vunpack.c.l.b16 %v295
  %v975 = vunpack.c.h.b16 %v295
  %v976 = vunpack.c.l.b16 %v296
  %v977 = vunpack.c.h.b16 %v296
  %v978 = vunpack.c.l.b16 %v297
  %v979 = vunpack.c.h.b16 %v297
  %v980 = vunpack.c.l.b16 %v298
  %v981 = vunpack.c.h.b16 %v298
  %v982 = vunpack.c.l.b16 %v299
  %v983 = vunpack.c.h.b16 %v299
  %v984 = vunpack.c.l.b16 %v300
  %v985 = vunpack.c.h.b16 %v300
  %v986 = vunpack.c.l.b16 %v301
  %v987 = vunpack.c.h.b16 %v301
  %v988 = vunpack.c.l.b16 %v302
  %v989 = vunpack.c.h.b16 %v302
  %v990 = vunpack.c.l.b16 %v303
  %v991 = vunpack.c.h.b16 %v303
  %v992 = vunpack.c.l.b16 %v304
  %v993 = vunpack.c.h.b16 %v304
  %v994 = vunpack.c.l.b16 %v305
  %v995 = vunpack.c.h.b16 %v305
  %v996 = vunpack.c.l.b16 %v306
  %v997 = vunpack.c.h.b16 %v306
  %v998 = vunpack.c.l.b16 %v307
  %v999 = vunpack.c.h.b16 %v307
  %v1000 = vunpack.c.l.b16 %v308
  %v1001 = vunpack.c.h.b16 %v308
  %v1002 = vunpack.c.l.b16 %v309
  %v1003 = vunpack.c.h.b16 %v309
  %v1004 = vunpack.c.l.b16 %v310
  %v1005 = vunpack.c.h.b16 %v310
  %v1006 = vunpack.c.l.b16 %v311
  %v1007 = vunpack.c.h.b16 %v311
  %v1008 = vunpack.c.l.b16 %v312
  %v1009 = vunpack.c.h.b16 %v312
  %v1010 = vunpack.c.l.b16 %v313
  %v1011 = vunpack.c.h.b16 %v313
  %v1012 = vunpack.c.l.b16 %v314
  %v1013 = vunpack.c.h.b16 %v314
  %v1014 = vunpack.c.l.b16 %v315
  %v1015 = vunpack.c.h.b16 %v315
  %v1016 = vunpack.c.l.b16 %v316
  %v1017 = vunpack.c.h.b16 %v316
  %v1018 = vunpack.c.l.b16 %v317
  %v1019 = vunpack.c.h.b16 %v317
  %v1020 = vunpack.c.l.b16 %v318
  %v1021 = vunpack.c.h.b16 %v318
  %v1022 = vunpack.c.l.b16 %v319
  %v1023 = vunpack.c.h.b16 %v319
  %v1024 = vunpack.c.l.b16 %v320
  %v1025 = vunpack.c.h.b16 %v320
  %v1026 = vunpack.c.l.b16 %v321
  %v1027 = vunpack.c.h.b16 %v321
  %v1028 = vunpack.c.l.b16 %v322
  %v1029 = vunpack.c.h.b16 %v322
  %v1030 = vunpack.c.l.b16 %v323
  %v1031 = vunpack.c.h.b16 %v323
  %v1032 = vunpack.c.l.b16 %v324
  %v1033 = vunpack.c.h.b16 %v324
  %v1034 = vunpack.c.l.b16 %v325
  %v1035 = vunpack.c.h.b16 %v325
  %v1036 = vunpack.c.l.b16 %v326
  %v1037 = vunpack.c.h.b16 %v326
  %v1038 = vunpack.c.l.b16 %v327
  %v1039 = vunpack.c.h.b16 %v327
  %v1040 = vunpack.c.l.b16 %v328
  %v1041 = vunpack.c.h.b16 %v328
  %v1042 = vunpack.c.l.b16 %v329
  %v1043 = vunpack.c.h.b16 %v329
  %v1044 = vunpack.c.l.b16 %v330
  %v1045 = vunpack.c.h.b16 %v330
  %v1046 = vunpack.c.l.b16 %v331
  %v1047 = vunpack.c.h.b16 %v331
  %v1048 = vunpack.c.l.b16 %v332
  %v1049 = vunpack.c.h.b16 %v332
  %v1050 = vunpack.c.l.b16 %v333
  %v1051 = vunpack.c.h.b16 %v333
  %v1052 = vunpack.c.l.b16 %v334
  %v1053 = vunpack.c.h.b16 %v334
  %v1054 = vunpack.c.l.b16 %v335
  %v1055 = vunpack.c.h.b16 %v335
  %v1056 = vunpack.c.l.b16 %v336
  %v1057 = vunpack.c.h.b16 %v336
  %v1058 = vunpack.c.l.b16 %v337
  %v1059 = vunpack.c.h.b16 %v337
  %v1060 = vunpack.c.l.b16 %v338
  %v1061 = vunpack.c.h.b16 %v338
  %v1062 = vunpack.c.l.b16 %v339
  %v1063 = vunpack.c.h.b16 %v339
  %v1064 = vunpack.c.l.b16 %v340
  %v1065 = vunpack.c.h.b16 %v340
  %v1066 = vunpack.c.l.b16 %v341
  %v1067 = vunpack.c.h.b16 %v341
  %v1068 = vunpack.c.l.b16 %v342
  %v1069 = vunpack.c.h.b16 %v342
  %v1070 = vunpack.c.l.b16 %v343
  %v1071 = vunpack.c.h.b16 %v343
  %v1072 = vunpack.c.l.b16 %v344
  %v1073 = vunpack.c.h.b16 %v344
  %v1074 = vunpack.c.l.b16 %v345
  %v1075 = vunpack.c.h.b16 %v345
  %v1076 = vunpack.c.l.b16 %v346
  %v1077 = vunpack.c.h.b16 %v346
  %v1078 = vunpack.c.l.b16 %v347
  %v1079 = vunpack.c.h.b16 %v347
  %v1080 = vunpack.c.l.b16 %v348
  %v1081 = vunpack.c.h.b16 %v348
  %v1082 = vunpack.c.l.b16 %v349
  %v1083 = vunpack.c.h.b16 %v349
  %v1084 = vunpack.c.l.b16 %v350
  %v1085 = vunpack.c.h.b16 %v350
  %v1086 = vunpack.c.l.b16 %v351
  %v1087 = vunpack.c.h.b16 %v351
  %v1088 = vunpack.c.l.b16 %v352
  %v1089 = vunpack.c.h.b16 %v352
  %v1090 = vunpack.c.l.b16 %v353
  %v1091 = vunpack.c.h.b16 %v353
  %v1092 = vunpack.c.l.b16 %v354
  %v1093 = vunpack.c.h.b16 %v354
  %v1094 = vunpack.c.l.b16 %v355
  %v1095 = vunpack.c.h.b16 %v355
  %v1096 = vunpack.c.l.b16 %v356
  %v1097 = vunpack.c.h.b16 %v356
  %v1098 = vunpack.c.l.b16 %v357
  %v1099 = vunpack.c.h.b16 %v357
  %v1100 = vunpack.c.l.b16 %v358
  %v1101 = vunpack.c.h.b16 %v358
  %v1102 = vunpack.c.l.b16 %v359
  %v1103 = vunpack.c.h.b16 %v359
  %v1104 = vunpack.c.l.b16 %v360
  %v1105 = vunpack.c.h.b16 %v360
  %v1106 = vunpack.c.l.b16 %v361
  %v1107 = vunpack.c.h.b16 %v361
  %v1108 = vunpack.c.l.b16 %v362
  %v1109 = vunpack.c.h.b16 %v362
  %v1110 = vunpack.c.l.b16 %v363
  %v1111 = vunpack.c.h.b16 %v363
  %v1112 = vunpack.c.l.b16 %v364
  %v1113 = vunpack.c.h.b16 %v364
  %v1114 = vunpack.c.l.b16 %v365
  %v1115 = vunpack.c.h.b16 %v365
  %v1116 = vunpack.c.l.b16 %v366
  %v1117 = vunpack.c.h.b16 %v366
  %v1118 = vunpack.c.l.b16 %v367
  %v1119 = vunpack.c.h.b16 %v367
  %v1120 = vunpack.c.l.b16 %v368
  %v1121 = vunpack.c.h.b16 %v368
  %v1122 = vunpack.c.l.b16 %v369
  %v1123 = vunpack.c.h.b16 %v369
  %v1124 = vunpack.c.l.b16 %v370
  %v1125 = vunpack.c.h.b16 %v370
  %v1126 = vunpack.c.l.b16 %v371
  %v1127 = vunpack.c.h.b16 %v371
  %v1128 = vunpack.c.l.b16 %v372
  %v1129 = vunpack.c.h.b16 %v372
  %v1130 = vunpack.c.l.b16 %v373
  %v1131 = vunpack.c.h.b16 %v373
  %v1132 = vunpack.c.l.b16 %v374
  %v1133 = vunpack.c.h.b16 %v374
  %v1134 = vunpack.c.l.b16 %v375
  %v1135 = vunpack.c.h.b16 %v375
  %v1136 = vunpack.c.l.b16 %v376
  %v1137 = vunpack.c.h.b16 %v376
  %v1138 = vunpack.c.l.b16 %v377
  %v1139 = vunpack.c.h.b16 %v377
  %v1140 = vunpack.c.l.b16 %v378
  %v1141 = vunpack.c.h.b16 %v378
  %v1142 = vunpack.c.l.b16 %v379
  %v1143 = vunpack.c.h.b16 %v379
  %v1144 = vunpack.c.l.b16 %v380
  %v1145 = vunpack.c.h.b16 %v380
  %v1146 = vunpack.c.l.b16 %v381
  %v1147 = vunpack.c.h.b16 %v381
  %v1148 = vunpack.c.l.b16 %v382
  %v1149 = vunpack.c.h.b16 %v382
  %v1150 = vunpack.c.l.b16 %v383
  %v1151 = vunpack.c.h.b16 %v383
  %v1152 = vpack.c.b16 %v648, %v640
  %v1153 = vpack.c.b16 %v649, %v641
  %v1154 = vpack.c.b16 %v650, %v642
  %v1155 = vpack.c.b16 %v651, %v643
  %v1156 = vpack.c.b16 %v652, %v644
  %v1157 = vpack.c.b16 %v653, %v645
  %v1158 = vpack.c.b16 %v654, %v646
  %v1159 = vpack.c.b16 %v655, %v647
  %v1160 = vpack.c.b16 %v664, %v656
  %v1161 = vpack.c.b16 %v665, %v657
  %v1162 = vpack.c.b16 %v666, %v658
  %v1163 = vpack.c.b16 %v667, %v659
  %v1164 = vpack.c.b16 %v668, %v660
  %v1165 = vpack.c.b16 %v669, %v661
  %v1166 = vpack.c.b16 %v670, %v662
  %v1167 = vpack.c.b16 %v671, %v663
  %v1168 = vpack.c.b16 %v680, %v672
  %v1169 = vpack.c.b16 %v681, %v673
  %v1170 = vpack.c.b16 %v682, %v674
  %v1171 = vpack.c.b16 %v683, %v675
  %v1172 = vpack.c.b16 %v684, %v676
  %v1173 = vpack.c.b16 %v685, %v677
  %v1174 = vpack.c.b16 %v686, %v678
  %v1175 = vpack.c.b16 %v687, %v679
  %v1176 = vpack.c.b16 %v696, %v688
  %v1177 = vpack.c.b16 %v697, %v689
  %v1178 = vpack.c.b16 %v698, %v690
  %v1179 = vpack.c.b16 %v699, %v691
  %v1180 = vpack.c.b16 %v700, %v692
  %v1181 = vpack.c.b16 %v701, %v693
  %v1182 = vpack.c.b16 %v702, %v694
  %v1183 = vpack.c.b16 %v703, %v695
  %v1184 = vpack.c.b16 %v712, %v704
  %v1185 = vpack.c.b16 %v713, %v705
  %v1186 = vpack.c.b16 %v714, %v706
  %v1187 = vpack.c.b16 %v715, %v707
  %v1188 = vpack.c.b16 %v716, %v708
  %v1189 = vpack.c.b16 %v717, %v709
  %v1190 = vpack.c.b16 %v718, %v710
  %v1191 = vpack.c.b16 %v719, %v711
  %v1192 = vpack.c.b16 %v728, %v720
  %v1193 = vpack.c.b16 %v729, %v721
  %v1194 = vpack.c.b16 %v730, %v722
  %v1195 = vpack.c.b16 %v731, %v723
  %v1196 = vpack.c.b16 %v732, %v724
  %v1197 = vpack.c.b16 %v733, %v725
  %v1198 = vpack.c.b16 %v734, %v726
  %v1199 = vpack.c.b16 %v735, %v727
  %v1200 = vpack.c.b16 %v744, %v736
  %v1201 = vpack.c.b16 %v745, %v737
  %v1202 = vpack.c.b16 %v746, %v738
  %v1203 = vpack.c.b16 %v747, %v739
  %v1204 = vpack.c.b16 %v748, %v740
  %v1205 = vpack.c.b16 %v749, %v741
  %v1206 = vpack.c.b16 %v750, %v742
  %v1207 = vpack.c.b16 %v751, %v743
  %v1208 = vpack.c.b16 %v760, %v752
  %v1209 = vpack.c.b16 %v761, %v753
  %v1210 = vpack.c.b16 %v762, %v754
  %v1211 = vpack.c.b16 %v763, %v755
  %v1212 = vpack.c.b16 %v764, %v756
  %v1213 = vpack.c.b16 %v765, %v757
  %v1214 = vpack.c.b16 %v766, %v758
  %v1215 = vpack.c.b16 %v767, %v759
  %v1216 = vpack.c.b16 %v776, %v768
  %v1217 = vpack.c.b16 %v777, %v769
  %v1218 = vpack.c.b16 %v778, %v770
  %v1219 = vpack.c.b16 %v779, %v771
  %v1220 = vpack.c.b16 %v780, %v772
  %v1221 = vpack.c.b16 %v781, %v773
  %v1222 = vpack.c.b16 %v782, %v774
  %v1223 = vpack.c.b16 %v783, %v775
  %v1224 = vpack.c.b16 %v792, %v784
  %v1225 = vpack.c.b16 %v793, %v785
  %v1226 = vpack.c.b16 %v794, %v786
  %v1227 = vpack.c.b16 %v795, %v787
  %v1228 = vpack.c.b16 %v796, %v788
  %v1229 = vpack.c.b16 %v797, %v789
  %v1230 = vpack.c.b16 %v798, %v790
  %v1231 = vpack.c.b16 %v799, %v791
  %v1232 = vpack.c.b16 %v808, %v800
  %v1233 = vpack.c.b16 %v809, %v801
  %v1234 = vpack.c.b16 %v810, %v802
  %v1235 = vpack.c.b16 %v811, %v803
  %v1236 = vpack.c.b16 %v812, %v804
  %v1237 = vpack.c.b16 %v813, %v805
  %v1238 = vpack.c.b16 %v814, %v806
  %v1239 = vpack.c.b16 %v815, %v807
  %v1240 = vpack.c.b16 %v824, %v816
  %v1241 = vpack.c.b16 %v825, %v817
  %v1242 = vpack.c.b16 %v826, %v818
  %v1243 = vpack.c.b16 %v827, %v819
  %v1244 = vpack.c.b16 %v828, %v820
  %v1245 = vpack.c.b16 %v829, %v821
  %v1246 = vpack.c.b16 %v830, %v822
  %v1247 = vpack.c.b16 %v831, %v823
  %v1248 = vpack.c.b16 %v840, %v832
  %v1249 = vpack.c.b16 %v841, %v833
  %v1250 = vpack.c.b16 %v842, %v834
  %v1251 = vpack.c.b16 %v843, %v835
  %v1252 = vpack.c.b16 %v844, %v836
  %v1253 = vpack.c.b16 %v845, %v837
  %v1254 = vpack.c.b16 %v846, %v838
  %v1255 = vpack.c.b16 %v847, %v839
  %v1256 = vpack.c.b16 %v856, %v848
  %v1257 = vpack.c.b16 %v857, %v849
  %v1258 = vpack.c.b16 %v858, %v850
  %v1259 = vpack.c.b16 %v859, %v851
  %v1260 = vpack.c.b16 %v860, %v852
  %v1261 = vpack.c.b16 %v861, %v853
  %v1262 = vpack.c.b16 %v862, %v854
  %v1263 = vpack.c.b16 %v863, %v855
  %v1264 = vpack.c.b16 %v872, %v864
  %v1265 = vpack.c.b16 %v873, %v865
  %v1266 = vpack.c.b16 %v874, %v866
  %v1267 = vpack.c.b16 %v875, %v867
  %v1268 = vpack.c.b16 %v876, %v868
  %v1269 = vpack.c.b16 %v877, %v869
  %v1270 = vpack.c.b16 %v878, %v870
  %v1271 = vpack.c.b16 %v879, %v871
  %v1272 = vpack.c.b16 %v888, %v880
  %v1273 = vpack.c.b16 %v889, %v881
  %v1274 = vpack.c.b16 %v890, %v882
  %v1275 = vpack.c.b16 %v891, %v883
  %v1276 = vpack.c.b16 %v892, %v884
  %v1277 = vpack.c.b16 %v893, %v885
  %v1278 = vpack.c.b16 %v894, %v886
  %v1279 = vpack.c.b16 %v895, %v887
  %v1280 = vpack.c.b16 %v904, %v896
  %v1281 = vpack.c.b16 %v905, %v897
  %v1282 = vpack.c.b16 %v906, %v898
  %v1283 = vpack.c.b16 %v907, %v899
  %v1284 = vpack.c.b16 %v908, %v900
  %v1285 = vpack.c.b16 %v909, %v901
  %v1286 = vpack.c.b16 %v910, %v902
  %v1287 = vpack.c.b16 %v911, %v903
  %v1288 = vpack.c.b16 %v920, %v912
  %v1289 = vpack.c.b16 %v921, %v913
  %v1290 = vpack.c.b16 %v922, %v914
  %v1291 = vpack.c.b16 %v923, %v915
  %v1292 = vpack.c.b16 %v924, %v916
  %v1293 = vpack.c.b16 %v925, %v917
  %v1294 = vpack.c.b16 %v926, %v918
  %v1295 = vpack.c.b16 %v927, %v919
  %v1296 = vpack.c.b16 %v936, %v928
  %v1297 = vpack.c.b16 %v937, %v929
  %v1298 = vpack.c.b16 %v938, %v930
  %v1299 = vpack.c.b16 %v939, %v931
  %v1300 = vpack.c.b16 %v940, %v932
  %v1301 = vpack.c.b16 %v941, %v933
  %v1302 = vpack.c.b16 %v942, %v934
  %v1303 = vpack.c.b16 %v943, %v935
  %v1304 = vpack.c.b16 %v952, %v944
  %v1305 = vpack.c.b16 %v953, %v945
  %v1306 = vpack.c.b16 %v954, %v946
  %v1307 = vpack.c.b16 %v955, %v947
  %v1308 = vpack.c.b16 %v956, %v948
  %v1309 = vpack.c.b16 %v957, %v949
  %v1310 = vpack.c.b16 %v958, %v950
  %v1311 = vpack.c.b16 %v959, %v951
  %v1312 = vpack.c.b16 %v968, %v960
  %v1313 = vpack.c.b16 %v969, %v961
  %v1314 = vpack.c.b16 %v970, %v962
  %v1315 = vpack.c.b16 %v971, %v963
  %v1316 = vpack.c.b16 %v972, %v964
  %v1317 = vpack.c.b16 %v973, %v965
  %v1318 = vpack.c.b16 %v974, %v966
  %v1319 = vpack.c.b16 %v975, %v967
  %v1320 = vpack.c.b16 %v984, %v976
  %v1321 = vpack.c.b16 %v985, %v977
  %v1322 = vpack.c.b16 %v986, %v978
  %v1323 = vpack.c.b16 %v987, %v979
  %v1324 = vpack.c.b16 %v988, %v980
  %v1325 = vpack.c.b16 %v989, %v981
  %v1326 = vpack.c.b16 %v990, %v982
  %v1327 = vpack.c.b16 %v991, %v983
  %v1328 = vpack.c.b16 %v1000, %v992
  %v1329 = vpack.c.b16 %v1001, %v993
  %v1330 = vpack.c.b16 %v1002, %v994
  %v1331 = vpack.c.b16 %v1003, %v995
  %v1332 = vpack.c.b16 %v1004, %v996
  %v1333 = vpack.c.b16 %v1005, %v997
  %v1334 = vpack.c.b16 %v1006, %v998
  %v1335 = vpack.c.b16 %v1007, %v999
  %v1336 = vpack.c.b16 %v1016, %v1008
  %v1337 = vpack.c.b16 %v1017, %v1009
  %v1338 = vpack.c.b16 %v1018, %v1010
  %v1339 = vpack.c.b16 %v1019, %v1011
  %v1340 = vpack.c.b16 %v1020, %v1012
  %v1341 = vpack.c.b16 %v1021, %v1013
  %v1342 = vpack.c.b16 %v1022, %v1014
  %v1343 = vpack.c.b16 %v1023, %v1015
  %v1344 = vpack.c.b16 %v1032, %v1024
  %v1345 = vpack.c.b16 %v1033, %v1025
  %v1346 = vpack.c.b16 %v1034, %v1026
  %v1347 = vpack.c.b16 %v1035, %v1027
  %v1348 = vpack.c.b16 %v1036, %v1028
  %v1349 = vpack.c.b16 %v1037, %v1029
  %v1350 = vpack.c.b16 %v1038, %v1030
  %v1351 = vpack.c.b16 %v1039, %v1031
  %v1352 = vpack.c.b16 %v1048, %v1040
  %v1353 = vpack.c.b16 %v1049, %v1041
  %v1354 = vpack.c.b16 %v1050, %v1042
  %v1355 = vpack.c.b16 %v1051, %v1043
  %v1356 = vpack.c.b16 %v1052, %v1044
  %v1357 = vpack.c.b16 %v1053, %v1045
  %v1358 = vpack.c.b16 %v1054, %v1046
  %v1359 = vpack.c.b16 %v1055, %v1047
  %v1360 = vpack.c.b16 %v1064, %v1056
  %v1361 = vpack.c.b16 %v1065, %v1057
  %v1362 = vpack.c.b16 %v1066, %v1058
  %v1363 = vpack.c.b16 %v1067, %v1059
  %v1364 = vpack.c.b16 %v1068, %v1060
  %v1365 = vpack.c.b16 %v1069, %v1061
  %v1366 = vpack.c.b16 %v1070, %v1062
  %v1367 = vpack.c.b16 %v1071, %v1063
  %v1368 = vpack.c.b16 %v1080, %v1072
  %v1369 = vpack.c.b16 %v1081, %v1073
  %v1370 = vpack.c.b16 %v1082, %v1074
  %v1371 = vpack.c.b16 %v1083, %v1075
  %v1372 = vpack.c.b16 %v1084, %v1076
  %v1373 = vpack.c.b16 %v1085, %v1077
  %v1374 = vpack.c.b16 %v1086, %v1078
  %v1375 = vpack.c.b16 %v1087, %v1079
  %v1376 = vpack.c.b16 %v1096, %v1088
  %v1377 = vpack.c.b16 %v1097, %v1089
  %v1378 = vpack.c.b16 %v1098, %v1090
  %v1379 = vpack.c.b16 %v1099, %v1091
  %v1380 = vpack.c.b16 %v1100, %v1092
  %v1381 = vpack.c.b16 %v1101, %v1093
  %v1382 = vpack.c.b16 %v1102, %v1094
  %v1383 = vpack.c.b16 %v1103, %v1095
  %v1384 = vpack.c.b16 %v1112, %v1104
  %v1385 = vpack.c.b16 %v1113, %v1105
  %v1386 = vpack.c.b16 %v1114, %v1106
  %v1387 = vpack.c.b16 %v1115, %v1107
  %v1388 = vpack.c.b16 %v1116, %v1108
  %v1389 = vpack.c.b16 %v1117, %v1109
  %v1390 = vpack.c.b16 %v1118, %v1110
  %v1391 = vpack.c.b16 %v1119, %v1111
  %v1392 = vpack.c.b16 %v1128, %v1120
  %v1393 = vpack.c.b16 %v1129, %v1121
  %v1394 = vpack.c.b16 %v1130, %v1122
  %v1395 = vpack.c.b16 %v1131, %v1123
  %v1396 = vpack.c.b16 %v1132, %v1124
  %v1397 = vpack.c.b16 %v1133, %v1125
  %v1398 = vpack.c.b16 %v1134, %v1126
  %v1399 = vpack.c.b16 %v1135, %v1127
  %v1400 = vpack.c.b16 %v1144, %v1136
  %v1401 = vpack.c.b16 %v1145, %v1137
  %v1402 = vpack.c.b16 %v1146, %v1138
  %v1403 = vpack.c.b16 %v1147, %v1139
  %v1404 = vpack.c.b16 %v1148, %v1140
  %v1405 = vpack.c.b16 %v1149, %v1141
  %v1406 = vpack.c.b16 %v1150, %v1142
  %v1407 = vpack.c.b16 %v1151, %v1143
  %1664 = vmatprep.subr.bf16.mxu0 %v1153
  %1665 = vmatpush1.bf16.msra.mxu0 %v1152
  %1666 = vmatprep.subr.bf16.mxu0 %v1161
  %1667 = vmatpush1.bf16.msra.mxu0 %v1160
  %1668 = vmatprep.subr.bf16.mxu0 %v1169
  %1669 = vmatpush1.bf16.msra.mxu0 %v1168
  %1670 = vmatprep.subr.bf16.mxu0 %v1177
  %1671 = vmatpush1.bf16.msra.mxu0 %v1176
  %1672 = vmatprep.subr.bf16.mxu0 %v1185
  %1673 = vmatpush1.bf16.msra.mxu0 %v1184
  %1674 = vmatprep.subr.bf16.mxu0 %v1193
  %1675 = vmatpush1.bf16.msra.mxu0 %v1192
  %1676 = vmatprep.subr.bf16.mxu0 %v1201
  %1677 = vmatpush1.bf16.msra.mxu0 %v1200
  %1678 = vmatprep.subr.bf16.mxu0 %v1209
  %1679 = vmatpush1.bf16.msra.mxu0 %v1208
  %1680 = vmatprep.subr.bf16.mxu0 %v1217
  %1681 = vmatpush1.bf16.msra.mxu0 %v1216
  %1682 = vmatprep.subr.bf16.mxu0 %v1225
  %1683 = vmatpush1.bf16.msra.mxu0 %v1224
  %1684 = vmatprep.subr.bf16.mxu0 %v1233
  %1685 = vmatpush1.bf16.msra.mxu0 %v1232
  %1686 = vmatprep.subr.bf16.mxu0 %v1241
  %1687 = vmatpush1.bf16.msra.mxu0 %v1240
  %1688 = vmatprep.subr.bf16.mxu0 %v1249
  %1689 = vmatpush1.bf16.msra.mxu0 %v1248
  %1690 = vmatprep.subr.bf16.mxu0 %v1257
  %1691 = vmatpush1.bf16.msra.mxu0 %v1256
  %1692 = vmatprep.subr.bf16.mxu0 %v1265
  %1693 = vmatpush1.bf16.msra.mxu0 %v1264
  %1694 = vmatprep.subr.bf16.mxu0 %v1273
  %1695 = vmatpush1.bf16.msra.mxu0 %v1272
  %1696 = vmatprep.mubr.bf16.mxu0 %v125
  %1697 = vmatmul.mubr.bf16.gmra.mrb[0].mxu0 %v124
  %v1698 = vpop.f32.mrb[0].mxu0
  %v1699 = vadd.f32 0.0, %v1698
  %v1700 = vpop.f32.mrb[0].mxu0
  %v1701 = vadd.f32 0.0, %v1700
  %v1702 = vpop.f32.mrb[0].mxu0
  %v1703 = vpop.f32.mrb[0].mxu0
  %1704 = vdwg.mxu0
  %1705 = vmatprep.subr.bf16.mxu0 %v1281
  %1706 = vmatpush1.bf16.msra.mxu0 %v1280
  %1707 = vmatprep.subr.bf16.mxu0 %v1289
  %1708 = vmatpush1.bf16.msra.mxu0 %v1288
  %1709 = vmatprep.subr.bf16.mxu0 %v1297
  %1710 = vmatpush1.bf16.msra.mxu0 %v1296
  %1711 = vmatprep.subr.bf16.mxu0 %v1305
  %1712 = vmatpush1.bf16.msra.mxu0 %v1304
  %1713 = vmatprep.subr.bf16.mxu0 %v1313
  %1714 = vmatpush1.bf16.msra.mxu0 %v1312
  %1715 = vmatprep.subr.bf16.mxu0 %v1321
  %1716 = vmatpush1.bf16.msra.mxu0 %v1320
  %1717 = vmatprep.subr.bf16.mxu0 %v1329
  %1718 = vmatpush1.bf16.msra.mxu0 %v1328
  %1719 = vmatprep.subr.bf16.mxu0 %v1337
  %1720 = vmatpush1.bf16.msra.mxu0 %v1336
  %1721 = vmatprep.subr.bf16.mxu0 %v1345
  %1722 = vmatpush1.bf16.msra.mxu0 %v1344
  %1723 = vmatprep.subr.bf16.mxu0 %v1353
  %1724 = vmatpush1.bf16.msra.mxu0 %v1352
  %1725 = vmatprep.subr.bf16.mxu0 %v1361
  %1726 = vmatpush1.bf16.msra.mxu0 %v1360
  %1727 = vmatprep.subr.bf16.mxu0 %v1369
  %1728 = vmatpush1.bf16.msra.mxu0 %v1368
  %1729 = vmatprep.subr.bf16.mxu0 %v1377
  %1730 = vmatpush1.bf16.msra.mxu0 %v1376
  %1731 = vmatprep.subr.bf16.mxu0 %v1385
  %1732 = vmatpush1.bf16.msra.mxu0 %v1384
  %1733 = vmatprep.subr.bf16.mxu0 %v1393
  %1734 = vmatpush1.bf16.msra.mxu0 %v1392
  %1735 = vmatprep.subr.bf16.mxu0 %v1401
  %1736 = vmatpush1.bf16.msra.mxu0 %v1400
  %1737 = vmatprep.mubr.bf16.mxu0 %v127
  %1738 = vmatmul.mubr.bf16.gmra.mrb[0].mxu0 %v126
  %v1739 = vpop.f32.mrb[0].mxu0
  %v1740 = vadd.f32 %v1699, %v1739
  %v1741 = vpop.f32.mrb[0].mxu0
  %v1742 = vadd.f32 %v1701, %v1741
  %v1743 = vpop.f32.mrb[0].mxu0
  %v1744 = vpop.f32.mrb[0].mxu0
  %1745 = vdwg.mxu0
  %1746 = vmatprep.subr.bf16.mxu0 %v1155
  %1747 = vmatpush1.bf16.msra.mxu0 %v1154
  %1748 = vmatprep.subr.bf16.mxu0 %v1163
  %1749 = vmatpush1.bf16.msra.mxu0 %v1162
  %1750 = vmatprep.subr.bf16.mxu0 %v1171
  %1751 = vmatpush1.bf16.msra.mxu0 %v1170
  %1752 = vmatprep.subr.bf16.mxu0 %v1179
  %1753 = vmatpush1.bf16.msra.mxu0 %v1178
  %1754 = vmatprep.subr.bf16.mxu0 %v1187
  %1755 = vmatpush1.bf16.msra.mxu0 %v1186
  %1756 = vmatprep.subr.bf16.mxu0 %v1195
  %1757 = vmatpush1.bf16.msra.mxu0 %v1194
  %1758 = vmatprep.subr.bf16.mxu0 %v1203
  %1759 = vmatpush1.bf16.msra.mxu0 %v1202
  %1760 = vmatprep.subr.bf16.mxu0 %v1211
  %1761 = vmatpush1.bf16.msra.mxu0 %v1210
  %1762 = vmatprep.subr.bf16.mxu0 %v1219
  %1763 = vmatpush1.bf16.msra.mxu0 %v1218
  %1764 = vmatprep.subr.bf16.mxu0 %v1227
  %1765 = vmatpush1.bf16.msra.mxu0 %v1226
  %1766 = vmatprep.subr.bf16.mxu0 %v1235
  %1767 = vmatpush1.bf16.msra.mxu0 %v1234
  %1768 = vmatprep.subr.bf16.mxu0 %v1243
  %1769 = vmatpush1.bf16.msra.mxu0 %v1242
  %1770 = vmatprep.subr.bf16.mxu0 %v1251
  %1771 = vmatpush1.bf16.msra.mxu0 %v1250
  %1772 = vmatprep.subr.bf16.mxu0 %v1259
  %1773 = vmatpush1.bf16.msra.mxu0 %v1258
  %1774 = vmatprep.subr.bf16.mxu0 %v1267
  %1775 = vmatpush1.bf16.msra.mxu0 %v1266
  %1776 = vmatprep.subr.bf16.mxu0 %v1275
  %1777 = vmatpush1.bf16.msra.mxu0 %v1274
  %1778 = vmatprep.mubr.bf16.mxu0 %v125
  %1779 = vmatmul.mubr.bf16.gmra.mrb[0].mxu0 %v124
  %v1780 = vpop.f32.mrb[0].mxu0
  %v1781 = vadd.f32 0.0, %v1780
  %v1782 = vpop.f32.mrb[0].mxu0
  %v1783 = vadd.f32 0.0, %v1782
  %v1784 = vpop.f32.mrb[0].mxu0
  %v1785 = vpop.f32.mrb[0].mxu0
  %1786 = vdwg.mxu0
  %1787 = vmatprep.subr.bf16.mxu0 %v1283
  %1788 = vmatpush1.bf16.msra.mxu0 %v1282
  %1789 = vmatprep.subr.bf16.mxu0 %v1291
  %1790 = vmatpush1.bf16.msra.mxu0 %v1290
  %1791 = vmatprep.subr.bf16.mxu0 %v1299
  %1792 = vmatpush1.bf16.msra.mxu0 %v1298
  %1793 = vmatprep.subr.bf16.mxu0 %v1307
  %1794 = vmatpush1.bf16.msra.mxu0 %v1306
  %1795 = vmatprep.subr.bf16.mxu0 %v1315
  %1796 = vmatpush1.bf16.msra.mxu0 %v1314
  %1797 = vmatprep.subr.bf16.mxu0 %v1323
  %1798 = vmatpush1.bf16.msra.mxu0 %v1322
  %1799 = vmatprep.subr.bf16.mxu0 %v1331
  %1800 = vmatpush1.bf16.msra.mxu0 %v1330
  %1801 = vmatprep.subr.bf16.mxu0 %v1339
  %1802 = vmatpush1.bf16.msra.mxu0 %v1338
  %1803 = vmatprep.subr.bf16.mxu0 %v1347
  %1804 = vmatpush1.bf16.msra.mxu0 %v1346
  %1805 = vmatprep.subr.bf16.mxu0 %v1355
  %1806 = vmatpush1.bf16.msra.mxu0 %v1354
  %1807 = vmatprep.subr.bf16.mxu0 %v1363
  %1808 = vmatpush1.bf16.msra.mxu0 %v1362
  %1809 = vmatprep.subr.bf16.mxu0 %v1371
  %1810 = vmatpush1.bf16.msra.mxu0 %v1370
  %1811 = vmatprep.subr.bf16.mxu0 %v1379
  %1812 = vmatpush1.bf16.msra.mxu0 %v1378
  %1813 = vmatprep.subr.bf16.mxu0 %v1387
  %1814 = vmatpush1.bf16.msra.mxu0 %v1386
  %1815 = vmatprep.subr.bf16.mxu0 %v1395
  %1816 = vmatpush1.bf16.msra.mxu0 %v1394
  %1817 = vmatprep.subr.bf16.mxu0 %v1403
  %1818 = vmatpush1.bf16.msra.mxu0 %v1402
  %1819 = vmatprep.mubr.bf16.mxu0 %v127
  %1820 = vmatmul.mubr.bf16.gmra.mrb[0].mxu0 %v126
  %v1821 = vpop.f32.mrb[0].mxu0
  %v1822 = vadd.f32 %v1781, %v1821
  %v1823 = vpop.f32.mrb[0].mxu0
  %v1824 = vadd.f32 %v1783, %v1823
  %v1825 = vpop.f32.mrb[0].mxu0
  %v1826 = vpop.f32.mrb[0].mxu0
  %1827 = vdwg.mxu0
  %1828 = vmatprep.subr.bf16.mxu0 %v1157
  %1829 = vmatpush1.bf16.msra.mxu0 %v1156
  %1830 = vmatprep.subr.bf16.mxu0 %v1165
  %1831 = vmatpush1.bf16.msra.mxu0 %v1164
  %1832 = vmatprep.subr.bf16.mxu0 %v1173
  %1833 = vmatpush1.bf16.msra.mxu0 %v1172
  %1834 = vmatprep.subr.bf16.mxu0 %v1181
  %1835 = vmatpush1.bf16.msra.mxu0 %v1180
  %1836 = vmatprep.subr.bf16.mxu0 %v1189
  %1837 = vmatpush1.bf16.msra.mxu0 %v1188
  %1838 = vmatprep.subr.bf16.mxu0 %v1197
  %1839 = vmatpush1.bf16.msra.mxu0 %v1196
  %1840 = vmatprep.subr.bf16.mxu0 %v1205
  %1841 = vmatpush1.bf16.msra.mxu0 %v1204
  %1842 = vmatprep.subr.bf16.mxu0 %v1213
  %1843 = vmatpush1.bf16.msra.mxu0 %v1212
  %1844 = vmatprep.subr.bf16.mxu0 %v1221
  %1845 = vmatpush1.bf16.msra.mxu0 %v1220
  %1846 = vmatprep.subr.bf16.mxu0 %v1229
  %1847 = vmatpush1.bf16.msra.mxu0 %v1228
  %1848 = vmatprep.subr.bf16.mxu0 %v1237
  %1849 = vmatpush1.bf16.msra.mxu0 %v1236
  %1850 = vmatprep.subr.bf16.mxu0 %v1245
  %1851 = vmatpush1.bf16.msra.mxu0 %v1244
  %1852 = vmatprep.subr.bf16.mxu0 %v1253
  %1853 = vmatpush1.bf16.msra.mxu0 %v1252
  %1854 = vmatprep.subr.bf16.mxu0 %v1261
  %1855 = vmatpush1.bf16.msra.mxu0 %v1260
  %1856 = vmatprep.subr.bf16.mxu0 %v1269
  %1857 = vmatpush1.bf16.msra.mxu0 %v1268
  %1858 = vmatprep.subr.bf16.mxu0 %v1277
  %1859 = vmatpush1.bf16.msra.mxu0 %v1276
  %1860 = vmatprep.mubr.bf16.mxu0 %v125
  %1861 = vmatmul.mubr.bf16.gmra.mrb[0].mxu0 %v124
  %v1862 = vpop.f32.mrb[0].mxu0
  %v1863 = vadd.f32 0.0, %v1862
  %v1864 = vpop.f32.mrb[0].mxu0
  %v1865 = vadd.f32 0.0, %v1864
  %v1866 = vpop.f32.mrb[0].mxu0
  %v1867 = vpop.f32.mrb[0].mxu0
  %1868 = vdwg.mxu0
  %1869 = vmatprep.subr.bf16.mxu0 %v1285
  %1870 = vmatpush1.bf16.msra.mxu0 %v1284
  %1871 = vmatprep.subr.bf16.mxu0 %v1293
  %1872 = vmatpush1.bf16.msra.mxu0 %v1292
  %1873 = vmatprep.subr.bf16.mxu0 %v1301
  %1874 = vmatpush1.bf16.msra.mxu0 %v1300
  %1875 = vmatprep.subr.bf16.mxu0 %v1309
  %1876 = vmatpush1.bf16.msra.mxu0 %v1308
  %1877 = vmatprep.subr.bf16.mxu0 %v1317
  %1878 = vmatpush1.bf16.msra.mxu0 %v1316
  %1879 = vmatprep.subr.bf16.mxu0 %v1325
  %1880 = vmatpush1.bf16.msra.mxu0 %v1324
  %1881 = vmatprep.subr.bf16.mxu0 %v1333
  %1882 = vmatpush1.bf16.msra.mxu0 %v1332
  %1883 = vmatprep.subr.bf16.mxu0 %v1341
  %1884 = vmatpush1.bf16.msra.mxu0 %v1340
  %1885 = vmatprep.subr.bf16.mxu0 %v1349
  %1886 = vmatpush1.bf16.msra.mxu0 %v1348
  %1887 = vmatprep.subr.bf16.mxu0 %v1357
  %1888 = vmatpush1.bf16.msra.mxu0 %v1356
  %1889 = vmatprep.subr.bf16.mxu0 %v1365
  %1890 = vmatpush1.bf16.msra.mxu0 %v1364
  %1891 = vmatprep.subr.bf16.mxu0 %v1373
  %1892 = vmatpush1.bf16.msra.mxu0 %v1372
  %1893 = vmatprep.subr.bf16.mxu0 %v1381
  %1894 = vmatpush1.bf16.msra.mxu0 %v1380
  %1895 = vmatprep.subr.bf16.mxu0 %v1389
  %1896 = vmatpush1.bf16.msra.mxu0 %v1388
  %1897 = vmatprep.subr.bf16.mxu0 %v1397
  %1898 = vmatpush1.bf16.msra.mxu0 %v1396
  %1899 = vmatprep.subr.bf16.mxu0 %v1405
  %1900 = vmatpush1.bf16.msra.mxu0 %v1404
  %1901 = vmatprep.mubr.bf16.mxu0 %v127
  %1902 = vmatmul.mubr.bf16.gmra.mrb[0].mxu0 %v126
  %v1903 = vpop.f32.mrb[0].mxu0
  %v1904 = vadd.f32 %v1863, %v1903
  %v1905 = vpop.f32.mrb[0].mxu0
  %v1906 = vadd.f32 %v1865, %v1905
  %v1907 = vpop.f32.mrb[0].mxu0
  %v1908 = vpop.f32.mrb[0].mxu0
  %1909 = vdwg.mxu0
  %1910 = vmatprep.subr.bf16.mxu0 %v1159
  %1911 = vmatpush1.bf16.msra.mxu0 %v1158
  %1912 = vmatprep.subr.bf16.mxu0 %v1167
  %1913 = vmatpush1.bf16.msra.mxu0 %v1166
  %1914 = vmatprep.subr.bf16.mxu0 %v1175
  %1915 = vmatpush1.bf16.msra.mxu0 %v1174
  %1916 = vmatprep.subr.bf16.mxu0 %v1183
  %1917 = vmatpush1.bf16.msra.mxu0 %v1182
  %1918 = vmatprep.subr.bf16.mxu0 %v1191
  %1919 = vmatpush1.bf16.msra.mxu0 %v1190
  %1920 = vmatprep.subr.bf16.mxu0 %v1199
  %1921 = vmatpush1.bf16.msra.mxu0 %v1198
  %1922 = vmatprep.subr.bf16.mxu0 %v1207
  %1923 = vmatpush1.bf16.msra.mxu0 %v1206
  %1924 = vmatprep.subr.bf16.mxu0 %v1215
  %1925 = vmatpush1.bf16.msra.mxu0 %v1214
  %1926 = vmatprep.subr.bf16.mxu0 %v1223
  %1927 = vmatpush1.bf16.msra.mxu0 %v1222
  %1928 = vmatprep.subr.bf16.mxu0 %v1231
  %1929 = vmatpush1.bf16.msra.mxu0 %v1230
  %1930 = vmatprep.subr.bf16.mxu0 %v1239
  %1931 = vmatpush1.bf16.msra.mxu0 %v1238
  %1932 = vmatprep.subr.bf16.mxu0 %v1247
  %1933 = vmatpush1.bf16.msra.mxu0 %v1246
  %1934 = vmatprep.subr.bf16.mxu0 %v1255
  %1935 = vmatpush1.bf16.msra.mxu0 %v1254
  %1936 = vmatprep.subr.bf16.mxu0 %v1263
  %1937 = vmatpush1.bf16.msra.mxu0 %v1262
  %1938 = vmatprep.subr.bf16.mxu0 %v1271
  %1939 = vmatpush1.bf16.msra.mxu0 %v1270
  %1940 = vmatprep.subr.bf16.mxu0 %v1279
  %1941 = vmatpush1.bf16.msra.mxu0 %v1278
  %1942 = vmatprep.mubr.bf16.mxu0 %v125
  %1943 = vmatmul.mubr.bf16.gmra.mrb[0].mxu0 %v124
  %v1944 = vpop.f32.mrb[0].mxu0
  %v1945 = vadd.f32 0.0, %v1944
  %v1946 = vpop.f32.mrb[0].mxu0
  %v1947 = vadd.f32 0.0, %v1946
  %v1948 = vpop.f32.mrb[0].mxu0
  %v1949 = vpop.f32.mrb[0].mxu0
  %1950 = vdwg.mxu0
  %1951 = vmatprep.subr.bf16.mxu0 %v1287
  %1952 = vmatpush1.bf16.msra.mxu0 %v1286
  %1953 = vmatprep.subr.bf16.mxu0 %v1295
  %1954 = vmatpush1.bf16.msra.mxu0 %v1294
  %1955 = vmatprep.subr.bf16.mxu0 %v1303
  %1956 = vmatpush1.bf16.msra.mxu0 %v1302
  %1957 = vmatprep.subr.bf16.mxu0 %v1311
  %1958 = vmatpush1.bf16.msra.mxu0 %v1310
  %1959 = vmatprep.subr.bf16.mxu0 %v1319
  %1960 = vmatpush1.bf16.msra.mxu0 %v1318
  %1961 = vmatprep.subr.bf16.mxu0 %v1327
  %1962 = vmatpush1.bf16.msra.mxu0 %v1326
  %1963 = vmatprep.subr.bf16.mxu0 %v1335
  %1964 = vmatpush1.bf16.msra.mxu0 %v1334
  %1965 = vmatprep.subr.bf16.mxu0 %v1343
  %1966 = vmatpush1.bf16.msra.mxu0 %v1342
  %1967 = vmatprep.subr.bf16.mxu0 %v1351
  %1968 = vmatpush1.bf16.msra.mxu0 %v1350
  %1969 = vmatprep.subr.bf16.mxu0 %v1359
  %1970 = vmatpush1.bf16.msra.mxu0 %v1358
  %1971 = vmatprep.subr.bf16.mxu0 %v1367
  %1972 = vmatpush1.bf16.msra.mxu0 %v1366
  %1973 = vmatprep.subr.bf16.mxu0 %v1375
  %1974 = vmatpush1.bf16.msra.mxu0 %v1374
  %1975 = vmatprep.subr.bf16.mxu0 %v1383
  %1976 = vmatpush1.bf16.msra.mxu0 %v1382
  %1977 = vmatprep.subr.bf16.mxu0 %v1391
  %1978 = vmatpush1.bf16.msra.mxu0 %v1390
  %1979 = vmatprep.subr.bf16.mxu0 %v1399
  %1980 = vmatpush1.bf16.msra.mxu0 %v1398
  %1981 = vmatprep.subr.bf16.mxu0 %v1407
  %1982 = vmatpush1.bf16.msra.mxu0 %v1406
  %1983 = vmatprep.mubr.bf16.mxu0 %v127
  %1984 = vmatmul.mubr.bf16.gmra.mrb[0].mxu0 %v126
  %v1985 = vpop.f32.mrb[0].mxu0
  %v1986 = vadd.f32 %v1945, %v1985
  %v1987 = vpop.f32.mrb[0].mxu0
  %v1988 = vadd.f32 %v1947, %v1987
  %v1989 = vpop.f32.mrb[0].mxu0
  %v1990 = vpop.f32.mrb[0].mxu0
  %1991 = vdwg.mxu0
  %v2000 = vcombine.low %v1740, %v1742
  %v2001 = vcombine.low %v1822, %v1824
  %v2003 = vunpack.c.l.s4 1983009808
  %v2004 = vunpack.c.0.s8 %v2003
  %v2005 = vlaneseq
  %v2006 = vshrl.u32 %v2005, 7
  %v2007 = vsub.s32 %v2004, %v2006
  %v2008 = vrot.slane %v2000, %v2007
  %v2010 = vunpack.c.l.s4 1983009808
  %v2011 = vunpack.c.0.s8 %v2010
  %v2012 = vlaneseq
  %v2013 = vshrl.u32 %v2012, 7
  %v2014 = vsub.s32 %v2011, %v2013
  %v2015 = vrot.slane %v2001, %v2014
  %v2016 = vcombine.low %v2008, %v2015
  %v2017 = vcombine.low %v1904, %v1906
  %v2018 = vcombine.low %v1986, %v1988
  %v2020 = vunpack.c.l.s4 1983009808
  %v2021 = vunpack.c.0.s8 %v2020
  %v2022 = vlaneseq
  %v2023 = vshrl.u32 %v2022, 7
  %v2024 = vsub.s32 %v2021, %v2023
  %v2025 = vrot.slane %v2017, %v2024
  %v2027 = vunpack.c.l.s4 1983009808
  %v2028 = vunpack.c.0.s8 %v2027
  %v2029 = vlaneseq
  %v2030 = vshrl.u32 %v2029, 7
  %v2031 = vsub.s32 %v2028, %v2030
  %v2032 = vrot.slane %v2018, %v2031
  %v2033 = vcombine.low %v2025, %v2032
  %2036 = vst [vmem:[%s4] sm:$0xff] %v2016
  %2037 = vst [vmem:[%s4 + $0x8] sm:$0xff] %v2033
  %v2038 = vld [vmem:[%s5] sm:$0xff]
  %vm2039 = vcmask 1041408
  %v2040 = vsel %vm2039, %v1740, 0.0
  %v2041 = vrot.slane %v2040, 4
  %v2042 = vadd.f32 %v2040, %v2041
  %v2043 = vrot.slane %v2042, 2
  %v2044 = vadd.f32 %v2042, %v2043
  %v2045 = vrot.slane %v2044, 1
  %v2046 = vadd.f32 %v2044, %v2045
  %v2047 = vsel %vm2039, %v1742, 0.0
  %v2048 = vrot.slane %v2047, 4
  %v2049 = vadd.f32 %v2047, %v2048
  %v2050 = vrot.slane %v2049, 2
  %v2051 = vadd.f32 %v2049, %v2050
  %v2052 = vrot.slane %v2051, 1
  %v2053 = vadd.f32 %v2051, %v2052
  %v2054 = vsel %vm2039, %v1822, 0.0
  %v2055 = vrot.slane %v2054, 4
  %v2056 = vadd.f32 %v2054, %v2055
  %v2057 = vrot.slane %v2056, 2
  %v2058 = vadd.f32 %v2056, %v2057
  %v2059 = vrot.slane %v2058, 1
  %v2060 = vadd.f32 %v2058, %v2059
  %v2061 = vsel %vm2039, %v1824, 0.0
  %v2062 = vrot.slane %v2061, 4
  %v2063 = vadd.f32 %v2061, %v2062
  %v2064 = vrot.slane %v2063, 2
  %v2065 = vadd.f32 %v2063, %v2064
  %v2066 = vrot.slane %v2065, 1
  %v2067 = vadd.f32 %v2065, %v2066
  %v2068 = vsel %vm2039, %v1904, 0.0
  %v2069 = vrot.slane %v2068, 4
  %v2070 = vadd.f32 %v2068, %v2069
  %v2071 = vrot.slane %v2070, 2
  %v2072 = vadd.f32 %v2070, %v2071
  %v2073 = vrot.slane %v2072, 1
  %v2074 = vadd.f32 %v2072, %v2073
  %v2075 = vsel %vm2039, %v1906, 0.0
  %v2076 = vrot.slane %v2075, 4
  %v2077 = vadd.f32 %v2075, %v2076
  %v2078 = vrot.slane %v2077, 2
  %v2079 = vadd.f32 %v2077, %v2078
  %v2080 = vrot.slane %v2079, 1
  %v2081 = vadd.f32 %v2079, %v2080
  %v2082 = vsel %vm2039, %v1986, 0.0
  %v2083 = vrot.slane %v2082, 4
  %v2084 = vadd.f32 %v2082, %v2083
  %v2085 = vrot.slane %v2084, 2
  %v2086 = vadd.f32 %v2084, %v2085
  %v2087 = vrot.slane %v2086, 1
  %v2088 = vadd.f32 %v2086, %v2087
  %v2089 = vsel %vm2039, %v1988, 0.0
  %v2090 = vrot.slane %v2089, 4
  %v2091 = vadd.f32 %v2089, %v2090
  %v2092 = vrot.slane %v2091, 2
  %v2093 = vadd.f32 %v2091, %v2092
  %v2094 = vrot.slane %v2093, 1
  %v2095 = vadd.f32 %v2093, %v2094
  %v2104 = vcombine.low %v2046, %v2053
  %v2105 = vcombine.low %v2060, %v2067
  %v2106 = vcombine.low %v2074, %v2081
  %v2107 = vcombine.low %v2088, %v2095
  %v2109 = vunpack.c.l.s4 1966171168
  %v2110 = vunpack.c.0.s8 %v2109
  %v2111 = vlaneseq
  %v2112 = vshrl.u32 %v2111, 7
  %v2113 = vsub.s32 %v2110, %v2112
  %v2114 = vrot.slane %v2104, %v2113
  %v2116 = vunpack.c.l.s4 1966171168
  %v2117 = vunpack.c.0.s8 %v2116
  %v2118 = vlaneseq
  %v2119 = vshrl.u32 %v2118, 7
  %v2120 = vsub.s32 %v2117, %v2119
  %v2121 = vrot.slane %v2105, %v2120
  %v2123 = vunpack.c.l.s4 1966171168
  %v2124 = vunpack.c.0.s8 %v2123
  %v2125 = vlaneseq
  %v2126 = vshrl.u32 %v2125, 7
  %v2127 = vsub.s32 %v2124, %v2126
  %v2128 = vrot.slane %v2106, %v2127
  %v2130 = vunpack.c.l.s4 1966171168
  %v2131 = vunpack.c.0.s8 %v2130
  %v2132 = vlaneseq
  %v2133 = vshrl.u32 %v2132, 7
  %v2134 = vsub.s32 %v2131, %v2133
  %v2135 = vrot.slane %v2107, %v2134
  %v2136 = vcombine.low %v2114, %v2121
  %v2137 = vcombine.low %v2128, %v2135
  %v2139 = vunpack.c.l.s4 1966171168
  %v2140 = vunpack.c.0.s8 %v2139
  %v2141 = vlaneseq
  %v2142 = vshrl.u32 %v2141, 7
  %v2143 = vsub.s32 %v2140, %v2142
  %v2144 = vrot.slane %v2136, %v2143
  %v2146 = vunpack.c.l.s4 1966171168
  %v2147 = vunpack.c.0.s8 %v2146
  %v2148 = vlaneseq
  %v2149 = vshrl.u32 %v2148, 7
  %v2150 = vsub.s32 %v2147, %v2149
  %v2151 = vrot.slane %v2137, %v2150
  %v2152 = vcombine.low %v2144, %v2151
  %v2154 = vadd.f32 %v2038, %v2152
  %2155 = vst [vmem:[%s5] sm:$0xff] %v2154
  %v2156 = vld [vmem:[%s6] sm:$0xff]
  %v2157 = vmul.f32 %v1740, %v1740
  %v2158 = vmul.f32 %v1742, %v1742
  %v2159 = vmul.f32 %v1822, %v1822
  %v2160 = vmul.f32 %v1824, %v1824
  %v2161 = vmul.f32 %v1904, %v1904
  %v2162 = vmul.f32 %v1906, %v1906
  %v2163 = vmul.f32 %v1986, %v1986
  %v2164 = vmul.f32 %v1988, %v1988
  %v2165 = vsel %vm2039, %v2157, 0.0
  %v2166 = vrot.slane %v2165, 4
  %v2167 = vadd.f32 %v2165, %v2166
  %v2168 = vrot.slane %v2167, 2
  %v2169 = vadd.f32 %v2167, %v2168
  %v2170 = vrot.slane %v2169, 1
  %v2171 = vadd.f32 %v2169, %v2170
  %v2172 = vsel %vm2039, %v2158, 0.0
  %v2173 = vrot.slane %v2172, 4
  %v2174 = vadd.f32 %v2172, %v2173
  %v2175 = vrot.slane %v2174, 2
  %v2176 = vadd.f32 %v2174, %v2175
  %v2177 = vrot.slane %v2176, 1
  %v2178 = vadd.f32 %v2176, %v2177
  %v2179 = vsel %vm2039, %v2159, 0.0
  %v2180 = vrot.slane %v2179, 4
  %v2181 = vadd.f32 %v2179, %v2180
  %v2182 = vrot.slane %v2181, 2
  %v2183 = vadd.f32 %v2181, %v2182
  %v2184 = vrot.slane %v2183, 1
  %v2185 = vadd.f32 %v2183, %v2184
  %v2186 = vsel %vm2039, %v2160, 0.0
  %v2187 = vrot.slane %v2186, 4
  %v2188 = vadd.f32 %v2186, %v2187
  %v2189 = vrot.slane %v2188, 2
  %v2190 = vadd.f32 %v2188, %v2189
  %v2191 = vrot.slane %v2190, 1
  %v2192 = vadd.f32 %v2190, %v2191
  %v2193 = vsel %vm2039, %v2161, 0.0
  %v2194 = vrot.slane %v2193, 4
  %v2195 = vadd.f32 %v2193, %v2194
  %v2196 = vrot.slane %v2195, 2
  %v2197 = vadd.f32 %v2195, %v2196
  %v2198 = vrot.slane %v2197, 1
  %v2199 = vadd.f32 %v2197, %v2198
  %v2200 = vsel %vm2039, %v2162, 0.0
  %v2201 = vrot.slane %v2200, 4
  %v2202 = vadd.f32 %v2200, %v2201
  %v2203 = vrot.slane %v2202, 2
  %v2204 = vadd.f32 %v2202, %v2203
  %v2205 = vrot.slane %v2204, 1
  %v2206 = vadd.f32 %v2204, %v2205
  %v2207 = vsel %vm2039, %v2163, 0.0
  %v2208 = vrot.slane %v2207, 4
  %v2209 = vadd.f32 %v2207, %v2208
  %v2210 = vrot.slane %v2209, 2
  %v2211 = vadd.f32 %v2209, %v2210
  %v2212 = vrot.slane %v2211, 1
  %v2213 = vadd.f32 %v2211, %v2212
  %v2214 = vsel %vm2039, %v2164, 0.0
  %v2215 = vrot.slane %v2214, 4
  %v2216 = vadd.f32 %v2214, %v2215
  %v2217 = vrot.slane %v2216, 2
  %v2218 = vadd.f32 %v2216, %v2217
  %v2219 = vrot.slane %v2218, 1
  %v2220 = vadd.f32 %v2218, %v2219
  %v2229 = vcombine.low %v2171, %v2178
  %v2230 = vcombine.low %v2185, %v2192
  %v2231 = vcombine.low %v2199, %v2206
  %v2232 = vcombine.low %v2213, %v2220
  %v2234 = vunpack.c.l.s4 1966171168
  %v2235 = vunpack.c.0.s8 %v2234
  %v2236 = vlaneseq
  %v2237 = vshrl.u32 %v2236, 7
  %v2238 = vsub.s32 %v2235, %v2237
  %v2239 = vrot.slane %v2229, %v2238
  %v2241 = vunpack.c.l.s4 1966171168
  %v2242 = vunpack.c.0.s8 %v2241
  %v2243 = vlaneseq
  %v2244 = vshrl.u32 %v2243, 7
  %v2245 = vsub.s32 %v2242, %v2244
  %v2246 = vrot.slane %v2230, %v2245
  %v2248 = vunpack.c.l.s4 1966171168
  %v2249 = vunpack.c.0.s8 %v2248
  %v2250 = vlaneseq
  %v2251 = vshrl.u32 %v2250, 7
  %v2252 = vsub.s32 %v2249, %v2251
  %v2253 = vrot.slane %v2231, %v2252
  %v2255 = vunpack.c.l.s4 1966171168
  %v2256 = vunpack.c.0.s8 %v2255
  %v2257 = vlaneseq
  %v2258 = vshrl.u32 %v2257, 7
  %v2259 = vsub.s32 %v2256, %v2258
  %v2260 = vrot.slane %v2232, %v2259
  %v2261 = vcombine.low %v2239, %v2246
  %v2262 = vcombine.low %v2253, %v2260
  %v2264 = vunpack.c.l.s4 1966171168
  %v2265 = vunpack.c.0.s8 %v2264
  %v2266 = vlaneseq
  %v2267 = vshrl.u32 %v2266, 7
  %v2268 = vsub.s32 %v2265, %v2267
  %v2269 = vrot.slane %v2261, %v2268
  %v2271 = vunpack.c.l.s4 1966171168
  %v2272 = vunpack.c.0.s8 %v2271
  %v2273 = vlaneseq
  %v2274 = vshrl.u32 %v2273, 7
  %v2275 = vsub.s32 %v2272, %v2274
  %v2276 = vrot.slane %v2262, %v2275
  %v2277 = vcombine.low %v2269, %v2276
  %v2279 = vadd.f32 %v2156, %v2277
  %2280 = vst [vmem:[%s6] sm:$0xff] %v2279
  // Predicated region
  $region22: #{mnet_forward.22} parent=0 // pred_check
    _
  $region23: #{mnet_forward.22} parent=0 // pred_check_branch
    %2282 = sbr.rel (0) target = $region25
  $region24: #{mnet_forward.22} parent=0 // pred_region
    _
  $region25: #{mnet_forward.22} parent=0 // pred_fallthru
    _
  // Predicated region
  $region26: #{mnet_forward.22} parent=0 // pred_check
    _
  $region27: #{mnet_forward.22} parent=0 // pred_check_branch
    %2284 = sbr.rel (0) target = $region29
  $region28: #{mnet_forward.22} parent=0 // pred_region
    _
  $region29: #{mnet_forward.22} parent=0 // pred_fallthru
    _
  // Predicated region
  $region30: #{mnet_forward.22} parent=0 // pred_check
    _
  $region31: #{mnet_forward.22} parent=0 // pred_check_branch
    %2286 = sbr.rel (0) target = $region33
  $region32: #{mnet_forward.22} parent=0 // pred_region
    _
  $region33: #{mnet_forward.22} parent=0 // pred_fallthru
    _
  // Predicated region
  $region34: #{mnet_forward.22} parent=0 // pred_check
    _
  $region35: #{mnet_forward.22} parent=0 // pred_check_branch
    %2288 = sbr.rel (0) target = $region37
  $region36: #{mnet_forward.22} parent=0 // pred_region
    _
  $region37: #{mnet_forward.22} parent=0 // pred_fallthru
    _
  // Predicated region
  $region38: #{mnet_forward.22} parent=0 // pred_check
    _
  $region39: #{mnet_forward.22} parent=0 // pred_check_branch
    %2290 = sbr.rel (0) target = $region41
  $region40: #{mnet_forward.22} parent=0 // pred_region
    _
  $region41: #{mnet_forward.22} parent=0 // pred_fallthru
    _
  // Predicated region
  $region42: #{mnet_forward.22} parent=0 // pred_check
    _
  $region43: #{mnet_forward.22} parent=0 // pred_check_branch
    %2292 = sbr.rel (0) target = $region45
  $region44: #{mnet_forward.22} parent=0 // pred_region
    _
  $region45: #{mnet_forward.22} parent=0 // pred_fallthru
    _

</llo_original>
